<compile_context>
chip_gen: v5e
topology: v5e:2x2
jax: 0.10.0
libtpu: 0.0.40
codegen_flags: <defaults>
</compile_context>

<pallas_src>
import jax
import jax.numpy as jnp
from jax import lax
from jax.experimental import pallas as pl
from jax.experimental.pallas import tpu as pltpu

EPS = 1e-5
CLASS_PAD = 128  # pad num_classes (27) to one full lane width for a dense store


def fusion_kernel(x_ref, w1_ref, b1_ref, g1_ref, be1_ref,
                  w2_ref, b2_ref, g2_ref, be2_ref,
                  w3_ref, b3_ref, out_ref, acc_ref):
    k = pl.program_id(0)

    @pl.when(k == 0)
    def _():
        acc_ref[...] = jnp.zeros_like(acc_ref)

    # K-tiled first linear layer: bf16 operands, f32 MXU accumulation into a
    # resident VMEM scratch.
    acc_ref[...] += jnp.dot(x_ref[...], w1_ref[...],
                            preferred_element_type=jnp.float32)

    @pl.when(k == pl.num_programs(0) - 1)
    def _():
        # Linear1 bias + ReLU (f32)
        h1 = jnp.maximum(acc_ref[...] + b1_ref[...], 0.0)
        # BatchNorm1d(1024), training-mode batch statistics (biased variance)
        m1 = jnp.mean(h1, axis=0, keepdims=True)
        v1 = jnp.mean((h1 - m1) ** 2, axis=0, keepdims=True)
        h1 = (h1 - m1) * lax.rsqrt(v1 + EPS) * g1_ref[...] + be1_ref[...]
        # Linear2 + ReLU: bf16 operands (W2 pre-cast), f32 accumulation
        h2 = jnp.dot(h1.astype(jnp.bfloat16), w2_ref[...],
                     preferred_element_type=jnp.float32) + b2_ref[...]
        h2 = jnp.maximum(h2, 0.0)
        # BatchNorm1d(512)
        m2 = jnp.mean(h2, axis=0, keepdims=True)
        v2 = jnp.mean((h2 - m2) ** 2, axis=0, keepdims=True)
        h2 = (h2 - m2) * lax.rsqrt(v2 + EPS) * g2_ref[...] + be2_ref[...]
        # Linear3 (classes zero-padded to 128 lanes -> unmasked lane-dense store)
        out_ref[...] = jnp.dot(h2.astype(jnp.bfloat16), w3_ref[...],
                               preferred_element_type=jnp.float32) + b3_ref[...]


def prepare_params(params):
    """One-time parameter preparation (hoisted OUT of the per-call hot path):
    bf16-cast the streamed weight matrices and zero-pad the class dim."""
    w1, b1, g1, be1, w2, b2, g2, be2, w3, b3 = params
    H2, C = w3.shape
    w3p = jnp.zeros((H2, CLASS_PAD), jnp.bfloat16).at[:, :C].set(
        w3.astype(jnp.bfloat16))
    b3p = jnp.zeros((1, CLASS_PAD), jnp.float32).at[:, :C].set(b3)
    prepped = (w1.astype(jnp.bfloat16), b1, g1, be1,
               w2.astype(jnp.bfloat16), b2, g2, be2, w3p, b3p)
    return prepped, C


def fusion_classifier(x_bf16, prepped, num_classes, *, tk=1536):
    """x_bf16: [B, input_dim] bf16 activations (cast once by the caller)."""
    B, K = x_bf16.shape
    w1, b1, g1, be1, w2, b2, g2, be2, w3p, b3p = prepped
    H1 = w1.shape[1]
    H2 = w2.shape[1]

    assert K % tk == 0, "input_dim must be divisible by the K tile"
    grid = (K // tk,)

    out = pl.pallas_call(
        fusion_kernel,
        out_shape=jax.ShapeDtypeStruct((B, CLASS_PAD), jnp.float32),
        grid_spec=pltpu.PrefetchScalarGridSpec(
            num_scalar_prefetch=0,
            grid=grid,
            in_specs=[
                pl.BlockSpec((B, tk), lambda k: (0, k)),          # x tile (bf16)
                pl.BlockSpec((tk, H1), lambda k: (k, 0)),         # W1 tile (bf16)
                pl.BlockSpec((1, H1), lambda k: (0, 0)),          # b1
                pl.BlockSpec((1, H1), lambda k: (0, 0)),          # gamma1
                pl.BlockSpec((1, H1), lambda k: (0, 0)),          # beta1
                pl.BlockSpec((H1, H2), lambda k: (0, 0)),         # W2 (bf16)
                pl.BlockSpec((1, H2), lambda k: (0, 0)),          # b2
                pl.BlockSpec((1, H2), lambda k: (0, 0)),          # gamma2
                pl.BlockSpec((1, H2), lambda k: (0, 0)),          # beta2
                pl.BlockSpec((H2, CLASS_PAD), lambda k: (0, 0)),  # W3 (bf16, padded)
                pl.BlockSpec((1, CLASS_PAD), lambda k: (0, 0)),   # b3 (padded)
            ],
            out_specs=pl.BlockSpec((B, CLASS_PAD), lambda k: (0, 0)),
            scratch_shapes=[pltpu.VMEM((B, H1), jnp.float32)],
        ),
        compiler_params=pltpu.CompilerParams(
            dimension_semantics=("arbitrary",),
            vmem_limit_bytes=32 * 1024 * 1024,
        ),
    )(x_bf16, w1, b1, g1, be1, w2, b2, g2, be2, w3p, b3p)

    return out[:, :num_classes]


def init_linear(key, fan_in, fan_out):
    # PyTorch nn.Linear default init: U(-1/sqrt(fan_in), 1/sqrt(fan_in))
    kw, kb = jax.random.split(key)
    bound = 1.0 / (fan_in ** 0.5)
    w = jax.random.uniform(kw, (fan_in, fan_out), jnp.float32, -bound, bound)
    b = jax.random.uniform(kb, (1, fan_out), jnp.float32, -bound, bound)
    return w, b


def reference(x, params):
    """Pure-JAX reference applying the same deliberate bf16 quantization of the
    three matmuls (f32 accumulation); BN and everything else in f32."""
    w1, b1, g1, be1, w2, b2, g2, be2, w3, b3 = params

    def bn(h, g, be):
        m = jnp.mean(h, axis=0, keepdims=True)
        v = jnp.mean((h - m) ** 2, axis=0, keepdims=True)
        return (h - m) * lax.rsqrt(v + EPS) * g + be

    h = jnp.dot(x.astype(jnp.bfloat16), w1.astype(jnp.bfloat16),
                preferred_element_type=jnp.float32) + b1
    h = bn(jnp.maximum(h, 0.0), g1, be1)
    h = jnp.dot(h.astype(jnp.bfloat16), w2.astype(jnp.bfloat16),
                preferred_element_type=jnp.float32) + b2
    h = bn(jnp.maximum(h, 0.0), g2, be2)
    return jnp.dot(h.astype(jnp.bfloat16), w3.astype(jnp.bfloat16),
                   preferred_element_type=jnp.float32) + b3


if __name__ == "__main__":
    B = 8
    INPUT_DIM = 6144
    H1, H2, NUM_CLASSES = 1024, 512, 27

    root = jax.random.PRNGKey(0)
    kx, k1, k2, k3 = jax.random.split(root, 4)

    x = jax.random.normal(kx, (B, INPUT_DIM), jnp.float32)

    w1, b1 = init_linear(k1, INPUT_DIM, H1)
    w2, b2 = init_linear(k2, H1, H2)
    w3, b3 = init_linear(k3, H2, NUM_CLASSES)
    # BatchNorm1d affine params: PyTorch init (gamma=1, beta=0)
    g1, be1 = jnp.ones((1, H1), jnp.float32), jnp.zeros((1, H1), jnp.float32)
    g2, be2 = jnp.ones((1, H2), jnp.float32), jnp.zeros((1, H2), jnp.float32)

    params = (w1, b1, g1, be1, w2, b2, g2, be2, w3, b3)

    # One-time prep, hoisted out of the hot path; block so the casts/padding
    # can never be re-done inside the per-call region.
    prepped, num_classes = prepare_params(params)
    prepped = jax.block_until_ready(prepped)
    x_bf16 = jax.block_until_ready(x.astype(jnp.bfloat16))

    out = fusion_classifier(x_bf16, prepped, num_classes)
    out = jax.block_until_ready(out)

    ref = reference(x, params)
    assert out.shape == (B, NUM_CLASSES), out.shape
    assert jnp.allclose(out, ref, rtol=2e-2, atol=2e-2), "mismatch vs. reference"

    print("KERNEL_OK")
</pallas_src>

<mosaic_0001>
module attributes {stable_mosaic.version = 11 : i64} {
  func.func @fusion_kernel(%arg0: i32, %arg1: memref<8x1536xbf16, #tpu.memory_space<vmem>>, %arg2: memref<1536x1024xbf16, #tpu.memory_space<vmem>>, %arg3: memref<1x1024xf32, #tpu.memory_space<vmem>>, %arg4: memref<1x1024xf32, #tpu.memory_space<vmem>>, %arg5: memref<1x1024xf32, #tpu.memory_space<vmem>>, %arg6: memref<1024x512xbf16, #tpu.memory_space<vmem>>, %arg7: memref<1x512xf32, #tpu.memory_space<vmem>>, %arg8: memref<1x512xf32, #tpu.memory_space<vmem>>, %arg9: memref<1x512xf32, #tpu.memory_space<vmem>>, %arg10: memref<512x128xbf16, #tpu.memory_space<vmem>>, %arg11: memref<1x128xf32, #tpu.memory_space<vmem>>, %arg12: memref<8x128xf32, #tpu.memory_space<vmem>>, %arg13: memref<8x1024xf32, #tpu.memory_space<vmem>>) attributes {dimension_semantics = [#tpu.dimension_semantics<arbitrary>], iteration_bounds = array<i64: 4>, scalar_prefetch = 0 : i64, scratch_operands = 1 : i64, tpu.core_type = #tpu.core_type<tc>, window_params = [{transform_indices = @transform_0, window_bounds = array<i64: 8, 1536>}, {transform_indices = @transform_1, window_bounds = array<i64: 1536, 1024>}, {pipeline_mode = #tpu.pipeline_mode<synchronous>, transform_indices = @transform_2, window_bounds = array<i64: 1, 1024>}, {pipeline_mode = #tpu.pipeline_mode<synchronous>, transform_indices = @transform_3, window_bounds = array<i64: 1, 1024>}, {pipeline_mode = #tpu.pipeline_mode<synchronous>, transform_indices = @transform_4, window_bounds = array<i64: 1, 1024>}, {pipeline_mode = #tpu.pipeline_mode<synchronous>, transform_indices = @transform_5, window_bounds = array<i64: 1024, 512>}, {pipeline_mode = #tpu.pipeline_mode<synchronous>, transform_indices = @transform_6, window_bounds = array<i64: 1, 512>}, {pipeline_mode = #tpu.pipeline_mode<synchronous>, transform_indices = @transform_7, window_bounds = array<i64: 1, 512>}, {pipeline_mode = #tpu.pipeline_mode<synchronous>, transform_indices = @transform_8, window_bounds = array<i64: 1, 512>}, {pipeline_mode = #tpu.pipeline_mode<synchronous>, transform_indices = @transform_9, window_bounds = array<i64: 512, 128>}, {pipeline_mode = #tpu.pipeline_mode<synchronous>, transform_indices = @transform_10, window_bounds = array<i64: 1, 128>}, {pipeline_mode = #tpu.pipeline_mode<synchronous>, transform_indices = @transform_11, window_bounds = array<i64: 8, 128>}]} {
    %c0_i32 = arith.constant 0 : i32
    %0 = arith.cmpi eq, %arg0, %c0_i32 : i32
    %1 = arith.extui %0 : i1 to i32
    %c0_i32_0 = arith.constant 0 : i32
    %2 = arith.cmpi ne, %1, %c0_i32_0 : i32
    scf.if %2 {
      %cst_9 = arith.constant 0.000000e+00 : f32
      %12 = vector.broadcast %cst_9 : f32 to vector<8x1024xf32>
      %c0_10 = arith.constant 0 : index
      %c0_11 = arith.constant 0 : index
      %13 = vector.load %arg13[%c0_10, %c0_11] : memref<8x1024xf32, #tpu.memory_space<vmem>>, vector<8x1024xf32>
      tpu.vector_store %arg13[%c0_10, %c0_11], %12 {strides = array<i32>} : memref<8x1024xf32, #tpu.memory_space<vmem>>, vector<8x1024xf32>,
    } else {
    }
    %c0 = arith.constant 0 : index
    %c0_1 = arith.constant 0 : index
    %3 = vector.load %arg13[%c0, %c0_1] : memref<8x1024xf32, #tpu.memory_space<vmem>>, vector<8x1024xf32>
    %c0_2 = arith.constant 0 : index
    %c0_3 = arith.constant 0 : index
    %4 = vector.load %arg1[%c0_2, %c0_3] : memref<8x1536xbf16, #tpu.memory_space<vmem>>, vector<8x1536xbf16>
    %c0_4 = arith.constant 0 : index
    %c0_5 = arith.constant 0 : index
    %5 = vector.load %arg2[%c0_4, %c0_5] : memref<1536x1024xbf16, #tpu.memory_space<vmem>>, vector<1536x1024xbf16>
    %cst = arith.constant dense<0.000000e+00> : vector<8x1024xf32>
    %6 = tpu.matmul %4, %5, %cst {dimension_numbers = #tpu.dot_dimension_numbers<[1], [0], [0], [1], [0, 0, 1, 1], [], []>} : vector<8x1536xbf16>, vector<1536x1024xbf16>, vector<8x1024xf32> -> vector<8x1024xf32>
    %7 = arith.addf %3, %6 : vector<8x1024xf32>
    %c0_6 = arith.constant 0 : index
    %c0_7 = arith.constant 0 : index
    %8 = vector.load %arg13[%c0_6, %c0_7] : memref<8x1024xf32, #tpu.memory_space<vmem>>, vector<8x1024xf32>
    tpu.vector_store %arg13[%c0_6, %c0_7], %7 {strides = array<i32>} : memref<8x1024xf32, #tpu.memory_space<vmem>>, vector<8x1024xf32>,
    %c3_i32 = arith.constant 3 : i32
    %9 = arith.cmpi eq, %arg0, %c3_i32 : i32
    %10 = arith.extui %9 : i1 to i32
    %c0_i32_8 = arith.constant 0 : i32
    %11 = arith.cmpi ne, %10, %c0_i32_8 : i32
    scf.if %11 {
      %c0_9 = arith.constant 0 : index
      %c0_10 = arith.constant 0 : index
      %12 = vector.load %arg13[%c0_9, %c0_10] : memref<8x1024xf32, #tpu.memory_space<vmem>>, vector<8x1024xf32>
      %c0_11 = arith.constant 0 : index
      %c0_12 = arith.constant 0 : index
      %13 = vector.load %arg3[%c0_11, %c0_12] : memref<1x1024xf32, #tpu.memory_space<vmem>>, vector<1x1024xf32>
      %14 = vector.broadcast %13 : vector<1x1024xf32> to vector<8x1024xf32>
      %15 = arith.addf %12, %14 : vector<8x1024xf32>
      %cst_13 = arith.constant 0.000000e+00 : f32
      %16 = vector.broadcast %cst_13 : f32 to vector<8x1024xf32>
      %17 = arith.maximumf %15, %16 : vector<8x1024xf32>
      %cst_14 = arith.constant dense<0.000000e+00> : vector<1024xf32>
      %18 = vector.multi_reduction <add>, %17, %cst_14 [0] : vector<8x1024xf32> to vector<1024xf32>
      %19 = vector.shape_cast %18 : vector<1024xf32> to vector<1x1024xf32>
      %cst_15 = arith.constant 8.000000e+00 : f32
      %20 = vector.broadcast %cst_15 : f32 to vector<1x1024xf32>
      %21 = arith.divf %19, %20 : vector<1x1024xf32>
      %22 = vector.broadcast %21 : vector<1x1024xf32> to vector<8x1024xf32>
      %23 = arith.subf %17, %22 : vector<8x1024xf32>
      %24 = arith.mulf %23, %23 : vector<8x1024xf32>
      %cst_16 = arith.constant dense<0.000000e+00> : vector<1024xf32>
      %25 = vector.multi_reduction <add>, %24, %cst_16 [0] : vector<8x1024xf32> to vector<1024xf32>
      %26 = vector.shape_cast %25 : vector<1024xf32> to vector<1x1024xf32>
      %cst_17 = arith.constant 8.000000e+00 : f32
      %27 = vector.broadcast %cst_17 : f32 to vector<1x1024xf32>
      %28 = arith.divf %26, %27 : vector<1x1024xf32>
      %29 = vector.broadcast %21 : vector<1x1024xf32> to vector<8x1024xf32>
      %30 = arith.subf %17, %29 : vector<8x1024xf32>
      %cst_18 = arith.constant 9.99999974E-6 : f32
      %31 = vector.broadcast %cst_18 : f32 to vector<1x1024xf32>
      %32 = arith.addf %28, %31 : vector<1x1024xf32>
      %33 = math.rsqrt %32 : vector<1x1024xf32>
      %34 = vector.broadcast %33 : vector<1x1024xf32> to vector<8x1024xf32>
      %35 = arith.mulf %30, %34 : vector<8x1024xf32>
      %c0_19 = arith.constant 0 : index
      %c0_20 = arith.constant 0 : index
      %36 = vector.load %arg4[%c0_19, %c0_20] : memref<1x1024xf32, #tpu.memory_space<vmem>>, vector<1x1024xf32>
      %37 = vector.broadcast %36 : vector<1x1024xf32> to vector<8x1024xf32>
      %38 = arith.mulf %35, %37 : vector<8x1024xf32>
      %c0_21 = arith.constant 0 : index
      %c0_22 = arith.constant 0 : index
      %39 = vector.load %arg5[%c0_21, %c0_22] : memref<1x1024xf32, #tpu.memory_space<vmem>>, vector<1x1024xf32>
      %40 = vector.broadcast %39 : vector<1x1024xf32> to vector<8x1024xf32>
      %41 = arith.addf %38, %40 : vector<8x1024xf32>
      %42 = arith.truncf %41 : vector<8x1024xf32> to vector<8x1024xbf16>
      %c0_23 = arith.constant 0 : index
      %c0_24 = arith.constant 0 : index
      %43 = vector.load %arg6[%c0_23, %c0_24] : memref<1024x512xbf16, #tpu.memory_space<vmem>>, vector<1024x512xbf16>
      %cst_25 = arith.constant dense<0.000000e+00> : vector<8x512xf32>
      %44 = tpu.matmul %42, %43, %cst_25 {dimension_numbers = #tpu.dot_dimension_numbers<[1], [0], [0], [1], [0, 0, 1, 1], [], []>} : vector<8x1024xbf16>, vector<1024x512xbf16>, vector<8x512xf32> -> vector<8x512xf32>
      %c0_26 = arith.constant 0 : index
      %c0_27 = arith.constant 0 : index
      %45 = vector.load %arg7[%c0_26, %c0_27] : memref<1x512xf32, #tpu.memory_space<vmem>>, vector<1x512xf32>
      %46 = vector.broadcast %45 : vector<1x512xf32> to vector<8x512xf32>
      %47 = arith.addf %44, %46 : vector<8x512xf32>
      %cst_28 = arith.constant 0.000000e+00 : f32
      %48 = vector.broadcast %cst_28 : f32 to vector<8x512xf32>
      %49 = arith.maximumf %47, %48 : vector<8x512xf32>
      %cst_29 = arith.constant dense<0.000000e+00> : vector<512xf32>
      %50 = vector.multi_reduction <add>, %49, %cst_29 [0] : vector<8x512xf32> to vector<512xf32>
      %51 = vector.shape_cast %50 : vector<512xf32> to vector<1x512xf32>
      %cst_30 = arith.constant 8.000000e+00 : f32
      %52 = vector.broadcast %cst_30 : f32 to vector<1x512xf32>
      %53 = arith.divf %51, %52 : vector<1x512xf32>
      %54 = vector.broadcast %53 : vector<1x512xf32> to vector<8x512xf32>
      %55 = arith.subf %49, %54 : vector<8x512xf32>
      %56 = arith.mulf %55, %55 : vector<8x512xf32>
      %cst_31 = arith.constant dense<0.000000e+00> : vector<512xf32>
      %57 = vector.multi_reduction <add>, %56, %cst_31 [0] : vector<8x512xf32> to vector<512xf32>
      %58 = vector.shape_cast %57 : vector<512xf32> to vector<1x512xf32>
      %cst_32 = arith.constant 8.000000e+00 : f32
      %59 = vector.broadcast %cst_32 : f32 to vector<1x512xf32>
      %60 = arith.divf %58, %59 : vector<1x512xf32>
      %61 = vector.broadcast %53 : vector<1x512xf32> to vector<8x512xf32>
      %62 = arith.subf %49, %61 : vector<8x512xf32>
      %cst_33 = arith.constant 9.99999974E-6 : f32
      %63 = vector.broadcast %cst_33 : f32 to vector<1x512xf32>
      %64 = arith.addf %60, %63 : vector<1x512xf32>
      %65 = math.rsqrt %64 : vector<1x512xf32>
      %66 = vector.broadcast %65 : vector<1x512xf32> to vector<8x512xf32>
      %67 = arith.mulf %62, %66 : vector<8x512xf32>
      %c0_34 = arith.constant 0 : index
      %c0_35 = arith.constant 0 : index
      %68 = vector.load %arg8[%c0_34, %c0_35] : memref<1x512xf32, #tpu.memory_space<vmem>>, vector<1x512xf32>
      %69 = vector.broadcast %68 : vector<1x512xf32> to vector<8x512xf32>
      %70 = arith.mulf %67, %69 : vector<8x512xf32>
      %c0_36 = arith.constant 0 : index
      %c0_37 = arith.constant 0 : index
      %71 = vector.load %arg9[%c0_36, %c0_37] : memref<1x512xf32, #tpu.memory_space<vmem>>, vector<1x512xf32>
      %72 = vector.broadcast %71 : vector<1x512xf32> to vector<8x512xf32>
      %73 = arith.addf %70, %72 : vector<8x512xf32>
      %74 = arith.truncf %73 : vector<8x512xf32> to vector<8x512xbf16>
      %c0_38 = arith.constant 0 : index
      %c0_39 = arith.constant 0 : index
      %75 = vector.load %arg10[%c0_38, %c0_39] : memref<512x128xbf16, #tpu.memory_space<vmem>>, vector<512x128xbf16>
      %cst_40 = arith.constant dense<0.000000e+00> : vector<8x128xf32>
      %76 = tpu.matmul %74, %75, %cst_40 {dimension_numbers = #tpu.dot_dimension_numbers<[1], [0], [0], [1], [0, 0, 1, 1], [], []>} : vector<8x512xbf16>, vector<512x128xbf16>, vector<8x128xf32> -> vector<8x128xf32>
      %c0_41 = arith.constant 0 : index
      %c0_42 = arith.constant 0 : index
      %77 = vector.load %arg11[%c0_41, %c0_42] : memref<1x128xf32, #tpu.memory_space<vmem>>, vector<1x128xf32>
      %78 = vector.broadcast %77 : vector<1x128xf32> to vector<8x128xf32>
      %79 = arith.addf %76, %78 : vector<8x128xf32>
      %c0_43 = arith.constant 0 : index
      %c0_44 = arith.constant 0 : index
      %80 = vector.load %arg12[%c0_43, %c0_44] : memref<8x128xf32, #tpu.memory_space<vmem>>, vector<8x128xf32>
      tpu.vector_store %arg12[%c0_43, %c0_44], %79 {strides = array<i32>} : memref<8x128xf32, #tpu.memory_space<vmem>>, vector<8x128xf32>,
    } else {
    }
    return
  }
  func.func @transform_0(%arg0: i32) -> (i32, i32) {
    %c0_i32 = arith.constant 0 : i32
    %c0_i32_0 = arith.constant 0 : i32
    return %c0_i32, %arg0 : i32, i32
  }
  func.func @transform_1(%arg0: i32) -> (i32, i32) {
    %c0_i32 = arith.constant 0 : i32
    %c0_i32_0 = arith.constant 0 : i32
    return %arg0, %c0_i32 : i32, i32
  }
  func.func @transform_2(%arg0: i32) -> (i32, i32) {
    %c0_i32 = arith.constant 0 : i32
    %c0_i32_0 = arith.constant 0 : i32
    %c0_i32_1 = arith.constant 0 : i32
    return %c0_i32, %c0_i32_0 : i32, i32
  }
  func.func @transform_3(%arg0: i32) -> (i32, i32) {
    %c0_i32 = arith.constant 0 : i32
    %c0_i32_0 = arith.constant 0 : i32
    %c0_i32_1 = arith.constant 0 : i32
    return %c0_i32, %c0_i32_0 : i32, i32
  }
  func.func @transform_4(%arg0: i32) -> (i32, i32) {
    %c0_i32 = arith.constant 0 : i32
    %c0_i32_0 = arith.constant 0 : i32
    %c0_i32_1 = arith.constant 0 : i32
    return %c0_i32, %c0_i32_0 : i32, i32
  }
  func.func @transform_5(%arg0: i32) -> (i32, i32) {
    %c0_i32 = arith.constant 0 : i32
    %c0_i32_0 = arith.constant 0 : i32
    %c0_i32_1 = arith.constant 0 : i32
    return %c0_i32, %c0_i32_0 : i32, i32
  }
  func.func @transform_6(%arg0: i32) -> (i32, i32) {
    %c0_i32 = arith.constant 0 : i32
    %c0_i32_0 = arith.constant 0 : i32
    %c0_i32_1 = arith.constant 0 : i32
    return %c0_i32, %c0_i32_0 : i32, i32
  }
  func.func @transform_7(%arg0: i32) -> (i32, i32) {
    %c0_i32 = arith.constant 0 : i32
    %c0_i32_0 = arith.constant 0 : i32
    %c0_i32_1 = arith.constant 0 : i32
    return %c0_i32, %c0_i32_0 : i32, i32
  }
  func.func @transform_8(%arg0: i32) -> (i32, i32) {
    %c0_i32 = arith.constant 0 : i32
    %c0_i32_0 = arith.constant 0 : i32
    %c0_i32_1 = arith.constant 0 : i32
    return %c0_i32, %c0_i32_0 : i32, i32
  }
  func.func @transform_9(%arg0: i32) -> (i32, i32) {
    %c0_i32 = arith.constant 0 : i32
    %c0_i32_0 = arith.constant 0 : i32
    %c0_i32_1 = arith.constant 0 : i32
    return %c0_i32, %c0_i32_0 : i32, i32
  }
  func.func @transform_10(%arg0: i32) -> (i32, i32) {
    %c0_i32 = arith.constant 0 : i32
    %c0_i32_0 = arith.constant 0 : i32
    %c0_i32_1 = arith.constant 0 : i32
    return %c0_i32, %c0_i32_0 : i32, i32
  }
  func.func @transform_11(%arg0: i32) -> (i32, i32) {
    %c0_i32 = arith.constant 0 : i32
    %c0_i32_0 = arith.constant 0 : i32
    %c0_i32_1 = arith.constant 0 : i32
    return %c0_i32, %c0_i32_0 : i32, i32
  }
}

</mosaic_0001>

<llo_original>
// kernel: tpu_custom_call.1
$region0: #{tpu_custom_call.1}
  #allocation0 [shape = 'u32[]', space=smem, size = 0x4, offset = 0x4, fixed_abs, tag = 'smem constant byte address 0x4 - core index']
  #allocation1 [shape = 'u32[72,128]{1,0:T(1,128)}', space=vmem, size = 0x9000, scoped, tag = 'internal scratch']
  #allocation2 [shape = 'f32[8,1024]{1,0:T(8,128)}', space=vmem, size = 0x8000, scoped, tag = 'scratch operand']
  %s0 = inlined_call_operand.hbm [shape: bf16[8,6144], index: 0, kind: input, shape index: {}]
  %s1 = inlined_call_operand.hbm [shape: bf16[6144,1024], index: 1, kind: input, shape index: {}]
  %s2 = inlined_call_operand.hbm [shape: f32[1,1024], index: 2, kind: input, shape index: {}]
  %s3 = inlined_call_operand.hbm [shape: f32[1,1024], index: 3, kind: input, shape index: {}]
  %s4 = inlined_call_operand.hbm [shape: f32[1,1024], index: 4, kind: input, shape index: {}]
  %s5 = inlined_call_operand.hbm [shape: bf16[1024,512], index: 5, kind: input, shape index: {}]
  %s6 = inlined_call_operand.hbm [shape: f32[1,512], index: 6, kind: input, shape index: {}]
  %s7 = inlined_call_operand.hbm [shape: f32[1,512], index: 7, kind: input, shape index: {}]
  %s8 = inlined_call_operand.hbm [shape: f32[1,512], index: 8, kind: input, shape index: {}]
  %s9 = inlined_call_operand.hbm [shape: bf16[512,128], index: 9, kind: input, shape index: {}]
  %s10 = inlined_call_operand.hbm [shape: f32[1,128], index: 10, kind: input, shape index: {}]
  %s11 = inlined_call_operand.hbm [shape: f32[8,128], index: 11, kind: output, shape index: {}]
  %s12 = sld [smem:[#allocation0]]
  $region129: #{tpu_custom_call.1} parent=0
    _
  %s14 = ssub.s32 1, %s12
  %s15 = scalar_select 0, %s14, %s12
  $region1: #{tpu_custom_call.1} parent=0
    #allocation3 [shape = 'u8[49152]{0}', space=vmem, size = 0xc000, scoped, tag = 'input window, operand 0']
    #allocation4 [shape = 's32[2]{0}', space=sflag, size = 0x8, scoped, tag = 'scoped memory for tpu_custom_call.1']
    #allocation5 [shape = 's32[2]{0}', space=sflag, size = 0x8, scoped, tag = 'scoped memory for tpu_custom_call.1']
    #allocation6 [shape = 'u8[6291456]{0}', space=vmem, size = 0x600000, scoped, tag = 'input window, operand 1']
    #allocation7 [shape = 's32[2]{0}', space=sflag, size = 0x8, scoped, tag = 'scoped memory for tpu_custom_call.1']
    #allocation8 [shape = 'u8[4096]{0}', space=vmem, size = 0x1000, scoped, tag = 'input window, operand 2, single buffered']
    #allocation9 [shape = 'u8[4096]{0}', space=vmem, size = 0x1000, scoped, tag = 'input window, operand 3, single buffered']
    #allocation10 [shape = 's32[1]{0}', space=sflag, size = 0x4, scoped, tag = 'scoped memory for tpu_custom_call.1']
    #allocation11 [shape = 'u8[4096]{0}', space=vmem, size = 0x1000, scoped, tag = 'input window, operand 4, single buffered']
    #allocation12 [shape = 'u8[1048576]{0}', space=vmem, size = 0x100000, scoped, tag = 'input window, operand 5, single buffered']
    #allocation13 [shape = 's32[1]{0}', space=sflag, size = 0x4, scoped, tag = 'scoped memory for tpu_custom_call.1']
    #allocation14 [shape = 'u8[2048]{0}', space=vmem, size = 0x800, scoped, tag = 'input window, operand 6, single buffered']
    #allocation15 [shape = 'u8[2048]{0}', space=vmem, size = 0x800, scoped, tag = 'input window, operand 7, single buffered']
    #allocation16 [shape = 's32[1]{0}', space=sflag, size = 0x4, scoped, tag = 'scoped memory for tpu_custom_call.1']
    #allocation17 [shape = 'u8[2048]{0}', space=vmem, size = 0x800, scoped, tag = 'input window, operand 8, single buffered']
    #allocation18 [shape = 'u8[131072]{0}', space=vmem, size = 0x20000, scoped, tag = 'input window, operand 9, single buffered']
    #allocation19 [shape = 's32[1]{0}', space=sflag, size = 0x4, scoped, tag = 'scoped memory for tpu_custom_call.1']
    #allocation20 [shape = 'u8[512]{0}', space=vmem, size = 0x400, scoped, tag = 'input window, operand 10, single buffered']
    #allocation21 [shape = 'u8[4096]{0}', space=vmem, size = 0x1000, scoped, tag = 'output window, operand 0, single buffered']
    %16 = vsyncpa [#allocation4], 0
    %s17 = scalar_lea.sflag [#allocation4], 1
    %18 = vsyncpa %s17, 0
    %19 = vsyncpa [#allocation7], 0
    %s20 = scalar_lea.sflag [#allocation7], 1
    %21 = vsyncpa %s20, 0
    %22 = vsyncpa [#allocation10], 0
    %23 = vsyncpa [#allocation13], 0
    %24 = vsyncpa [#allocation16], 0
    %25 = vsyncpa [#allocation19], 0
    %26 = vsyncpa [#allocation5], 0
    loop: start=0, step=1, limit=6
    $region2: #{tpu_custom_call.1} parent=1 // loop_pre_header
      _
    $region3: #{tpu_custom_call.1} parent=1 // loop_header
      %s28 = sphi 0, %s32
      %p29 = scmp.ge.s32.totalorder %s28, 6
      %s38 = sphi 0, %s40
      %s41 = sphi 0, %s38
      %s42 = sphi 0, %s41
      %s58 = sphi 0, %s42
      %s64 = sphi 0, %s66
      %s67 = sphi 0, %s64
      %s68 = sphi 0, %s67
      %s84 = sphi 0, %s68
      %s88 = sphi 0, %s88
      %s90 = sphi 0, %s88
      %s91 = sphi 0, %s90
      %s105 = sphi 0, %s91
      %s109 = sphi 0, %s109
      %s111 = sphi 0, %s109
      %s112 = sphi 0, %s111
      %s126 = sphi 0, %s112
      %s130 = sphi 0, %s130
      %s132 = sphi 0, %s130
      %s133 = sphi 0, %s132
      %s147 = sphi 0, %s133
      %s151 = sphi 0, %s151
      %s153 = sphi 0, %s151
      %s154 = sphi 0, %s153
      %s168 = sphi 0, %s154
      %s172 = sphi 0, %s172
      %s174 = sphi 0, %s172
      %s175 = sphi 0, %s174
      %s189 = sphi 0, %s175
      %s193 = sphi 0, %s193
      %s195 = sphi 0, %s193
      %s196 = sphi 0, %s195
      %s210 = sphi 0, %s196
      %s214 = sphi 0, %s214
      %s216 = sphi 0, %s214
      %s217 = sphi 0, %s216
      %s231 = sphi 0, %s217
      %s235 = sphi 0, %s235
      %s237 = sphi 0, %s235
      %s238 = sphi 0, %s237
      %s252 = sphi 0, %s238
      %s256 = sphi 0, %s256
      %s258 = sphi 0, %s256
      %s259 = sphi 0, %s258
      %s273 = sphi 0, %s259
      %s277 = sphi 0, %s277
      %s279 = sphi 0, %s277
      %s280 = sphi 0, %s279
      %s294 = sphi 0, %s280
    $region4: #{tpu_custom_call.1} parent=1 // loop_header_branch
      %31 = sbr.rel (%p29) target = $region8
    $region5: #{tpu_custom_call.1} parent=1 // loop_body
      %s33 = ssub.s32 %s28, 1
      %s34 = ssub.s32 %s28, 2
      %s35 = sadd.s32 %s28, 1
      %s36 = ssub.s32 %s28, %s35
      %p37 = scmp.eq.s32.totalorder %s36, 0
      %s39 = sadd.s32 %s38, 1
      %s40 = scalar_select %p37, %s38, %s39
      %p43 = pneg %p37
      %p44 = scmp.eq.s32.totalorder %s28, 3
      %p45 = por %p43, %p44
      %p46 = scmp.ne.s32.totalorder %s38, %s41
      %p47 = scmp.eq.s32.totalorder %s28, 0
      %p48 = por %p46, %p47
      %p49 = scmp.ne.s32.totalorder %s38, %s41
      %p50 = scmp.eq.s32.totalorder %s33, 3
      %p51 = por %p49, %p50
      %p52 = scmp.ne.s32.totalorder %s41, %s42
      %p53 = scmp.eq.s32.totalorder %s33, 0
      %p54 = por %p52, %p53
      %p55 = scmp.ne.s32.totalorder %s41, %s42
      %p56 = scmp.eq.s32.totalorder %s34, 3
      %p57 = por %p55, %p56
      %p59 = scmp.ne.s32.totalorder %s42, %s58
      %p60 = scmp.eq.s32.totalorder %s34, 0
      %p61 = por %p59, %p60
      %s62 = ssub.s32 %s28, %s35
      %p63 = scmp.eq.s32.totalorder %s62, 0
      %s65 = sadd.s32 %s64, 1
      %s66 = scalar_select %p63, %s64, %s65
      %p69 = pneg %p63
      %p70 = scmp.eq.s32.totalorder %s28, 3
      %p71 = por %p69, %p70
      %p72 = scmp.ne.s32.totalorder %s64, %s67
      %p73 = scmp.eq.s32.totalorder %s28, 0
      %p74 = por %p72, %p73
      %p75 = scmp.ne.s32.totalorder %s64, %s67
      %p76 = scmp.eq.s32.totalorder %s33, 3
      %p77 = por %p75, %p76
      %p78 = scmp.ne.s32.totalorder %s67, %s68
      %p79 = scmp.eq.s32.totalorder %s33, 0
      %p80 = por %p78, %p79
      %p81 = scmp.ne.s32.totalorder %s67, %s68
      %p82 = scmp.eq.s32.totalorder %s34, 3
      %p83 = por %p81, %p82
      %p85 = scmp.ne.s32.totalorder %s68, %s84
      %p86 = scmp.eq.s32.totalorder %s34, 0
      %p87 = por %p85, %p86
      %s89 = sadd.s32 %s88, 1
      %p92 = scmp.eq.s32.totalorder %s28, 3
      %p93 = scmp.ne.s32.totalorder %s88, %s90
      %p94 = scmp.eq.s32.totalorder %s28, 0
      %p95 = por %p93, %p94
      %p96 = scmp.ne.s32.totalorder %s88, %s90
      %p97 = scmp.eq.s32.totalorder %s33, 3
      %p98 = por %p96, %p97
      %p99 = scmp.ne.s32.totalorder %s90, %s91
      %p100 = scmp.eq.s32.totalorder %s33, 0
      %p101 = por %p99, %p100
      %p102 = scmp.ne.s32.totalorder %s90, %s91
      %p103 = scmp.eq.s32.totalorder %s34, 3
      %p104 = por %p102, %p103
      %p106 = scmp.ne.s32.totalorder %s91, %s105
      %p107 = scmp.eq.s32.totalorder %s34, 0
      %p108 = por %p106, %p107
      %s110 = sadd.s32 %s109, 1
      %p113 = scmp.eq.s32.totalorder %s28, 3
      %p114 = scmp.ne.s32.totalorder %s109, %s111
      %p115 = scmp.eq.s32.totalorder %s28, 0
      %p116 = por %p114, %p115
      %p117 = scmp.ne.s32.totalorder %s109, %s111
      %p118 = scmp.eq.s32.totalorder %s33, 3
      %p119 = por %p117, %p118
      %p120 = scmp.ne.s32.totalorder %s111, %s112
      %p121 = scmp.eq.s32.totalorder %s33, 0
      %p122 = por %p120, %p121
      %p123 = scmp.ne.s32.totalorder %s111, %s112
      %p124 = scmp.eq.s32.totalorder %s34, 3
      %p125 = por %p123, %p124
      %p127 = scmp.ne.s32.totalorder %s112, %s126
      %p128 = scmp.eq.s32.totalorder %s34, 0
      %p129 = por %p127, %p128
      %s131 = sadd.s32 %s130, 1
      %p134 = scmp.eq.s32.totalorder %s28, 3
      %p135 = scmp.ne.s32.totalorder %s130, %s132
      %p136 = scmp.eq.s32.totalorder %s28, 0
      %p137 = por %p135, %p136
      %p138 = scmp.ne.s32.totalorder %s130, %s132
      %p139 = scmp.eq.s32.totalorder %s33, 3
      %p140 = por %p138, %p139
      %p141 = scmp.ne.s32.totalorder %s132, %s133
      %p142 = scmp.eq.s32.totalorder %s33, 0
      %p143 = por %p141, %p142
      %p144 = scmp.ne.s32.totalorder %s132, %s133
      %p145 = scmp.eq.s32.totalorder %s34, 3
      %p146 = por %p144, %p145
      %p148 = scmp.ne.s32.totalorder %s133, %s147
      %p149 = scmp.eq.s32.totalorder %s34, 0
      %p150 = por %p148, %p149
      %s152 = sadd.s32 %s151, 1
      %p155 = scmp.eq.s32.totalorder %s28, 3
      %p156 = scmp.ne.s32.totalorder %s151, %s153
      %p157 = scmp.eq.s32.totalorder %s28, 0
      %p158 = por %p156, %p157
      %p159 = scmp.ne.s32.totalorder %s151, %s153
      %p160 = scmp.eq.s32.totalorder %s33, 3
      %p161 = por %p159, %p160
      %p162 = scmp.ne.s32.totalorder %s153, %s154
      %p163 = scmp.eq.s32.totalorder %s33, 0
      %p164 = por %p162, %p163
      %p165 = scmp.ne.s32.totalorder %s153, %s154
      %p166 = scmp.eq.s32.totalorder %s34, 3
      %p167 = por %p165, %p166
      %p169 = scmp.ne.s32.totalorder %s154, %s168
      %p170 = scmp.eq.s32.totalorder %s34, 0
      %p171 = por %p169, %p170
      %s173 = sadd.s32 %s172, 1
      %p176 = scmp.eq.s32.totalorder %s28, 3
      %p177 = scmp.ne.s32.totalorder %s172, %s174
      %p178 = scmp.eq.s32.totalorder %s28, 0
      %p179 = por %p177, %p178
      %p180 = scmp.ne.s32.totalorder %s172, %s174
      %p181 = scmp.eq.s32.totalorder %s33, 3
      %p182 = por %p180, %p181
      %p183 = scmp.ne.s32.totalorder %s174, %s175
      %p184 = scmp.eq.s32.totalorder %s33, 0
      %p185 = por %p183, %p184
      %p186 = scmp.ne.s32.totalorder %s174, %s175
      %p187 = scmp.eq.s32.totalorder %s34, 3
      %p188 = por %p186, %p187
      %p190 = scmp.ne.s32.totalorder %s175, %s189
      %p191 = scmp.eq.s32.totalorder %s34, 0
      %p192 = por %p190, %p191
      %s194 = sadd.s32 %s193, 1
      %p197 = scmp.eq.s32.totalorder %s28, 3
      %p198 = scmp.ne.s32.totalorder %s193, %s195
      %p199 = scmp.eq.s32.totalorder %s28, 0
      %p200 = por %p198, %p199
      %p201 = scmp.ne.s32.totalorder %s193, %s195
      %p202 = scmp.eq.s32.totalorder %s33, 3
      %p203 = por %p201, %p202
      %p204 = scmp.ne.s32.totalorder %s195, %s196
      %p205 = scmp.eq.s32.totalorder %s33, 0
      %p206 = por %p204, %p205
      %p207 = scmp.ne.s32.totalorder %s195, %s196
      %p208 = scmp.eq.s32.totalorder %s34, 3
      %p209 = por %p207, %p208
      %p211 = scmp.ne.s32.totalorder %s196, %s210
      %p212 = scmp.eq.s32.totalorder %s34, 0
      %p213 = por %p211, %p212
      %s215 = sadd.s32 %s214, 1
      %p218 = scmp.eq.s32.totalorder %s28, 3
      %p219 = scmp.ne.s32.totalorder %s214, %s216
      %p220 = scmp.eq.s32.totalorder %s28, 0
      %p221 = por %p219, %p220
      %p222 = scmp.ne.s32.totalorder %s214, %s216
      %p223 = scmp.eq.s32.totalorder %s33, 3
      %p224 = por %p222, %p223
      %p225 = scmp.ne.s32.totalorder %s216, %s217
      %p226 = scmp.eq.s32.totalorder %s33, 0
      %p227 = por %p225, %p226
      %p228 = scmp.ne.s32.totalorder %s216, %s217
      %p229 = scmp.eq.s32.totalorder %s34, 3
      %p230 = por %p228, %p229
      %p232 = scmp.ne.s32.totalorder %s217, %s231
      %p233 = scmp.eq.s32.totalorder %s34, 0
      %p234 = por %p232, %p233
      %s236 = sadd.s32 %s235, 1
      %p239 = scmp.eq.s32.totalorder %s28, 3
      %p240 = scmp.ne.s32.totalorder %s235, %s237
      %p241 = scmp.eq.s32.totalorder %s28, 0
      %p242 = por %p240, %p241
      %p243 = scmp.ne.s32.totalorder %s235, %s237
      %p244 = scmp.eq.s32.totalorder %s33, 3
      %p245 = por %p243, %p244
      %p246 = scmp.ne.s32.totalorder %s237, %s238
      %p247 = scmp.eq.s32.totalorder %s33, 0
      %p248 = por %p246, %p247
      %p249 = scmp.ne.s32.totalorder %s237, %s238
      %p250 = scmp.eq.s32.totalorder %s34, 3
      %p251 = por %p249, %p250
      %p253 = scmp.ne.s32.totalorder %s238, %s252
      %p254 = scmp.eq.s32.totalorder %s34, 0
      %p255 = por %p253, %p254
      %s257 = sadd.s32 %s256, 1
      %p260 = scmp.eq.s32.totalorder %s28, 3
      %p261 = scmp.ne.s32.totalorder %s256, %s258
      %p262 = scmp.eq.s32.totalorder %s28, 0
      %p263 = por %p261, %p262
      %p264 = scmp.ne.s32.totalorder %s256, %s258
      %p265 = scmp.eq.s32.totalorder %s33, 3
      %p266 = por %p264, %p265
      %p267 = scmp.ne.s32.totalorder %s258, %s259
      %p268 = scmp.eq.s32.totalorder %s33, 0
      %p269 = por %p267, %p268
      %p270 = scmp.ne.s32.totalorder %s258, %s259
      %p271 = scmp.eq.s32.totalorder %s34, 3
      %p272 = por %p270, %p271
      %p274 = scmp.ne.s32.totalorder %s259, %s273
      %p275 = scmp.eq.s32.totalorder %s34, 0
      %p276 = por %p274, %p275
      %s278 = sadd.s32 %s277, 1
      %p281 = scmp.eq.s32.totalorder %s28, 3
      %p282 = scmp.ne.s32.totalorder %s277, %s279
      %p283 = scmp.eq.s32.totalorder %s28, 0
      %p284 = por %p282, %p283
      %p285 = scmp.ne.s32.totalorder %s277, %s279
      %p286 = scmp.eq.s32.totalorder %s33, 3
      %p287 = por %p285, %p286
      %p288 = scmp.ne.s32.totalorder %s279, %s280
      %p289 = scmp.eq.s32.totalorder %s33, 0
      %p290 = por %p288, %p289
      %p291 = scmp.ne.s32.totalorder %s279, %s280
      %p292 = scmp.eq.s32.totalorder %s34, 3
      %p293 = por %p291, %p292
      %p295 = scmp.ne.s32.totalorder %s280, %s294
      %p296 = scmp.eq.s32.totalorder %s34, 0
      %p297 = por %p295, %p296
      %p298 = scmp.le.s32.totalorder 1, %s28
      %p299 = scmp.lt.s32.totalorder %s28, 5
      %p300 = pnand %p298, %p299
      %p301 = pneg %p300
      // Predicated region
      $region9: #{tpu_custom_call.1} parent=5 // pred_check
        _
      $region10: #{tpu_custom_call.1} parent=5 // pred_check_branch
        %303 = sbr.rel (%p300) target = $region12
      $region11: #{tpu_custom_call.1} parent=5 // pred_region
        %s304 = ssub.s32 %s28, 1
        // Predicated region
        $region13: #{tpu_custom_call.1} parent=11 // pred_check
          %p305 = pneg %p101
        $region14: #{tpu_custom_call.1} parent=11 // pred_check_branch
          %307 = sbr.rel (%p305) target = $region16
        $region15: #{tpu_custom_call.1} parent=11 // pred_region
          %309 = vsyncadd [#allocation7], 0
          %s311 = sshll.u32 %s2, 4
          %s312 = int_to_ptr.hbm [resolvable:$true] %s311
          %s313 = sshll.u32 [#allocation8], 4
          %s314 = int_to_ptr.vmem [resolvable:$true] %s313
          %316 = dma.hbm_to_vmem [thread:$0]  %s312, 128, %s314, [#allocation7]
        $region16: #{tpu_custom_call.1} parent=11 // pred_fallthru
          _
        // Predicated region
        $region17: #{tpu_custom_call.1} parent=11 // pred_check
          %p317 = pneg %p122
        $region18: #{tpu_custom_call.1} parent=11 // pred_check_branch
          %319 = sbr.rel (%p317) target = $region20
        $region19: #{tpu_custom_call.1} parent=11 // pred_region
          %321 = vsyncadd [#allocation10], 0
          %s323 = sshll.u32 %s3, 4
          %s324 = int_to_ptr.hbm [resolvable:$true] %s323
          %s325 = sshll.u32 [#allocation9], 4
          %s326 = int_to_ptr.vmem [resolvable:$true] %s325
          %328 = dma.hbm_to_vmem [thread:$0]  %s324, 128, %s326, [#allocation10]
        $region20: #{tpu_custom_call.1} parent=11 // pred_fallthru
          _
        // Predicated region
        $region21: #{tpu_custom_call.1} parent=11 // pred_check
          %p329 = pneg %p143
        $region22: #{tpu_custom_call.1} parent=11 // pred_check_branch
          %331 = sbr.rel (%p329) target = $region24
        $region23: #{tpu_custom_call.1} parent=11 // pred_region
          %333 = vsyncadd [#allocation10], 0
          %s335 = sshll.u32 %s4, 4
          %s336 = int_to_ptr.hbm [resolvable:$true] %s335
          %s337 = sshll.u32 [#allocation11], 4
          %s338 = int_to_ptr.vmem [resolvable:$true] %s337
          %340 = dma.hbm_to_vmem [thread:$0]  %s336, 128, %s338, [#allocation10]
        $region24: #{tpu_custom_call.1} parent=11 // pred_fallthru
          _
        // Predicated region
        $region25: #{tpu_custom_call.1} parent=11 // pred_check
          %p341 = pneg %p164
        $region26: #{tpu_custom_call.1} parent=11 // pred_check_branch
          %343 = sbr.rel (%p341) target = $region28
        $region27: #{tpu_custom_call.1} parent=11 // pred_region
          %345 = vsyncadd [#allocation13], 0
          %s346 = sshll.u32 %s5, 4
          %s347 = int_to_ptr.hbm [resolvable:$true] %s346
          %s348 = sshll.u32 [#allocation12], 4
          %s349 = int_to_ptr.vmem [resolvable:$true] %s348
          %354 = dma.hbm_to_vmem [thread:$0]  %s347, 32768, %s349, [#allocation13], 256, 256, 16
        $region28: #{tpu_custom_call.1} parent=11 // pred_fallthru
          _
        // Predicated region
        $region29: #{tpu_custom_call.1} parent=11 // pred_check
          %p355 = pneg %p185
        $region30: #{tpu_custom_call.1} parent=11 // pred_check_branch
          %357 = sbr.rel (%p355) target = $region32
        $region31: #{tpu_custom_call.1} parent=11 // pred_region
          %359 = vsyncadd [#allocation13], 0
          %s361 = sshll.u32 %s6, 4
          %s362 = int_to_ptr.hbm [resolvable:$true] %s361
          %s363 = sshll.u32 [#allocation14], 4
          %s364 = int_to_ptr.vmem [resolvable:$true] %s363
          %366 = dma.hbm_to_vmem [thread:$0]  %s362, 64, %s364, [#allocation13]
        $region32: #{tpu_custom_call.1} parent=11 // pred_fallthru
          _
        // Predicated region
        $region33: #{tpu_custom_call.1} parent=11 // pred_check
          %p367 = pneg %p206
        $region34: #{tpu_custom_call.1} parent=11 // pred_check_branch
          %369 = sbr.rel (%p367) target = $region36
        $region35: #{tpu_custom_call.1} parent=11 // pred_region
          %371 = vsyncadd [#allocation16], 0
          %s373 = sshll.u32 %s7, 4
          %s374 = int_to_ptr.hbm [resolvable:$true] %s373
          %s375 = sshll.u32 [#allocation15], 4
          %s376 = int_to_ptr.vmem [resolvable:$true] %s375
          %378 = dma.hbm_to_vmem [thread:$0]  %s374, 64, %s376, [#allocation16]
        $region36: #{tpu_custom_call.1} parent=11 // pred_fallthru
          _
        // Predicated region
        $region37: #{tpu_custom_call.1} parent=11 // pred_check
          %p379 = pneg %p227
        $region38: #{tpu_custom_call.1} parent=11 // pred_check_branch
          %381 = sbr.rel (%p379) target = $region40
        $region39: #{tpu_custom_call.1} parent=11 // pred_region
          %383 = vsyncadd [#allocation16], 0
          %s385 = sshll.u32 %s8, 4
          %s386 = int_to_ptr.hbm [resolvable:$true] %s385
          %s387 = sshll.u32 [#allocation17], 4
          %s388 = int_to_ptr.vmem [resolvable:$true] %s387
          %390 = dma.hbm_to_vmem [thread:$0]  %s386, 64, %s388, [#allocation16]
        $region40: #{tpu_custom_call.1} parent=11 // pred_fallthru
          _
        // Predicated region
        $region41: #{tpu_custom_call.1} parent=11 // pred_check
          %p391 = pneg %p248
        $region42: #{tpu_custom_call.1} parent=11 // pred_check_branch
          %393 = sbr.rel (%p391) target = $region44
        $region43: #{tpu_custom_call.1} parent=11 // pred_region
          %395 = vsyncadd [#allocation19], 0
          %s396 = sshll.u32 %s9, 4
          %s397 = int_to_ptr.hbm [resolvable:$true] %s396
          %s398 = sshll.u32 [#allocation18], 4
          %s399 = int_to_ptr.vmem [resolvable:$true] %s398
          %404 = dma.hbm_to_vmem [thread:$0]  %s397, 4096, %s399, [#allocation19], 64, 64, 4
        $region44: #{tpu_custom_call.1} parent=11 // pred_fallthru
          _
        // Predicated region
        $region45: #{tpu_custom_call.1} parent=11 // pred_check
          %p405 = pneg %p269
        $region46: #{tpu_custom_call.1} parent=11 // pred_check_branch
          %407 = sbr.rel (%p405) target = $region48
        $region47: #{tpu_custom_call.1} parent=11 // pred_region
          %409 = vsyncadd [#allocation19], 0
          %s411 = sshll.u32 %s10, 4
          %s412 = int_to_ptr.hbm [resolvable:$true] %s411
          %s413 = sshll.u32 [#allocation20], 4
          %s414 = int_to_ptr.vmem [resolvable:$true] %s413
          %416 = dma.hbm_to_vmem [thread:$0]  %s412, 16, %s414, [#allocation19]
        $region48: #{tpu_custom_call.1} parent=11 // pred_fallthru
          _
      $region12: #{tpu_custom_call.1} parent=5 // pred_fallthru
        _
      %p417 = scmp.lt.s32.totalorder %s28, 4
      // Predicated region
      $region49: #{tpu_custom_call.1} parent=5 // pred_check
        %p418 = pneg %p417
      $region50: #{tpu_custom_call.1} parent=5 // pred_check_branch
        %420 = sbr.rel (%p418) target = $region52
      $region51: #{tpu_custom_call.1} parent=5 // pred_region
        // Predicated region
        $region53: #{tpu_custom_call.1} parent=51 // pred_check
          %p421 = pneg %p48
        $region54: #{tpu_custom_call.1} parent=51 // pred_check_branch
          %423 = sbr.rel (%p421) target = $region56
        $region55: #{tpu_custom_call.1} parent=51 // pred_region
          %s424 = sand.u32 %s38, 1
          %s425 = scalar_lea.sflag [#allocation4], %s424
          %s426 = sand.u32 %s38, 1
          %s427 = smul.addr %s426, 48
          %s428 = scalar_lea.vmem [#allocation3], %s427
          %s429 = smul.u32 12, %s28
          %431 = vsyncadd %s425, 0
          %s432 = smul.addr %s429, 4
          %s433 = scalar_lea.hbm %s0, %s432
          %s435 = sshll.u32 %s433, 4
          %s436 = int_to_ptr.hbm [resolvable:$true] %s435
          %s437 = sshll.u32 %s428, 4
          %s438 = int_to_ptr.vmem [resolvable:$true] %s437
          %440 = dma.hbm_to_vmem [thread:$0]  %s436, 768, %s438, %s425
        $region56: #{tpu_custom_call.1} parent=51 // pred_fallthru
          _
        // Predicated region
        $region57: #{tpu_custom_call.1} parent=51 // pred_check
          %p441 = pneg %p74
        $region58: #{tpu_custom_call.1} parent=51 // pred_check_branch
          %443 = sbr.rel (%p441) target = $region60
        $region59: #{tpu_custom_call.1} parent=51 // pred_region
          %s444 = sand.u32 %s28, 1
          %s445 = scalar_lea.sflag [#allocation7], %s444
          %s446 = sand.u32 %s64, 1
          %s447 = smul.addr %s446, 6144
          %s448 = scalar_lea.vmem [#allocation6], %s447
          %s449 = smul.u32 192, %s28
          %451 = vsyncadd %s445, 0
          %s452 = smul.addr %s449, 8
          %s453 = smul.addr %s452, 4
          %s454 = scalar_lea.hbm %s1, %s453
          %s455 = sshll.u32 %s454, 4
          %s456 = int_to_ptr.hbm [resolvable:$true] %s455
          %s457 = sshll.u32 %s448, 4
          %s458 = int_to_ptr.vmem [resolvable:$true] %s457
          %463 = dma.hbm_to_vmem [thread:$0]  %s456, 98304, %s458, %s445, 512, 512, 32
        $region60: #{tpu_custom_call.1} parent=51 // pred_fallthru
          _
      $region52: #{tpu_custom_call.1} parent=5 // pred_fallthru
        _
      %p464 = scmp.le.s32.totalorder 1, %s28
      %p465 = scmp.lt.s32.totalorder %s28, 5
      %p466 = pnand %p464, %p465
      %p467 = pneg %p466
      // Predicated region
      $region61: #{tpu_custom_call.1} parent=5 // pred_check
        _
      $region62: #{tpu_custom_call.1} parent=5 // pred_check_branch
        %469 = sbr.rel (%p466) target = $region64
      $region63: #{tpu_custom_call.1} parent=5 // pred_region
        %s470 = ssub.s32 %s28, 1
        %s471 = sand.u32 %s41, 1
        %s472 = scalar_lea.sflag [#allocation4], %s471
        %s473 = sand.u32 %s41, 1
        %s474 = smul.addr %s473, 48
        %s475 = scalar_lea.vmem [#allocation3], %s474
        // Predicated region
        $region65: #{tpu_custom_call.1} parent=63 // pred_check
          %p476 = pneg %p54
        $region66: #{tpu_custom_call.1} parent=63 // pred_check_branch
          %478 = sbr.rel (%p476) target = $region68
        $region67: #{tpu_custom_call.1} parent=63 // pred_region
          %480 = dma.done %s472, 768
        $region68: #{tpu_custom_call.1} parent=63 // pred_fallthru
          _
        %s481 = sand.u32 %s33, 1
        %s482 = scalar_lea.sflag [#allocation7], %s481
        %s483 = sand.u32 %s67, 1
        %s484 = smul.addr %s483, 6144
        %s485 = scalar_lea.vmem [#allocation6], %s484
        // Predicated region
        $region69: #{tpu_custom_call.1} parent=63 // pred_check
          %p486 = pneg %p80
        $region70: #{tpu_custom_call.1} parent=63 // pred_check_branch
          %488 = sbr.rel (%p486) target = $region72
        $region71: #{tpu_custom_call.1} parent=63 // pred_region
          %490 = dma.done %s482, 98304
        $region72: #{tpu_custom_call.1} parent=63 // pred_fallthru
          _
        // Predicated region
        $region73: #{tpu_custom_call.1} parent=63 // pred_check
          %p491 = pneg %p101
        $region74: #{tpu_custom_call.1} parent=63 // pred_check_branch
          %493 = sbr.rel (%p491) target = $region76
        $region75: #{tpu_custom_call.1} parent=63 // pred_region
          %495 = dma.done [#allocation7], 128
        $region76: #{tpu_custom_call.1} parent=63 // pred_fallthru
          _
        // Predicated region
        $region77: #{tpu_custom_call.1} parent=63 // pred_check
          %p496 = pneg %p122
        $region78: #{tpu_custom_call.1} parent=63 // pred_check_branch
          %498 = sbr.rel (%p496) target = $region80
        $region79: #{tpu_custom_call.1} parent=63 // pred_region
          %500 = dma.done [#allocation10], 128
        $region80: #{tpu_custom_call.1} parent=63 // pred_fallthru
          _
        // Predicated region
        $region81: #{tpu_custom_call.1} parent=63 // pred_check
          %p501 = pneg %p143
        $region82: #{tpu_custom_call.1} parent=63 // pred_check_branch
          %503 = sbr.rel (%p501) target = $region84
        $region83: #{tpu_custom_call.1} parent=63 // pred_region
          %505 = dma.done [#allocation10], 128
        $region84: #{tpu_custom_call.1} parent=63 // pred_fallthru
          _
        // Predicated region
        $region85: #{tpu_custom_call.1} parent=63 // pred_check
          %p506 = pneg %p164
        $region86: #{tpu_custom_call.1} parent=63 // pred_check_branch
          %508 = sbr.rel (%p506) target = $region88
        $region87: #{tpu_custom_call.1} parent=63 // pred_region
          %510 = dma.done [#allocation13], 32768
        $region88: #{tpu_custom_call.1} parent=63 // pred_fallthru
          _
        // Predicated region
        $region89: #{tpu_custom_call.1} parent=63 // pred_check
          %p511 = pneg %p185
        $region90: #{tpu_custom_call.1} parent=63 // pred_check_branch
          %513 = sbr.rel (%p511) target = $region92
        $region91: #{tpu_custom_call.1} parent=63 // pred_region
          %515 = dma.done [#allocation13], 64
        $region92: #{tpu_custom_call.1} parent=63 // pred_fallthru
          _
        // Predicated region
        $region93: #{tpu_custom_call.1} parent=63 // pred_check
          %p516 = pneg %p206
        $region94: #{tpu_custom_call.1} parent=63 // pred_check_branch
          %518 = sbr.rel (%p516) target = $region96
        $region95: #{tpu_custom_call.1} parent=63 // pred_region
          %520 = dma.done [#allocation16], 64
        $region96: #{tpu_custom_call.1} parent=63 // pred_fallthru
          _
        // Predicated region
        $region97: #{tpu_custom_call.1} parent=63 // pred_check
          %p521 = pneg %p227
        $region98: #{tpu_custom_call.1} parent=63 // pred_check_branch
          %523 = sbr.rel (%p521) target = $region100
        $region99: #{tpu_custom_call.1} parent=63 // pred_region
          %525 = dma.done [#allocation16], 64
        $region100: #{tpu_custom_call.1} parent=63 // pred_fallthru
          _
        // Predicated region
        $region101: #{tpu_custom_call.1} parent=63 // pred_check
          %p526 = pneg %p248
        $region102: #{tpu_custom_call.1} parent=63 // pred_check_branch
          %528 = sbr.rel (%p526) target = $region104
        $region103: #{tpu_custom_call.1} parent=63 // pred_region
          %530 = dma.done [#allocation19], 4096
        $region104: #{tpu_custom_call.1} parent=63 // pred_fallthru
          _
        // Predicated region
        $region105: #{tpu_custom_call.1} parent=63 // pred_check
          %p531 = pneg %p269
        $region106: #{tpu_custom_call.1} parent=63 // pred_check_branch
          %533 = sbr.rel (%p531) target = $region108
        $region107: #{tpu_custom_call.1} parent=63 // pred_region
          %535 = dma.done [#allocation19], 16
        $region108: #{tpu_custom_call.1} parent=63 // pred_fallthru
          _
        %s536 = sand.u32 %s41, 1
        %s537 = scalar_lea.sflag [#allocation4], %s536
        %s538 = sand.u32 %s41, 1
        %s539 = smul.addr %s538, 48
        %s540 = scalar_lea.vmem [#allocation3], %s539
        %p541 = pneg %p54
        %p542 = pneg %p51
        %s543 = sand.u32 %s33, 1
        %s544 = scalar_lea.sflag [#allocation7], %s543
        %s545 = sand.u32 %s67, 1
        %s546 = smul.addr %s545, 6144
        %s547 = scalar_lea.vmem [#allocation6], %s546
        %p548 = pneg %p80
        %p549 = pneg %p77
        %p550 = pneg %p101
        %p551 = pneg %p98
        %p552 = pneg %p122
        %p553 = pneg %p119
        %p554 = pneg %p143
        %p555 = pneg %p140
        %p556 = pneg %p164
        %p557 = pneg %p161
        %p558 = pneg %p185
        %p559 = pneg %p182
        %p560 = pneg %p206
        %p561 = pneg %p203
        %p562 = pneg %p227
        %p563 = pneg %p224
        %p564 = pneg %p248
        %p565 = pneg %p245
        %p566 = pneg %p269
        %p567 = pneg %p266
        %p568 = pneg %p290
        %p569 = pneg %p287
        %s570 = smul.u32 12, %s33
        %s571 = smul.u32 192, %s33
        %p572 = scmp.eq.s32.totalorder %s33, 0
        // Predicated region
        $region109: #{tpu_custom_call.1} parent=63 // pred_check
          %p573 = pneg %p572
        $region110: #{tpu_custom_call.1} parent=63 // pred_check_branch
          %575 = sbr.rel (%p573) target = $region112
        $region111: #{tpu_custom_call.1} parent=63 // pred_region
          %576 = vst [vmem:[#allocation2] sm:$0xff] 0.0
          %577 = vst [vmem:[#allocation2 + $0x8] sm:$0xff] 0.0
          %578 = vst [vmem:[#allocation2 + $0x10] sm:$0xff] 0.0
          %579 = vst [vmem:[#allocation2 + $0x18] sm:$0xff] 0.0
          %580 = vst [vmem:[#allocation2 + $0x20] sm:$0xff] 0.0
          %581 = vst [vmem:[#allocation2 + $0x28] sm:$0xff] 0.0
          %582 = vst [vmem:[#allocation2 + $0x30] sm:$0xff] 0.0
          %583 = vst [vmem:[#allocation2 + $0x38] sm:$0xff] 0.0
        $region112: #{tpu_custom_call.1} parent=63 // pred_fallthru
          _
        %v584 = vld [vmem:[#allocation2] sm:$0xff]
        %v585 = vld [vmem:[#allocation2 + $0x8] sm:$0xff]
        %v586 = vld [vmem:[#allocation2 + $0x10] sm:$0xff]
        %v587 = vld [vmem:[#allocation2 + $0x18] sm:$0xff]
        %v588 = vld [vmem:[#allocation2 + $0x20] sm:$0xff]
        %v589 = vld [vmem:[#allocation2 + $0x28] sm:$0xff]
        %v590 = vld [vmem:[#allocation2 + $0x30] sm:$0xff]
        %v591 = vld [vmem:[#allocation2 + $0x38] sm:$0xff]
        %v592 = vld [vmem:[%s475] sm:$0xff]
        %v593 = vld [vmem:[%s475 + $0x8] sm:$0xff]
        %v594 = vld [vmem:[%s475 + $0x10] sm:$0xff]
        %v595 = vld [vmem:[%s475 + $0x18] sm:$0xff]
        %v596 = vld [vmem:[%s475 + $0x20] sm:$0xff]
        %v597 = vld [vmem:[%s475 + $0x28] sm:$0xff]
        %v598 = vld [vmem:[%s485] sm:$0xff]
        %v599 = vld [vmem:[%s485 + $0x8] sm:$0xff]
        %v600 = vld [vmem:[%s485 + $0x10] sm:$0xff]
        %v601 = vld [vmem:[%s485 + $0x18] sm:$0xff]
        %v602 = vld [vmem:[%s485 + $0x20] sm:$0xff]
        %v603 = vld [vmem:[%s485 + $0x28] sm:$0xff]
        %v604 = vld [vmem:[%s485 + $0x30] sm:$0xff]
        %v605 = vld [vmem:[%s485 + $0x38] sm:$0xff]
        %v606 = vld [vmem:[%s485 + $0x40] sm:$0xff]
        %v607 = vld [vmem:[%s485 + $0x48] sm:$0xff]
        %v608 = vld [vmem:[%s485 + $0x50] sm:$0xff]
        %v609 = vld [vmem:[%s485 + $0x58] sm:$0xff]
        %v610 = vld [vmem:[%s485 + $0x60] sm:$0xff]
        %v611 = vld [vmem:[%s485 + $0x68] sm:$0xff]
        %v612 = vld [vmem:[%s485 + $0x70] sm:$0xff]
        %v613 = vld [vmem:[%s485 + $0x78] sm:$0xff]
        %v614 = vld [vmem:[%s485 + $0x80] sm:$0xff]
        %v615 = vld [vmem:[%s485 + $0x88] sm:$0xff]
        %v616 = vld [vmem:[%s485 + $0x90] sm:$0xff]
        %v617 = vld [vmem:[%s485 + $0x98] sm:$0xff]
        %v618 = vld [vmem:[%s485 + $0xa0] sm:$0xff]
        %v619 = vld [vmem:[%s485 + $0xa8] sm:$0xff]
        %v620 = vld [vmem:[%s485 + $0xb0] sm:$0xff]
        %v621 = vld [vmem:[%s485 + $0xb8] sm:$0xff]
        %v622 = vld [vmem:[%s485 + $0xc0] sm:$0xff]
        %v623 = vld [vmem:[%s485 + $0xc8] sm:$0xff]
        %v624 = vld [vmem:[%s485 + $0xd0] sm:$0xff]
        %v625 = vld [vmem:[%s485 + $0xd8] sm:$0xff]
        %v626 = vld [vmem:[%s485 + $0xe0] sm:$0xff]
        %v627 = vld [vmem:[%s485 + $0xe8] sm:$0xff]
        %v628 = vld [vmem:[%s485 + $0xf0] sm:$0xff]
        %v629 = vld [vmem:[%s485 + $0xf8] sm:$0xff]
        %v630 = vld [vmem:[%s485 + $0x100] sm:$0xff]
        %v631 = vld [vmem:[%s485 + $0x108] sm:$0xff]
        %v632 = vld [vmem:[%s485 + $0x110] sm:$0xff]
        %v633 = vld [vmem:[%s485 + $0x118] sm:$0xff]
        %v634 = vld [vmem:[%s485 + $0x120] sm:$0xff]
        %v635 = vld [vmem:[%s485 + $0x128] sm:$0xff]
        %v636 = vld [vmem:[%s485 + $0x130] sm:$0xff]
        %v637 = vld [vmem:[%s485 + $0x138] sm:$0xff]
        %v638 = vld [vmem:[%s485 + $0x140] sm:$0xff]
        %v639 = vld [vmem:[%s485 + $0x148] sm:$0xff]
        %v640 = vld [vmem:[%s485 + $0x150] sm:$0xff]
        %v641 = vld [vmem:[%s485 + $0x158] sm:$0xff]
        %v642 = vld [vmem:[%s485 + $0x160] sm:$0xff]
        %v643 = vld [vmem:[%s485 + $0x168] sm:$0xff]
        %v644 = vld [vmem:[%s485 + $0x170] sm:$0xff]
        %v645 = vld [vmem:[%s485 + $0x178] sm:$0xff]
        %v646 = vld [vmem:[%s485 + $0x180] sm:$0xff]
        %v647 = vld [vmem:[%s485 + $0x188] sm:$0xff]
        %v648 = vld [vmem:[%s485 + $0x190] sm:$0xff]
        %v649 = vld [vmem:[%s485 + $0x198] sm:$0xff]
        %v650 = vld [vmem:[%s485 + $0x1a0] sm:$0xff]
        %v651 = vld [vmem:[%s485 + $0x1a8] sm:$0xff]
        %v652 = vld [vmem:[%s485 + $0x1b0] sm:$0xff]
        %v653 = vld [vmem:[%s485 + $0x1b8] sm:$0xff]
        %v654 = vld [vmem:[%s485 + $0x1c0] sm:$0xff]
        %v655 = vld [vmem:[%s485 + $0x1c8] sm:$0xff]
        %v656 = vld [vmem:[%s485 + $0x1d0] sm:$0xff]
        %v657 = vld [vmem:[%s485 + $0x1d8] sm:$0xff]
        %v658 = vld [vmem:[%s485 + $0x1e0] sm:$0xff]
        %v659 = vld [vmem:[%s485 + $0x1e8] sm:$0xff]
        %v660 = vld [vmem:[%s485 + $0x1f0] sm:$0xff]
        %v661 = vld [vmem:[%s485 + $0x1f8] sm:$0xff]
        %v662 = vld [vmem:[%s485 + $0x200] sm:$0xff]
        %v663 = vld [vmem:[%s485 + $0x208] sm:$0xff]
        %v664 = vld [vmem:[%s485 + $0x210] sm:$0xff]
        %v665 = vld [vmem:[%s485 + $0x218] sm:$0xff]
        %v666 = vld [vmem:[%s485 + $0x220] sm:$0xff]
        %v667 = vld [vmem:[%s485 + $0x228] sm:$0xff]
        %v668 = vld [vmem:[%s485 + $0x230] sm:$0xff]
        %v669 = vld [vmem:[%s485 + $0x238] sm:$0xff]
        %v670 = vld [vmem:[%s485 + $0x240] sm:$0xff]
        %v671 = vld [vmem:[%s485 + $0x248] sm:$0xff]
        %v672 = vld [vmem:[%s485 + $0x250] sm:$0xff]
        %v673 = vld [vmem:[%s485 + $0x258] sm:$0xff]
        %v674 = vld [vmem:[%s485 + $0x260] sm:$0xff]
        %v675 = vld [vmem:[%s485 + $0x268] sm:$0xff]
        %v676 = vld [vmem:[%s485 + $0x270] sm:$0xff]
        %v677 = vld [vmem:[%s485 + $0x278] sm:$0xff]
        %v678 = vld [vmem:[%s485 + $0x280] sm:$0xff]
        %v679 = vld [vmem:[%s485 + $0x288] sm:$0xff]
        %v680 = vld [vmem:[%s485 + $0x290] sm:$0xff]
        %v681 = vld [vmem:[%s485 + $0x298] sm:$0xff]
        %v682 = vld [vmem:[%s485 + $0x2a0] sm:$0xff]
        %v683 = vld [vmem:[%s485 + $0x2a8] sm:$0xff]
        %v684 = vld [vmem:[%s485 + $0x2b0] sm:$0xff]
        %v685 = vld [vmem:[%s485 + $0x2b8] sm:$0xff]
        %v686 = vld [vmem:[%s485 + $0x2c0] sm:$0xff]
        %v687 = vld [vmem:[%s485 + $0x2c8] sm:$0xff]
        %v688 = vld [vmem:[%s485 + $0x2d0] sm:$0xff]
        %v689 = vld [vmem:[%s485 + $0x2d8] sm:$0xff]
        %v690 = vld [vmem:[%s485 + $0x2e0] sm:$0xff]
        %v691 = vld [vmem:[%s485 + $0x2e8] sm:$0xff]
        %v692 = vld [vmem:[%s485 + $0x2f0] sm:$0xff]
        %v693 = vld [vmem:[%s485 + $0x2f8] sm:$0xff]
        %v694 = vld [vmem:[%s485 + $0x300] sm:$0xff]
        %v695 = vld [vmem:[%s485 + $0x308] sm:$0xff]
        %v696 = vld [vmem:[%s485 + $0x310] sm:$0xff]
        %v697 = vld [vmem:[%s485 + $0x318] sm:$0xff]
        %v698 = vld [vmem:[%s485 + $0x320] sm:$0xff]
        %v699 = vld [vmem:[%s485 + $0x328] sm:$0xff]
        %v700 = vld [vmem:[%s485 + $0x330] sm:$0xff]
        %v701 = vld [vmem:[%s485 + $0x338] sm:$0xff]
        %v702 = vld [vmem:[%s485 + $0x340] sm:$0xff]
        %v703 = vld [vmem:[%s485 + $0x348] sm:$0xff]
        %v704 = vld [vmem:[%s485 + $0x350] sm:$0xff]
        %v705 = vld [vmem:[%s485 + $0x358] sm:$0xff]
        %v706 = vld [vmem:[%s485 + $0x360] sm:$0xff]
        %v707 = vld [vmem:[%s485 + $0x368] sm:$0xff]
        %v708 = vld [vmem:[%s485 + $0x370] sm:$0xff]
        %v709 = vld [vmem:[%s485 + $0x378] sm:$0xff]
        %v710 = vld [vmem:[%s485 + $0x380] sm:$0xff]
        %v711 = vld [vmem:[%s485 + $0x388] sm:$0xff]
        %v712 = vld [vmem:[%s485 + $0x390] sm:$0xff]
        %v713 = vld [vmem:[%s485 + $0x398] sm:$0xff]
        %v714 = vld [vmem:[%s485 + $0x3a0] sm:$0xff]
        %v715 = vld [vmem:[%s485 + $0x3a8] sm:$0xff]
        %v716 = vld [vmem:[%s485 + $0x3b0] sm:$0xff]
        %v717 = vld [vmem:[%s485 + $0x3b8] sm:$0xff]
        %v718 = vld [vmem:[%s485 + $0x3c0] sm:$0xff]
        %v719 = vld [vmem:[%s485 + $0x3c8] sm:$0xff]
        %v720 = vld [vmem:[%s485 + $0x3d0] sm:$0xff]
        %v721 = vld [vmem:[%s485 + $0x3d8] sm:$0xff]
        %v722 = vld [vmem:[%s485 + $0x3e0] sm:$0xff]
        %v723 = vld [vmem:[%s485 + $0x3e8] sm:$0xff]
        %v724 = vld [vmem:[%s485 + $0x3f0] sm:$0xff]
        %v725 = vld [vmem:[%s485 + $0x3f8] sm:$0xff]
        %v726 = vld [vmem:[%s485 + $0x400] sm:$0xff]
        %v727 = vld [vmem:[%s485 + $0x408] sm:$0xff]
        %v728 = vld [vmem:[%s485 + $0x410] sm:$0xff]
        %v729 = vld [vmem:[%s485 + $0x418] sm:$0xff]
        %v730 = vld [vmem:[%s485 + $0x420] sm:$0xff]
        %v731 = vld [vmem:[%s485 + $0x428] sm:$0xff]
        %v732 = vld [vmem:[%s485 + $0x430] sm:$0xff]
        %v733 = vld [vmem:[%s485 + $0x438] sm:$0xff]
        %v734 = vld [vmem:[%s485 + $0x440] sm:$0xff]
        %v735 = vld [vmem:[%s485 + $0x448] sm:$0xff]
        %v736 = vld [vmem:[%s485 + $0x450] sm:$0xff]
        %v737 = vld [vmem:[%s485 + $0x458] sm:$0xff]
        %v738 = vld [vmem:[%s485 + $0x460] sm:$0xff]
        %v739 = vld [vmem:[%s485 + $0x468] sm:$0xff]
        %v740 = vld [vmem:[%s485 + $0x470] sm:$0xff]
        %v741 = vld [vmem:[%s485 + $0x478] sm:$0xff]
        %v742 = vld [vmem:[%s485 + $0x480] sm:$0xff]
        %v743 = vld [vmem:[%s485 + $0x488] sm:$0xff]
        %v744 = vld [vmem:[%s485 + $0x490] sm:$0xff]
        %v745 = vld [vmem:[%s485 + $0x498] sm:$0xff]
        %v746 = vld [vmem:[%s485 + $0x4a0] sm:$0xff]
        %v747 = vld [vmem:[%s485 + $0x4a8] sm:$0xff]
        %v748 = vld [vmem:[%s485 + $0x4b0] sm:$0xff]
        %v749 = vld [vmem:[%s485 + $0x4b8] sm:$0xff]
        %v750 = vld [vmem:[%s485 + $0x4c0] sm:$0xff]
        %v751 = vld [vmem:[%s485 + $0x4c8] sm:$0xff]
        %v752 = vld [vmem:[%s485 + $0x4d0] sm:$0xff]
        %v753 = vld [vmem:[%s485 + $0x4d8] sm:$0xff]
        %v754 = vld [vmem:[%s485 + $0x4e0] sm:$0xff]
        %v755 = vld [vmem:[%s485 + $0x4e8] sm:$0xff]
        %v756 = vld [vmem:[%s485 + $0x4f0] sm:$0xff]
        %v757 = vld [vmem:[%s485 + $0x4f8] sm:$0xff]
        %v758 = vld [vmem:[%s485 + $0x500] sm:$0xff]
        %v759 = vld [vmem:[%s485 + $0x508] sm:$0xff]
        %v760 = vld [vmem:[%s485 + $0x510] sm:$0xff]
        %v761 = vld [vmem:[%s485 + $0x518] sm:$0xff]
        %v762 = vld [vmem:[%s485 + $0x520] sm:$0xff]
        %v763 = vld [vmem:[%s485 + $0x528] sm:$0xff]
        %v764 = vld [vmem:[%s485 + $0x530] sm:$0xff]
        %v765 = vld [vmem:[%s485 + $0x538] sm:$0xff]
        %v766 = vld [vmem:[%s485 + $0x540] sm:$0xff]
        %v767 = vld [vmem:[%s485 + $0x548] sm:$0xff]
        %v768 = vld [vmem:[%s485 + $0x550] sm:$0xff]
        %v769 = vld [vmem:[%s485 + $0x558] sm:$0xff]
        %v770 = vld [vmem:[%s485 + $0x560] sm:$0xff]
        %v771 = vld [vmem:[%s485 + $0x568] sm:$0xff]
        %v772 = vld [vmem:[%s485 + $0x570] sm:$0xff]
        %v773 = vld [vmem:[%s485 + $0x578] sm:$0xff]
        %v774 = vld [vmem:[%s485 + $0x580] sm:$0xff]
        %v775 = vld [vmem:[%s485 + $0x588] sm:$0xff]
        %v776 = vld [vmem:[%s485 + $0x590] sm:$0xff]
        %v777 = vld [vmem:[%s485 + $0x598] sm:$0xff]
        %v778 = vld [vmem:[%s485 + $0x5a0] sm:$0xff]
        %v779 = vld [vmem:[%s485 + $0x5a8] sm:$0xff]
        %v780 = vld [vmem:[%s485 + $0x5b0] sm:$0xff]
        %v781 = vld [vmem:[%s485 + $0x5b8] sm:$0xff]
        %v782 = vld [vmem:[%s485 + $0x5c0] sm:$0xff]
        %v783 = vld [vmem:[%s485 + $0x5c8] sm:$0xff]
        %v784 = vld [vmem:[%s485 + $0x5d0] sm:$0xff]
        %v785 = vld [vmem:[%s485 + $0x5d8] sm:$0xff]
        %v786 = vld [vmem:[%s485 + $0x5e0] sm:$0xff]
        %v787 = vld [vmem:[%s485 + $0x5e8] sm:$0xff]
        %v788 = vld [vmem:[%s485 + $0x5f0] sm:$0xff]
        %v789 = vld [vmem:[%s485 + $0x5f8] sm:$0xff]
        %v790 = vld [vmem:[%s485 + $0x600] sm:$0xff]
        %v791 = vld [vmem:[%s485 + $0x608] sm:$0xff]
        %v792 = vld [vmem:[%s485 + $0x610] sm:$0xff]
        %v793 = vld [vmem:[%s485 + $0x618] sm:$0xff]
        %v794 = vld [vmem:[%s485 + $0x620] sm:$0xff]
        %v795 = vld [vmem:[%s485 + $0x628] sm:$0xff]
        %v796 = vld [vmem:[%s485 + $0x630] sm:$0xff]
        %v797 = vld [vmem:[%s485 + $0x638] sm:$0xff]
        %v798 = vld [vmem:[%s485 + $0x640] sm:$0xff]
        %v799 = vld [vmem:[%s485 + $0x648] sm:$0xff]
        %v800 = vld [vmem:[%s485 + $0x650] sm:$0xff]
        %v801 = vld [vmem:[%s485 + $0x658] sm:$0xff]
        %v802 = vld [vmem:[%s485 + $0x660] sm:$0xff]
        %v803 = vld [vmem:[%s485 + $0x668] sm:$0xff]
        %v804 = vld [vmem:[%s485 + $0x670] sm:$0xff]
        %v805 = vld [vmem:[%s485 + $0x678] sm:$0xff]
        %v806 = vld [vmem:[%s485 + $0x680] sm:$0xff]
        %v807 = vld [vmem:[%s485 + $0x688] sm:$0xff]
        %v808 = vld [vmem:[%s485 + $0x690] sm:$0xff]
        %v809 = vld [vmem:[%s485 + $0x698] sm:$0xff]
        %v810 = vld [vmem:[%s485 + $0x6a0] sm:$0xff]
        %v811 = vld [vmem:[%s485 + $0x6a8] sm:$0xff]
        %v812 = vld [vmem:[%s485 + $0x6b0] sm:$0xff]
        %v813 = vld [vmem:[%s485 + $0x6b8] sm:$0xff]
        %v814 = vld [vmem:[%s485 + $0x6c0] sm:$0xff]
        %v815 = vld [vmem:[%s485 + $0x6c8] sm:$0xff]
        %v816 = vld [vmem:[%s485 + $0x6d0] sm:$0xff]
        %v817 = vld [vmem:[%s485 + $0x6d8] sm:$0xff]
        %v818 = vld [vmem:[%s485 + $0x6e0] sm:$0xff]
        %v819 = vld [vmem:[%s485 + $0x6e8] sm:$0xff]
        %v820 = vld [vmem:[%s485 + $0x6f0] sm:$0xff]
        %v821 = vld [vmem:[%s485 + $0x6f8] sm:$0xff]
        %v822 = vld [vmem:[%s485 + $0x700] sm:$0xff]
        %v823 = vld [vmem:[%s485 + $0x708] sm:$0xff]
        %v824 = vld [vmem:[%s485 + $0x710] sm:$0xff]
        %v825 = vld [vmem:[%s485 + $0x718] sm:$0xff]
        %v826 = vld [vmem:[%s485 + $0x720] sm:$0xff]
        %v827 = vld [vmem:[%s485 + $0x728] sm:$0xff]
        %v828 = vld [vmem:[%s485 + $0x730] sm:$0xff]
        %v829 = vld [vmem:[%s485 + $0x738] sm:$0xff]
        %v830 = vld [vmem:[%s485 + $0x740] sm:$0xff]
        %v831 = vld [vmem:[%s485 + $0x748] sm:$0xff]
        %v832 = vld [vmem:[%s485 + $0x750] sm:$0xff]
        %v833 = vld [vmem:[%s485 + $0x758] sm:$0xff]
        %v834 = vld [vmem:[%s485 + $0x760] sm:$0xff]
        %v835 = vld [vmem:[%s485 + $0x768] sm:$0xff]
        %v836 = vld [vmem:[%s485 + $0x770] sm:$0xff]
        %v837 = vld [vmem:[%s485 + $0x778] sm:$0xff]
        %v838 = vld [vmem:[%s485 + $0x780] sm:$0xff]
        %v839 = vld [vmem:[%s485 + $0x788] sm:$0xff]
        %v840 = vld [vmem:[%s485 + $0x790] sm:$0xff]
        %v841 = vld [vmem:[%s485 + $0x798] sm:$0xff]
        %v842 = vld [vmem:[%s485 + $0x7a0] sm:$0xff]
        %v843 = vld [vmem:[%s485 + $0x7a8] sm:$0xff]
        %v844 = vld [vmem:[%s485 + $0x7b0] sm:$0xff]
        %v845 = vld [vmem:[%s485 + $0x7b8] sm:$0xff]
        %v846 = vld [vmem:[%s485 + $0x7c0] sm:$0xff]
        %v847 = vld [vmem:[%s485 + $0x7c8] sm:$0xff]
        %v848 = vld [vmem:[%s485 + $0x7d0] sm:$0xff]
        %v849 = vld [vmem:[%s485 + $0x7d8] sm:$0xff]
        %v850 = vld [vmem:[%s485 + $0x7e0] sm:$0xff]
        %v851 = vld [vmem:[%s485 + $0x7e8] sm:$0xff]
        %v852 = vld [vmem:[%s485 + $0x7f0] sm:$0xff]
        %v853 = vld [vmem:[%s485 + $0x7f8] sm:$0xff]
        %v854 = vld [vmem:[%s485 + $0x800] sm:$0xff]
        %v855 = vld [vmem:[%s485 + $0x808] sm:$0xff]
        %v856 = vld [vmem:[%s485 + $0x810] sm:$0xff]
        %v857 = vld [vmem:[%s485 + $0x818] sm:$0xff]
        %v858 = vld [vmem:[%s485 + $0x820] sm:$0xff]
        %v859 = vld [vmem:[%s485 + $0x828] sm:$0xff]
        %v860 = vld [vmem:[%s485 + $0x830] sm:$0xff]
        %v861 = vld [vmem:[%s485 + $0x838] sm:$0xff]
        %v862 = vld [vmem:[%s485 + $0x840] sm:$0xff]
        %v863 = vld [vmem:[%s485 + $0x848] sm:$0xff]
        %v864 = vld [vmem:[%s485 + $0x850] sm:$0xff]
        %v865 = vld [vmem:[%s485 + $0x858] sm:$0xff]
        %v866 = vld [vmem:[%s485 + $0x860] sm:$0xff]
        %v867 = vld [vmem:[%s485 + $0x868] sm:$0xff]
        %v868 = vld [vmem:[%s485 + $0x870] sm:$0xff]
        %v869 = vld [vmem:[%s485 + $0x878] sm:$0xff]
        %v870 = vld [vmem:[%s485 + $0x880] sm:$0xff]
        %v871 = vld [vmem:[%s485 + $0x888] sm:$0xff]
        %v872 = vld [vmem:[%s485 + $0x890] sm:$0xff]
        %v873 = vld [vmem:[%s485 + $0x898] sm:$0xff]
        %v874 = vld [vmem:[%s485 + $0x8a0] sm:$0xff]
        %v875 = vld [vmem:[%s485 + $0x8a8] sm:$0xff]
        %v876 = vld [vmem:[%s485 + $0x8b0] sm:$0xff]
        %v877 = vld [vmem:[%s485 + $0x8b8] sm:$0xff]
        %v878 = vld [vmem:[%s485 + $0x8c0] sm:$0xff]
        %v879 = vld [vmem:[%s485 + $0x8c8] sm:$0xff]
        %v880 = vld [vmem:[%s485 + $0x8d0] sm:$0xff]
        %v881 = vld [vmem:[%s485 + $0x8d8] sm:$0xff]
        %v882 = vld [vmem:[%s485 + $0x8e0] sm:$0xff]
        %v883 = vld [vmem:[%s485 + $0x8e8] sm:$0xff]
        %v884 = vld [vmem:[%s485 + $0x8f0] sm:$0xff]
        %v885 = vld [vmem:[%s485 + $0x8f8] sm:$0xff]
        %v886 = vld [vmem:[%s485 + $0x900] sm:$0xff]
        %v887 = vld [vmem:[%s485 + $0x908] sm:$0xff]
        %v888 = vld [vmem:[%s485 + $0x910] sm:$0xff]
        %v889 = vld [vmem:[%s485 + $0x918] sm:$0xff]
        %v890 = vld [vmem:[%s485 + $0x920] sm:$0xff]
        %v891 = vld [vmem:[%s485 + $0x928] sm:$0xff]
        %v892 = vld [vmem:[%s485 + $0x930] sm:$0xff]
        %v893 = vld [vmem:[%s485 + $0x938] sm:$0xff]
        %v894 = vld [vmem:[%s485 + $0x940] sm:$0xff]
        %v895 = vld [vmem:[%s485 + $0x948] sm:$0xff]
        %v896 = vld [vmem:[%s485 + $0x950] sm:$0xff]
        %v897 = vld [vmem:[%s485 + $0x958] sm:$0xff]
        %v898 = vld [vmem:[%s485 + $0x960] sm:$0xff]
        %v899 = vld [vmem:[%s485 + $0x968] sm:$0xff]
        %v900 = vld [vmem:[%s485 + $0x970] sm:$0xff]
        %v901 = vld [vmem:[%s485 + $0x978] sm:$0xff]
        %v902 = vld [vmem:[%s485 + $0x980] sm:$0xff]
        %v903 = vld [vmem:[%s485 + $0x988] sm:$0xff]
        %v904 = vld [vmem:[%s485 + $0x990] sm:$0xff]
        %v905 = vld [vmem:[%s485 + $0x998] sm:$0xff]
        %v906 = vld [vmem:[%s485 + $0x9a0] sm:$0xff]
        %v907 = vld [vmem:[%s485 + $0x9a8] sm:$0xff]
        %v908 = vld [vmem:[%s485 + $0x9b0] sm:$0xff]
        %v909 = vld [vmem:[%s485 + $0x9b8] sm:$0xff]
        %v910 = vld [vmem:[%s485 + $0x9c0] sm:$0xff]
        %v911 = vld [vmem:[%s485 + $0x9c8] sm:$0xff]
        %v912 = vld [vmem:[%s485 + $0x9d0] sm:$0xff]
        %v913 = vld [vmem:[%s485 + $0x9d8] sm:$0xff]
        %v914 = vld [vmem:[%s485 + $0x9e0] sm:$0xff]
        %v915 = vld [vmem:[%s485 + $0x9e8] sm:$0xff]
        %v916 = vld [vmem:[%s485 + $0x9f0] sm:$0xff]
        %v917 = vld [vmem:[%s485 + $0x9f8] sm:$0xff]
        %v918 = vld [vmem:[%s485 + $0xa00] sm:$0xff]
        %v919 = vld [vmem:[%s485 + $0xa08] sm:$0xff]
        %v920 = vld [vmem:[%s485 + $0xa10] sm:$0xff]
        %v921 = vld [vmem:[%s485 + $0xa18] sm:$0xff]
        %v922 = vld [vmem:[%s485 + $0xa20] sm:$0xff]
        %v923 = vld [vmem:[%s485 + $0xa28] sm:$0xff]
        %v924 = vld [vmem:[%s485 + $0xa30] sm:$0xff]
        %v925 = vld [vmem:[%s485 + $0xa38] sm:$0xff]
        %v926 = vld [vmem:[%s485 + $0xa40] sm:$0xff]
        %v927 = vld [vmem:[%s485 + $0xa48] sm:$0xff]
        %v928 = vld [vmem:[%s485 + $0xa50] sm:$0xff]
        %v929 = vld [vmem:[%s485 + $0xa58] sm:$0xff]
        %v930 = vld [vmem:[%s485 + $0xa60] sm:$0xff]
        %v931 = vld [vmem:[%s485 + $0xa68] sm:$0xff]
        %v932 = vld [vmem:[%s485 + $0xa70] sm:$0xff]
        %v933 = vld [vmem:[%s485 + $0xa78] sm:$0xff]
        %v934 = vld [vmem:[%s485 + $0xa80] sm:$0xff]
        %v935 = vld [vmem:[%s485 + $0xa88] sm:$0xff]
        %v936 = vld [vmem:[%s485 + $0xa90] sm:$0xff]
        %v937 = vld [vmem:[%s485 + $0xa98] sm:$0xff]
        %v938 = vld [vmem:[%s485 + $0xaa0] sm:$0xff]
        %v939 = vld [vmem:[%s485 + $0xaa8] sm:$0xff]
        %v940 = vld [vmem:[%s485 + $0xab0] sm:$0xff]
        %v941 = vld [vmem:[%s485 + $0xab8] sm:$0xff]
        %v942 = vld [vmem:[%s485 + $0xac0] sm:$0xff]
        %v943 = vld [vmem:[%s485 + $0xac8] sm:$0xff]
        %v944 = vld [vmem:[%s485 + $0xad0] sm:$0xff]
        %v945 = vld [vmem:[%s485 + $0xad8] sm:$0xff]
        %v946 = vld [vmem:[%s485 + $0xae0] sm:$0xff]
        %v947 = vld [vmem:[%s485 + $0xae8] sm:$0xff]
        %v948 = vld [vmem:[%s485 + $0xaf0] sm:$0xff]
        %v949 = vld [vmem:[%s485 + $0xaf8] sm:$0xff]
        %v950 = vld [vmem:[%s485 + $0xb00] sm:$0xff]
        %v951 = vld [vmem:[%s485 + $0xb08] sm:$0xff]
        %v952 = vld [vmem:[%s485 + $0xb10] sm:$0xff]
        %v953 = vld [vmem:[%s485 + $0xb18] sm:$0xff]
        %v954 = vld [vmem:[%s485 + $0xb20] sm:$0xff]
        %v955 = vld [vmem:[%s485 + $0xb28] sm:$0xff]
        %v956 = vld [vmem:[%s485 + $0xb30] sm:$0xff]
        %v957 = vld [vmem:[%s485 + $0xb38] sm:$0xff]
        %v958 = vld [vmem:[%s485 + $0xb40] sm:$0xff]
        %v959 = vld [vmem:[%s485 + $0xb48] sm:$0xff]
        %v960 = vld [vmem:[%s485 + $0xb50] sm:$0xff]
        %v961 = vld [vmem:[%s485 + $0xb58] sm:$0xff]
        %v962 = vld [vmem:[%s485 + $0xb60] sm:$0xff]
        %v963 = vld [vmem:[%s485 + $0xb68] sm:$0xff]
        %v964 = vld [vmem:[%s485 + $0xb70] sm:$0xff]
        %v965 = vld [vmem:[%s485 + $0xb78] sm:$0xff]
        %v966 = vld [vmem:[%s485 + $0xb80] sm:$0xff]
        %v967 = vld [vmem:[%s485 + $0xb88] sm:$0xff]
        %v968 = vld [vmem:[%s485 + $0xb90] sm:$0xff]
        %v969 = vld [vmem:[%s485 + $0xb98] sm:$0xff]
        %v970 = vld [vmem:[%s485 + $0xba0] sm:$0xff]
        %v971 = vld [vmem:[%s485 + $0xba8] sm:$0xff]
        %v972 = vld [vmem:[%s485 + $0xbb0] sm:$0xff]
        %v973 = vld [vmem:[%s485 + $0xbb8] sm:$0xff]
        %v974 = vld [vmem:[%s485 + $0xbc0] sm:$0xff]
        %v975 = vld [vmem:[%s485 + $0xbc8] sm:$0xff]
        %v976 = vld [vmem:[%s485 + $0xbd0] sm:$0xff]
        %v977 = vld [vmem:[%s485 + $0xbd8] sm:$0xff]
        %v978 = vld [vmem:[%s485 + $0xbe0] sm:$0xff]
        %v979 = vld [vmem:[%s485 + $0xbe8] sm:$0xff]
        %v980 = vld [vmem:[%s485 + $0xbf0] sm:$0xff]
        %v981 = vld [vmem:[%s485 + $0xbf8] sm:$0xff]
        %v982 = vld [vmem:[%s485 + $0xc00] sm:$0xff]
        %v983 = vld [vmem:[%s485 + $0xc08] sm:$0xff]
        %v984 = vld [vmem:[%s485 + $0xc10] sm:$0xff]
        %v985 = vld [vmem:[%s485 + $0xc18] sm:$0xff]
        %v986 = vld [vmem:[%s485 + $0xc20] sm:$0xff]
        %v987 = vld [vmem:[%s485 + $0xc28] sm:$0xff]
        %v988 = vld [vmem:[%s485 + $0xc30] sm:$0xff]
        %v989 = vld [vmem:[%s485 + $0xc38] sm:$0xff]
        %v990 = vld [vmem:[%s485 + $0xc40] sm:$0xff]
        %v991 = vld [vmem:[%s485 + $0xc48] sm:$0xff]
        %v992 = vld [vmem:[%s485 + $0xc50] sm:$0xff]
        %v993 = vld [vmem:[%s485 + $0xc58] sm:$0xff]
        %v994 = vld [vmem:[%s485 + $0xc60] sm:$0xff]
        %v995 = vld [vmem:[%s485 + $0xc68] sm:$0xff]
        %v996 = vld [vmem:[%s485 + $0xc70] sm:$0xff]
        %v997 = vld [vmem:[%s485 + $0xc78] sm:$0xff]
        %v998 = vld [vmem:[%s485 + $0xc80] sm:$0xff]
        %v999 = vld [vmem:[%s485 + $0xc88] sm:$0xff]
        %v1000 = vld [vmem:[%s485 + $0xc90] sm:$0xff]
        %v1001 = vld [vmem:[%s485 + $0xc98] sm:$0xff]
        %v1002 = vld [vmem:[%s485 + $0xca0] sm:$0xff]
        %v1003 = vld [vmem:[%s485 + $0xca8] sm:$0xff]
        %v1004 = vld [vmem:[%s485 + $0xcb0] sm:$0xff]
        %v1005 = vld [vmem:[%s485 + $0xcb8] sm:$0xff]
        %v1006 = vld [vmem:[%s485 + $0xcc0] sm:$0xff]
        %v1007 = vld [vmem:[%s485 + $0xcc8] sm:$0xff]
        %v1008 = vld [vmem:[%s485 + $0xcd0] sm:$0xff]
        %v1009 = vld [vmem:[%s485 + $0xcd8] sm:$0xff]
        %v1010 = vld [vmem:[%s485 + $0xce0] sm:$0xff]
        %v1011 = vld [vmem:[%s485 + $0xce8] sm:$0xff]
        %v1012 = vld [vmem:[%s485 + $0xcf0] sm:$0xff]
        %v1013 = vld [vmem:[%s485 + $0xcf8] sm:$0xff]
        %v1014 = vld [vmem:[%s485 + $0xd00] sm:$0xff]
        %v1015 = vld [vmem:[%s485 + $0xd08] sm:$0xff]
        %v1016 = vld [vmem:[%s485 + $0xd10] sm:$0xff]
        %v1017 = vld [vmem:[%s485 + $0xd18] sm:$0xff]
        %v1018 = vld [vmem:[%s485 + $0xd20] sm:$0xff]
        %v1019 = vld [vmem:[%s485 + $0xd28] sm:$0xff]
        %v1020 = vld [vmem:[%s485 + $0xd30] sm:$0xff]
        %v1021 = vld [vmem:[%s485 + $0xd38] sm:$0xff]
        %v1022 = vld [vmem:[%s485 + $0xd40] sm:$0xff]
        %v1023 = vld [vmem:[%s485 + $0xd48] sm:$0xff]
        %v1024 = vld [vmem:[%s485 + $0xd50] sm:$0xff]
        %v1025 = vld [vmem:[%s485 + $0xd58] sm:$0xff]
        %v1026 = vld [vmem:[%s485 + $0xd60] sm:$0xff]
        %v1027 = vld [vmem:[%s485 + $0xd68] sm:$0xff]
        %v1028 = vld [vmem:[%s485 + $0xd70] sm:$0xff]
        %v1029 = vld [vmem:[%s485 + $0xd78] sm:$0xff]
        %v1030 = vld [vmem:[%s485 + $0xd80] sm:$0xff]
        %v1031 = vld [vmem:[%s485 + $0xd88] sm:$0xff]
        %v1032 = vld [vmem:[%s485 + $0xd90] sm:$0xff]
        %v1033 = vld [vmem:[%s485 + $0xd98] sm:$0xff]
        %v1034 = vld [vmem:[%s485 + $0xda0] sm:$0xff]
        %v1035 = vld [vmem:[%s485 + $0xda8] sm:$0xff]
        %v1036 = vld [vmem:[%s485 + $0xdb0] sm:$0xff]
        %v1037 = vld [vmem:[%s485 + $0xdb8] sm:$0xff]
        %v1038 = vld [vmem:[%s485 + $0xdc0] sm:$0xff]
        %v1039 = vld [vmem:[%s485 + $0xdc8] sm:$0xff]
        %v1040 = vld [vmem:[%s485 + $0xdd0] sm:$0xff]
        %v1041 = vld [vmem:[%s485 + $0xdd8] sm:$0xff]
        %v1042 = vld [vmem:[%s485 + $0xde0] sm:$0xff]
        %v1043 = vld [vmem:[%s485 + $0xde8] sm:$0xff]
        %v1044 = vld [vmem:[%s485 + $0xdf0] sm:$0xff]
        %v1045 = vld [vmem:[%s485 + $0xdf8] sm:$0xff]
        %v1046 = vld [vmem:[%s485 + $0xe00] sm:$0xff]
        %v1047 = vld [vmem:[%s485 + $0xe08] sm:$0xff]
        %v1048 = vld [vmem:[%s485 + $0xe10] sm:$0xff]
        %v1049 = vld [vmem:[%s485 + $0xe18] sm:$0xff]
        %v1050 = vld [vmem:[%s485 + $0xe20] sm:$0xff]
        %v1051 = vld [vmem:[%s485 + $0xe28] sm:$0xff]
        %v1052 = vld [vmem:[%s485 + $0xe30] sm:$0xff]
        %v1053 = vld [vmem:[%s485 + $0xe38] sm:$0xff]
        %v1054 = vld [vmem:[%s485 + $0xe40] sm:$0xff]
        %v1055 = vld [vmem:[%s485 + $0xe48] sm:$0xff]
        %v1056 = vld [vmem:[%s485 + $0xe50] sm:$0xff]
        %v1057 = vld [vmem:[%s485 + $0xe58] sm:$0xff]
        %v1058 = vld [vmem:[%s485 + $0xe60] sm:$0xff]
        %v1059 = vld [vmem:[%s485 + $0xe68] sm:$0xff]
        %v1060 = vld [vmem:[%s485 + $0xe70] sm:$0xff]
        %v1061 = vld [vmem:[%s485 + $0xe78] sm:$0xff]
        %v1062 = vld [vmem:[%s485 + $0xe80] sm:$0xff]
        %v1063 = vld [vmem:[%s485 + $0xe88] sm:$0xff]
        %v1064 = vld [vmem:[%s485 + $0xe90] sm:$0xff]
        %v1065 = vld [vmem:[%s485 + $0xe98] sm:$0xff]
        %v1066 = vld [vmem:[%s485 + $0xea0] sm:$0xff]
        %v1067 = vld [vmem:[%s485 + $0xea8] sm:$0xff]
        %v1068 = vld [vmem:[%s485 + $0xeb0] sm:$0xff]
        %v1069 = vld [vmem:[%s485 + $0xeb8] sm:$0xff]
        %v1070 = vld [vmem:[%s485 + $0xec0] sm:$0xff]
        %v1071 = vld [vmem:[%s485 + $0xec8] sm:$0xff]
        %v1072 = vld [vmem:[%s485 + $0xed0] sm:$0xff]
        %v1073 = vld [vmem:[%s485 + $0xed8] sm:$0xff]
        %v1074 = vld [vmem:[%s485 + $0xee0] sm:$0xff]
        %v1075 = vld [vmem:[%s485 + $0xee8] sm:$0xff]
        %v1076 = vld [vmem:[%s485 + $0xef0] sm:$0xff]
        %v1077 = vld [vmem:[%s485 + $0xef8] sm:$0xff]
        %v1078 = vld [vmem:[%s485 + $0xf00] sm:$0xff]
        %v1079 = vld [vmem:[%s485 + $0xf08] sm:$0xff]
        %v1080 = vld [vmem:[%s485 + $0xf10] sm:$0xff]
        %v1081 = vld [vmem:[%s485 + $0xf18] sm:$0xff]
        %v1082 = vld [vmem:[%s485 + $0xf20] sm:$0xff]
        %v1083 = vld [vmem:[%s485 + $0xf28] sm:$0xff]
        %v1084 = vld [vmem:[%s485 + $0xf30] sm:$0xff]
        %v1085 = vld [vmem:[%s485 + $0xf38] sm:$0xff]
        %v1086 = vld [vmem:[%s485 + $0xf40] sm:$0xff]
        %v1087 = vld [vmem:[%s485 + $0xf48] sm:$0xff]
        %v1088 = vld [vmem:[%s485 + $0xf50] sm:$0xff]
        %v1089 = vld [vmem:[%s485 + $0xf58] sm:$0xff]
        %v1090 = vld [vmem:[%s485 + $0xf60] sm:$0xff]
        %v1091 = vld [vmem:[%s485 + $0xf68] sm:$0xff]
        %v1092 = vld [vmem:[%s485 + $0xf70] sm:$0xff]
        %v1093 = vld [vmem:[%s485 + $0xf78] sm:$0xff]
        %v1094 = vld [vmem:[%s485 + $0xf80] sm:$0xff]
        %v1095 = vld [vmem:[%s485 + $0xf88] sm:$0xff]
        %v1096 = vld [vmem:[%s485 + $0xf90] sm:$0xff]
        %v1097 = vld [vmem:[%s485 + $0xf98] sm:$0xff]
        %v1098 = vld [vmem:[%s485 + $0xfa0] sm:$0xff]
        %v1099 = vld [vmem:[%s485 + $0xfa8] sm:$0xff]
        %v1100 = vld [vmem:[%s485 + $0xfb0] sm:$0xff]
        %v1101 = vld [vmem:[%s485 + $0xfb8] sm:$0xff]
        %v1102 = vld [vmem:[%s485 + $0xfc0] sm:$0xff]
        %v1103 = vld [vmem:[%s485 + $0xfc8] sm:$0xff]
        %v1104 = vld [vmem:[%s485 + $0xfd0] sm:$0xff]
        %v1105 = vld [vmem:[%s485 + $0xfd8] sm:$0xff]
        %v1106 = vld [vmem:[%s485 + $0xfe0] sm:$0xff]
        %v1107 = vld [vmem:[%s485 + $0xfe8] sm:$0xff]
        %v1108 = vld [vmem:[%s485 + $0xff0] sm:$0xff]
        %v1109 = vld [vmem:[%s485 + $0xff8] sm:$0xff]
        %v1110 = vld [vmem:[%s485 + $0x1000] sm:$0xff]
        %v1111 = vld [vmem:[%s485 + $0x1008] sm:$0xff]
        %v1112 = vld [vmem:[%s485 + $0x1010] sm:$0xff]
        %v1113 = vld [vmem:[%s485 + $0x1018] sm:$0xff]
        %v1114 = vld [vmem:[%s485 + $0x1020] sm:$0xff]
        %v1115 = vld [vmem:[%s485 + $0x1028] sm:$0xff]
        %v1116 = vld [vmem:[%s485 + $0x1030] sm:$0xff]
        %v1117 = vld [vmem:[%s485 + $0x1038] sm:$0xff]
        %v1118 = vld [vmem:[%s485 + $0x1040] sm:$0xff]
        %v1119 = vld [vmem:[%s485 + $0x1048] sm:$0xff]
        %v1120 = vld [vmem:[%s485 + $0x1050] sm:$0xff]
        %v1121 = vld [vmem:[%s485 + $0x1058] sm:$0xff]
        %v1122 = vld [vmem:[%s485 + $0x1060] sm:$0xff]
        %v1123 = vld [vmem:[%s485 + $0x1068] sm:$0xff]
        %v1124 = vld [vmem:[%s485 + $0x1070] sm:$0xff]
        %v1125 = vld [vmem:[%s485 + $0x1078] sm:$0xff]
        %v1126 = vld [vmem:[%s485 + $0x1080] sm:$0xff]
        %v1127 = vld [vmem:[%s485 + $0x1088] sm:$0xff]
        %v1128 = vld [vmem:[%s485 + $0x1090] sm:$0xff]
        %v1129 = vld [vmem:[%s485 + $0x1098] sm:$0xff]
        %v1130 = vld [vmem:[%s485 + $0x10a0] sm:$0xff]
        %v1131 = vld [vmem:[%s485 + $0x10a8] sm:$0xff]
        %v1132 = vld [vmem:[%s485 + $0x10b0] sm:$0xff]
        %v1133 = vld [vmem:[%s485 + $0x10b8] sm:$0xff]
        %v1134 = vld [vmem:[%s485 + $0x10c0] sm:$0xff]
        %v1135 = vld [vmem:[%s485 + $0x10c8] sm:$0xff]
        %v1136 = vld [vmem:[%s485 + $0x10d0] sm:$0xff]
        %v1137 = vld [vmem:[%s485 + $0x10d8] sm:$0xff]
        %v1138 = vld [vmem:[%s485 + $0x10e0] sm:$0xff]
        %v1139 = vld [vmem:[%s485 + $0x10e8] sm:$0xff]
        %v1140 = vld [vmem:[%s485 + $0x10f0] sm:$0xff]
        %v1141 = vld [vmem:[%s485 + $0x10f8] sm:$0xff]
        %v1142 = vld [vmem:[%s485 + $0x1100] sm:$0xff]
        %v1143 = vld [vmem:[%s485 + $0x1108] sm:$0xff]
        %v1144 = vld [vmem:[%s485 + $0x1110] sm:$0xff]
        %v1145 = vld [vmem:[%s485 + $0x1118] sm:$0xff]
        %v1146 = vld [vmem:[%s485 + $0x1120] sm:$0xff]
        %v1147 = vld [vmem:[%s485 + $0x1128] sm:$0xff]
        %v1148 = vld [vmem:[%s485 + $0x1130] sm:$0xff]
        %v1149 = vld [vmem:[%s485 + $0x1138] sm:$0xff]
        %v1150 = vld [vmem:[%s485 + $0x1140] sm:$0xff]
        %v1151 = vld [vmem:[%s485 + $0x1148] sm:$0xff]
        %v1152 = vld [vmem:[%s485 + $0x1150] sm:$0xff]
        %v1153 = vld [vmem:[%s485 + $0x1158] sm:$0xff]
        %v1154 = vld [vmem:[%s485 + $0x1160] sm:$0xff]
        %v1155 = vld [vmem:[%s485 + $0x1168] sm:$0xff]
        %v1156 = vld [vmem:[%s485 + $0x1170] sm:$0xff]
        %v1157 = vld [vmem:[%s485 + $0x1178] sm:$0xff]
        %v1158 = vld [vmem:[%s485 + $0x1180] sm:$0xff]
        %v1159 = vld [vmem:[%s485 + $0x1188] sm:$0xff]
        %v1160 = vld [vmem:[%s485 + $0x1190] sm:$0xff]
        %v1161 = vld [vmem:[%s485 + $0x1198] sm:$0xff]
        %v1162 = vld [vmem:[%s485 + $0x11a0] sm:$0xff]
        %v1163 = vld [vmem:[%s485 + $0x11a8] sm:$0xff]
        %v1164 = vld [vmem:[%s485 + $0x11b0] sm:$0xff]
        %v1165 = vld [vmem:[%s485 + $0x11b8] sm:$0xff]
        %v1166 = vld [vmem:[%s485 + $0x11c0] sm:$0xff]
        %v1167 = vld [vmem:[%s485 + $0x11c8] sm:$0xff]
        %v1168 = vld [vmem:[%s485 + $0x11d0] sm:$0xff]
        %v1169 = vld [vmem:[%s485 + $0x11d8] sm:$0xff]
        %v1170 = vld [vmem:[%s485 + $0x11e0] sm:$0xff]
        %v1171 = vld [vmem:[%s485 + $0x11e8] sm:$0xff]
        %v1172 = vld [vmem:[%s485 + $0x11f0] sm:$0xff]
        %v1173 = vld [vmem:[%s485 + $0x11f8] sm:$0xff]
        %v1174 = vld [vmem:[%s485 + $0x1200] sm:$0xff]
        %v1175 = vld [vmem:[%s485 + $0x1208] sm:$0xff]
        %v1176 = vld [vmem:[%s485 + $0x1210] sm:$0xff]
        %v1177 = vld [vmem:[%s485 + $0x1218] sm:$0xff]
        %v1178 = vld [vmem:[%s485 + $0x1220] sm:$0xff]
        %v1179 = vld [vmem:[%s485 + $0x1228] sm:$0xff]
        %v1180 = vld [vmem:[%s485 + $0x1230] sm:$0xff]
        %v1181 = vld [vmem:[%s485 + $0x1238] sm:$0xff]
        %v1182 = vld [vmem:[%s485 + $0x1240] sm:$0xff]
        %v1183 = vld [vmem:[%s485 + $0x1248] sm:$0xff]
        %v1184 = vld [vmem:[%s485 + $0x1250] sm:$0xff]
        %v1185 = vld [vmem:[%s485 + $0x1258] sm:$0xff]
        %v1186 = vld [vmem:[%s485 + $0x1260] sm:$0xff]
        %v1187 = vld [vmem:[%s485 + $0x1268] sm:$0xff]
        %v1188 = vld [vmem:[%s485 + $0x1270] sm:$0xff]
        %v1189 = vld [vmem:[%s485 + $0x1278] sm:$0xff]
        %v1190 = vld [vmem:[%s485 + $0x1280] sm:$0xff]
        %v1191 = vld [vmem:[%s485 + $0x1288] sm:$0xff]
        %v1192 = vld [vmem:[%s485 + $0x1290] sm:$0xff]
        %v1193 = vld [vmem:[%s485 + $0x1298] sm:$0xff]
        %v1194 = vld [vmem:[%s485 + $0x12a0] sm:$0xff]
        %v1195 = vld [vmem:[%s485 + $0x12a8] sm:$0xff]
        %v1196 = vld [vmem:[%s485 + $0x12b0] sm:$0xff]
        %v1197 = vld [vmem:[%s485 + $0x12b8] sm:$0xff]
        %v1198 = vld [vmem:[%s485 + $0x12c0] sm:$0xff]
        %v1199 = vld [vmem:[%s485 + $0x12c8] sm:$0xff]
        %v1200 = vld [vmem:[%s485 + $0x12d0] sm:$0xff]
        %v1201 = vld [vmem:[%s485 + $0x12d8] sm:$0xff]
        %v1202 = vld [vmem:[%s485 + $0x12e0] sm:$0xff]
        %v1203 = vld [vmem:[%s485 + $0x12e8] sm:$0xff]
        %v1204 = vld [vmem:[%s485 + $0x12f0] sm:$0xff]
        %v1205 = vld [vmem:[%s485 + $0x12f8] sm:$0xff]
        %v1206 = vld [vmem:[%s485 + $0x1300] sm:$0xff]
        %v1207 = vld [vmem:[%s485 + $0x1308] sm:$0xff]
        %v1208 = vld [vmem:[%s485 + $0x1310] sm:$0xff]
        %v1209 = vld [vmem:[%s485 + $0x1318] sm:$0xff]
        %v1210 = vld [vmem:[%s485 + $0x1320] sm:$0xff]
        %v1211 = vld [vmem:[%s485 + $0x1328] sm:$0xff]
        %v1212 = vld [vmem:[%s485 + $0x1330] sm:$0xff]
        %v1213 = vld [vmem:[%s485 + $0x1338] sm:$0xff]
        %v1214 = vld [vmem:[%s485 + $0x1340] sm:$0xff]
        %v1215 = vld [vmem:[%s485 + $0x1348] sm:$0xff]
        %v1216 = vld [vmem:[%s485 + $0x1350] sm:$0xff]
        %v1217 = vld [vmem:[%s485 + $0x1358] sm:$0xff]
        %v1218 = vld [vmem:[%s485 + $0x1360] sm:$0xff]
        %v1219 = vld [vmem:[%s485 + $0x1368] sm:$0xff]
        %v1220 = vld [vmem:[%s485 + $0x1370] sm:$0xff]
        %v1221 = vld [vmem:[%s485 + $0x1378] sm:$0xff]
        %v1222 = vld [vmem:[%s485 + $0x1380] sm:$0xff]
        %v1223 = vld [vmem:[%s485 + $0x1388] sm:$0xff]
        %v1224 = vld [vmem:[%s485 + $0x1390] sm:$0xff]
        %v1225 = vld [vmem:[%s485 + $0x1398] sm:$0xff]
        %v1226 = vld [vmem:[%s485 + $0x13a0] sm:$0xff]
        %v1227 = vld [vmem:[%s485 + $0x13a8] sm:$0xff]
        %v1228 = vld [vmem:[%s485 + $0x13b0] sm:$0xff]
        %v1229 = vld [vmem:[%s485 + $0x13b8] sm:$0xff]
        %v1230 = vld [vmem:[%s485 + $0x13c0] sm:$0xff]
        %v1231 = vld [vmem:[%s485 + $0x13c8] sm:$0xff]
        %v1232 = vld [vmem:[%s485 + $0x13d0] sm:$0xff]
        %v1233 = vld [vmem:[%s485 + $0x13d8] sm:$0xff]
        %v1234 = vld [vmem:[%s485 + $0x13e0] sm:$0xff]
        %v1235 = vld [vmem:[%s485 + $0x13e8] sm:$0xff]
        %v1236 = vld [vmem:[%s485 + $0x13f0] sm:$0xff]
        %v1237 = vld [vmem:[%s485 + $0x13f8] sm:$0xff]
        %v1238 = vld [vmem:[%s485 + $0x1400] sm:$0xff]
        %v1239 = vld [vmem:[%s485 + $0x1408] sm:$0xff]
        %v1240 = vld [vmem:[%s485 + $0x1410] sm:$0xff]
        %v1241 = vld [vmem:[%s485 + $0x1418] sm:$0xff]
        %v1242 = vld [vmem:[%s485 + $0x1420] sm:$0xff]
        %v1243 = vld [vmem:[%s485 + $0x1428] sm:$0xff]
        %v1244 = vld [vmem:[%s485 + $0x1430] sm:$0xff]
        %v1245 = vld [vmem:[%s485 + $0x1438] sm:$0xff]
        %v1246 = vld [vmem:[%s485 + $0x1440] sm:$0xff]
        %v1247 = vld [vmem:[%s485 + $0x1448] sm:$0xff]
        %v1248 = vld [vmem:[%s485 + $0x1450] sm:$0xff]
        %v1249 = vld [vmem:[%s485 + $0x1458] sm:$0xff]
        %v1250 = vld [vmem:[%s485 + $0x1460] sm:$0xff]
        %v1251 = vld [vmem:[%s485 + $0x1468] sm:$0xff]
        %v1252 = vld [vmem:[%s485 + $0x1470] sm:$0xff]
        %v1253 = vld [vmem:[%s485 + $0x1478] sm:$0xff]
        %v1254 = vld [vmem:[%s485 + $0x1480] sm:$0xff]
        %v1255 = vld [vmem:[%s485 + $0x1488] sm:$0xff]
        %v1256 = vld [vmem:[%s485 + $0x1490] sm:$0xff]
        %v1257 = vld [vmem:[%s485 + $0x1498] sm:$0xff]
        %v1258 = vld [vmem:[%s485 + $0x14a0] sm:$0xff]
        %v1259 = vld [vmem:[%s485 + $0x14a8] sm:$0xff]
        %v1260 = vld [vmem:[%s485 + $0x14b0] sm:$0xff]
        %v1261 = vld [vmem:[%s485 + $0x14b8] sm:$0xff]
        %v1262 = vld [vmem:[%s485 + $0x14c0] sm:$0xff]
        %v1263 = vld [vmem:[%s485 + $0x14c8] sm:$0xff]
        %v1264 = vld [vmem:[%s485 + $0x14d0] sm:$0xff]
        %v1265 = vld [vmem:[%s485 + $0x14d8] sm:$0xff]
        %v1266 = vld [vmem:[%s485 + $0x14e0] sm:$0xff]
        %v1267 = vld [vmem:[%s485 + $0x14e8] sm:$0xff]
        %v1268 = vld [vmem:[%s485 + $0x14f0] sm:$0xff]
        %v1269 = vld [vmem:[%s485 + $0x14f8] sm:$0xff]
        %v1270 = vld [vmem:[%s485 + $0x1500] sm:$0xff]
        %v1271 = vld [vmem:[%s485 + $0x1508] sm:$0xff]
        %v1272 = vld [vmem:[%s485 + $0x1510] sm:$0xff]
        %v1273 = vld [vmem:[%s485 + $0x1518] sm:$0xff]
        %v1274 = vld [vmem:[%s485 + $0x1520] sm:$0xff]
        %v1275 = vld [vmem:[%s485 + $0x1528] sm:$0xff]
        %v1276 = vld [vmem:[%s485 + $0x1530] sm:$0xff]
        %v1277 = vld [vmem:[%s485 + $0x1538] sm:$0xff]
        %v1278 = vld [vmem:[%s485 + $0x1540] sm:$0xff]
        %v1279 = vld [vmem:[%s485 + $0x1548] sm:$0xff]
        %v1280 = vld [vmem:[%s485 + $0x1550] sm:$0xff]
        %v1281 = vld [vmem:[%s485 + $0x1558] sm:$0xff]
        %v1282 = vld [vmem:[%s485 + $0x1560] sm:$0xff]
        %v1283 = vld [vmem:[%s485 + $0x1568] sm:$0xff]
        %v1284 = vld [vmem:[%s485 + $0x1570] sm:$0xff]
        %v1285 = vld [vmem:[%s485 + $0x1578] sm:$0xff]
        %v1286 = vld [vmem:[%s485 + $0x1580] sm:$0xff]
        %v1287 = vld [vmem:[%s485 + $0x1588] sm:$0xff]
        %v1288 = vld [vmem:[%s485 + $0x1590] sm:$0xff]
        %v1289 = vld [vmem:[%s485 + $0x1598] sm:$0xff]
        %v1290 = vld [vmem:[%s485 + $0x15a0] sm:$0xff]
        %v1291 = vld [vmem:[%s485 + $0x15a8] sm:$0xff]
        %v1292 = vld [vmem:[%s485 + $0x15b0] sm:$0xff]
        %v1293 = vld [vmem:[%s485 + $0x15b8] sm:$0xff]
        %v1294 = vld [vmem:[%s485 + $0x15c0] sm:$0xff]
        %v1295 = vld [vmem:[%s485 + $0x15c8] sm:$0xff]
        %v1296 = vld [vmem:[%s485 + $0x15d0] sm:$0xff]
        %v1297 = vld [vmem:[%s485 + $0x15d8] sm:$0xff]
        %v1298 = vld [vmem:[%s485 + $0x15e0] sm:$0xff]
        %v1299 = vld [vmem:[%s485 + $0x15e8] sm:$0xff]
        %v1300 = vld [vmem:[%s485 + $0x15f0] sm:$0xff]
        %v1301 = vld [vmem:[%s485 + $0x15f8] sm:$0xff]
        %v1302 = vld [vmem:[%s485 + $0x1600] sm:$0xff]
        %v1303 = vld [vmem:[%s485 + $0x1608] sm:$0xff]
        %v1304 = vld [vmem:[%s485 + $0x1610] sm:$0xff]
        %v1305 = vld [vmem:[%s485 + $0x1618] sm:$0xff]
        %v1306 = vld [vmem:[%s485 + $0x1620] sm:$0xff]
        %v1307 = vld [vmem:[%s485 + $0x1628] sm:$0xff]
        %v1308 = vld [vmem:[%s485 + $0x1630] sm:$0xff]
        %v1309 = vld [vmem:[%s485 + $0x1638] sm:$0xff]
        %v1310 = vld [vmem:[%s485 + $0x1640] sm:$0xff]
        %v1311 = vld [vmem:[%s485 + $0x1648] sm:$0xff]
        %v1312 = vld [vmem:[%s485 + $0x1650] sm:$0xff]
        %v1313 = vld [vmem:[%s485 + $0x1658] sm:$0xff]
        %v1314 = vld [vmem:[%s485 + $0x1660] sm:$0xff]
        %v1315 = vld [vmem:[%s485 + $0x1668] sm:$0xff]
        %v1316 = vld [vmem:[%s485 + $0x1670] sm:$0xff]
        %v1317 = vld [vmem:[%s485 + $0x1678] sm:$0xff]
        %v1318 = vld [vmem:[%s485 + $0x1680] sm:$0xff]
        %v1319 = vld [vmem:[%s485 + $0x1688] sm:$0xff]
        %v1320 = vld [vmem:[%s485 + $0x1690] sm:$0xff]
        %v1321 = vld [vmem:[%s485 + $0x1698] sm:$0xff]
        %v1322 = vld [vmem:[%s485 + $0x16a0] sm:$0xff]
        %v1323 = vld [vmem:[%s485 + $0x16a8] sm:$0xff]
        %v1324 = vld [vmem:[%s485 + $0x16b0] sm:$0xff]
        %v1325 = vld [vmem:[%s485 + $0x16b8] sm:$0xff]
        %v1326 = vld [vmem:[%s485 + $0x16c0] sm:$0xff]
        %v1327 = vld [vmem:[%s485 + $0x16c8] sm:$0xff]
        %v1328 = vld [vmem:[%s485 + $0x16d0] sm:$0xff]
        %v1329 = vld [vmem:[%s485 + $0x16d8] sm:$0xff]
        %v1330 = vld [vmem:[%s485 + $0x16e0] sm:$0xff]
        %v1331 = vld [vmem:[%s485 + $0x16e8] sm:$0xff]
        %v1332 = vld [vmem:[%s485 + $0x16f0] sm:$0xff]
        %v1333 = vld [vmem:[%s485 + $0x16f8] sm:$0xff]
        %v1334 = vld [vmem:[%s485 + $0x1700] sm:$0xff]
        %v1335 = vld [vmem:[%s485 + $0x1708] sm:$0xff]
        %v1336 = vld [vmem:[%s485 + $0x1710] sm:$0xff]
        %v1337 = vld [vmem:[%s485 + $0x1718] sm:$0xff]
        %v1338 = vld [vmem:[%s485 + $0x1720] sm:$0xff]
        %v1339 = vld [vmem:[%s485 + $0x1728] sm:$0xff]
        %v1340 = vld [vmem:[%s485 + $0x1730] sm:$0xff]
        %v1341 = vld [vmem:[%s485 + $0x1738] sm:$0xff]
        %v1342 = vld [vmem:[%s485 + $0x1740] sm:$0xff]
        %v1343 = vld [vmem:[%s485 + $0x1748] sm:$0xff]
        %v1344 = vld [vmem:[%s485 + $0x1750] sm:$0xff]
        %v1345 = vld [vmem:[%s485 + $0x1758] sm:$0xff]
        %v1346 = vld [vmem:[%s485 + $0x1760] sm:$0xff]
        %v1347 = vld [vmem:[%s485 + $0x1768] sm:$0xff]
        %v1348 = vld [vmem:[%s485 + $0x1770] sm:$0xff]
        %v1349 = vld [vmem:[%s485 + $0x1778] sm:$0xff]
        %v1350 = vld [vmem:[%s485 + $0x1780] sm:$0xff]
        %v1351 = vld [vmem:[%s485 + $0x1788] sm:$0xff]
        %v1352 = vld [vmem:[%s485 + $0x1790] sm:$0xff]
        %v1353 = vld [vmem:[%s485 + $0x1798] sm:$0xff]
        %v1354 = vld [vmem:[%s485 + $0x17a0] sm:$0xff]
        %v1355 = vld [vmem:[%s485 + $0x17a8] sm:$0xff]
        %v1356 = vld [vmem:[%s485 + $0x17b0] sm:$0xff]
        %v1357 = vld [vmem:[%s485 + $0x17b8] sm:$0xff]
        %v1358 = vld [vmem:[%s485 + $0x17c0] sm:$0xff]
        %v1359 = vld [vmem:[%s485 + $0x17c8] sm:$0xff]
        %v1360 = vld [vmem:[%s485 + $0x17d0] sm:$0xff]
        %v1361 = vld [vmem:[%s485 + $0x17d8] sm:$0xff]
        %v1362 = vld [vmem:[%s485 + $0x17e0] sm:$0xff]
        %v1363 = vld [vmem:[%s485 + $0x17e8] sm:$0xff]
        %v1364 = vld [vmem:[%s485 + $0x17f0] sm:$0xff]
        %v1365 = vld [vmem:[%s485 + $0x17f8] sm:$0xff]
        %v1372 = vunpack.c.l.b16 %v592
        %v1373 = vunpack.c.h.b16 %v592
        %v1374 = vunpack.c.l.b16 %v593
        %v1375 = vunpack.c.h.b16 %v593
        %v1376 = vunpack.c.l.b16 %v594
        %v1377 = vunpack.c.h.b16 %v594
        %v1378 = vunpack.c.l.b16 %v595
        %v1379 = vunpack.c.h.b16 %v595
        %v1380 = vunpack.c.l.b16 %v596
        %v1381 = vunpack.c.h.b16 %v596
        %v1382 = vunpack.c.l.b16 %v597
        %v1383 = vunpack.c.h.b16 %v597
        %v1384 = vpack.c.b16 %v1372, %v1372
        %v1385 = vpack.c.b16 %v1373, %v1373
        %v1386 = vpack.c.b16 %v1374, %v1374
        %v1387 = vpack.c.b16 %v1375, %v1375
        %v1388 = vpack.c.b16 %v1376, %v1376
        %v1389 = vpack.c.b16 %v1377, %v1377
        %v1390 = vpack.c.b16 %v1378, %v1378
        %v1391 = vpack.c.b16 %v1379, %v1379
        %v1392 = vpack.c.b16 %v1380, %v1380
        %v1393 = vpack.c.b16 %v1381, %v1381
        %v1394 = vpack.c.b16 %v1382, %v1382
        %v1395 = vpack.c.b16 %v1383, %v1383
        %v2176 = vunpack.c.l.b16 %v598
        %v2177 = vunpack.c.h.b16 %v598
        %v2178 = vunpack.c.l.b16 %v599
        %v2179 = vunpack.c.h.b16 %v599
        %v2180 = vunpack.c.l.b16 %v600
        %v2181 = vunpack.c.h.b16 %v600
        %v2182 = vunpack.c.l.b16 %v601
        %v2183 = vunpack.c.h.b16 %v601
        %v2184 = vunpack.c.l.b16 %v602
        %v2185 = vunpack.c.h.b16 %v602
        %v2186 = vunpack.c.l.b16 %v603
        %v2187 = vunpack.c.h.b16 %v603
        %v2188 = vunpack.c.l.b16 %v604
        %v2189 = vunpack.c.h.b16 %v604
        %v2190 = vunpack.c.l.b16 %v605
        %v2191 = vunpack.c.h.b16 %v605
        %v2192 = vunpack.c.l.b16 %v606
        %v2193 = vunpack.c.h.b16 %v606
        %v2194 = vunpack.c.l.b16 %v607
        %v2195 = vunpack.c.h.b16 %v607
        %v2196 = vunpack.c.l.b16 %v608
        %v2197 = vunpack.c.h.b16 %v608
        %v2198 = vunpack.c.l.b16 %v609
        %v2199 = vunpack.c.h.b16 %v609
        %v2200 = vunpack.c.l.b16 %v610
        %v2201 = vunpack.c.h.b16 %v610
        %v2202 = vunpack.c.l.b16 %v611
        %v2203 = vunpack.c.h.b16 %v611
        %v2204 = vunpack.c.l.b16 %v612
        %v2205 = vunpack.c.h.b16 %v612
        %v2206 = vunpack.c.l.b16 %v613
        %v2207 = vunpack.c.h.b16 %v613
        %v2208 = vunpack.c.l.b16 %v614
        %v2209 = vunpack.c.h.b16 %v614
        %v2210 = vunpack.c.l.b16 %v615
        %v2211 = vunpack.c.h.b16 %v615
        %v2212 = vunpack.c.l.b16 %v616
        %v2213 = vunpack.c.h.b16 %v616
        %v2214 = vunpack.c.l.b16 %v617
        %v2215 = vunpack.c.h.b16 %v617
        %v2216 = vunpack.c.l.b16 %v618
        %v2217 = vunpack.c.h.b16 %v618
        %v2218 = vunpack.c.l.b16 %v619
        %v2219 = vunpack.c.h.b16 %v619
        %v2220 = vunpack.c.l.b16 %v620
        %v2221 = vunpack.c.h.b16 %v620
        %v2222 = vunpack.c.l.b16 %v621
        %v2223 = vunpack.c.h.b16 %v621
        %v2224 = vunpack.c.l.b16 %v622
        %v2225 = vunpack.c.h.b16 %v622
        %v2226 = vunpack.c.l.b16 %v623
        %v2227 = vunpack.c.h.b16 %v623
        %v2228 = vunpack.c.l.b16 %v624
        %v2229 = vunpack.c.h.b16 %v624
        %v2230 = vunpack.c.l.b16 %v625
        %v2231 = vunpack.c.h.b16 %v625
        %v2232 = vunpack.c.l.b16 %v626
        %v2233 = vunpack.c.h.b16 %v626
        %v2234 = vunpack.c.l.b16 %v627
        %v2235 = vunpack.c.h.b16 %v627
        %v2236 = vunpack.c.l.b16 %v628
        %v2237 = vunpack.c.h.b16 %v628
        %v2238 = vunpack.c.l.b16 %v629
        %v2239 = vunpack.c.h.b16 %v629
        %v2240 = vunpack.c.l.b16 %v630
        %v2241 = vunpack.c.h.b16 %v630
        %v2242 = vunpack.c.l.b16 %v631
        %v2243 = vunpack.c.h.b16 %v631
        %v2244 = vunpack.c.l.b16 %v632
        %v2245 = vunpack.c.h.b16 %v632
        %v2246 = vunpack.c.l.b16 %v633
        %v2247 = vunpack.c.h.b16 %v633
        %v2248 = vunpack.c.l.b16 %v634
        %v2249 = vunpack.c.h.b16 %v634
        %v2250 = vunpack.c.l.b16 %v635
        %v2251 = vunpack.c.h.b16 %v635
        %v2252 = vunpack.c.l.b16 %v636
        %v2253 = vunpack.c.h.b16 %v636
        %v2254 = vunpack.c.l.b16 %v637
        %v2255 = vunpack.c.h.b16 %v637
        %v2256 = vunpack.c.l.b16 %v638
        %v2257 = vunpack.c.h.b16 %v638
        %v2258 = vunpack.c.l.b16 %v639
        %v2259 = vunpack.c.h.b16 %v639
        %v2260 = vunpack.c.l.b16 %v640
        %v2261 = vunpack.c.h.b16 %v640
        %v2262 = vunpack.c.l.b16 %v641
        %v2263 = vunpack.c.h.b16 %v641
        %v2264 = vunpack.c.l.b16 %v642
        %v2265 = vunpack.c.h.b16 %v642
        %v2266 = vunpack.c.l.b16 %v643
        %v2267 = vunpack.c.h.b16 %v643
        %v2268 = vunpack.c.l.b16 %v644
        %v2269 = vunpack.c.h.b16 %v644
        %v2270 = vunpack.c.l.b16 %v645
        %v2271 = vunpack.c.h.b16 %v645
        %v2272 = vunpack.c.l.b16 %v646
        %v2273 = vunpack.c.h.b16 %v646
        %v2274 = vunpack.c.l.b16 %v647
        %v2275 = vunpack.c.h.b16 %v647
        %v2276 = vunpack.c.l.b16 %v648
        %v2277 = vunpack.c.h.b16 %v648
        %v2278 = vunpack.c.l.b16 %v649
        %v2279 = vunpack.c.h.b16 %v649
        %v2280 = vunpack.c.l.b16 %v650
        %v2281 = vunpack.c.h.b16 %v650
        %v2282 = vunpack.c.l.b16 %v651
        %v2283 = vunpack.c.h.b16 %v651
        %v2284 = vunpack.c.l.b16 %v652
        %v2285 = vunpack.c.h.b16 %v652
        %v2286 = vunpack.c.l.b16 %v653
        %v2287 = vunpack.c.h.b16 %v653
        %v2288 = vunpack.c.l.b16 %v654
        %v2289 = vunpack.c.h.b16 %v654
        %v2290 = vunpack.c.l.b16 %v655
        %v2291 = vunpack.c.h.b16 %v655
        %v2292 = vunpack.c.l.b16 %v656
        %v2293 = vunpack.c.h.b16 %v656
        %v2294 = vunpack.c.l.b16 %v657
        %v2295 = vunpack.c.h.b16 %v657
        %v2296 = vunpack.c.l.b16 %v658
        %v2297 = vunpack.c.h.b16 %v658
        %v2298 = vunpack.c.l.b16 %v659
        %v2299 = vunpack.c.h.b16 %v659
        %v2300 = vunpack.c.l.b16 %v660
        %v2301 = vunpack.c.h.b16 %v660
        %v2302 = vunpack.c.l.b16 %v661
        %v2303 = vunpack.c.h.b16 %v661
        %v2304 = vunpack.c.l.b16 %v662
        %v2305 = vunpack.c.h.b16 %v662
        %v2306 = vunpack.c.l.b16 %v663
        %v2307 = vunpack.c.h.b16 %v663
        %v2308 = vunpack.c.l.b16 %v664
        %v2309 = vunpack.c.h.b16 %v664
        %v2310 = vunpack.c.l.b16 %v665
        %v2311 = vunpack.c.h.b16 %v665
        %v2312 = vunpack.c.l.b16 %v666
        %v2313 = vunpack.c.h.b16 %v666
        %v2314 = vunpack.c.l.b16 %v667
        %v2315 = vunpack.c.h.b16 %v667
        %v2316 = vunpack.c.l.b16 %v668
        %v2317 = vunpack.c.h.b16 %v668
        %v2318 = vunpack.c.l.b16 %v669
        %v2319 = vunpack.c.h.b16 %v669
        %v2320 = vunpack.c.l.b16 %v670
        %v2321 = vunpack.c.h.b16 %v670
        %v2322 = vunpack.c.l.b16 %v671
        %v2323 = vunpack.c.h.b16 %v671
        %v2324 = vunpack.c.l.b16 %v672
        %v2325 = vunpack.c.h.b16 %v672
        %v2326 = vunpack.c.l.b16 %v673
        %v2327 = vunpack.c.h.b16 %v673
        %v2328 = vunpack.c.l.b16 %v674
        %v2329 = vunpack.c.h.b16 %v674
        %v2330 = vunpack.c.l.b16 %v675
        %v2331 = vunpack.c.h.b16 %v675
        %v2332 = vunpack.c.l.b16 %v676
        %v2333 = vunpack.c.h.b16 %v676
        %v2334 = vunpack.c.l.b16 %v677
        %v2335 = vunpack.c.h.b16 %v677
        %v2336 = vunpack.c.l.b16 %v678
        %v2337 = vunpack.c.h.b16 %v678
        %v2338 = vunpack.c.l.b16 %v679
        %v2339 = vunpack.c.h.b16 %v679
        %v2340 = vunpack.c.l.b16 %v680
        %v2341 = vunpack.c.h.b16 %v680
        %v2342 = vunpack.c.l.b16 %v681
        %v2343 = vunpack.c.h.b16 %v681
        %v2344 = vunpack.c.l.b16 %v682
        %v2345 = vunpack.c.h.b16 %v682
        %v2346 = vunpack.c.l.b16 %v683
        %v2347 = vunpack.c.h.b16 %v683
        %v2348 = vunpack.c.l.b16 %v684
        %v2349 = vunpack.c.h.b16 %v684
        %v2350 = vunpack.c.l.b16 %v685
        %v2351 = vunpack.c.h.b16 %v685
        %v2352 = vunpack.c.l.b16 %v686
        %v2353 = vunpack.c.h.b16 %v686
        %v2354 = vunpack.c.l.b16 %v687
        %v2355 = vunpack.c.h.b16 %v687
        %v2356 = vunpack.c.l.b16 %v688
        %v2357 = vunpack.c.h.b16 %v688
        %v2358 = vunpack.c.l.b16 %v689
        %v2359 = vunpack.c.h.b16 %v689
        %v2360 = vunpack.c.l.b16 %v690
        %v2361 = vunpack.c.h.b16 %v690
        %v2362 = vunpack.c.l.b16 %v691
        %v2363 = vunpack.c.h.b16 %v691
        %v2364 = vunpack.c.l.b16 %v692
        %v2365 = vunpack.c.h.b16 %v692
        %v2366 = vunpack.c.l.b16 %v693
        %v2367 = vunpack.c.h.b16 %v693
        %v2368 = vunpack.c.l.b16 %v694
        %v2369 = vunpack.c.h.b16 %v694
        %v2370 = vunpack.c.l.b16 %v695
        %v2371 = vunpack.c.h.b16 %v695
        %v2372 = vunpack.c.l.b16 %v696
        %v2373 = vunpack.c.h.b16 %v696
        %v2374 = vunpack.c.l.b16 %v697
        %v2375 = vunpack.c.h.b16 %v697
        %v2376 = vunpack.c.l.b16 %v698
        %v2377 = vunpack.c.h.b16 %v698
        %v2378 = vunpack.c.l.b16 %v699
        %v2379 = vunpack.c.h.b16 %v699
        %v2380 = vunpack.c.l.b16 %v700
        %v2381 = vunpack.c.h.b16 %v700
        %v2382 = vunpack.c.l.b16 %v701
        %v2383 = vunpack.c.h.b16 %v701
        %v2384 = vunpack.c.l.b16 %v702
        %v2385 = vunpack.c.h.b16 %v702
        %v2386 = vunpack.c.l.b16 %v703
        %v2387 = vunpack.c.h.b16 %v703
        %v2388 = vunpack.c.l.b16 %v704
        %v2389 = vunpack.c.h.b16 %v704
        %v2390 = vunpack.c.l.b16 %v705
        %v2391 = vunpack.c.h.b16 %v705
        %v2392 = vunpack.c.l.b16 %v706
        %v2393 = vunpack.c.h.b16 %v706
        %v2394 = vunpack.c.l.b16 %v707
        %v2395 = vunpack.c.h.b16 %v707
        %v2396 = vunpack.c.l.b16 %v708
        %v2397 = vunpack.c.h.b16 %v708
        %v2398 = vunpack.c.l.b16 %v709
        %v2399 = vunpack.c.h.b16 %v709
        %v2400 = vunpack.c.l.b16 %v710
        %v2401 = vunpack.c.h.b16 %v710
        %v2402 = vunpack.c.l.b16 %v711
        %v2403 = vunpack.c.h.b16 %v711
        %v2404 = vunpack.c.l.b16 %v712
        %v2405 = vunpack.c.h.b16 %v712
        %v2406 = vunpack.c.l.b16 %v713
        %v2407 = vunpack.c.h.b16 %v713
        %v2408 = vunpack.c.l.b16 %v714
        %v2409 = vunpack.c.h.b16 %v714
        %v2410 = vunpack.c.l.b16 %v715
        %v2411 = vunpack.c.h.b16 %v715
        %v2412 = vunpack.c.l.b16 %v716
        %v2413 = vunpack.c.h.b16 %v716
        %v2414 = vunpack.c.l.b16 %v717
        %v2415 = vunpack.c.h.b16 %v717
        %v2416 = vunpack.c.l.b16 %v718
        %v2417 = vunpack.c.h.b16 %v718
        %v2418 = vunpack.c.l.b16 %v719
        %v2419 = vunpack.c.h.b16 %v719
        %v2420 = vunpack.c.l.b16 %v720
        %v2421 = vunpack.c.h.b16 %v720
        %v2422 = vunpack.c.l.b16 %v721
        %v2423 = vunpack.c.h.b16 %v721
        %v2424 = vunpack.c.l.b16 %v722
        %v2425 = vunpack.c.h.b16 %v722
        %v2426 = vunpack.c.l.b16 %v723
        %v2427 = vunpack.c.h.b16 %v723
        %v2428 = vunpack.c.l.b16 %v724
        %v2429 = vunpack.c.h.b16 %v724
        %v2430 = vunpack.c.l.b16 %v725
        %v2431 = vunpack.c.h.b16 %v725
        %v2432 = vunpack.c.l.b16 %v726
        %v2433 = vunpack.c.h.b16 %v726
        %v2434 = vunpack.c.l.b16 %v727
        %v2435 = vunpack.c.h.b16 %v727
        %v2436 = vunpack.c.l.b16 %v728
        %v2437 = vunpack.c.h.b16 %v728
        %v2438 = vunpack.c.l.b16 %v729
        %v2439 = vunpack.c.h.b16 %v729
        %v2440 = vunpack.c.l.b16 %v730
        %v2441 = vunpack.c.h.b16 %v730
        %v2442 = vunpack.c.l.b16 %v731
        %v2443 = vunpack.c.h.b16 %v731
        %v2444 = vunpack.c.l.b16 %v732
        %v2445 = vunpack.c.h.b16 %v732
        %v2446 = vunpack.c.l.b16 %v733
        %v2447 = vunpack.c.h.b16 %v733
        %v2448 = vunpack.c.l.b16 %v734
        %v2449 = vunpack.c.h.b16 %v734
        %v2450 = vunpack.c.l.b16 %v735
        %v2451 = vunpack.c.h.b16 %v735
        %v2452 = vunpack.c.l.b16 %v736
        %v2453 = vunpack.c.h.b16 %v736
        %v2454 = vunpack.c.l.b16 %v737
        %v2455 = vunpack.c.h.b16 %v737
        %v2456 = vunpack.c.l.b16 %v738
        %v2457 = vunpack.c.h.b16 %v738
        %v2458 = vunpack.c.l.b16 %v739
        %v2459 = vunpack.c.h.b16 %v739
        %v2460 = vunpack.c.l.b16 %v740
        %v2461 = vunpack.c.h.b16 %v740
        %v2462 = vunpack.c.l.b16 %v741
        %v2463 = vunpack.c.h.b16 %v741
        %v2464 = vunpack.c.l.b16 %v742
        %v2465 = vunpack.c.h.b16 %v742
        %v2466 = vunpack.c.l.b16 %v743
        %v2467 = vunpack.c.h.b16 %v743
        %v2468 = vunpack.c.l.b16 %v744
        %v2469 = vunpack.c.h.b16 %v744
        %v2470 = vunpack.c.l.b16 %v745
        %v2471 = vunpack.c.h.b16 %v745
        %v2472 = vunpack.c.l.b16 %v746
        %v2473 = vunpack.c.h.b16 %v746
        %v2474 = vunpack.c.l.b16 %v747
        %v2475 = vunpack.c.h.b16 %v747
        %v2476 = vunpack.c.l.b16 %v748
        %v2477 = vunpack.c.h.b16 %v748
        %v2478 = vunpack.c.l.b16 %v749
        %v2479 = vunpack.c.h.b16 %v749
        %v2480 = vunpack.c.l.b16 %v750
        %v2481 = vunpack.c.h.b16 %v750
        %v2482 = vunpack.c.l.b16 %v751
        %v2483 = vunpack.c.h.b16 %v751
        %v2484 = vunpack.c.l.b16 %v752
        %v2485 = vunpack.c.h.b16 %v752
        %v2486 = vunpack.c.l.b16 %v753
        %v2487 = vunpack.c.h.b16 %v753
        %v2488 = vunpack.c.l.b16 %v754
        %v2489 = vunpack.c.h.b16 %v754
        %v2490 = vunpack.c.l.b16 %v755
        %v2491 = vunpack.c.h.b16 %v755
        %v2492 = vunpack.c.l.b16 %v756
        %v2493 = vunpack.c.h.b16 %v756
        %v2494 = vunpack.c.l.b16 %v757
        %v2495 = vunpack.c.h.b16 %v757
        %v2496 = vunpack.c.l.b16 %v758
        %v2497 = vunpack.c.h.b16 %v758
        %v2498 = vunpack.c.l.b16 %v759
        %v2499 = vunpack.c.h.b16 %v759
        %v2500 = vunpack.c.l.b16 %v760
        %v2501 = vunpack.c.h.b16 %v760
        %v2502 = vunpack.c.l.b16 %v761
        %v2503 = vunpack.c.h.b16 %v761
        %v2504 = vunpack.c.l.b16 %v762
        %v2505 = vunpack.c.h.b16 %v762
        %v2506 = vunpack.c.l.b16 %v763
        %v2507 = vunpack.c.h.b16 %v763
        %v2508 = vunpack.c.l.b16 %v764
        %v2509 = vunpack.c.h.b16 %v764
        %v2510 = vunpack.c.l.b16 %v765
        %v2511 = vunpack.c.h.b16 %v765
        %v2512 = vunpack.c.l.b16 %v766
        %v2513 = vunpack.c.h.b16 %v766
        %v2514 = vunpack.c.l.b16 %v767
        %v2515 = vunpack.c.h.b16 %v767
        %v2516 = vunpack.c.l.b16 %v768
        %v2517 = vunpack.c.h.b16 %v768
        %v2518 = vunpack.c.l.b16 %v769
        %v2519 = vunpack.c.h.b16 %v769
        %v2520 = vunpack.c.l.b16 %v770
        %v2521 = vunpack.c.h.b16 %v770
        %v2522 = vunpack.c.l.b16 %v771
        %v2523 = vunpack.c.h.b16 %v771
        %v2524 = vunpack.c.l.b16 %v772
        %v2525 = vunpack.c.h.b16 %v772
        %v2526 = vunpack.c.l.b16 %v773
        %v2527 = vunpack.c.h.b16 %v773
        %v2528 = vunpack.c.l.b16 %v774
        %v2529 = vunpack.c.h.b16 %v774
        %v2530 = vunpack.c.l.b16 %v775
        %v2531 = vunpack.c.h.b16 %v775
        %v2532 = vunpack.c.l.b16 %v776
        %v2533 = vunpack.c.h.b16 %v776
        %v2534 = vunpack.c.l.b16 %v777
        %v2535 = vunpack.c.h.b16 %v777
        %v2536 = vunpack.c.l.b16 %v778
        %v2537 = vunpack.c.h.b16 %v778
        %v2538 = vunpack.c.l.b16 %v779
        %v2539 = vunpack.c.h.b16 %v779
        %v2540 = vunpack.c.l.b16 %v780
        %v2541 = vunpack.c.h.b16 %v780
        %v2542 = vunpack.c.l.b16 %v781
        %v2543 = vunpack.c.h.b16 %v781
        %v2544 = vunpack.c.l.b16 %v782
        %v2545 = vunpack.c.h.b16 %v782
        %v2546 = vunpack.c.l.b16 %v783
        %v2547 = vunpack.c.h.b16 %v783
        %v2548 = vunpack.c.l.b16 %v784
        %v2549 = vunpack.c.h.b16 %v784
        %v2550 = vunpack.c.l.b16 %v785
        %v2551 = vunpack.c.h.b16 %v785
        %v2552 = vunpack.c.l.b16 %v786
        %v2553 = vunpack.c.h.b16 %v786
        %v2554 = vunpack.c.l.b16 %v787
        %v2555 = vunpack.c.h.b16 %v787
        %v2556 = vunpack.c.l.b16 %v788
        %v2557 = vunpack.c.h.b16 %v788
        %v2558 = vunpack.c.l.b16 %v789
        %v2559 = vunpack.c.h.b16 %v789
        %v2560 = vunpack.c.l.b16 %v790
        %v2561 = vunpack.c.h.b16 %v790
        %v2562 = vunpack.c.l.b16 %v791
        %v2563 = vunpack.c.h.b16 %v791
        %v2564 = vunpack.c.l.b16 %v792
        %v2565 = vunpack.c.h.b16 %v792
        %v2566 = vunpack.c.l.b16 %v793
        %v2567 = vunpack.c.h.b16 %v793
        %v2568 = vunpack.c.l.b16 %v794
        %v2569 = vunpack.c.h.b16 %v794
        %v2570 = vunpack.c.l.b16 %v795
        %v2571 = vunpack.c.h.b16 %v795
        %v2572 = vunpack.c.l.b16 %v796
        %v2573 = vunpack.c.h.b16 %v796
        %v2574 = vunpack.c.l.b16 %v797
        %v2575 = vunpack.c.h.b16 %v797
        %v2576 = vunpack.c.l.b16 %v798
        %v2577 = vunpack.c.h.b16 %v798
        %v2578 = vunpack.c.l.b16 %v799
        %v2579 = vunpack.c.h.b16 %v799
        %v2580 = vunpack.c.l.b16 %v800
        %v2581 = vunpack.c.h.b16 %v800
        %v2582 = vunpack.c.l.b16 %v801
        %v2583 = vunpack.c.h.b16 %v801
        %v2584 = vunpack.c.l.b16 %v802
        %v2585 = vunpack.c.h.b16 %v802
        %v2586 = vunpack.c.l.b16 %v803
        %v2587 = vunpack.c.h.b16 %v803
        %v2588 = vunpack.c.l.b16 %v804
        %v2589 = vunpack.c.h.b16 %v804
        %v2590 = vunpack.c.l.b16 %v805
        %v2591 = vunpack.c.h.b16 %v805
        %v2592 = vunpack.c.l.b16 %v806
        %v2593 = vunpack.c.h.b16 %v806
        %v2594 = vunpack.c.l.b16 %v807
        %v2595 = vunpack.c.h.b16 %v807
        %v2596 = vunpack.c.l.b16 %v808
        %v2597 = vunpack.c.h.b16 %v808
        %v2598 = vunpack.c.l.b16 %v809
        %v2599 = vunpack.c.h.b16 %v809
        %v2600 = vunpack.c.l.b16 %v810
        %v2601 = vunpack.c.h.b16 %v810
        %v2602 = vunpack.c.l.b16 %v811
        %v2603 = vunpack.c.h.b16 %v811
        %v2604 = vunpack.c.l.b16 %v812
        %v2605 = vunpack.c.h.b16 %v812
        %v2606 = vunpack.c.l.b16 %v813
        %v2607 = vunpack.c.h.b16 %v813
        %v2608 = vunpack.c.l.b16 %v814
        %v2609 = vunpack.c.h.b16 %v814
        %v2610 = vunpack.c.l.b16 %v815
        %v2611 = vunpack.c.h.b16 %v815
        %v2612 = vunpack.c.l.b16 %v816
        %v2613 = vunpack.c.h.b16 %v816
        %v2614 = vunpack.c.l.b16 %v817
        %v2615 = vunpack.c.h.b16 %v817
        %v2616 = vunpack.c.l.b16 %v818
        %v2617 = vunpack.c.h.b16 %v818
        %v2618 = vunpack.c.l.b16 %v819
        %v2619 = vunpack.c.h.b16 %v819
        %v2620 = vunpack.c.l.b16 %v820
        %v2621 = vunpack.c.h.b16 %v820
        %v2622 = vunpack.c.l.b16 %v821
        %v2623 = vunpack.c.h.b16 %v821
        %v2624 = vunpack.c.l.b16 %v822
        %v2625 = vunpack.c.h.b16 %v822
        %v2626 = vunpack.c.l.b16 %v823
        %v2627 = vunpack.c.h.b16 %v823
        %v2628 = vunpack.c.l.b16 %v824
        %v2629 = vunpack.c.h.b16 %v824
        %v2630 = vunpack.c.l.b16 %v825
        %v2631 = vunpack.c.h.b16 %v825
        %v2632 = vunpack.c.l.b16 %v826
        %v2633 = vunpack.c.h.b16 %v826
        %v2634 = vunpack.c.l.b16 %v827
        %v2635 = vunpack.c.h.b16 %v827
        %v2636 = vunpack.c.l.b16 %v828
        %v2637 = vunpack.c.h.b16 %v828
        %v2638 = vunpack.c.l.b16 %v829
        %v2639 = vunpack.c.h.b16 %v829
        %v2640 = vunpack.c.l.b16 %v830
        %v2641 = vunpack.c.h.b16 %v830
        %v2642 = vunpack.c.l.b16 %v831
        %v2643 = vunpack.c.h.b16 %v831
        %v2644 = vunpack.c.l.b16 %v832
        %v2645 = vunpack.c.h.b16 %v832
        %v2646 = vunpack.c.l.b16 %v833
        %v2647 = vunpack.c.h.b16 %v833
        %v2648 = vunpack.c.l.b16 %v834
        %v2649 = vunpack.c.h.b16 %v834
        %v2650 = vunpack.c.l.b16 %v835
        %v2651 = vunpack.c.h.b16 %v835
        %v2652 = vunpack.c.l.b16 %v836
        %v2653 = vunpack.c.h.b16 %v836
        %v2654 = vunpack.c.l.b16 %v837
        %v2655 = vunpack.c.h.b16 %v837
        %v2656 = vunpack.c.l.b16 %v838
        %v2657 = vunpack.c.h.b16 %v838
        %v2658 = vunpack.c.l.b16 %v839
        %v2659 = vunpack.c.h.b16 %v839
        %v2660 = vunpack.c.l.b16 %v840
        %v2661 = vunpack.c.h.b16 %v840
        %v2662 = vunpack.c.l.b16 %v841
        %v2663 = vunpack.c.h.b16 %v841
        %v2664 = vunpack.c.l.b16 %v842
        %v2665 = vunpack.c.h.b16 %v842
        %v2666 = vunpack.c.l.b16 %v843
        %v2667 = vunpack.c.h.b16 %v843
        %v2668 = vunpack.c.l.b16 %v844
        %v2669 = vunpack.c.h.b16 %v844
        %v2670 = vunpack.c.l.b16 %v845
        %v2671 = vunpack.c.h.b16 %v845
        %v2672 = vunpack.c.l.b16 %v846
        %v2673 = vunpack.c.h.b16 %v846
        %v2674 = vunpack.c.l.b16 %v847
        %v2675 = vunpack.c.h.b16 %v847
        %v2676 = vunpack.c.l.b16 %v848
        %v2677 = vunpack.c.h.b16 %v848
        %v2678 = vunpack.c.l.b16 %v849
        %v2679 = vunpack.c.h.b16 %v849
        %v2680 = vunpack.c.l.b16 %v850
        %v2681 = vunpack.c.h.b16 %v850
        %v2682 = vunpack.c.l.b16 %v851
        %v2683 = vunpack.c.h.b16 %v851
        %v2684 = vunpack.c.l.b16 %v852
        %v2685 = vunpack.c.h.b16 %v852
        %v2686 = vunpack.c.l.b16 %v853
        %v2687 = vunpack.c.h.b16 %v853
        %v2688 = vunpack.c.l.b16 %v854
        %v2689 = vunpack.c.h.b16 %v854
        %v2690 = vunpack.c.l.b16 %v855
        %v2691 = vunpack.c.h.b16 %v855
        %v2692 = vunpack.c.l.b16 %v856
        %v2693 = vunpack.c.h.b16 %v856
        %v2694 = vunpack.c.l.b16 %v857
        %v2695 = vunpack.c.h.b16 %v857
        %v2696 = vunpack.c.l.b16 %v858
        %v2697 = vunpack.c.h.b16 %v858
        %v2698 = vunpack.c.l.b16 %v859
        %v2699 = vunpack.c.h.b16 %v859
        %v2700 = vunpack.c.l.b16 %v860
        %v2701 = vunpack.c.h.b16 %v860
        %v2702 = vunpack.c.l.b16 %v861
        %v2703 = vunpack.c.h.b16 %v861
        %v2704 = vunpack.c.l.b16 %v862
        %v2705 = vunpack.c.h.b16 %v862
        %v2706 = vunpack.c.l.b16 %v863
        %v2707 = vunpack.c.h.b16 %v863
        %v2708 = vunpack.c.l.b16 %v864
        %v2709 = vunpack.c.h.b16 %v864
        %v2710 = vunpack.c.l.b16 %v865
        %v2711 = vunpack.c.h.b16 %v865
        %v2712 = vunpack.c.l.b16 %v866
        %v2713 = vunpack.c.h.b16 %v866
        %v2714 = vunpack.c.l.b16 %v867
        %v2715 = vunpack.c.h.b16 %v867
        %v2716 = vunpack.c.l.b16 %v868
        %v2717 = vunpack.c.h.b16 %v868
        %v2718 = vunpack.c.l.b16 %v869
        %v2719 = vunpack.c.h.b16 %v869
        %v2720 = vunpack.c.l.b16 %v870
        %v2721 = vunpack.c.h.b16 %v870
        %v2722 = vunpack.c.l.b16 %v871
        %v2723 = vunpack.c.h.b16 %v871
        %v2724 = vunpack.c.l.b16 %v872
        %v2725 = vunpack.c.h.b16 %v872
        %v2726 = vunpack.c.l.b16 %v873
        %v2727 = vunpack.c.h.b16 %v873
        %v2728 = vunpack.c.l.b16 %v874
        %v2729 = vunpack.c.h.b16 %v874
        %v2730 = vunpack.c.l.b16 %v875
        %v2731 = vunpack.c.h.b16 %v875
        %v2732 = vunpack.c.l.b16 %v876
        %v2733 = vunpack.c.h.b16 %v876
        %v2734 = vunpack.c.l.b16 %v877
        %v2735 = vunpack.c.h.b16 %v877
        %v2736 = vunpack.c.l.b16 %v878
        %v2737 = vunpack.c.h.b16 %v878
        %v2738 = vunpack.c.l.b16 %v879
        %v2739 = vunpack.c.h.b16 %v879
        %v2740 = vunpack.c.l.b16 %v880
        %v2741 = vunpack.c.h.b16 %v880
        %v2742 = vunpack.c.l.b16 %v881
        %v2743 = vunpack.c.h.b16 %v881
        %v2744 = vunpack.c.l.b16 %v882
        %v2745 = vunpack.c.h.b16 %v882
        %v2746 = vunpack.c.l.b16 %v883
        %v2747 = vunpack.c.h.b16 %v883
        %v2748 = vunpack.c.l.b16 %v884
        %v2749 = vunpack.c.h.b16 %v884
        %v2750 = vunpack.c.l.b16 %v885
        %v2751 = vunpack.c.h.b16 %v885
        %v2752 = vunpack.c.l.b16 %v886
        %v2753 = vunpack.c.h.b16 %v886
        %v2754 = vunpack.c.l.b16 %v887
        %v2755 = vunpack.c.h.b16 %v887
        %v2756 = vunpack.c.l.b16 %v888
        %v2757 = vunpack.c.h.b16 %v888
        %v2758 = vunpack.c.l.b16 %v889
        %v2759 = vunpack.c.h.b16 %v889
        %v2760 = vunpack.c.l.b16 %v890
        %v2761 = vunpack.c.h.b16 %v890
        %v2762 = vunpack.c.l.b16 %v891
        %v2763 = vunpack.c.h.b16 %v891
        %v2764 = vunpack.c.l.b16 %v892
        %v2765 = vunpack.c.h.b16 %v892
        %v2766 = vunpack.c.l.b16 %v893
        %v2767 = vunpack.c.h.b16 %v893
        %v2768 = vunpack.c.l.b16 %v894
        %v2769 = vunpack.c.h.b16 %v894
        %v2770 = vunpack.c.l.b16 %v895
        %v2771 = vunpack.c.h.b16 %v895
        %v2772 = vunpack.c.l.b16 %v896
        %v2773 = vunpack.c.h.b16 %v896
        %v2774 = vunpack.c.l.b16 %v897
        %v2775 = vunpack.c.h.b16 %v897
        %v2776 = vunpack.c.l.b16 %v898
        %v2777 = vunpack.c.h.b16 %v898
        %v2778 = vunpack.c.l.b16 %v899
        %v2779 = vunpack.c.h.b16 %v899
        %v2780 = vunpack.c.l.b16 %v900
        %v2781 = vunpack.c.h.b16 %v900
        %v2782 = vunpack.c.l.b16 %v901
        %v2783 = vunpack.c.h.b16 %v901
        %v2784 = vunpack.c.l.b16 %v902
        %v2785 = vunpack.c.h.b16 %v902
        %v2786 = vunpack.c.l.b16 %v903
        %v2787 = vunpack.c.h.b16 %v903
        %v2788 = vunpack.c.l.b16 %v904
        %v2789 = vunpack.c.h.b16 %v904
        %v2790 = vunpack.c.l.b16 %v905
        %v2791 = vunpack.c.h.b16 %v905
        %v2792 = vunpack.c.l.b16 %v906
        %v2793 = vunpack.c.h.b16 %v906
        %v2794 = vunpack.c.l.b16 %v907
        %v2795 = vunpack.c.h.b16 %v907
        %v2796 = vunpack.c.l.b16 %v908
        %v2797 = vunpack.c.h.b16 %v908
        %v2798 = vunpack.c.l.b16 %v909
        %v2799 = vunpack.c.h.b16 %v909
        %v2800 = vunpack.c.l.b16 %v910
        %v2801 = vunpack.c.h.b16 %v910
        %v2802 = vunpack.c.l.b16 %v911
        %v2803 = vunpack.c.h.b16 %v911
        %v2804 = vunpack.c.l.b16 %v912
        %v2805 = vunpack.c.h.b16 %v912
        %v2806 = vunpack.c.l.b16 %v913
        %v2807 = vunpack.c.h.b16 %v913
        %v2808 = vunpack.c.l.b16 %v914
        %v2809 = vunpack.c.h.b16 %v914
        %v2810 = vunpack.c.l.b16 %v915
        %v2811 = vunpack.c.h.b16 %v915
        %v2812 = vunpack.c.l.b16 %v916
        %v2813 = vunpack.c.h.b16 %v916
        %v2814 = vunpack.c.l.b16 %v917
        %v2815 = vunpack.c.h.b16 %v917
        %v2816 = vunpack.c.l.b16 %v918
        %v2817 = vunpack.c.h.b16 %v918
        %v2818 = vunpack.c.l.b16 %v919
        %v2819 = vunpack.c.h.b16 %v919
        %v2820 = vunpack.c.l.b16 %v920
        %v2821 = vunpack.c.h.b16 %v920
        %v2822 = vunpack.c.l.b16 %v921
        %v2823 = vunpack.c.h.b16 %v921
        %v2824 = vunpack.c.l.b16 %v922
        %v2825 = vunpack.c.h.b16 %v922
        %v2826 = vunpack.c.l.b16 %v923
        %v2827 = vunpack.c.h.b16 %v923
        %v2828 = vunpack.c.l.b16 %v924
        %v2829 = vunpack.c.h.b16 %v924
        %v2830 = vunpack.c.l.b16 %v925
        %v2831 = vunpack.c.h.b16 %v925
        %v2832 = vunpack.c.l.b16 %v926
        %v2833 = vunpack.c.h.b16 %v926
        %v2834 = vunpack.c.l.b16 %v927
        %v2835 = vunpack.c.h.b16 %v927
        %v2836 = vunpack.c.l.b16 %v928
        %v2837 = vunpack.c.h.b16 %v928
        %v2838 = vunpack.c.l.b16 %v929
        %v2839 = vunpack.c.h.b16 %v929
        %v2840 = vunpack.c.l.b16 %v930
        %v2841 = vunpack.c.h.b16 %v930
        %v2842 = vunpack.c.l.b16 %v931
        %v2843 = vunpack.c.h.b16 %v931
        %v2844 = vunpack.c.l.b16 %v932
        %v2845 = vunpack.c.h.b16 %v932
        %v2846 = vunpack.c.l.b16 %v933
        %v2847 = vunpack.c.h.b16 %v933
        %v2848 = vunpack.c.l.b16 %v934
        %v2849 = vunpack.c.h.b16 %v934
        %v2850 = vunpack.c.l.b16 %v935
        %v2851 = vunpack.c.h.b16 %v935
        %v2852 = vunpack.c.l.b16 %v936
        %v2853 = vunpack.c.h.b16 %v936
        %v2854 = vunpack.c.l.b16 %v937
        %v2855 = vunpack.c.h.b16 %v937
        %v2856 = vunpack.c.l.b16 %v938
        %v2857 = vunpack.c.h.b16 %v938
        %v2858 = vunpack.c.l.b16 %v939
        %v2859 = vunpack.c.h.b16 %v939
        %v2860 = vunpack.c.l.b16 %v940
        %v2861 = vunpack.c.h.b16 %v940
        %v2862 = vunpack.c.l.b16 %v941
        %v2863 = vunpack.c.h.b16 %v941
        %v2864 = vunpack.c.l.b16 %v942
        %v2865 = vunpack.c.h.b16 %v942
        %v2866 = vunpack.c.l.b16 %v943
        %v2867 = vunpack.c.h.b16 %v943
        %v2868 = vunpack.c.l.b16 %v944
        %v2869 = vunpack.c.h.b16 %v944
        %v2870 = vunpack.c.l.b16 %v945
        %v2871 = vunpack.c.h.b16 %v945
        %v2872 = vunpack.c.l.b16 %v946
        %v2873 = vunpack.c.h.b16 %v946
        %v2874 = vunpack.c.l.b16 %v947
        %v2875 = vunpack.c.h.b16 %v947
        %v2876 = vunpack.c.l.b16 %v948
        %v2877 = vunpack.c.h.b16 %v948
        %v2878 = vunpack.c.l.b16 %v949
        %v2879 = vunpack.c.h.b16 %v949
        %v2880 = vunpack.c.l.b16 %v950
        %v2881 = vunpack.c.h.b16 %v950
        %v2882 = vunpack.c.l.b16 %v951
        %v2883 = vunpack.c.h.b16 %v951
        %v2884 = vunpack.c.l.b16 %v952
        %v2885 = vunpack.c.h.b16 %v952
        %v2886 = vunpack.c.l.b16 %v953
        %v2887 = vunpack.c.h.b16 %v953
        %v2888 = vunpack.c.l.b16 %v954
        %v2889 = vunpack.c.h.b16 %v954
        %v2890 = vunpack.c.l.b16 %v955
        %v2891 = vunpack.c.h.b16 %v955
        %v2892 = vunpack.c.l.b16 %v956
        %v2893 = vunpack.c.h.b16 %v956
        %v2894 = vunpack.c.l.b16 %v957
        %v2895 = vunpack.c.h.b16 %v957
        %v2896 = vunpack.c.l.b16 %v958
        %v2897 = vunpack.c.h.b16 %v958
        %v2898 = vunpack.c.l.b16 %v959
        %v2899 = vunpack.c.h.b16 %v959
        %v2900 = vunpack.c.l.b16 %v960
        %v2901 = vunpack.c.h.b16 %v960
        %v2902 = vunpack.c.l.b16 %v961
        %v2903 = vunpack.c.h.b16 %v961
        %v2904 = vunpack.c.l.b16 %v962
        %v2905 = vunpack.c.h.b16 %v962
        %v2906 = vunpack.c.l.b16 %v963
        %v2907 = vunpack.c.h.b16 %v963
        %v2908 = vunpack.c.l.b16 %v964
        %v2909 = vunpack.c.h.b16 %v964
        %v2910 = vunpack.c.l.b16 %v965
        %v2911 = vunpack.c.h.b16 %v965
        %v2912 = vunpack.c.l.b16 %v966
        %v2913 = vunpack.c.h.b16 %v966
        %v2914 = vunpack.c.l.b16 %v967
        %v2915 = vunpack.c.h.b16 %v967
        %v2916 = vunpack.c.l.b16 %v968
        %v2917 = vunpack.c.h.b16 %v968
        %v2918 = vunpack.c.l.b16 %v969
        %v2919 = vunpack.c.h.b16 %v969
        %v2920 = vunpack.c.l.b16 %v970
        %v2921 = vunpack.c.h.b16 %v970
        %v2922 = vunpack.c.l.b16 %v971
        %v2923 = vunpack.c.h.b16 %v971
        %v2924 = vunpack.c.l.b16 %v972
        %v2925 = vunpack.c.h.b16 %v972
        %v2926 = vunpack.c.l.b16 %v973
        %v2927 = vunpack.c.h.b16 %v973
        %v2928 = vunpack.c.l.b16 %v974
        %v2929 = vunpack.c.h.b16 %v974
        %v2930 = vunpack.c.l.b16 %v975
        %v2931 = vunpack.c.h.b16 %v975
        %v2932 = vunpack.c.l.b16 %v976
        %v2933 = vunpack.c.h.b16 %v976
        %v2934 = vunpack.c.l.b16 %v977
        %v2935 = vunpack.c.h.b16 %v977
        %v2936 = vunpack.c.l.b16 %v978
        %v2937 = vunpack.c.h.b16 %v978
        %v2938 = vunpack.c.l.b16 %v979
        %v2939 = vunpack.c.h.b16 %v979
        %v2940 = vunpack.c.l.b16 %v980
        %v2941 = vunpack.c.h.b16 %v980
        %v2942 = vunpack.c.l.b16 %v981
        %v2943 = vunpack.c.h.b16 %v981
        %v2944 = vunpack.c.l.b16 %v982
        %v2945 = vunpack.c.h.b16 %v982
        %v2946 = vunpack.c.l.b16 %v983
        %v2947 = vunpack.c.h.b16 %v983
        %v2948 = vunpack.c.l.b16 %v984
        %v2949 = vunpack.c.h.b16 %v984
        %v2950 = vunpack.c.l.b16 %v985
        %v2951 = vunpack.c.h.b16 %v985
        %v2952 = vunpack.c.l.b16 %v986
        %v2953 = vunpack.c.h.b16 %v986
        %v2954 = vunpack.c.l.b16 %v987
        %v2955 = vunpack.c.h.b16 %v987
        %v2956 = vunpack.c.l.b16 %v988
        %v2957 = vunpack.c.h.b16 %v988
        %v2958 = vunpack.c.l.b16 %v989
        %v2959 = vunpack.c.h.b16 %v989
        %v2960 = vunpack.c.l.b16 %v990
        %v2961 = vunpack.c.h.b16 %v990
        %v2962 = vunpack.c.l.b16 %v991
        %v2963 = vunpack.c.h.b16 %v991
        %v2964 = vunpack.c.l.b16 %v992
        %v2965 = vunpack.c.h.b16 %v992
        %v2966 = vunpack.c.l.b16 %v993
        %v2967 = vunpack.c.h.b16 %v993
        %v2968 = vunpack.c.l.b16 %v994
        %v2969 = vunpack.c.h.b16 %v994
        %v2970 = vunpack.c.l.b16 %v995
        %v2971 = vunpack.c.h.b16 %v995
        %v2972 = vunpack.c.l.b16 %v996
        %v2973 = vunpack.c.h.b16 %v996
        %v2974 = vunpack.c.l.b16 %v997
        %v2975 = vunpack.c.h.b16 %v997
        %v2976 = vunpack.c.l.b16 %v998
        %v2977 = vunpack.c.h.b16 %v998
        %v2978 = vunpack.c.l.b16 %v999
        %v2979 = vunpack.c.h.b16 %v999
        %v2980 = vunpack.c.l.b16 %v1000
        %v2981 = vunpack.c.h.b16 %v1000
        %v2982 = vunpack.c.l.b16 %v1001
        %v2983 = vunpack.c.h.b16 %v1001
        %v2984 = vunpack.c.l.b16 %v1002
        %v2985 = vunpack.c.h.b16 %v1002
        %v2986 = vunpack.c.l.b16 %v1003
        %v2987 = vunpack.c.h.b16 %v1003
        %v2988 = vunpack.c.l.b16 %v1004
        %v2989 = vunpack.c.h.b16 %v1004
        %v2990 = vunpack.c.l.b16 %v1005
        %v2991 = vunpack.c.h.b16 %v1005
        %v2992 = vunpack.c.l.b16 %v1006
        %v2993 = vunpack.c.h.b16 %v1006
        %v2994 = vunpack.c.l.b16 %v1007
        %v2995 = vunpack.c.h.b16 %v1007
        %v2996 = vunpack.c.l.b16 %v1008
        %v2997 = vunpack.c.h.b16 %v1008
        %v2998 = vunpack.c.l.b16 %v1009
        %v2999 = vunpack.c.h.b16 %v1009
        %v3000 = vunpack.c.l.b16 %v1010
        %v3001 = vunpack.c.h.b16 %v1010
        %v3002 = vunpack.c.l.b16 %v1011
        %v3003 = vunpack.c.h.b16 %v1011
        %v3004 = vunpack.c.l.b16 %v1012
        %v3005 = vunpack.c.h.b16 %v1012
        %v3006 = vunpack.c.l.b16 %v1013
        %v3007 = vunpack.c.h.b16 %v1013
        %v3008 = vunpack.c.l.b16 %v1014
        %v3009 = vunpack.c.h.b16 %v1014
        %v3010 = vunpack.c.l.b16 %v1015
        %v3011 = vunpack.c.h.b16 %v1015
        %v3012 = vunpack.c.l.b16 %v1016
        %v3013 = vunpack.c.h.b16 %v1016
        %v3014 = vunpack.c.l.b16 %v1017
        %v3015 = vunpack.c.h.b16 %v1017
        %v3016 = vunpack.c.l.b16 %v1018
        %v3017 = vunpack.c.h.b16 %v1018
        %v3018 = vunpack.c.l.b16 %v1019
        %v3019 = vunpack.c.h.b16 %v1019
        %v3020 = vunpack.c.l.b16 %v1020
        %v3021 = vunpack.c.h.b16 %v1020
        %v3022 = vunpack.c.l.b16 %v1021
        %v3023 = vunpack.c.h.b16 %v1021
        %v3024 = vunpack.c.l.b16 %v1022
        %v3025 = vunpack.c.h.b16 %v1022
        %v3026 = vunpack.c.l.b16 %v1023
        %v3027 = vunpack.c.h.b16 %v1023
        %v3028 = vunpack.c.l.b16 %v1024
        %v3029 = vunpack.c.h.b16 %v1024
        %v3030 = vunpack.c.l.b16 %v1025
        %v3031 = vunpack.c.h.b16 %v1025
        %v3032 = vunpack.c.l.b16 %v1026
        %v3033 = vunpack.c.h.b16 %v1026
        %v3034 = vunpack.c.l.b16 %v1027
        %v3035 = vunpack.c.h.b16 %v1027
        %v3036 = vunpack.c.l.b16 %v1028
        %v3037 = vunpack.c.h.b16 %v1028
        %v3038 = vunpack.c.l.b16 %v1029
        %v3039 = vunpack.c.h.b16 %v1029
        %v3040 = vunpack.c.l.b16 %v1030
        %v3041 = vunpack.c.h.b16 %v1030
        %v3042 = vunpack.c.l.b16 %v1031
        %v3043 = vunpack.c.h.b16 %v1031
        %v3044 = vunpack.c.l.b16 %v1032
        %v3045 = vunpack.c.h.b16 %v1032
        %v3046 = vunpack.c.l.b16 %v1033
        %v3047 = vunpack.c.h.b16 %v1033
        %v3048 = vunpack.c.l.b16 %v1034
        %v3049 = vunpack.c.h.b16 %v1034
        %v3050 = vunpack.c.l.b16 %v1035
        %v3051 = vunpack.c.h.b16 %v1035
        %v3052 = vunpack.c.l.b16 %v1036
        %v3053 = vunpack.c.h.b16 %v1036
        %v3054 = vunpack.c.l.b16 %v1037
        %v3055 = vunpack.c.h.b16 %v1037
        %v3056 = vunpack.c.l.b16 %v1038
        %v3057 = vunpack.c.h.b16 %v1038
        %v3058 = vunpack.c.l.b16 %v1039
        %v3059 = vunpack.c.h.b16 %v1039
        %v3060 = vunpack.c.l.b16 %v1040
        %v3061 = vunpack.c.h.b16 %v1040
        %v3062 = vunpack.c.l.b16 %v1041
        %v3063 = vunpack.c.h.b16 %v1041
        %v3064 = vunpack.c.l.b16 %v1042
        %v3065 = vunpack.c.h.b16 %v1042
        %v3066 = vunpack.c.l.b16 %v1043
        %v3067 = vunpack.c.h.b16 %v1043
        %v3068 = vunpack.c.l.b16 %v1044
        %v3069 = vunpack.c.h.b16 %v1044
        %v3070 = vunpack.c.l.b16 %v1045
        %v3071 = vunpack.c.h.b16 %v1045
        %v3072 = vunpack.c.l.b16 %v1046
        %v3073 = vunpack.c.h.b16 %v1046
        %v3074 = vunpack.c.l.b16 %v1047
        %v3075 = vunpack.c.h.b16 %v1047
        %v3076 = vunpack.c.l.b16 %v1048
        %v3077 = vunpack.c.h.b16 %v1048
        %v3078 = vunpack.c.l.b16 %v1049
        %v3079 = vunpack.c.h.b16 %v1049
        %v3080 = vunpack.c.l.b16 %v1050
        %v3081 = vunpack.c.h.b16 %v1050
        %v3082 = vunpack.c.l.b16 %v1051
        %v3083 = vunpack.c.h.b16 %v1051
        %v3084 = vunpack.c.l.b16 %v1052
        %v3085 = vunpack.c.h.b16 %v1052
        %v3086 = vunpack.c.l.b16 %v1053
        %v3087 = vunpack.c.h.b16 %v1053
        %v3088 = vunpack.c.l.b16 %v1054
        %v3089 = vunpack.c.h.b16 %v1054
        %v3090 = vunpack.c.l.b16 %v1055
        %v3091 = vunpack.c.h.b16 %v1055
        %v3092 = vunpack.c.l.b16 %v1056
        %v3093 = vunpack.c.h.b16 %v1056
        %v3094 = vunpack.c.l.b16 %v1057
        %v3095 = vunpack.c.h.b16 %v1057
        %v3096 = vunpack.c.l.b16 %v1058
        %v3097 = vunpack.c.h.b16 %v1058
        %v3098 = vunpack.c.l.b16 %v1059
        %v3099 = vunpack.c.h.b16 %v1059
        %v3100 = vunpack.c.l.b16 %v1060
        %v3101 = vunpack.c.h.b16 %v1060
        %v3102 = vunpack.c.l.b16 %v1061
        %v3103 = vunpack.c.h.b16 %v1061
        %v3104 = vunpack.c.l.b16 %v1062
        %v3105 = vunpack.c.h.b16 %v1062
        %v3106 = vunpack.c.l.b16 %v1063
        %v3107 = vunpack.c.h.b16 %v1063
        %v3108 = vunpack.c.l.b16 %v1064
        %v3109 = vunpack.c.h.b16 %v1064
        %v3110 = vunpack.c.l.b16 %v1065
        %v3111 = vunpack.c.h.b16 %v1065
        %v3112 = vunpack.c.l.b16 %v1066
        %v3113 = vunpack.c.h.b16 %v1066
        %v3114 = vunpack.c.l.b16 %v1067
        %v3115 = vunpack.c.h.b16 %v1067
        %v3116 = vunpack.c.l.b16 %v1068
        %v3117 = vunpack.c.h.b16 %v1068
        %v3118 = vunpack.c.l.b16 %v1069
        %v3119 = vunpack.c.h.b16 %v1069
        %v3120 = vunpack.c.l.b16 %v1070
        %v3121 = vunpack.c.h.b16 %v1070
        %v3122 = vunpack.c.l.b16 %v1071
        %v3123 = vunpack.c.h.b16 %v1071
        %v3124 = vunpack.c.l.b16 %v1072
        %v3125 = vunpack.c.h.b16 %v1072
        %v3126 = vunpack.c.l.b16 %v1073
        %v3127 = vunpack.c.h.b16 %v1073
        %v3128 = vunpack.c.l.b16 %v1074
        %v3129 = vunpack.c.h.b16 %v1074
        %v3130 = vunpack.c.l.b16 %v1075
        %v3131 = vunpack.c.h.b16 %v1075
        %v3132 = vunpack.c.l.b16 %v1076
        %v3133 = vunpack.c.h.b16 %v1076
        %v3134 = vunpack.c.l.b16 %v1077
        %v3135 = vunpack.c.h.b16 %v1077
        %v3136 = vunpack.c.l.b16 %v1078
        %v3137 = vunpack.c.h.b16 %v1078
        %v3138 = vunpack.c.l.b16 %v1079
        %v3139 = vunpack.c.h.b16 %v1079
        %v3140 = vunpack.c.l.b16 %v1080
        %v3141 = vunpack.c.h.b16 %v1080
        %v3142 = vunpack.c.l.b16 %v1081
        %v3143 = vunpack.c.h.b16 %v1081
        %v3144 = vunpack.c.l.b16 %v1082
        %v3145 = vunpack.c.h.b16 %v1082
        %v3146 = vunpack.c.l.b16 %v1083
        %v3147 = vunpack.c.h.b16 %v1083
        %v3148 = vunpack.c.l.b16 %v1084
        %v3149 = vunpack.c.h.b16 %v1084
        %v3150 = vunpack.c.l.b16 %v1085
        %v3151 = vunpack.c.h.b16 %v1085
        %v3152 = vunpack.c.l.b16 %v1086
        %v3153 = vunpack.c.h.b16 %v1086
        %v3154 = vunpack.c.l.b16 %v1087
        %v3155 = vunpack.c.h.b16 %v1087
        %v3156 = vunpack.c.l.b16 %v1088
        %v3157 = vunpack.c.h.b16 %v1088
        %v3158 = vunpack.c.l.b16 %v1089
        %v3159 = vunpack.c.h.b16 %v1089
        %v3160 = vunpack.c.l.b16 %v1090
        %v3161 = vunpack.c.h.b16 %v1090
        %v3162 = vunpack.c.l.b16 %v1091
        %v3163 = vunpack.c.h.b16 %v1091
        %v3164 = vunpack.c.l.b16 %v1092
        %v3165 = vunpack.c.h.b16 %v1092
        %v3166 = vunpack.c.l.b16 %v1093
        %v3167 = vunpack.c.h.b16 %v1093
        %v3168 = vunpack.c.l.b16 %v1094
        %v3169 = vunpack.c.h.b16 %v1094
        %v3170 = vunpack.c.l.b16 %v1095
        %v3171 = vunpack.c.h.b16 %v1095
        %v3172 = vunpack.c.l.b16 %v1096
        %v3173 = vunpack.c.h.b16 %v1096
        %v3174 = vunpack.c.l.b16 %v1097
        %v3175 = vunpack.c.h.b16 %v1097
        %v3176 = vunpack.c.l.b16 %v1098
        %v3177 = vunpack.c.h.b16 %v1098
        %v3178 = vunpack.c.l.b16 %v1099
        %v3179 = vunpack.c.h.b16 %v1099
        %v3180 = vunpack.c.l.b16 %v1100
        %v3181 = vunpack.c.h.b16 %v1100
        %v3182 = vunpack.c.l.b16 %v1101
        %v3183 = vunpack.c.h.b16 %v1101
        %v3184 = vunpack.c.l.b16 %v1102
        %v3185 = vunpack.c.h.b16 %v1102
        %v3186 = vunpack.c.l.b16 %v1103
        %v3187 = vunpack.c.h.b16 %v1103
        %v3188 = vunpack.c.l.b16 %v1104
        %v3189 = vunpack.c.h.b16 %v1104
        %v3190 = vunpack.c.l.b16 %v1105
        %v3191 = vunpack.c.h.b16 %v1105
        %v3192 = vunpack.c.l.b16 %v1106
        %v3193 = vunpack.c.h.b16 %v1106
        %v3194 = vunpack.c.l.b16 %v1107
        %v3195 = vunpack.c.h.b16 %v1107
        %v3196 = vunpack.c.l.b16 %v1108
        %v3197 = vunpack.c.h.b16 %v1108
        %v3198 = vunpack.c.l.b16 %v1109
        %v3199 = vunpack.c.h.b16 %v1109
        %v3200 = vunpack.c.l.b16 %v1110
        %v3201 = vunpack.c.h.b16 %v1110
        %v3202 = vunpack.c.l.b16 %v1111
        %v3203 = vunpack.c.h.b16 %v1111
        %v3204 = vunpack.c.l.b16 %v1112
        %v3205 = vunpack.c.h.b16 %v1112
        %v3206 = vunpack.c.l.b16 %v1113
        %v3207 = vunpack.c.h.b16 %v1113
        %v3208 = vunpack.c.l.b16 %v1114
        %v3209 = vunpack.c.h.b16 %v1114
        %v3210 = vunpack.c.l.b16 %v1115
        %v3211 = vunpack.c.h.b16 %v1115
        %v3212 = vunpack.c.l.b16 %v1116
        %v3213 = vunpack.c.h.b16 %v1116
        %v3214 = vunpack.c.l.b16 %v1117
        %v3215 = vunpack.c.h.b16 %v1117
        %v3216 = vunpack.c.l.b16 %v1118
        %v3217 = vunpack.c.h.b16 %v1118
        %v3218 = vunpack.c.l.b16 %v1119
        %v3219 = vunpack.c.h.b16 %v1119
        %v3220 = vunpack.c.l.b16 %v1120
        %v3221 = vunpack.c.h.b16 %v1120
        %v3222 = vunpack.c.l.b16 %v1121
        %v3223 = vunpack.c.h.b16 %v1121
        %v3224 = vunpack.c.l.b16 %v1122
        %v3225 = vunpack.c.h.b16 %v1122
        %v3226 = vunpack.c.l.b16 %v1123
        %v3227 = vunpack.c.h.b16 %v1123
        %v3228 = vunpack.c.l.b16 %v1124
        %v3229 = vunpack.c.h.b16 %v1124
        %v3230 = vunpack.c.l.b16 %v1125
        %v3231 = vunpack.c.h.b16 %v1125
        %v3232 = vunpack.c.l.b16 %v1126
        %v3233 = vunpack.c.h.b16 %v1126
        %v3234 = vunpack.c.l.b16 %v1127
        %v3235 = vunpack.c.h.b16 %v1127
        %v3236 = vunpack.c.l.b16 %v1128
        %v3237 = vunpack.c.h.b16 %v1128
        %v3238 = vunpack.c.l.b16 %v1129
        %v3239 = vunpack.c.h.b16 %v1129
        %v3240 = vunpack.c.l.b16 %v1130
        %v3241 = vunpack.c.h.b16 %v1130
        %v3242 = vunpack.c.l.b16 %v1131
        %v3243 = vunpack.c.h.b16 %v1131
        %v3244 = vunpack.c.l.b16 %v1132
        %v3245 = vunpack.c.h.b16 %v1132
        %v3246 = vunpack.c.l.b16 %v1133
        %v3247 = vunpack.c.h.b16 %v1133
        %v3248 = vunpack.c.l.b16 %v1134
        %v3249 = vunpack.c.h.b16 %v1134
        %v3250 = vunpack.c.l.b16 %v1135
        %v3251 = vunpack.c.h.b16 %v1135
        %v3252 = vunpack.c.l.b16 %v1136
        %v3253 = vunpack.c.h.b16 %v1136
        %v3254 = vunpack.c.l.b16 %v1137
        %v3255 = vunpack.c.h.b16 %v1137
        %v3256 = vunpack.c.l.b16 %v1138
        %v3257 = vunpack.c.h.b16 %v1138
        %v3258 = vunpack.c.l.b16 %v1139
        %v3259 = vunpack.c.h.b16 %v1139
        %v3260 = vunpack.c.l.b16 %v1140
        %v3261 = vunpack.c.h.b16 %v1140
        %v3262 = vunpack.c.l.b16 %v1141
        %v3263 = vunpack.c.h.b16 %v1141
        %v3264 = vunpack.c.l.b16 %v1142
        %v3265 = vunpack.c.h.b16 %v1142
        %v3266 = vunpack.c.l.b16 %v1143
        %v3267 = vunpack.c.h.b16 %v1143
        %v3268 = vunpack.c.l.b16 %v1144
        %v3269 = vunpack.c.h.b16 %v1144
        %v3270 = vunpack.c.l.b16 %v1145
        %v3271 = vunpack.c.h.b16 %v1145
        %v3272 = vunpack.c.l.b16 %v1146
        %v3273 = vunpack.c.h.b16 %v1146
        %v3274 = vunpack.c.l.b16 %v1147
        %v3275 = vunpack.c.h.b16 %v1147
        %v3276 = vunpack.c.l.b16 %v1148
        %v3277 = vunpack.c.h.b16 %v1148
        %v3278 = vunpack.c.l.b16 %v1149
        %v3279 = vunpack.c.h.b16 %v1149
        %v3280 = vunpack.c.l.b16 %v1150
        %v3281 = vunpack.c.h.b16 %v1150
        %v3282 = vunpack.c.l.b16 %v1151
        %v3283 = vunpack.c.h.b16 %v1151
        %v3284 = vunpack.c.l.b16 %v1152
        %v3285 = vunpack.c.h.b16 %v1152
        %v3286 = vunpack.c.l.b16 %v1153
        %v3287 = vunpack.c.h.b16 %v1153
        %v3288 = vunpack.c.l.b16 %v1154
        %v3289 = vunpack.c.h.b16 %v1154
        %v3290 = vunpack.c.l.b16 %v1155
        %v3291 = vunpack.c.h.b16 %v1155
        %v3292 = vunpack.c.l.b16 %v1156
        %v3293 = vunpack.c.h.b16 %v1156
        %v3294 = vunpack.c.l.b16 %v1157
        %v3295 = vunpack.c.h.b16 %v1157
        %v3296 = vunpack.c.l.b16 %v1158
        %v3297 = vunpack.c.h.b16 %v1158
        %v3298 = vunpack.c.l.b16 %v1159
        %v3299 = vunpack.c.h.b16 %v1159
        %v3300 = vunpack.c.l.b16 %v1160
        %v3301 = vunpack.c.h.b16 %v1160
        %v3302 = vunpack.c.l.b16 %v1161
        %v3303 = vunpack.c.h.b16 %v1161
        %v3304 = vunpack.c.l.b16 %v1162
        %v3305 = vunpack.c.h.b16 %v1162
        %v3306 = vunpack.c.l.b16 %v1163
        %v3307 = vunpack.c.h.b16 %v1163
        %v3308 = vunpack.c.l.b16 %v1164
        %v3309 = vunpack.c.h.b16 %v1164
        %v3310 = vunpack.c.l.b16 %v1165
        %v3311 = vunpack.c.h.b16 %v1165
        %v3312 = vunpack.c.l.b16 %v1166
        %v3313 = vunpack.c.h.b16 %v1166
        %v3314 = vunpack.c.l.b16 %v1167
        %v3315 = vunpack.c.h.b16 %v1167
        %v3316 = vunpack.c.l.b16 %v1168
        %v3317 = vunpack.c.h.b16 %v1168
        %v3318 = vunpack.c.l.b16 %v1169
        %v3319 = vunpack.c.h.b16 %v1169
        %v3320 = vunpack.c.l.b16 %v1170
        %v3321 = vunpack.c.h.b16 %v1170
        %v3322 = vunpack.c.l.b16 %v1171
        %v3323 = vunpack.c.h.b16 %v1171
        %v3324 = vunpack.c.l.b16 %v1172
        %v3325 = vunpack.c.h.b16 %v1172
        %v3326 = vunpack.c.l.b16 %v1173
        %v3327 = vunpack.c.h.b16 %v1173
        %v3328 = vunpack.c.l.b16 %v1174
        %v3329 = vunpack.c.h.b16 %v1174
        %v3330 = vunpack.c.l.b16 %v1175
        %v3331 = vunpack.c.h.b16 %v1175
        %v3332 = vunpack.c.l.b16 %v1176
        %v3333 = vunpack.c.h.b16 %v1176
        %v3334 = vunpack.c.l.b16 %v1177
        %v3335 = vunpack.c.h.b16 %v1177
        %v3336 = vunpack.c.l.b16 %v1178
        %v3337 = vunpack.c.h.b16 %v1178
        %v3338 = vunpack.c.l.b16 %v1179
        %v3339 = vunpack.c.h.b16 %v1179
        %v3340 = vunpack.c.l.b16 %v1180
        %v3341 = vunpack.c.h.b16 %v1180
        %v3342 = vunpack.c.l.b16 %v1181
        %v3343 = vunpack.c.h.b16 %v1181
        %v3344 = vunpack.c.l.b16 %v1182
        %v3345 = vunpack.c.h.b16 %v1182
        %v3346 = vunpack.c.l.b16 %v1183
        %v3347 = vunpack.c.h.b16 %v1183
        %v3348 = vunpack.c.l.b16 %v1184
        %v3349 = vunpack.c.h.b16 %v1184
        %v3350 = vunpack.c.l.b16 %v1185
        %v3351 = vunpack.c.h.b16 %v1185
        %v3352 = vunpack.c.l.b16 %v1186
        %v3353 = vunpack.c.h.b16 %v1186
        %v3354 = vunpack.c.l.b16 %v1187
        %v3355 = vunpack.c.h.b16 %v1187
        %v3356 = vunpack.c.l.b16 %v1188
        %v3357 = vunpack.c.h.b16 %v1188
        %v3358 = vunpack.c.l.b16 %v1189
        %v3359 = vunpack.c.h.b16 %v1189
        %v3360 = vunpack.c.l.b16 %v1190
        %v3361 = vunpack.c.h.b16 %v1190
        %v3362 = vunpack.c.l.b16 %v1191
        %v3363 = vunpack.c.h.b16 %v1191
        %v3364 = vunpack.c.l.b16 %v1192
        %v3365 = vunpack.c.h.b16 %v1192
        %v3366 = vunpack.c.l.b16 %v1193
        %v3367 = vunpack.c.h.b16 %v1193
        %v3368 = vunpack.c.l.b16 %v1194
        %v3369 = vunpack.c.h.b16 %v1194
        %v3370 = vunpack.c.l.b16 %v1195
        %v3371 = vunpack.c.h.b16 %v1195
        %v3372 = vunpack.c.l.b16 %v1196
        %v3373 = vunpack.c.h.b16 %v1196
        %v3374 = vunpack.c.l.b16 %v1197
        %v3375 = vunpack.c.h.b16 %v1197
        %v3376 = vunpack.c.l.b16 %v1198
        %v3377 = vunpack.c.h.b16 %v1198
        %v3378 = vunpack.c.l.b16 %v1199
        %v3379 = vunpack.c.h.b16 %v1199
        %v3380 = vunpack.c.l.b16 %v1200
        %v3381 = vunpack.c.h.b16 %v1200
        %v3382 = vunpack.c.l.b16 %v1201
        %v3383 = vunpack.c.h.b16 %v1201
        %v3384 = vunpack.c.l.b16 %v1202
        %v3385 = vunpack.c.h.b16 %v1202
        %v3386 = vunpack.c.l.b16 %v1203
        %v3387 = vunpack.c.h.b16 %v1203
        %v3388 = vunpack.c.l.b16 %v1204
        %v3389 = vunpack.c.h.b16 %v1204
        %v3390 = vunpack.c.l.b16 %v1205
        %v3391 = vunpack.c.h.b16 %v1205
        %v3392 = vunpack.c.l.b16 %v1206
        %v3393 = vunpack.c.h.b16 %v1206
        %v3394 = vunpack.c.l.b16 %v1207
        %v3395 = vunpack.c.h.b16 %v1207
        %v3396 = vunpack.c.l.b16 %v1208
        %v3397 = vunpack.c.h.b16 %v1208
        %v3398 = vunpack.c.l.b16 %v1209
        %v3399 = vunpack.c.h.b16 %v1209
        %v3400 = vunpack.c.l.b16 %v1210
        %v3401 = vunpack.c.h.b16 %v1210
        %v3402 = vunpack.c.l.b16 %v1211
        %v3403 = vunpack.c.h.b16 %v1211
        %v3404 = vunpack.c.l.b16 %v1212
        %v3405 = vunpack.c.h.b16 %v1212
        %v3406 = vunpack.c.l.b16 %v1213
        %v3407 = vunpack.c.h.b16 %v1213
        %v3408 = vunpack.c.l.b16 %v1214
        %v3409 = vunpack.c.h.b16 %v1214
        %v3410 = vunpack.c.l.b16 %v1215
        %v3411 = vunpack.c.h.b16 %v1215
        %v3412 = vunpack.c.l.b16 %v1216
        %v3413 = vunpack.c.h.b16 %v1216
        %v3414 = vunpack.c.l.b16 %v1217
        %v3415 = vunpack.c.h.b16 %v1217
        %v3416 = vunpack.c.l.b16 %v1218
        %v3417 = vunpack.c.h.b16 %v1218
        %v3418 = vunpack.c.l.b16 %v1219
        %v3419 = vunpack.c.h.b16 %v1219
        %v3420 = vunpack.c.l.b16 %v1220
        %v3421 = vunpack.c.h.b16 %v1220
        %v3422 = vunpack.c.l.b16 %v1221
        %v3423 = vunpack.c.h.b16 %v1221
        %v3424 = vunpack.c.l.b16 %v1222
        %v3425 = vunpack.c.h.b16 %v1222
        %v3426 = vunpack.c.l.b16 %v1223
        %v3427 = vunpack.c.h.b16 %v1223
        %v3428 = vunpack.c.l.b16 %v1224
        %v3429 = vunpack.c.h.b16 %v1224
        %v3430 = vunpack.c.l.b16 %v1225
        %v3431 = vunpack.c.h.b16 %v1225
        %v3432 = vunpack.c.l.b16 %v1226
        %v3433 = vunpack.c.h.b16 %v1226
        %v3434 = vunpack.c.l.b16 %v1227
        %v3435 = vunpack.c.h.b16 %v1227
        %v3436 = vunpack.c.l.b16 %v1228
        %v3437 = vunpack.c.h.b16 %v1228
        %v3438 = vunpack.c.l.b16 %v1229
        %v3439 = vunpack.c.h.b16 %v1229
        %v3440 = vunpack.c.l.b16 %v1230
        %v3441 = vunpack.c.h.b16 %v1230
        %v3442 = vunpack.c.l.b16 %v1231
        %v3443 = vunpack.c.h.b16 %v1231
        %v3444 = vunpack.c.l.b16 %v1232
        %v3445 = vunpack.c.h.b16 %v1232
        %v3446 = vunpack.c.l.b16 %v1233
        %v3447 = vunpack.c.h.b16 %v1233
        %v3448 = vunpack.c.l.b16 %v1234
        %v3449 = vunpack.c.h.b16 %v1234
        %v3450 = vunpack.c.l.b16 %v1235
        %v3451 = vunpack.c.h.b16 %v1235
        %v3452 = vunpack.c.l.b16 %v1236
        %v3453 = vunpack.c.h.b16 %v1236
        %v3454 = vunpack.c.l.b16 %v1237
        %v3455 = vunpack.c.h.b16 %v1237
        %v3456 = vunpack.c.l.b16 %v1238
        %v3457 = vunpack.c.h.b16 %v1238
        %v3458 = vunpack.c.l.b16 %v1239
        %v3459 = vunpack.c.h.b16 %v1239
        %v3460 = vunpack.c.l.b16 %v1240
        %v3461 = vunpack.c.h.b16 %v1240
        %v3462 = vunpack.c.l.b16 %v1241
        %v3463 = vunpack.c.h.b16 %v1241
        %v3464 = vunpack.c.l.b16 %v1242
        %v3465 = vunpack.c.h.b16 %v1242
        %v3466 = vunpack.c.l.b16 %v1243
        %v3467 = vunpack.c.h.b16 %v1243
        %v3468 = vunpack.c.l.b16 %v1244
        %v3469 = vunpack.c.h.b16 %v1244
        %v3470 = vunpack.c.l.b16 %v1245
        %v3471 = vunpack.c.h.b16 %v1245
        %v3472 = vunpack.c.l.b16 %v1246
        %v3473 = vunpack.c.h.b16 %v1246
        %v3474 = vunpack.c.l.b16 %v1247
        %v3475 = vunpack.c.h.b16 %v1247
        %v3476 = vunpack.c.l.b16 %v1248
        %v3477 = vunpack.c.h.b16 %v1248
        %v3478 = vunpack.c.l.b16 %v1249
        %v3479 = vunpack.c.h.b16 %v1249
        %v3480 = vunpack.c.l.b16 %v1250
        %v3481 = vunpack.c.h.b16 %v1250
        %v3482 = vunpack.c.l.b16 %v1251
        %v3483 = vunpack.c.h.b16 %v1251
        %v3484 = vunpack.c.l.b16 %v1252
        %v3485 = vunpack.c.h.b16 %v1252
        %v3486 = vunpack.c.l.b16 %v1253
        %v3487 = vunpack.c.h.b16 %v1253
        %v3488 = vunpack.c.l.b16 %v1254
        %v3489 = vunpack.c.h.b16 %v1254
        %v3490 = vunpack.c.l.b16 %v1255
        %v3491 = vunpack.c.h.b16 %v1255
        %v3492 = vunpack.c.l.b16 %v1256
        %v3493 = vunpack.c.h.b16 %v1256
        %v3494 = vunpack.c.l.b16 %v1257
        %v3495 = vunpack.c.h.b16 %v1257
        %v3496 = vunpack.c.l.b16 %v1258
        %v3497 = vunpack.c.h.b16 %v1258
        %v3498 = vunpack.c.l.b16 %v1259
        %v3499 = vunpack.c.h.b16 %v1259
        %v3500 = vunpack.c.l.b16 %v1260
        %v3501 = vunpack.c.h.b16 %v1260
        %v3502 = vunpack.c.l.b16 %v1261
        %v3503 = vunpack.c.h.b16 %v1261
        %v3504 = vunpack.c.l.b16 %v1262
        %v3505 = vunpack.c.h.b16 %v1262
        %v3506 = vunpack.c.l.b16 %v1263
        %v3507 = vunpack.c.h.b16 %v1263
        %v3508 = vunpack.c.l.b16 %v1264
        %v3509 = vunpack.c.h.b16 %v1264
        %v3510 = vunpack.c.l.b16 %v1265
        %v3511 = vunpack.c.h.b16 %v1265
        %v3512 = vunpack.c.l.b16 %v1266
        %v3513 = vunpack.c.h.b16 %v1266
        %v3514 = vunpack.c.l.b16 %v1267
        %v3515 = vunpack.c.h.b16 %v1267
        %v3516 = vunpack.c.l.b16 %v1268
        %v3517 = vunpack.c.h.b16 %v1268
        %v3518 = vunpack.c.l.b16 %v1269
        %v3519 = vunpack.c.h.b16 %v1269
        %v3520 = vunpack.c.l.b16 %v1270
        %v3521 = vunpack.c.h.b16 %v1270
        %v3522 = vunpack.c.l.b16 %v1271
        %v3523 = vunpack.c.h.b16 %v1271
        %v3524 = vunpack.c.l.b16 %v1272
        %v3525 = vunpack.c.h.b16 %v1272
        %v3526 = vunpack.c.l.b16 %v1273
        %v3527 = vunpack.c.h.b16 %v1273
        %v3528 = vunpack.c.l.b16 %v1274
        %v3529 = vunpack.c.h.b16 %v1274
        %v3530 = vunpack.c.l.b16 %v1275
        %v3531 = vunpack.c.h.b16 %v1275
        %v3532 = vunpack.c.l.b16 %v1276
        %v3533 = vunpack.c.h.b16 %v1276
        %v3534 = vunpack.c.l.b16 %v1277
        %v3535 = vunpack.c.h.b16 %v1277
        %v3536 = vunpack.c.l.b16 %v1278
        %v3537 = vunpack.c.h.b16 %v1278
        %v3538 = vunpack.c.l.b16 %v1279
        %v3539 = vunpack.c.h.b16 %v1279
        %v3540 = vunpack.c.l.b16 %v1280
        %v3541 = vunpack.c.h.b16 %v1280
        %v3542 = vunpack.c.l.b16 %v1281
        %v3543 = vunpack.c.h.b16 %v1281
        %v3544 = vunpack.c.l.b16 %v1282
        %v3545 = vunpack.c.h.b16 %v1282
        %v3546 = vunpack.c.l.b16 %v1283
        %v3547 = vunpack.c.h.b16 %v1283
        %v3548 = vunpack.c.l.b16 %v1284
        %v3549 = vunpack.c.h.b16 %v1284
        %v3550 = vunpack.c.l.b16 %v1285
        %v3551 = vunpack.c.h.b16 %v1285
        %v3552 = vunpack.c.l.b16 %v1286
        %v3553 = vunpack.c.h.b16 %v1286
        %v3554 = vunpack.c.l.b16 %v1287
        %v3555 = vunpack.c.h.b16 %v1287
        %v3556 = vunpack.c.l.b16 %v1288
        %v3557 = vunpack.c.h.b16 %v1288
        %v3558 = vunpack.c.l.b16 %v1289
        %v3559 = vunpack.c.h.b16 %v1289
        %v3560 = vunpack.c.l.b16 %v1290
        %v3561 = vunpack.c.h.b16 %v1290
        %v3562 = vunpack.c.l.b16 %v1291
        %v3563 = vunpack.c.h.b16 %v1291
        %v3564 = vunpack.c.l.b16 %v1292
        %v3565 = vunpack.c.h.b16 %v1292
        %v3566 = vunpack.c.l.b16 %v1293
        %v3567 = vunpack.c.h.b16 %v1293
        %v3568 = vunpack.c.l.b16 %v1294
        %v3569 = vunpack.c.h.b16 %v1294
        %v3570 = vunpack.c.l.b16 %v1295
        %v3571 = vunpack.c.h.b16 %v1295
        %v3572 = vunpack.c.l.b16 %v1296
        %v3573 = vunpack.c.h.b16 %v1296
        %v3574 = vunpack.c.l.b16 %v1297
        %v3575 = vunpack.c.h.b16 %v1297
        %v3576 = vunpack.c.l.b16 %v1298
        %v3577 = vunpack.c.h.b16 %v1298
        %v3578 = vunpack.c.l.b16 %v1299
        %v3579 = vunpack.c.h.b16 %v1299
        %v3580 = vunpack.c.l.b16 %v1300
        %v3581 = vunpack.c.h.b16 %v1300
        %v3582 = vunpack.c.l.b16 %v1301
        %v3583 = vunpack.c.h.b16 %v1301
        %v3584 = vunpack.c.l.b16 %v1302
        %v3585 = vunpack.c.h.b16 %v1302
        %v3586 = vunpack.c.l.b16 %v1303
        %v3587 = vunpack.c.h.b16 %v1303
        %v3588 = vunpack.c.l.b16 %v1304
        %v3589 = vunpack.c.h.b16 %v1304
        %v3590 = vunpack.c.l.b16 %v1305
        %v3591 = vunpack.c.h.b16 %v1305
        %v3592 = vunpack.c.l.b16 %v1306
        %v3593 = vunpack.c.h.b16 %v1306
        %v3594 = vunpack.c.l.b16 %v1307
        %v3595 = vunpack.c.h.b16 %v1307
        %v3596 = vunpack.c.l.b16 %v1308
        %v3597 = vunpack.c.h.b16 %v1308
        %v3598 = vunpack.c.l.b16 %v1309
        %v3599 = vunpack.c.h.b16 %v1309
        %v3600 = vunpack.c.l.b16 %v1310
        %v3601 = vunpack.c.h.b16 %v1310
        %v3602 = vunpack.c.l.b16 %v1311
        %v3603 = vunpack.c.h.b16 %v1311
        %v3604 = vunpack.c.l.b16 %v1312
        %v3605 = vunpack.c.h.b16 %v1312
        %v3606 = vunpack.c.l.b16 %v1313
        %v3607 = vunpack.c.h.b16 %v1313
        %v3608 = vunpack.c.l.b16 %v1314
        %v3609 = vunpack.c.h.b16 %v1314
        %v3610 = vunpack.c.l.b16 %v1315
        %v3611 = vunpack.c.h.b16 %v1315
        %v3612 = vunpack.c.l.b16 %v1316
        %v3613 = vunpack.c.h.b16 %v1316
        %v3614 = vunpack.c.l.b16 %v1317
        %v3615 = vunpack.c.h.b16 %v1317
        %v3616 = vunpack.c.l.b16 %v1318
        %v3617 = vunpack.c.h.b16 %v1318
        %v3618 = vunpack.c.l.b16 %v1319
        %v3619 = vunpack.c.h.b16 %v1319
        %v3620 = vunpack.c.l.b16 %v1320
        %v3621 = vunpack.c.h.b16 %v1320
        %v3622 = vunpack.c.l.b16 %v1321
        %v3623 = vunpack.c.h.b16 %v1321
        %v3624 = vunpack.c.l.b16 %v1322
        %v3625 = vunpack.c.h.b16 %v1322
        %v3626 = vunpack.c.l.b16 %v1323
        %v3627 = vunpack.c.h.b16 %v1323
        %v3628 = vunpack.c.l.b16 %v1324
        %v3629 = vunpack.c.h.b16 %v1324
        %v3630 = vunpack.c.l.b16 %v1325
        %v3631 = vunpack.c.h.b16 %v1325
        %v3632 = vunpack.c.l.b16 %v1326
        %v3633 = vunpack.c.h.b16 %v1326
        %v3634 = vunpack.c.l.b16 %v1327
        %v3635 = vunpack.c.h.b16 %v1327
        %v3636 = vunpack.c.l.b16 %v1328
        %v3637 = vunpack.c.h.b16 %v1328
        %v3638 = vunpack.c.l.b16 %v1329
        %v3639 = vunpack.c.h.b16 %v1329
        %v3640 = vunpack.c.l.b16 %v1330
        %v3641 = vunpack.c.h.b16 %v1330
        %v3642 = vunpack.c.l.b16 %v1331
        %v3643 = vunpack.c.h.b16 %v1331
        %v3644 = vunpack.c.l.b16 %v1332
        %v3645 = vunpack.c.h.b16 %v1332
        %v3646 = vunpack.c.l.b16 %v1333
        %v3647 = vunpack.c.h.b16 %v1333
        %v3648 = vunpack.c.l.b16 %v1334
        %v3649 = vunpack.c.h.b16 %v1334
        %v3650 = vunpack.c.l.b16 %v1335
        %v3651 = vunpack.c.h.b16 %v1335
        %v3652 = vunpack.c.l.b16 %v1336
        %v3653 = vunpack.c.h.b16 %v1336
        %v3654 = vunpack.c.l.b16 %v1337
        %v3655 = vunpack.c.h.b16 %v1337
        %v3656 = vunpack.c.l.b16 %v1338
        %v3657 = vunpack.c.h.b16 %v1338
        %v3658 = vunpack.c.l.b16 %v1339
        %v3659 = vunpack.c.h.b16 %v1339
        %v3660 = vunpack.c.l.b16 %v1340
        %v3661 = vunpack.c.h.b16 %v1340
        %v3662 = vunpack.c.l.b16 %v1341
        %v3663 = vunpack.c.h.b16 %v1341
        %v3664 = vunpack.c.l.b16 %v1342
        %v3665 = vunpack.c.h.b16 %v1342
        %v3666 = vunpack.c.l.b16 %v1343
        %v3667 = vunpack.c.h.b16 %v1343
        %v3668 = vunpack.c.l.b16 %v1344
        %v3669 = vunpack.c.h.b16 %v1344
        %v3670 = vunpack.c.l.b16 %v1345
        %v3671 = vunpack.c.h.b16 %v1345
        %v3672 = vunpack.c.l.b16 %v1346
        %v3673 = vunpack.c.h.b16 %v1346
        %v3674 = vunpack.c.l.b16 %v1347
        %v3675 = vunpack.c.h.b16 %v1347
        %v3676 = vunpack.c.l.b16 %v1348
        %v3677 = vunpack.c.h.b16 %v1348
        %v3678 = vunpack.c.l.b16 %v1349
        %v3679 = vunpack.c.h.b16 %v1349
        %v3680 = vunpack.c.l.b16 %v1350
        %v3681 = vunpack.c.h.b16 %v1350
        %v3682 = vunpack.c.l.b16 %v1351
        %v3683 = vunpack.c.h.b16 %v1351
        %v3684 = vunpack.c.l.b16 %v1352
        %v3685 = vunpack.c.h.b16 %v1352
        %v3686 = vunpack.c.l.b16 %v1353
        %v3687 = vunpack.c.h.b16 %v1353
        %v3688 = vunpack.c.l.b16 %v1354
        %v3689 = vunpack.c.h.b16 %v1354
        %v3690 = vunpack.c.l.b16 %v1355
        %v3691 = vunpack.c.h.b16 %v1355
        %v3692 = vunpack.c.l.b16 %v1356
        %v3693 = vunpack.c.h.b16 %v1356
        %v3694 = vunpack.c.l.b16 %v1357
        %v3695 = vunpack.c.h.b16 %v1357
        %v3696 = vunpack.c.l.b16 %v1358
        %v3697 = vunpack.c.h.b16 %v1358
        %v3698 = vunpack.c.l.b16 %v1359
        %v3699 = vunpack.c.h.b16 %v1359
        %v3700 = vunpack.c.l.b16 %v1360
        %v3701 = vunpack.c.h.b16 %v1360
        %v3702 = vunpack.c.l.b16 %v1361
        %v3703 = vunpack.c.h.b16 %v1361
        %v3704 = vunpack.c.l.b16 %v1362
        %v3705 = vunpack.c.h.b16 %v1362
        %v3706 = vunpack.c.l.b16 %v1363
        %v3707 = vunpack.c.h.b16 %v1363
        %v3708 = vunpack.c.l.b16 %v1364
        %v3709 = vunpack.c.h.b16 %v1364
        %v3710 = vunpack.c.l.b16 %v1365
        %v3711 = vunpack.c.h.b16 %v1365
        %v3712 = vpack.c.b16 %v2184, %v2176
        %v3713 = vpack.c.b16 %v2185, %v2177
        %v3714 = vpack.c.b16 %v2186, %v2178
        %v3715 = vpack.c.b16 %v2187, %v2179
        %v3716 = vpack.c.b16 %v2188, %v2180
        %v3717 = vpack.c.b16 %v2189, %v2181
        %v3718 = vpack.c.b16 %v2190, %v2182
        %v3719 = vpack.c.b16 %v2191, %v2183
        %v3720 = vpack.c.b16 %v2200, %v2192
        %v3721 = vpack.c.b16 %v2201, %v2193
        %v3722 = vpack.c.b16 %v2202, %v2194
        %v3723 = vpack.c.b16 %v2203, %v2195
        %v3724 = vpack.c.b16 %v2204, %v2196
        %v3725 = vpack.c.b16 %v2205, %v2197
        %v3726 = vpack.c.b16 %v2206, %v2198
        %v3727 = vpack.c.b16 %v2207, %v2199
        %v3728 = vpack.c.b16 %v2216, %v2208
        %v3729 = vpack.c.b16 %v2217, %v2209
        %v3730 = vpack.c.b16 %v2218, %v2210
        %v3731 = vpack.c.b16 %v2219, %v2211
        %v3732 = vpack.c.b16 %v2220, %v2212
        %v3733 = vpack.c.b16 %v2221, %v2213
        %v3734 = vpack.c.b16 %v2222, %v2214
        %v3735 = vpack.c.b16 %v2223, %v2215
        %v3736 = vpack.c.b16 %v2232, %v2224
        %v3737 = vpack.c.b16 %v2233, %v2225
        %v3738 = vpack.c.b16 %v2234, %v2226
        %v3739 = vpack.c.b16 %v2235, %v2227
        %v3740 = vpack.c.b16 %v2236, %v2228
        %v3741 = vpack.c.b16 %v2237, %v2229
        %v3742 = vpack.c.b16 %v2238, %v2230
        %v3743 = vpack.c.b16 %v2239, %v2231
        %v3744 = vpack.c.b16 %v2248, %v2240
        %v3745 = vpack.c.b16 %v2249, %v2241
        %v3746 = vpack.c.b16 %v2250, %v2242
        %v3747 = vpack.c.b16 %v2251, %v2243
        %v3748 = vpack.c.b16 %v2252, %v2244
        %v3749 = vpack.c.b16 %v2253, %v2245
        %v3750 = vpack.c.b16 %v2254, %v2246
        %v3751 = vpack.c.b16 %v2255, %v2247
        %v3752 = vpack.c.b16 %v2264, %v2256
        %v3753 = vpack.c.b16 %v2265, %v2257
        %v3754 = vpack.c.b16 %v2266, %v2258
        %v3755 = vpack.c.b16 %v2267, %v2259
        %v3756 = vpack.c.b16 %v2268, %v2260
        %v3757 = vpack.c.b16 %v2269, %v2261
        %v3758 = vpack.c.b16 %v2270, %v2262
        %v3759 = vpack.c.b16 %v2271, %v2263
        %v3760 = vpack.c.b16 %v2280, %v2272
        %v3761 = vpack.c.b16 %v2281, %v2273
        %v3762 = vpack.c.b16 %v2282, %v2274
        %v3763 = vpack.c.b16 %v2283, %v2275
        %v3764 = vpack.c.b16 %v2284, %v2276
        %v3765 = vpack.c.b16 %v2285, %v2277
        %v3766 = vpack.c.b16 %v2286, %v2278
        %v3767 = vpack.c.b16 %v2287, %v2279
        %v3768 = vpack.c.b16 %v2296, %v2288
        %v3769 = vpack.c.b16 %v2297, %v2289
        %v3770 = vpack.c.b16 %v2298, %v2290
        %v3771 = vpack.c.b16 %v2299, %v2291
        %v3772 = vpack.c.b16 %v2300, %v2292
        %v3773 = vpack.c.b16 %v2301, %v2293
        %v3774 = vpack.c.b16 %v2302, %v2294
        %v3775 = vpack.c.b16 %v2303, %v2295
        %v3776 = vpack.c.b16 %v2312, %v2304
        %v3777 = vpack.c.b16 %v2313, %v2305
        %v3778 = vpack.c.b16 %v2314, %v2306
        %v3779 = vpack.c.b16 %v2315, %v2307
        %v3780 = vpack.c.b16 %v2316, %v2308
        %v3781 = vpack.c.b16 %v2317, %v2309
        %v3782 = vpack.c.b16 %v2318, %v2310
        %v3783 = vpack.c.b16 %v2319, %v2311
        %v3784 = vpack.c.b16 %v2328, %v2320
        %v3785 = vpack.c.b16 %v2329, %v2321
        %v3786 = vpack.c.b16 %v2330, %v2322
        %v3787 = vpack.c.b16 %v2331, %v2323
        %v3788 = vpack.c.b16 %v2332, %v2324
        %v3789 = vpack.c.b16 %v2333, %v2325
        %v3790 = vpack.c.b16 %v2334, %v2326
        %v3791 = vpack.c.b16 %v2335, %v2327
        %v3792 = vpack.c.b16 %v2344, %v2336
        %v3793 = vpack.c.b16 %v2345, %v2337
        %v3794 = vpack.c.b16 %v2346, %v2338
        %v3795 = vpack.c.b16 %v2347, %v2339
        %v3796 = vpack.c.b16 %v2348, %v2340
        %v3797 = vpack.c.b16 %v2349, %v2341
        %v3798 = vpack.c.b16 %v2350, %v2342
        %v3799 = vpack.c.b16 %v2351, %v2343
        %v3800 = vpack.c.b16 %v2360, %v2352
        %v3801 = vpack.c.b16 %v2361, %v2353
        %v3802 = vpack.c.b16 %v2362, %v2354
        %v3803 = vpack.c.b16 %v2363, %v2355
        %v3804 = vpack.c.b16 %v2364, %v2356
        %v3805 = vpack.c.b16 %v2365, %v2357
        %v3806 = vpack.c.b16 %v2366, %v2358
        %v3807 = vpack.c.b16 %v2367, %v2359
        %v3808 = vpack.c.b16 %v2376, %v2368
        %v3809 = vpack.c.b16 %v2377, %v2369
        %v3810 = vpack.c.b16 %v2378, %v2370
        %v3811 = vpack.c.b16 %v2379, %v2371
        %v3812 = vpack.c.b16 %v2380, %v2372
        %v3813 = vpack.c.b16 %v2381, %v2373
        %v3814 = vpack.c.b16 %v2382, %v2374
        %v3815 = vpack.c.b16 %v2383, %v2375
        %v3816 = vpack.c.b16 %v2392, %v2384
        %v3817 = vpack.c.b16 %v2393, %v2385
        %v3818 = vpack.c.b16 %v2394, %v2386
        %v3819 = vpack.c.b16 %v2395, %v2387
        %v3820 = vpack.c.b16 %v2396, %v2388
        %v3821 = vpack.c.b16 %v2397, %v2389
        %v3822 = vpack.c.b16 %v2398, %v2390
        %v3823 = vpack.c.b16 %v2399, %v2391
        %v3824 = vpack.c.b16 %v2408, %v2400
        %v3825 = vpack.c.b16 %v2409, %v2401
        %v3826 = vpack.c.b16 %v2410, %v2402
        %v3827 = vpack.c.b16 %v2411, %v2403
        %v3828 = vpack.c.b16 %v2412, %v2404
        %v3829 = vpack.c.b16 %v2413, %v2405
        %v3830 = vpack.c.b16 %v2414, %v2406
        %v3831 = vpack.c.b16 %v2415, %v2407
        %v3832 = vpack.c.b16 %v2424, %v2416
        %v3833 = vpack.c.b16 %v2425, %v2417
        %v3834 = vpack.c.b16 %v2426, %v2418
        %v3835 = vpack.c.b16 %v2427, %v2419
        %v3836 = vpack.c.b16 %v2428, %v2420
        %v3837 = vpack.c.b16 %v2429, %v2421
        %v3838 = vpack.c.b16 %v2430, %v2422
        %v3839 = vpack.c.b16 %v2431, %v2423
        %v3840 = vpack.c.b16 %v2440, %v2432
        %v3841 = vpack.c.b16 %v2441, %v2433
        %v3842 = vpack.c.b16 %v2442, %v2434
        %v3843 = vpack.c.b16 %v2443, %v2435
        %v3844 = vpack.c.b16 %v2444, %v2436
        %v3845 = vpack.c.b16 %v2445, %v2437
        %v3846 = vpack.c.b16 %v2446, %v2438
        %v3847 = vpack.c.b16 %v2447, %v2439
        %v3848 = vpack.c.b16 %v2456, %v2448
        %v3849 = vpack.c.b16 %v2457, %v2449
        %v3850 = vpack.c.b16 %v2458, %v2450
        %v3851 = vpack.c.b16 %v2459, %v2451
        %v3852 = vpack.c.b16 %v2460, %v2452
        %v3853 = vpack.c.b16 %v2461, %v2453
        %v3854 = vpack.c.b16 %v2462, %v2454
        %v3855 = vpack.c.b16 %v2463, %v2455
        %v3856 = vpack.c.b16 %v2472, %v2464
        %v3857 = vpack.c.b16 %v2473, %v2465
        %v3858 = vpack.c.b16 %v2474, %v2466
        %v3859 = vpack.c.b16 %v2475, %v2467
        %v3860 = vpack.c.b16 %v2476, %v2468
        %v3861 = vpack.c.b16 %v2477, %v2469
        %v3862 = vpack.c.b16 %v2478, %v2470
        %v3863 = vpack.c.b16 %v2479, %v2471
        %v3864 = vpack.c.b16 %v2488, %v2480
        %v3865 = vpack.c.b16 %v2489, %v2481
        %v3866 = vpack.c.b16 %v2490, %v2482
        %v3867 = vpack.c.b16 %v2491, %v2483
        %v3868 = vpack.c.b16 %v2492, %v2484
        %v3869 = vpack.c.b16 %v2493, %v2485
        %v3870 = vpack.c.b16 %v2494, %v2486
        %v3871 = vpack.c.b16 %v2495, %v2487
        %v3872 = vpack.c.b16 %v2504, %v2496
        %v3873 = vpack.c.b16 %v2505, %v2497
        %v3874 = vpack.c.b16 %v2506, %v2498
        %v3875 = vpack.c.b16 %v2507, %v2499
        %v3876 = vpack.c.b16 %v2508, %v2500
        %v3877 = vpack.c.b16 %v2509, %v2501
        %v3878 = vpack.c.b16 %v2510, %v2502
        %v3879 = vpack.c.b16 %v2511, %v2503
        %v3880 = vpack.c.b16 %v2520, %v2512
        %v3881 = vpack.c.b16 %v2521, %v2513
        %v3882 = vpack.c.b16 %v2522, %v2514
        %v3883 = vpack.c.b16 %v2523, %v2515
        %v3884 = vpack.c.b16 %v2524, %v2516
        %v3885 = vpack.c.b16 %v2525, %v2517
        %v3886 = vpack.c.b16 %v2526, %v2518
        %v3887 = vpack.c.b16 %v2527, %v2519
        %v3888 = vpack.c.b16 %v2536, %v2528
        %v3889 = vpack.c.b16 %v2537, %v2529
        %v3890 = vpack.c.b16 %v2538, %v2530
        %v3891 = vpack.c.b16 %v2539, %v2531
        %v3892 = vpack.c.b16 %v2540, %v2532
        %v3893 = vpack.c.b16 %v2541, %v2533
        %v3894 = vpack.c.b16 %v2542, %v2534
        %v3895 = vpack.c.b16 %v2543, %v2535
        %v3896 = vpack.c.b16 %v2552, %v2544
        %v3897 = vpack.c.b16 %v2553, %v2545
        %v3898 = vpack.c.b16 %v2554, %v2546
        %v3899 = vpack.c.b16 %v2555, %v2547
        %v3900 = vpack.c.b16 %v2556, %v2548
        %v3901 = vpack.c.b16 %v2557, %v2549
        %v3902 = vpack.c.b16 %v2558, %v2550
        %v3903 = vpack.c.b16 %v2559, %v2551
        %v3904 = vpack.c.b16 %v2568, %v2560
        %v3905 = vpack.c.b16 %v2569, %v2561
        %v3906 = vpack.c.b16 %v2570, %v2562
        %v3907 = vpack.c.b16 %v2571, %v2563
        %v3908 = vpack.c.b16 %v2572, %v2564
        %v3909 = vpack.c.b16 %v2573, %v2565
        %v3910 = vpack.c.b16 %v2574, %v2566
        %v3911 = vpack.c.b16 %v2575, %v2567
        %v3912 = vpack.c.b16 %v2584, %v2576
        %v3913 = vpack.c.b16 %v2585, %v2577
        %v3914 = vpack.c.b16 %v2586, %v2578
        %v3915 = vpack.c.b16 %v2587, %v2579
        %v3916 = vpack.c.b16 %v2588, %v2580
        %v3917 = vpack.c.b16 %v2589, %v2581
        %v3918 = vpack.c.b16 %v2590, %v2582
        %v3919 = vpack.c.b16 %v2591, %v2583
        %v3920 = vpack.c.b16 %v2600, %v2592
        %v3921 = vpack.c.b16 %v2601, %v2593
        %v3922 = vpack.c.b16 %v2602, %v2594
        %v3923 = vpack.c.b16 %v2603, %v2595
        %v3924 = vpack.c.b16 %v2604, %v2596
        %v3925 = vpack.c.b16 %v2605, %v2597
        %v3926 = vpack.c.b16 %v2606, %v2598
        %v3927 = vpack.c.b16 %v2607, %v2599
        %v3928 = vpack.c.b16 %v2616, %v2608
        %v3929 = vpack.c.b16 %v2617, %v2609
        %v3930 = vpack.c.b16 %v2618, %v2610
        %v3931 = vpack.c.b16 %v2619, %v2611
        %v3932 = vpack.c.b16 %v2620, %v2612
        %v3933 = vpack.c.b16 %v2621, %v2613
        %v3934 = vpack.c.b16 %v2622, %v2614
        %v3935 = vpack.c.b16 %v2623, %v2615
        %v3936 = vpack.c.b16 %v2632, %v2624
        %v3937 = vpack.c.b16 %v2633, %v2625
        %v3938 = vpack.c.b16 %v2634, %v2626
        %v3939 = vpack.c.b16 %v2635, %v2627
        %v3940 = vpack.c.b16 %v2636, %v2628
        %v3941 = vpack.c.b16 %v2637, %v2629
        %v3942 = vpack.c.b16 %v2638, %v2630
        %v3943 = vpack.c.b16 %v2639, %v2631
        %v3944 = vpack.c.b16 %v2648, %v2640
        %v3945 = vpack.c.b16 %v2649, %v2641
        %v3946 = vpack.c.b16 %v2650, %v2642
        %v3947 = vpack.c.b16 %v2651, %v2643
        %v3948 = vpack.c.b16 %v2652, %v2644
        %v3949 = vpack.c.b16 %v2653, %v2645
        %v3950 = vpack.c.b16 %v2654, %v2646
        %v3951 = vpack.c.b16 %v2655, %v2647
        %v3952 = vpack.c.b16 %v2664, %v2656
        %v3953 = vpack.c.b16 %v2665, %v2657
        %v3954 = vpack.c.b16 %v2666, %v2658
        %v3955 = vpack.c.b16 %v2667, %v2659
        %v3956 = vpack.c.b16 %v2668, %v2660
        %v3957 = vpack.c.b16 %v2669, %v2661
        %v3958 = vpack.c.b16 %v2670, %v2662
        %v3959 = vpack.c.b16 %v2671, %v2663
        %v3960 = vpack.c.b16 %v2680, %v2672
        %v3961 = vpack.c.b16 %v2681, %v2673
        %v3962 = vpack.c.b16 %v2682, %v2674
        %v3963 = vpack.c.b16 %v2683, %v2675
        %v3964 = vpack.c.b16 %v2684, %v2676
        %v3965 = vpack.c.b16 %v2685, %v2677
        %v3966 = vpack.c.b16 %v2686, %v2678
        %v3967 = vpack.c.b16 %v2687, %v2679
        %v3968 = vpack.c.b16 %v2696, %v2688
        %v3969 = vpack.c.b16 %v2697, %v2689
        %v3970 = vpack.c.b16 %v2698, %v2690
        %v3971 = vpack.c.b16 %v2699, %v2691
        %v3972 = vpack.c.b16 %v2700, %v2692
        %v3973 = vpack.c.b16 %v2701, %v2693
        %v3974 = vpack.c.b16 %v2702, %v2694
        %v3975 = vpack.c.b16 %v2703, %v2695
        %v3976 = vpack.c.b16 %v2712, %v2704
        %v3977 = vpack.c.b16 %v2713, %v2705
        %v3978 = vpack.c.b16 %v2714, %v2706
        %v3979 = vpack.c.b16 %v2715, %v2707
        %v3980 = vpack.c.b16 %v2716, %v2708
        %v3981 = vpack.c.b16 %v2717, %v2709
        %v3982 = vpack.c.b16 %v2718, %v2710
        %v3983 = vpack.c.b16 %v2719, %v2711
        %v3984 = vpack.c.b16 %v2728, %v2720
        %v3985 = vpack.c.b16 %v2729, %v2721
        %v3986 = vpack.c.b16 %v2730, %v2722
        %v3987 = vpack.c.b16 %v2731, %v2723
        %v3988 = vpack.c.b16 %v2732, %v2724
        %v3989 = vpack.c.b16 %v2733, %v2725
        %v3990 = vpack.c.b16 %v2734, %v2726
        %v3991 = vpack.c.b16 %v2735, %v2727
        %v3992 = vpack.c.b16 %v2744, %v2736
        %v3993 = vpack.c.b16 %v2745, %v2737
        %v3994 = vpack.c.b16 %v2746, %v2738
        %v3995 = vpack.c.b16 %v2747, %v2739
        %v3996 = vpack.c.b16 %v2748, %v2740
        %v3997 = vpack.c.b16 %v2749, %v2741
        %v3998 = vpack.c.b16 %v2750, %v2742
        %v3999 = vpack.c.b16 %v2751, %v2743
        %v4000 = vpack.c.b16 %v2760, %v2752
        %v4001 = vpack.c.b16 %v2761, %v2753
        %v4002 = vpack.c.b16 %v2762, %v2754
        %v4003 = vpack.c.b16 %v2763, %v2755
        %v4004 = vpack.c.b16 %v2764, %v2756
        %v4005 = vpack.c.b16 %v2765, %v2757
        %v4006 = vpack.c.b16 %v2766, %v2758
        %v4007 = vpack.c.b16 %v2767, %v2759
        %v4008 = vpack.c.b16 %v2776, %v2768
        %v4009 = vpack.c.b16 %v2777, %v2769
        %v4010 = vpack.c.b16 %v2778, %v2770
        %v4011 = vpack.c.b16 %v2779, %v2771
        %v4012 = vpack.c.b16 %v2780, %v2772
        %v4013 = vpack.c.b16 %v2781, %v2773
        %v4014 = vpack.c.b16 %v2782, %v2774
        %v4015 = vpack.c.b16 %v2783, %v2775
        %v4016 = vpack.c.b16 %v2792, %v2784
        %v4017 = vpack.c.b16 %v2793, %v2785
        %v4018 = vpack.c.b16 %v2794, %v2786
        %v4019 = vpack.c.b16 %v2795, %v2787
        %v4020 = vpack.c.b16 %v2796, %v2788
        %v4021 = vpack.c.b16 %v2797, %v2789
        %v4022 = vpack.c.b16 %v2798, %v2790
        %v4023 = vpack.c.b16 %v2799, %v2791
        %v4024 = vpack.c.b16 %v2808, %v2800
        %v4025 = vpack.c.b16 %v2809, %v2801
        %v4026 = vpack.c.b16 %v2810, %v2802
        %v4027 = vpack.c.b16 %v2811, %v2803
        %v4028 = vpack.c.b16 %v2812, %v2804
        %v4029 = vpack.c.b16 %v2813, %v2805
        %v4030 = vpack.c.b16 %v2814, %v2806
        %v4031 = vpack.c.b16 %v2815, %v2807
        %v4032 = vpack.c.b16 %v2824, %v2816
        %v4033 = vpack.c.b16 %v2825, %v2817
        %v4034 = vpack.c.b16 %v2826, %v2818
        %v4035 = vpack.c.b16 %v2827, %v2819
        %v4036 = vpack.c.b16 %v2828, %v2820
        %v4037 = vpack.c.b16 %v2829, %v2821
        %v4038 = vpack.c.b16 %v2830, %v2822
        %v4039 = vpack.c.b16 %v2831, %v2823
        %v4040 = vpack.c.b16 %v2840, %v2832
        %v4041 = vpack.c.b16 %v2841, %v2833
        %v4042 = vpack.c.b16 %v2842, %v2834
        %v4043 = vpack.c.b16 %v2843, %v2835
        %v4044 = vpack.c.b16 %v2844, %v2836
        %v4045 = vpack.c.b16 %v2845, %v2837
        %v4046 = vpack.c.b16 %v2846, %v2838
        %v4047 = vpack.c.b16 %v2847, %v2839
        %v4048 = vpack.c.b16 %v2856, %v2848
        %v4049 = vpack.c.b16 %v2857, %v2849
        %v4050 = vpack.c.b16 %v2858, %v2850
        %v4051 = vpack.c.b16 %v2859, %v2851
        %v4052 = vpack.c.b16 %v2860, %v2852
        %v4053 = vpack.c.b16 %v2861, %v2853
        %v4054 = vpack.c.b16 %v2862, %v2854
        %v4055 = vpack.c.b16 %v2863, %v2855
        %v4056 = vpack.c.b16 %v2872, %v2864
        %v4057 = vpack.c.b16 %v2873, %v2865
        %v4058 = vpack.c.b16 %v2874, %v2866
        %v4059 = vpack.c.b16 %v2875, %v2867
        %v4060 = vpack.c.b16 %v2876, %v2868
        %v4061 = vpack.c.b16 %v2877, %v2869
        %v4062 = vpack.c.b16 %v2878, %v2870
        %v4063 = vpack.c.b16 %v2879, %v2871
        %v4064 = vpack.c.b16 %v2888, %v2880
        %v4065 = vpack.c.b16 %v2889, %v2881
        %v4066 = vpack.c.b16 %v2890, %v2882
        %v4067 = vpack.c.b16 %v2891, %v2883
        %v4068 = vpack.c.b16 %v2892, %v2884
        %v4069 = vpack.c.b16 %v2893, %v2885
        %v4070 = vpack.c.b16 %v2894, %v2886
        %v4071 = vpack.c.b16 %v2895, %v2887
        %v4072 = vpack.c.b16 %v2904, %v2896
        %v4073 = vpack.c.b16 %v2905, %v2897
        %v4074 = vpack.c.b16 %v2906, %v2898
        %v4075 = vpack.c.b16 %v2907, %v2899
        %v4076 = vpack.c.b16 %v2908, %v2900
        %v4077 = vpack.c.b16 %v2909, %v2901
        %v4078 = vpack.c.b16 %v2910, %v2902
        %v4079 = vpack.c.b16 %v2911, %v2903
        %v4080 = vpack.c.b16 %v2920, %v2912
        %v4081 = vpack.c.b16 %v2921, %v2913
        %v4082 = vpack.c.b16 %v2922, %v2914
        %v4083 = vpack.c.b16 %v2923, %v2915
        %v4084 = vpack.c.b16 %v2924, %v2916
        %v4085 = vpack.c.b16 %v2925, %v2917
        %v4086 = vpack.c.b16 %v2926, %v2918
        %v4087 = vpack.c.b16 %v2927, %v2919
        %v4088 = vpack.c.b16 %v2936, %v2928
        %v4089 = vpack.c.b16 %v2937, %v2929
        %v4090 = vpack.c.b16 %v2938, %v2930
        %v4091 = vpack.c.b16 %v2939, %v2931
        %v4092 = vpack.c.b16 %v2940, %v2932
        %v4093 = vpack.c.b16 %v2941, %v2933
        %v4094 = vpack.c.b16 %v2942, %v2934
        %v4095 = vpack.c.b16 %v2943, %v2935
        %v4096 = vpack.c.b16 %v2952, %v2944
        %v4097 = vpack.c.b16 %v2953, %v2945
        %v4098 = vpack.c.b16 %v2954, %v2946
        %v4099 = vpack.c.b16 %v2955, %v2947
        %v4100 = vpack.c.b16 %v2956, %v2948
        %v4101 = vpack.c.b16 %v2957, %v2949
        %v4102 = vpack.c.b16 %v2958, %v2950
        %v4103 = vpack.c.b16 %v2959, %v2951
        %v4104 = vpack.c.b16 %v2968, %v2960
        %v4105 = vpack.c.b16 %v2969, %v2961
        %v4106 = vpack.c.b16 %v2970, %v2962
        %v4107 = vpack.c.b16 %v2971, %v2963
        %v4108 = vpack.c.b16 %v2972, %v2964
        %v4109 = vpack.c.b16 %v2973, %v2965
        %v4110 = vpack.c.b16 %v2974, %v2966
        %v4111 = vpack.c.b16 %v2975, %v2967
        %v4112 = vpack.c.b16 %v2984, %v2976
        %v4113 = vpack.c.b16 %v2985, %v2977
        %v4114 = vpack.c.b16 %v2986, %v2978
        %v4115 = vpack.c.b16 %v2987, %v2979
        %v4116 = vpack.c.b16 %v2988, %v2980
        %v4117 = vpack.c.b16 %v2989, %v2981
        %v4118 = vpack.c.b16 %v2990, %v2982
        %v4119 = vpack.c.b16 %v2991, %v2983
        %v4120 = vpack.c.b16 %v3000, %v2992
        %v4121 = vpack.c.b16 %v3001, %v2993
        %v4122 = vpack.c.b16 %v3002, %v2994
        %v4123 = vpack.c.b16 %v3003, %v2995
        %v4124 = vpack.c.b16 %v3004, %v2996
        %v4125 = vpack.c.b16 %v3005, %v2997
        %v4126 = vpack.c.b16 %v3006, %v2998
        %v4127 = vpack.c.b16 %v3007, %v2999
        %v4128 = vpack.c.b16 %v3016, %v3008
        %v4129 = vpack.c.b16 %v3017, %v3009
        %v4130 = vpack.c.b16 %v3018, %v3010
        %v4131 = vpack.c.b16 %v3019, %v3011
        %v4132 = vpack.c.b16 %v3020, %v3012
        %v4133 = vpack.c.b16 %v3021, %v3013
        %v4134 = vpack.c.b16 %v3022, %v3014
        %v4135 = vpack.c.b16 %v3023, %v3015
        %v4136 = vpack.c.b16 %v3032, %v3024
        %v4137 = vpack.c.b16 %v3033, %v3025
        %v4138 = vpack.c.b16 %v3034, %v3026
        %v4139 = vpack.c.b16 %v3035, %v3027
        %v4140 = vpack.c.b16 %v3036, %v3028
        %v4141 = vpack.c.b16 %v3037, %v3029
        %v4142 = vpack.c.b16 %v3038, %v3030
        %v4143 = vpack.c.b16 %v3039, %v3031
        %v4144 = vpack.c.b16 %v3048, %v3040
        %v4145 = vpack.c.b16 %v3049, %v3041
        %v4146 = vpack.c.b16 %v3050, %v3042
        %v4147 = vpack.c.b16 %v3051, %v3043
        %v4148 = vpack.c.b16 %v3052, %v3044
        %v4149 = vpack.c.b16 %v3053, %v3045
        %v4150 = vpack.c.b16 %v3054, %v3046
        %v4151 = vpack.c.b16 %v3055, %v3047
        %v4152 = vpack.c.b16 %v3064, %v3056
        %v4153 = vpack.c.b16 %v3065, %v3057
        %v4154 = vpack.c.b16 %v3066, %v3058
        %v4155 = vpack.c.b16 %v3067, %v3059
        %v4156 = vpack.c.b16 %v3068, %v3060
        %v4157 = vpack.c.b16 %v3069, %v3061
        %v4158 = vpack.c.b16 %v3070, %v3062
        %v4159 = vpack.c.b16 %v3071, %v3063
        %v4160 = vpack.c.b16 %v3080, %v3072
        %v4161 = vpack.c.b16 %v3081, %v3073
        %v4162 = vpack.c.b16 %v3082, %v3074
        %v4163 = vpack.c.b16 %v3083, %v3075
        %v4164 = vpack.c.b16 %v3084, %v3076
        %v4165 = vpack.c.b16 %v3085, %v3077
        %v4166 = vpack.c.b16 %v3086, %v3078
        %v4167 = vpack.c.b16 %v3087, %v3079
        %v4168 = vpack.c.b16 %v3096, %v3088
        %v4169 = vpack.c.b16 %v3097, %v3089
        %v4170 = vpack.c.b16 %v3098, %v3090
        %v4171 = vpack.c.b16 %v3099, %v3091
        %v4172 = vpack.c.b16 %v3100, %v3092
        %v4173 = vpack.c.b16 %v3101, %v3093
        %v4174 = vpack.c.b16 %v3102, %v3094
        %v4175 = vpack.c.b16 %v3103, %v3095
        %v4176 = vpack.c.b16 %v3112, %v3104
        %v4177 = vpack.c.b16 %v3113, %v3105
        %v4178 = vpack.c.b16 %v3114, %v3106
        %v4179 = vpack.c.b16 %v3115, %v3107
        %v4180 = vpack.c.b16 %v3116, %v3108
        %v4181 = vpack.c.b16 %v3117, %v3109
        %v4182 = vpack.c.b16 %v3118, %v3110
        %v4183 = vpack.c.b16 %v3119, %v3111
        %v4184 = vpack.c.b16 %v3128, %v3120
        %v4185 = vpack.c.b16 %v3129, %v3121
        %v4186 = vpack.c.b16 %v3130, %v3122
        %v4187 = vpack.c.b16 %v3131, %v3123
        %v4188 = vpack.c.b16 %v3132, %v3124
        %v4189 = vpack.c.b16 %v3133, %v3125
        %v4190 = vpack.c.b16 %v3134, %v3126
        %v4191 = vpack.c.b16 %v3135, %v3127
        %v4192 = vpack.c.b16 %v3144, %v3136
        %v4193 = vpack.c.b16 %v3145, %v3137
        %v4194 = vpack.c.b16 %v3146, %v3138
        %v4195 = vpack.c.b16 %v3147, %v3139
        %v4196 = vpack.c.b16 %v3148, %v3140
        %v4197 = vpack.c.b16 %v3149, %v3141
        %v4198 = vpack.c.b16 %v3150, %v3142
        %v4199 = vpack.c.b16 %v3151, %v3143
        %v4200 = vpack.c.b16 %v3160, %v3152
        %v4201 = vpack.c.b16 %v3161, %v3153
        %v4202 = vpack.c.b16 %v3162, %v3154
        %v4203 = vpack.c.b16 %v3163, %v3155
        %v4204 = vpack.c.b16 %v3164, %v3156
        %v4205 = vpack.c.b16 %v3165, %v3157
        %v4206 = vpack.c.b16 %v3166, %v3158
        %v4207 = vpack.c.b16 %v3167, %v3159
        %v4208 = vpack.c.b16 %v3176, %v3168
        %v4209 = vpack.c.b16 %v3177, %v3169
        %v4210 = vpack.c.b16 %v3178, %v3170
        %v4211 = vpack.c.b16 %v3179, %v3171
        %v4212 = vpack.c.b16 %v3180, %v3172
        %v4213 = vpack.c.b16 %v3181, %v3173
        %v4214 = vpack.c.b16 %v3182, %v3174
        %v4215 = vpack.c.b16 %v3183, %v3175
        %v4216 = vpack.c.b16 %v3192, %v3184
        %v4217 = vpack.c.b16 %v3193, %v3185
        %v4218 = vpack.c.b16 %v3194, %v3186
        %v4219 = vpack.c.b16 %v3195, %v3187
        %v4220 = vpack.c.b16 %v3196, %v3188
        %v4221 = vpack.c.b16 %v3197, %v3189
        %v4222 = vpack.c.b16 %v3198, %v3190
        %v4223 = vpack.c.b16 %v3199, %v3191
        %v4224 = vpack.c.b16 %v3208, %v3200
        %v4225 = vpack.c.b16 %v3209, %v3201
        %v4226 = vpack.c.b16 %v3210, %v3202
        %v4227 = vpack.c.b16 %v3211, %v3203
        %v4228 = vpack.c.b16 %v3212, %v3204
        %v4229 = vpack.c.b16 %v3213, %v3205
        %v4230 = vpack.c.b16 %v3214, %v3206
        %v4231 = vpack.c.b16 %v3215, %v3207
        %v4232 = vpack.c.b16 %v3224, %v3216
        %v4233 = vpack.c.b16 %v3225, %v3217
        %v4234 = vpack.c.b16 %v3226, %v3218
        %v4235 = vpack.c.b16 %v3227, %v3219
        %v4236 = vpack.c.b16 %v3228, %v3220
        %v4237 = vpack.c.b16 %v3229, %v3221
        %v4238 = vpack.c.b16 %v3230, %v3222
        %v4239 = vpack.c.b16 %v3231, %v3223
        %v4240 = vpack.c.b16 %v3240, %v3232
        %v4241 = vpack.c.b16 %v3241, %v3233
        %v4242 = vpack.c.b16 %v3242, %v3234
        %v4243 = vpack.c.b16 %v3243, %v3235
        %v4244 = vpack.c.b16 %v3244, %v3236
        %v4245 = vpack.c.b16 %v3245, %v3237
        %v4246 = vpack.c.b16 %v3246, %v3238
        %v4247 = vpack.c.b16 %v3247, %v3239
        %v4248 = vpack.c.b16 %v3256, %v3248
        %v4249 = vpack.c.b16 %v3257, %v3249
        %v4250 = vpack.c.b16 %v3258, %v3250
        %v4251 = vpack.c.b16 %v3259, %v3251
        %v4252 = vpack.c.b16 %v3260, %v3252
        %v4253 = vpack.c.b16 %v3261, %v3253
        %v4254 = vpack.c.b16 %v3262, %v3254
        %v4255 = vpack.c.b16 %v3263, %v3255
        %v4256 = vpack.c.b16 %v3272, %v3264
        %v4257 = vpack.c.b16 %v3273, %v3265
        %v4258 = vpack.c.b16 %v3274, %v3266
        %v4259 = vpack.c.b16 %v3275, %v3267
        %v4260 = vpack.c.b16 %v3276, %v3268
        %v4261 = vpack.c.b16 %v3277, %v3269
        %v4262 = vpack.c.b16 %v3278, %v3270
        %v4263 = vpack.c.b16 %v3279, %v3271
        %v4264 = vpack.c.b16 %v3288, %v3280
        %v4265 = vpack.c.b16 %v3289, %v3281
        %v4266 = vpack.c.b16 %v3290, %v3282
        %v4267 = vpack.c.b16 %v3291, %v3283
        %v4268 = vpack.c.b16 %v3292, %v3284
        %v4269 = vpack.c.b16 %v3293, %v3285
        %v4270 = vpack.c.b16 %v3294, %v3286
        %v4271 = vpack.c.b16 %v3295, %v3287
        %v4272 = vpack.c.b16 %v3304, %v3296
        %v4273 = vpack.c.b16 %v3305, %v3297
        %v4274 = vpack.c.b16 %v3306, %v3298
        %v4275 = vpack.c.b16 %v3307, %v3299
        %v4276 = vpack.c.b16 %v3308, %v3300
        %v4277 = vpack.c.b16 %v3309, %v3301
        %v4278 = vpack.c.b16 %v3310, %v3302
        %v4279 = vpack.c.b16 %v3311, %v3303
        %v4280 = vpack.c.b16 %v3320, %v3312
        %v4281 = vpack.c.b16 %v3321, %v3313
        %v4282 = vpack.c.b16 %v3322, %v3314
        %v4283 = vpack.c.b16 %v3323, %v3315
        %v4284 = vpack.c.b16 %v3324, %v3316
        %v4285 = vpack.c.b16 %v3325, %v3317
        %v4286 = vpack.c.b16 %v3326, %v3318
        %v4287 = vpack.c.b16 %v3327, %v3319
        %v4288 = vpack.c.b16 %v3336, %v3328
        %v4289 = vpack.c.b16 %v3337, %v3329
        %v4290 = vpack.c.b16 %v3338, %v3330
        %v4291 = vpack.c.b16 %v3339, %v3331
        %v4292 = vpack.c.b16 %v3340, %v3332
        %v4293 = vpack.c.b16 %v3341, %v3333
        %v4294 = vpack.c.b16 %v3342, %v3334
        %v4295 = vpack.c.b16 %v3343, %v3335
        %v4296 = vpack.c.b16 %v3352, %v3344
        %v4297 = vpack.c.b16 %v3353, %v3345
        %v4298 = vpack.c.b16 %v3354, %v3346
        %v4299 = vpack.c.b16 %v3355, %v3347
        %v4300 = vpack.c.b16 %v3356, %v3348
        %v4301 = vpack.c.b16 %v3357, %v3349
        %v4302 = vpack.c.b16 %v3358, %v3350
        %v4303 = vpack.c.b16 %v3359, %v3351
        %v4304 = vpack.c.b16 %v3368, %v3360
        %v4305 = vpack.c.b16 %v3369, %v3361
        %v4306 = vpack.c.b16 %v3370, %v3362
        %v4307 = vpack.c.b16 %v3371, %v3363
        %v4308 = vpack.c.b16 %v3372, %v3364
        %v4309 = vpack.c.b16 %v3373, %v3365
        %v4310 = vpack.c.b16 %v3374, %v3366
        %v4311 = vpack.c.b16 %v3375, %v3367
        %v4312 = vpack.c.b16 %v3384, %v3376
        %v4313 = vpack.c.b16 %v3385, %v3377
        %v4314 = vpack.c.b16 %v3386, %v3378
        %v4315 = vpack.c.b16 %v3387, %v3379
        %v4316 = vpack.c.b16 %v3388, %v3380
        %v4317 = vpack.c.b16 %v3389, %v3381
        %v4318 = vpack.c.b16 %v3390, %v3382
        %v4319 = vpack.c.b16 %v3391, %v3383
        %v4320 = vpack.c.b16 %v3400, %v3392
        %v4321 = vpack.c.b16 %v3401, %v3393
        %v4322 = vpack.c.b16 %v3402, %v3394
        %v4323 = vpack.c.b16 %v3403, %v3395
        %v4324 = vpack.c.b16 %v3404, %v3396
        %v4325 = vpack.c.b16 %v3405, %v3397
        %v4326 = vpack.c.b16 %v3406, %v3398
        %v4327 = vpack.c.b16 %v3407, %v3399
        %v4328 = vpack.c.b16 %v3416, %v3408
        %v4329 = vpack.c.b16 %v3417, %v3409
        %v4330 = vpack.c.b16 %v3418, %v3410
        %v4331 = vpack.c.b16 %v3419, %v3411
        %v4332 = vpack.c.b16 %v3420, %v3412
        %v4333 = vpack.c.b16 %v3421, %v3413
        %v4334 = vpack.c.b16 %v3422, %v3414
        %v4335 = vpack.c.b16 %v3423, %v3415
        %v4336 = vpack.c.b16 %v3432, %v3424
        %v4337 = vpack.c.b16 %v3433, %v3425
        %v4338 = vpack.c.b16 %v3434, %v3426
        %v4339 = vpack.c.b16 %v3435, %v3427
        %v4340 = vpack.c.b16 %v3436, %v3428
        %v4341 = vpack.c.b16 %v3437, %v3429
        %v4342 = vpack.c.b16 %v3438, %v3430
        %v4343 = vpack.c.b16 %v3439, %v3431
        %v4344 = vpack.c.b16 %v3448, %v3440
        %v4345 = vpack.c.b16 %v3449, %v3441
        %v4346 = vpack.c.b16 %v3450, %v3442
        %v4347 = vpack.c.b16 %v3451, %v3443
        %v4348 = vpack.c.b16 %v3452, %v3444
        %v4349 = vpack.c.b16 %v3453, %v3445
        %v4350 = vpack.c.b16 %v3454, %v3446
        %v4351 = vpack.c.b16 %v3455, %v3447
        %v4352 = vpack.c.b16 %v3464, %v3456
        %v4353 = vpack.c.b16 %v3465, %v3457
        %v4354 = vpack.c.b16 %v3466, %v3458
        %v4355 = vpack.c.b16 %v3467, %v3459
        %v4356 = vpack.c.b16 %v3468, %v3460
        %v4357 = vpack.c.b16 %v3469, %v3461
        %v4358 = vpack.c.b16 %v3470, %v3462
        %v4359 = vpack.c.b16 %v3471, %v3463
        %v4360 = vpack.c.b16 %v3480, %v3472
        %v4361 = vpack.c.b16 %v3481, %v3473
        %v4362 = vpack.c.b16 %v3482, %v3474
        %v4363 = vpack.c.b16 %v3483, %v3475
        %v4364 = vpack.c.b16 %v3484, %v3476
        %v4365 = vpack.c.b16 %v3485, %v3477
        %v4366 = vpack.c.b16 %v3486, %v3478
        %v4367 = vpack.c.b16 %v3487, %v3479
        %v4368 = vpack.c.b16 %v3496, %v3488
        %v4369 = vpack.c.b16 %v3497, %v3489
        %v4370 = vpack.c.b16 %v3498, %v3490
        %v4371 = vpack.c.b16 %v3499, %v3491
        %v4372 = vpack.c.b16 %v3500, %v3492
        %v4373 = vpack.c.b16 %v3501, %v3493
        %v4374 = vpack.c.b16 %v3502, %v3494
        %v4375 = vpack.c.b16 %v3503, %v3495
        %v4376 = vpack.c.b16 %v3512, %v3504
        %v4377 = vpack.c.b16 %v3513, %v3505
        %v4378 = vpack.c.b16 %v3514, %v3506
        %v4379 = vpack.c.b16 %v3515, %v3507
        %v4380 = vpack.c.b16 %v3516, %v3508
        %v4381 = vpack.c.b16 %v3517, %v3509
        %v4382 = vpack.c.b16 %v3518, %v3510
        %v4383 = vpack.c.b16 %v3519, %v3511
        %v4384 = vpack.c.b16 %v3528, %v3520
        %v4385 = vpack.c.b16 %v3529, %v3521
        %v4386 = vpack.c.b16 %v3530, %v3522
        %v4387 = vpack.c.b16 %v3531, %v3523
        %v4388 = vpack.c.b16 %v3532, %v3524
        %v4389 = vpack.c.b16 %v3533, %v3525
        %v4390 = vpack.c.b16 %v3534, %v3526
        %v4391 = vpack.c.b16 %v3535, %v3527
        %v4392 = vpack.c.b16 %v3544, %v3536
        %v4393 = vpack.c.b16 %v3545, %v3537
        %v4394 = vpack.c.b16 %v3546, %v3538
        %v4395 = vpack.c.b16 %v3547, %v3539
        %v4396 = vpack.c.b16 %v3548, %v3540
        %v4397 = vpack.c.b16 %v3549, %v3541
        %v4398 = vpack.c.b16 %v3550, %v3542
        %v4399 = vpack.c.b16 %v3551, %v3543
        %v4400 = vpack.c.b16 %v3560, %v3552
        %v4401 = vpack.c.b16 %v3561, %v3553
        %v4402 = vpack.c.b16 %v3562, %v3554
        %v4403 = vpack.c.b16 %v3563, %v3555
        %v4404 = vpack.c.b16 %v3564, %v3556
        %v4405 = vpack.c.b16 %v3565, %v3557
        %v4406 = vpack.c.b16 %v3566, %v3558
        %v4407 = vpack.c.b16 %v3567, %v3559
        %v4408 = vpack.c.b16 %v3576, %v3568
        %v4409 = vpack.c.b16 %v3577, %v3569
        %v4410 = vpack.c.b16 %v3578, %v3570
        %v4411 = vpack.c.b16 %v3579, %v3571
        %v4412 = vpack.c.b16 %v3580, %v3572
        %v4413 = vpack.c.b16 %v3581, %v3573
        %v4414 = vpack.c.b16 %v3582, %v3574
        %v4415 = vpack.c.b16 %v3583, %v3575
        %v4416 = vpack.c.b16 %v3592, %v3584
        %v4417 = vpack.c.b16 %v3593, %v3585
        %v4418 = vpack.c.b16 %v3594, %v3586
        %v4419 = vpack.c.b16 %v3595, %v3587
        %v4420 = vpack.c.b16 %v3596, %v3588
        %v4421 = vpack.c.b16 %v3597, %v3589
        %v4422 = vpack.c.b16 %v3598, %v3590
        %v4423 = vpack.c.b16 %v3599, %v3591
        %v4424 = vpack.c.b16 %v3608, %v3600
        %v4425 = vpack.c.b16 %v3609, %v3601
        %v4426 = vpack.c.b16 %v3610, %v3602
        %v4427 = vpack.c.b16 %v3611, %v3603
        %v4428 = vpack.c.b16 %v3612, %v3604
        %v4429 = vpack.c.b16 %v3613, %v3605
        %v4430 = vpack.c.b16 %v3614, %v3606
        %v4431 = vpack.c.b16 %v3615, %v3607
        %v4432 = vpack.c.b16 %v3624, %v3616
        %v4433 = vpack.c.b16 %v3625, %v3617
        %v4434 = vpack.c.b16 %v3626, %v3618
        %v4435 = vpack.c.b16 %v3627, %v3619
        %v4436 = vpack.c.b16 %v3628, %v3620
        %v4437 = vpack.c.b16 %v3629, %v3621
        %v4438 = vpack.c.b16 %v3630, %v3622
        %v4439 = vpack.c.b16 %v3631, %v3623
        %v4440 = vpack.c.b16 %v3640, %v3632
        %v4441 = vpack.c.b16 %v3641, %v3633
        %v4442 = vpack.c.b16 %v3642, %v3634
        %v4443 = vpack.c.b16 %v3643, %v3635
        %v4444 = vpack.c.b16 %v3644, %v3636
        %v4445 = vpack.c.b16 %v3645, %v3637
        %v4446 = vpack.c.b16 %v3646, %v3638
        %v4447 = vpack.c.b16 %v3647, %v3639
        %v4448 = vpack.c.b16 %v3656, %v3648
        %v4449 = vpack.c.b16 %v3657, %v3649
        %v4450 = vpack.c.b16 %v3658, %v3650
        %v4451 = vpack.c.b16 %v3659, %v3651
        %v4452 = vpack.c.b16 %v3660, %v3652
        %v4453 = vpack.c.b16 %v3661, %v3653
        %v4454 = vpack.c.b16 %v3662, %v3654
        %v4455 = vpack.c.b16 %v3663, %v3655
        %v4456 = vpack.c.b16 %v3672, %v3664
        %v4457 = vpack.c.b16 %v3673, %v3665
        %v4458 = vpack.c.b16 %v3674, %v3666
        %v4459 = vpack.c.b16 %v3675, %v3667
        %v4460 = vpack.c.b16 %v3676, %v3668
        %v4461 = vpack.c.b16 %v3677, %v3669
        %v4462 = vpack.c.b16 %v3678, %v3670
        %v4463 = vpack.c.b16 %v3679, %v3671
        %v4464 = vpack.c.b16 %v3688, %v3680
        %v4465 = vpack.c.b16 %v3689, %v3681
        %v4466 = vpack.c.b16 %v3690, %v3682
        %v4467 = vpack.c.b16 %v3691, %v3683
        %v4468 = vpack.c.b16 %v3692, %v3684
        %v4469 = vpack.c.b16 %v3693, %v3685
        %v4470 = vpack.c.b16 %v3694, %v3686
        %v4471 = vpack.c.b16 %v3695, %v3687
        %v4472 = vpack.c.b16 %v3704, %v3696
        %v4473 = vpack.c.b16 %v3705, %v3697
        %v4474 = vpack.c.b16 %v3706, %v3698
        %v4475 = vpack.c.b16 %v3707, %v3699
        %v4476 = vpack.c.b16 %v3708, %v3700
        %v4477 = vpack.c.b16 %v3709, %v3701
        %v4478 = vpack.c.b16 %v3710, %v3702
        %v4479 = vpack.c.b16 %v3711, %v3703
        %5248 = vmatpush.bf16.msra.mxu0 %v3768
        %5249 = vmatpush.bf16.msra.mxu0 %v3760
        %5250 = vmatpush.bf16.msra.mxu0 %v3752
        %5251 = vmatpush.bf16.msra.mxu0 %v3744
        %5252 = vmatpush.bf16.msra.mxu0 %v3736
        %5253 = vmatpush.bf16.msra.mxu0 %v3728
        %5254 = vmatpush.bf16.msra.mxu0 %v3720
        %5255 = vmatpush.bf16.msra.mxu0 %v3712
        %5256 = vmatmul.bf16.gmra.mxu0 %v1384
        %v5257 = vpop.f32.mrf.mxu0
        %v5258 = vadd.f32 0.0, %v5257
        %v5259 = vpop.f32.mrf.mxu0
        %5260 = vdwg.mxu0
        %5261 = vmatpush.bf16.msra.mxu0 %v3832
        %5262 = vmatpush.bf16.msra.mxu0 %v3824
        %5263 = vmatpush.bf16.msra.mxu0 %v3816
        %5264 = vmatpush.bf16.msra.mxu0 %v3808
        %5265 = vmatpush.bf16.msra.mxu0 %v3800
        %5266 = vmatpush.bf16.msra.mxu0 %v3792
        %5267 = vmatpush.bf16.msra.mxu0 %v3784
        %5268 = vmatpush.bf16.msra.mxu0 %v3776
        %5269 = vmatmul.bf16.gmra.mxu0 %v1385
        %v5270 = vpop.f32.mrf.mxu0
        %v5271 = vadd.f32 %v5258, %v5270
        %v5272 = vpop.f32.mrf.mxu0
        %5273 = vdwg.mxu0
        %5274 = vmatpush.bf16.msra.mxu0 %v3896
        %5275 = vmatpush.bf16.msra.mxu0 %v3888
        %5276 = vmatpush.bf16.msra.mxu0 %v3880
        %5277 = vmatpush.bf16.msra.mxu0 %v3872
        %5278 = vmatpush.bf16.msra.mxu0 %v3864
        %5279 = vmatpush.bf16.msra.mxu0 %v3856
        %5280 = vmatpush.bf16.msra.mxu0 %v3848
        %5281 = vmatpush.bf16.msra.mxu0 %v3840
        %5282 = vmatmul.bf16.gmra.mxu0 %v1386
        %v5283 = vpop.f32.mrf.mxu0
        %v5284 = vadd.f32 %v5271, %v5283
        %v5285 = vpop.f32.mrf.mxu0
        %5286 = vdwg.mxu0
        %5287 = vmatpush.bf16.msra.mxu0 %v3960
        %5288 = vmatpush.bf16.msra.mxu0 %v3952
        %5289 = vmatpush.bf16.msra.mxu0 %v3944
        %5290 = vmatpush.bf16.msra.mxu0 %v3936
        %5291 = vmatpush.bf16.msra.mxu0 %v3928
        %5292 = vmatpush.bf16.msra.mxu0 %v3920
        %5293 = vmatpush.bf16.msra.mxu0 %v3912
        %5294 = vmatpush.bf16.msra.mxu0 %v3904
        %5295 = vmatmul.bf16.gmra.mxu0 %v1387
        %v5296 = vpop.f32.mrf.mxu0
        %v5297 = vadd.f32 %v5284, %v5296
        %v5298 = vpop.f32.mrf.mxu0
        %5299 = vdwg.mxu0
        %5300 = vmatpush.bf16.msra.mxu0 %v4024
        %5301 = vmatpush.bf16.msra.mxu0 %v4016
        %5302 = vmatpush.bf16.msra.mxu0 %v4008
        %5303 = vmatpush.bf16.msra.mxu0 %v4000
        %5304 = vmatpush.bf16.msra.mxu0 %v3992
        %5305 = vmatpush.bf16.msra.mxu0 %v3984
        %5306 = vmatpush.bf16.msra.mxu0 %v3976
        %5307 = vmatpush.bf16.msra.mxu0 %v3968
        %5308 = vmatmul.bf16.gmra.mxu0 %v1388
        %v5309 = vpop.f32.mrf.mxu0
        %v5310 = vadd.f32 %v5297, %v5309
        %v5311 = vpop.f32.mrf.mxu0
        %5312 = vdwg.mxu0
        %5313 = vmatpush.bf16.msra.mxu0 %v4088
        %5314 = vmatpush.bf16.msra.mxu0 %v4080
        %5315 = vmatpush.bf16.msra.mxu0 %v4072
        %5316 = vmatpush.bf16.msra.mxu0 %v4064
        %5317 = vmatpush.bf16.msra.mxu0 %v4056
        %5318 = vmatpush.bf16.msra.mxu0 %v4048
        %5319 = vmatpush.bf16.msra.mxu0 %v4040
        %5320 = vmatpush.bf16.msra.mxu0 %v4032
        %5321 = vmatmul.bf16.gmra.mxu0 %v1389
        %v5322 = vpop.f32.mrf.mxu0
        %v5323 = vadd.f32 %v5310, %v5322
        %v5324 = vpop.f32.mrf.mxu0
        %5325 = vdwg.mxu0
        %5326 = vmatpush.bf16.msra.mxu0 %v4152
        %5327 = vmatpush.bf16.msra.mxu0 %v4144
        %5328 = vmatpush.bf16.msra.mxu0 %v4136
        %5329 = vmatpush.bf16.msra.mxu0 %v4128
        %5330 = vmatpush.bf16.msra.mxu0 %v4120
        %5331 = vmatpush.bf16.msra.mxu0 %v4112
        %5332 = vmatpush.bf16.msra.mxu0 %v4104
        %5333 = vmatpush.bf16.msra.mxu0 %v4096
        %5334 = vmatmul.bf16.gmra.mxu0 %v1390
        %v5335 = vpop.f32.mrf.mxu0
        %v5336 = vadd.f32 %v5323, %v5335
        %v5337 = vpop.f32.mrf.mxu0
        %5338 = vdwg.mxu0
        %5339 = vmatpush.bf16.msra.mxu0 %v4216
        %5340 = vmatpush.bf16.msra.mxu0 %v4208
        %5341 = vmatpush.bf16.msra.mxu0 %v4200
        %5342 = vmatpush.bf16.msra.mxu0 %v4192
        %5343 = vmatpush.bf16.msra.mxu0 %v4184
        %5344 = vmatpush.bf16.msra.mxu0 %v4176
        %5345 = vmatpush.bf16.msra.mxu0 %v4168
        %5346 = vmatpush.bf16.msra.mxu0 %v4160
        %5347 = vmatmul.bf16.gmra.mxu0 %v1391
        %v5348 = vpop.f32.mrf.mxu0
        %v5349 = vadd.f32 %v5336, %v5348
        %v5350 = vpop.f32.mrf.mxu0
        %5351 = vdwg.mxu0
        %5352 = vmatpush.bf16.msra.mxu0 %v4280
        %5353 = vmatpush.bf16.msra.mxu0 %v4272
        %5354 = vmatpush.bf16.msra.mxu0 %v4264
        %5355 = vmatpush.bf16.msra.mxu0 %v4256
        %5356 = vmatpush.bf16.msra.mxu0 %v4248
        %5357 = vmatpush.bf16.msra.mxu0 %v4240
        %5358 = vmatpush.bf16.msra.mxu0 %v4232
        %5359 = vmatpush.bf16.msra.mxu0 %v4224
        %5360 = vmatmul.bf16.gmra.mxu0 %v1392
        %v5361 = vpop.f32.mrf.mxu0
        %v5362 = vadd.f32 %v5349, %v5361
        %v5363 = vpop.f32.mrf.mxu0
        %5364 = vdwg.mxu0
        %5365 = vmatpush.bf16.msra.mxu0 %v4344
        %5366 = vmatpush.bf16.msra.mxu0 %v4336
        %5367 = vmatpush.bf16.msra.mxu0 %v4328
        %5368 = vmatpush.bf16.msra.mxu0 %v4320
        %5369 = vmatpush.bf16.msra.mxu0 %v4312
        %5370 = vmatpush.bf16.msra.mxu0 %v4304
        %5371 = vmatpush.bf16.msra.mxu0 %v4296
        %5372 = vmatpush.bf16.msra.mxu0 %v4288
        %5373 = vmatmul.bf16.gmra.mxu0 %v1393
        %v5374 = vpop.f32.mrf.mxu0
        %v5375 = vadd.f32 %v5362, %v5374
        %v5376 = vpop.f32.mrf.mxu0
        %5377 = vdwg.mxu0
        %5378 = vmatpush.bf16.msra.mxu0 %v4408
        %5379 = vmatpush.bf16.msra.mxu0 %v4400
        %5380 = vmatpush.bf16.msra.mxu0 %v4392
        %5381 = vmatpush.bf16.msra.mxu0 %v4384
        %5382 = vmatpush.bf16.msra.mxu0 %v4376
        %5383 = vmatpush.bf16.msra.mxu0 %v4368
        %5384 = vmatpush.bf16.msra.mxu0 %v4360
        %5385 = vmatpush.bf16.msra.mxu0 %v4352
        %5386 = vmatmul.bf16.gmra.mxu0 %v1394
        %v5387 = vpop.f32.mrf.mxu0
        %v5388 = vadd.f32 %v5375, %v5387
        %v5389 = vpop.f32.mrf.mxu0
        %5390 = vdwg.mxu0
        %5391 = vmatpush.bf16.msra.mxu0 %v4472
        %5392 = vmatpush.bf16.msra.mxu0 %v4464
        %5393 = vmatpush.bf16.msra.mxu0 %v4456
        %5394 = vmatpush.bf16.msra.mxu0 %v4448
        %5395 = vmatpush.bf16.msra.mxu0 %v4440
        %5396 = vmatpush.bf16.msra.mxu0 %v4432
        %5397 = vmatpush.bf16.msra.mxu0 %v4424
        %5398 = vmatpush.bf16.msra.mxu0 %v4416
        %5399 = vmatmul.bf16.gmra.mxu0 %v1395
        %v5400 = vpop.f32.mrf.mxu0
        %v5401 = vadd.f32 %v5388, %v5400
        %v5402 = vpop.f32.mrf.mxu0
        %5403 = vdwg.mxu0
        %5404 = vmatpush.bf16.msra.mxu0 %v3769
        %5405 = vmatpush.bf16.msra.mxu0 %v3761
        %5406 = vmatpush.bf16.msra.mxu0 %v3753
        %5407 = vmatpush.bf16.msra.mxu0 %v3745
        %5408 = vmatpush.bf16.msra.mxu0 %v3737
        %5409 = vmatpush.bf16.msra.mxu0 %v3729
        %5410 = vmatpush.bf16.msra.mxu0 %v3721
        %5411 = vmatpush.bf16.msra.mxu0 %v3713
        %5412 = vmatmul.bf16.gmra.mxu0 %v1384
        %v5413 = vpop.f32.mrf.mxu0
        %v5414 = vadd.f32 0.0, %v5413
        %v5415 = vpop.f32.mrf.mxu0
        %5416 = vdwg.mxu0
        %5417 = vmatpush.bf16.msra.mxu0 %v3833
        %5418 = vmatpush.bf16.msra.mxu0 %v3825
        %5419 = vmatpush.bf16.msra.mxu0 %v3817
        %5420 = vmatpush.bf16.msra.mxu0 %v3809
        %5421 = vmatpush.bf16.msra.mxu0 %v3801
        %5422 = vmatpush.bf16.msra.mxu0 %v3793
        %5423 = vmatpush.bf16.msra.mxu0 %v3785
        %5424 = vmatpush.bf16.msra.mxu0 %v3777
        %5425 = vmatmul.bf16.gmra.mxu0 %v1385
        %v5426 = vpop.f32.mrf.mxu0
        %v5427 = vadd.f32 %v5414, %v5426
        %v5428 = vpop.f32.mrf.mxu0
        %5429 = vdwg.mxu0
        %5430 = vmatpush.bf16.msra.mxu0 %v3897
        %5431 = vmatpush.bf16.msra.mxu0 %v3889
        %5432 = vmatpush.bf16.msra.mxu0 %v3881
        %5433 = vmatpush.bf16.msra.mxu0 %v3873
        %5434 = vmatpush.bf16.msra.mxu0 %v3865
        %5435 = vmatpush.bf16.msra.mxu0 %v3857
        %5436 = vmatpush.bf16.msra.mxu0 %v3849
        %5437 = vmatpush.bf16.msra.mxu0 %v3841
        %5438 = vmatmul.bf16.gmra.mxu0 %v1386
        %v5439 = vpop.f32.mrf.mxu0
        %v5440 = vadd.f32 %v5427, %v5439
        %v5441 = vpop.f32.mrf.mxu0
        %5442 = vdwg.mxu0
        %5443 = vmatpush.bf16.msra.mxu0 %v3961
        %5444 = vmatpush.bf16.msra.mxu0 %v3953
        %5445 = vmatpush.bf16.msra.mxu0 %v3945
        %5446 = vmatpush.bf16.msra.mxu0 %v3937
        %5447 = vmatpush.bf16.msra.mxu0 %v3929
        %5448 = vmatpush.bf16.msra.mxu0 %v3921
        %5449 = vmatpush.bf16.msra.mxu0 %v3913
        %5450 = vmatpush.bf16.msra.mxu0 %v3905
        %5451 = vmatmul.bf16.gmra.mxu0 %v1387
        %v5452 = vpop.f32.mrf.mxu0
        %v5453 = vadd.f32 %v5440, %v5452
        %v5454 = vpop.f32.mrf.mxu0
        %5455 = vdwg.mxu0
        %5456 = vmatpush.bf16.msra.mxu0 %v4025
        %5457 = vmatpush.bf16.msra.mxu0 %v4017
        %5458 = vmatpush.bf16.msra.mxu0 %v4009
        %5459 = vmatpush.bf16.msra.mxu0 %v4001
        %5460 = vmatpush.bf16.msra.mxu0 %v3993
        %5461 = vmatpush.bf16.msra.mxu0 %v3985
        %5462 = vmatpush.bf16.msra.mxu0 %v3977
        %5463 = vmatpush.bf16.msra.mxu0 %v3969
        %5464 = vmatmul.bf16.gmra.mxu0 %v1388
        %v5465 = vpop.f32.mrf.mxu0
        %v5466 = vadd.f32 %v5453, %v5465
        %v5467 = vpop.f32.mrf.mxu0
        %5468 = vdwg.mxu0
        %5469 = vmatpush.bf16.msra.mxu0 %v4089
        %5470 = vmatpush.bf16.msra.mxu0 %v4081
        %5471 = vmatpush.bf16.msra.mxu0 %v4073
        %5472 = vmatpush.bf16.msra.mxu0 %v4065
        %5473 = vmatpush.bf16.msra.mxu0 %v4057
        %5474 = vmatpush.bf16.msra.mxu0 %v4049
        %5475 = vmatpush.bf16.msra.mxu0 %v4041
        %5476 = vmatpush.bf16.msra.mxu0 %v4033
        %5477 = vmatmul.bf16.gmra.mxu0 %v1389
        %v5478 = vpop.f32.mrf.mxu0
        %v5479 = vadd.f32 %v5466, %v5478
        %v5480 = vpop.f32.mrf.mxu0
        %5481 = vdwg.mxu0
        %5482 = vmatpush.bf16.msra.mxu0 %v4153
        %5483 = vmatpush.bf16.msra.mxu0 %v4145
        %5484 = vmatpush.bf16.msra.mxu0 %v4137
        %5485 = vmatpush.bf16.msra.mxu0 %v4129
        %5486 = vmatpush.bf16.msra.mxu0 %v4121
        %5487 = vmatpush.bf16.msra.mxu0 %v4113
        %5488 = vmatpush.bf16.msra.mxu0 %v4105
        %5489 = vmatpush.bf16.msra.mxu0 %v4097
        %5490 = vmatmul.bf16.gmra.mxu0 %v1390
        %v5491 = vpop.f32.mrf.mxu0
        %v5492 = vadd.f32 %v5479, %v5491
        %v5493 = vpop.f32.mrf.mxu0
        %5494 = vdwg.mxu0
        %5495 = vmatpush.bf16.msra.mxu0 %v4217
        %5496 = vmatpush.bf16.msra.mxu0 %v4209
        %5497 = vmatpush.bf16.msra.mxu0 %v4201
        %5498 = vmatpush.bf16.msra.mxu0 %v4193
        %5499 = vmatpush.bf16.msra.mxu0 %v4185
        %5500 = vmatpush.bf16.msra.mxu0 %v4177
        %5501 = vmatpush.bf16.msra.mxu0 %v4169
        %5502 = vmatpush.bf16.msra.mxu0 %v4161
        %5503 = vmatmul.bf16.gmra.mxu0 %v1391
        %v5504 = vpop.f32.mrf.mxu0
        %v5505 = vadd.f32 %v5492, %v5504
        %v5506 = vpop.f32.mrf.mxu0
        %5507 = vdwg.mxu0
        %5508 = vmatpush.bf16.msra.mxu0 %v4281
        %5509 = vmatpush.bf16.msra.mxu0 %v4273
        %5510 = vmatpush.bf16.msra.mxu0 %v4265
        %5511 = vmatpush.bf16.msra.mxu0 %v4257
        %5512 = vmatpush.bf16.msra.mxu0 %v4249
        %5513 = vmatpush.bf16.msra.mxu0 %v4241
        %5514 = vmatpush.bf16.msra.mxu0 %v4233
        %5515 = vmatpush.bf16.msra.mxu0 %v4225
        %5516 = vmatmul.bf16.gmra.mxu0 %v1392
        %v5517 = vpop.f32.mrf.mxu0
        %v5518 = vadd.f32 %v5505, %v5517
        %v5519 = vpop.f32.mrf.mxu0
        %5520 = vdwg.mxu0
        %5521 = vmatpush.bf16.msra.mxu0 %v4345
        %5522 = vmatpush.bf16.msra.mxu0 %v4337
        %5523 = vmatpush.bf16.msra.mxu0 %v4329
        %5524 = vmatpush.bf16.msra.mxu0 %v4321
        %5525 = vmatpush.bf16.msra.mxu0 %v4313
        %5526 = vmatpush.bf16.msra.mxu0 %v4305
        %5527 = vmatpush.bf16.msra.mxu0 %v4297
        %5528 = vmatpush.bf16.msra.mxu0 %v4289
        %5529 = vmatmul.bf16.gmra.mxu0 %v1393
        %v5530 = vpop.f32.mrf.mxu0
        %v5531 = vadd.f32 %v5518, %v5530
        %v5532 = vpop.f32.mrf.mxu0
        %5533 = vdwg.mxu0
        %5534 = vmatpush.bf16.msra.mxu0 %v4409
        %5535 = vmatpush.bf16.msra.mxu0 %v4401
        %5536 = vmatpush.bf16.msra.mxu0 %v4393
        %5537 = vmatpush.bf16.msra.mxu0 %v4385
        %5538 = vmatpush.bf16.msra.mxu0 %v4377
        %5539 = vmatpush.bf16.msra.mxu0 %v4369
        %5540 = vmatpush.bf16.msra.mxu0 %v4361
        %5541 = vmatpush.bf16.msra.mxu0 %v4353
        %5542 = vmatmul.bf16.gmra.mxu0 %v1394
        %v5543 = vpop.f32.mrf.mxu0
        %v5544 = vadd.f32 %v5531, %v5543
        %v5545 = vpop.f32.mrf.mxu0
        %5546 = vdwg.mxu0
        %5547 = vmatpush.bf16.msra.mxu0 %v4473
        %5548 = vmatpush.bf16.msra.mxu0 %v4465
        %5549 = vmatpush.bf16.msra.mxu0 %v4457
        %5550 = vmatpush.bf16.msra.mxu0 %v4449
        %5551 = vmatpush.bf16.msra.mxu0 %v4441
        %5552 = vmatpush.bf16.msra.mxu0 %v4433
        %5553 = vmatpush.bf16.msra.mxu0 %v4425
        %5554 = vmatpush.bf16.msra.mxu0 %v4417
        %5555 = vmatmul.bf16.gmra.mxu0 %v1395
        %v5556 = vpop.f32.mrf.mxu0
        %v5557 = vadd.f32 %v5544, %v5556
        %v5558 = vpop.f32.mrf.mxu0
        %5559 = vdwg.mxu0
        %5560 = vmatpush.bf16.msra.mxu0 %v3770
        %5561 = vmatpush.bf16.msra.mxu0 %v3762
        %5562 = vmatpush.bf16.msra.mxu0 %v3754
        %5563 = vmatpush.bf16.msra.mxu0 %v3746
        %5564 = vmatpush.bf16.msra.mxu0 %v3738
        %5565 = vmatpush.bf16.msra.mxu0 %v3730
        %5566 = vmatpush.bf16.msra.mxu0 %v3722
        %5567 = vmatpush.bf16.msra.mxu0 %v3714
        %5568 = vmatmul.bf16.gmra.mxu0 %v1384
        %v5569 = vpop.f32.mrf.mxu0
        %v5570 = vadd.f32 0.0, %v5569
        %v5571 = vpop.f32.mrf.mxu0
        %5572 = vdwg.mxu0
        %5573 = vmatpush.bf16.msra.mxu0 %v3834
        %5574 = vmatpush.bf16.msra.mxu0 %v3826
        %5575 = vmatpush.bf16.msra.mxu0 %v3818
        %5576 = vmatpush.bf16.msra.mxu0 %v3810
        %5577 = vmatpush.bf16.msra.mxu0 %v3802
        %5578 = vmatpush.bf16.msra.mxu0 %v3794
        %5579 = vmatpush.bf16.msra.mxu0 %v3786
        %5580 = vmatpush.bf16.msra.mxu0 %v3778
        %5581 = vmatmul.bf16.gmra.mxu0 %v1385
        %v5582 = vpop.f32.mrf.mxu0
        %v5583 = vadd.f32 %v5570, %v5582
        %v5584 = vpop.f32.mrf.mxu0
        %5585 = vdwg.mxu0
        %5586 = vmatpush.bf16.msra.mxu0 %v3898
        %5587 = vmatpush.bf16.msra.mxu0 %v3890
        %5588 = vmatpush.bf16.msra.mxu0 %v3882
        %5589 = vmatpush.bf16.msra.mxu0 %v3874
        %5590 = vmatpush.bf16.msra.mxu0 %v3866
        %5591 = vmatpush.bf16.msra.mxu0 %v3858
        %5592 = vmatpush.bf16.msra.mxu0 %v3850
        %5593 = vmatpush.bf16.msra.mxu0 %v3842
        %5594 = vmatmul.bf16.gmra.mxu0 %v1386
        %v5595 = vpop.f32.mrf.mxu0
        %v5596 = vadd.f32 %v5583, %v5595
        %v5597 = vpop.f32.mrf.mxu0
        %5598 = vdwg.mxu0
        %5599 = vmatpush.bf16.msra.mxu0 %v3962
        %5600 = vmatpush.bf16.msra.mxu0 %v3954
        %5601 = vmatpush.bf16.msra.mxu0 %v3946
        %5602 = vmatpush.bf16.msra.mxu0 %v3938
        %5603 = vmatpush.bf16.msra.mxu0 %v3930
        %5604 = vmatpush.bf16.msra.mxu0 %v3922
        %5605 = vmatpush.bf16.msra.mxu0 %v3914
        %5606 = vmatpush.bf16.msra.mxu0 %v3906
        %5607 = vmatmul.bf16.gmra.mxu0 %v1387
        %v5608 = vpop.f32.mrf.mxu0
        %v5609 = vadd.f32 %v5596, %v5608
        %v5610 = vpop.f32.mrf.mxu0
        %5611 = vdwg.mxu0
        %5612 = vmatpush.bf16.msra.mxu0 %v4026
        %5613 = vmatpush.bf16.msra.mxu0 %v4018
        %5614 = vmatpush.bf16.msra.mxu0 %v4010
        %5615 = vmatpush.bf16.msra.mxu0 %v4002
        %5616 = vmatpush.bf16.msra.mxu0 %v3994
        %5617 = vmatpush.bf16.msra.mxu0 %v3986
        %5618 = vmatpush.bf16.msra.mxu0 %v3978
        %5619 = vmatpush.bf16.msra.mxu0 %v3970
        %5620 = vmatmul.bf16.gmra.mxu0 %v1388
        %v5621 = vpop.f32.mrf.mxu0
        %v5622 = vadd.f32 %v5609, %v5621
        %v5623 = vpop.f32.mrf.mxu0
        %5624 = vdwg.mxu0
        %5625 = vmatpush.bf16.msra.mxu0 %v4090
        %5626 = vmatpush.bf16.msra.mxu0 %v4082
        %5627 = vmatpush.bf16.msra.mxu0 %v4074
        %5628 = vmatpush.bf16.msra.mxu0 %v4066
        %5629 = vmatpush.bf16.msra.mxu0 %v4058
        %5630 = vmatpush.bf16.msra.mxu0 %v4050
        %5631 = vmatpush.bf16.msra.mxu0 %v4042
        %5632 = vmatpush.bf16.msra.mxu0 %v4034
        %5633 = vmatmul.bf16.gmra.mxu0 %v1389
        %v5634 = vpop.f32.mrf.mxu0
        %v5635 = vadd.f32 %v5622, %v5634
        %v5636 = vpop.f32.mrf.mxu0
        %5637 = vdwg.mxu0
        %5638 = vmatpush.bf16.msra.mxu0 %v4154
        %5639 = vmatpush.bf16.msra.mxu0 %v4146
        %5640 = vmatpush.bf16.msra.mxu0 %v4138
        %5641 = vmatpush.bf16.msra.mxu0 %v4130
        %5642 = vmatpush.bf16.msra.mxu0 %v4122
        %5643 = vmatpush.bf16.msra.mxu0 %v4114
        %5644 = vmatpush.bf16.msra.mxu0 %v4106
        %5645 = vmatpush.bf16.msra.mxu0 %v4098
        %5646 = vmatmul.bf16.gmra.mxu0 %v1390
        %v5647 = vpop.f32.mrf.mxu0
        %v5648 = vadd.f32 %v5635, %v5647
        %v5649 = vpop.f32.mrf.mxu0
        %5650 = vdwg.mxu0
        %5651 = vmatpush.bf16.msra.mxu0 %v4218
        %5652 = vmatpush.bf16.msra.mxu0 %v4210
        %5653 = vmatpush.bf16.msra.mxu0 %v4202
        %5654 = vmatpush.bf16.msra.mxu0 %v4194
        %5655 = vmatpush.bf16.msra.mxu0 %v4186
        %5656 = vmatpush.bf16.msra.mxu0 %v4178
        %5657 = vmatpush.bf16.msra.mxu0 %v4170
        %5658 = vmatpush.bf16.msra.mxu0 %v4162
        %5659 = vmatmul.bf16.gmra.mxu0 %v1391
        %v5660 = vpop.f32.mrf.mxu0
        %v5661 = vadd.f32 %v5648, %v5660
        %v5662 = vpop.f32.mrf.mxu0
        %5663 = vdwg.mxu0
        %5664 = vmatpush.bf16.msra.mxu0 %v4282
        %5665 = vmatpush.bf16.msra.mxu0 %v4274
        %5666 = vmatpush.bf16.msra.mxu0 %v4266
        %5667 = vmatpush.bf16.msra.mxu0 %v4258
        %5668 = vmatpush.bf16.msra.mxu0 %v4250
        %5669 = vmatpush.bf16.msra.mxu0 %v4242
        %5670 = vmatpush.bf16.msra.mxu0 %v4234
        %5671 = vmatpush.bf16.msra.mxu0 %v4226
        %5672 = vmatmul.bf16.gmra.mxu0 %v1392
        %v5673 = vpop.f32.mrf.mxu0
        %v5674 = vadd.f32 %v5661, %v5673
        %v5675 = vpop.f32.mrf.mxu0
        %5676 = vdwg.mxu0
        %5677 = vmatpush.bf16.msra.mxu0 %v4346
        %5678 = vmatpush.bf16.msra.mxu0 %v4338
        %5679 = vmatpush.bf16.msra.mxu0 %v4330
        %5680 = vmatpush.bf16.msra.mxu0 %v4322
        %5681 = vmatpush.bf16.msra.mxu0 %v4314
        %5682 = vmatpush.bf16.msra.mxu0 %v4306
        %5683 = vmatpush.bf16.msra.mxu0 %v4298
        %5684 = vmatpush.bf16.msra.mxu0 %v4290
        %5685 = vmatmul.bf16.gmra.mxu0 %v1393
        %v5686 = vpop.f32.mrf.mxu0
        %v5687 = vadd.f32 %v5674, %v5686
        %v5688 = vpop.f32.mrf.mxu0
        %5689 = vdwg.mxu0
        %5690 = vmatpush.bf16.msra.mxu0 %v4410
        %5691 = vmatpush.bf16.msra.mxu0 %v4402
        %5692 = vmatpush.bf16.msra.mxu0 %v4394
        %5693 = vmatpush.bf16.msra.mxu0 %v4386
        %5694 = vmatpush.bf16.msra.mxu0 %v4378
        %5695 = vmatpush.bf16.msra.mxu0 %v4370
        %5696 = vmatpush.bf16.msra.mxu0 %v4362
        %5697 = vmatpush.bf16.msra.mxu0 %v4354
        %5698 = vmatmul.bf16.gmra.mxu0 %v1394
        %v5699 = vpop.f32.mrf.mxu0
        %v5700 = vadd.f32 %v5687, %v5699
        %v5701 = vpop.f32.mrf.mxu0
        %5702 = vdwg.mxu0
        %5703 = vmatpush.bf16.msra.mxu0 %v4474
        %5704 = vmatpush.bf16.msra.mxu0 %v4466
        %5705 = vmatpush.bf16.msra.mxu0 %v4458
        %5706 = vmatpush.bf16.msra.mxu0 %v4450
        %5707 = vmatpush.bf16.msra.mxu0 %v4442
        %5708 = vmatpush.bf16.msra.mxu0 %v4434
        %5709 = vmatpush.bf16.msra.mxu0 %v4426
        %5710 = vmatpush.bf16.msra.mxu0 %v4418
        %5711 = vmatmul.bf16.gmra.mxu0 %v1395
        %v5712 = vpop.f32.mrf.mxu0
        %v5713 = vadd.f32 %v5700, %v5712
        %v5714 = vpop.f32.mrf.mxu0
        %5715 = vdwg.mxu0
        %5716 = vmatpush.bf16.msra.mxu0 %v3771
        %5717 = vmatpush.bf16.msra.mxu0 %v3763
        %5718 = vmatpush.bf16.msra.mxu0 %v3755
        %5719 = vmatpush.bf16.msra.mxu0 %v3747
        %5720 = vmatpush.bf16.msra.mxu0 %v3739
        %5721 = vmatpush.bf16.msra.mxu0 %v3731
        %5722 = vmatpush.bf16.msra.mxu0 %v3723
        %5723 = vmatpush.bf16.msra.mxu0 %v3715
        %5724 = vmatmul.bf16.gmra.mxu0 %v1384
        %v5725 = vpop.f32.mrf.mxu0
        %v5726 = vadd.f32 0.0, %v5725
        %v5727 = vpop.f32.mrf.mxu0
        %5728 = vdwg.mxu0
        %5729 = vmatpush.bf16.msra.mxu0 %v3835
        %5730 = vmatpush.bf16.msra.mxu0 %v3827
        %5731 = vmatpush.bf16.msra.mxu0 %v3819
        %5732 = vmatpush.bf16.msra.mxu0 %v3811
        %5733 = vmatpush.bf16.msra.mxu0 %v3803
        %5734 = vmatpush.bf16.msra.mxu0 %v3795
        %5735 = vmatpush.bf16.msra.mxu0 %v3787
        %5736 = vmatpush.bf16.msra.mxu0 %v3779
        %5737 = vmatmul.bf16.gmra.mxu0 %v1385
        %v5738 = vpop.f32.mrf.mxu0
        %v5739 = vadd.f32 %v5726, %v5738
        %v5740 = vpop.f32.mrf.mxu0
        %5741 = vdwg.mxu0
        %5742 = vmatpush.bf16.msra.mxu0 %v3899
        %5743 = vmatpush.bf16.msra.mxu0 %v3891
        %5744 = vmatpush.bf16.msra.mxu0 %v3883
        %5745 = vmatpush.bf16.msra.mxu0 %v3875
        %5746 = vmatpush.bf16.msra.mxu0 %v3867
        %5747 = vmatpush.bf16.msra.mxu0 %v3859
        %5748 = vmatpush.bf16.msra.mxu0 %v3851
        %5749 = vmatpush.bf16.msra.mxu0 %v3843
        %5750 = vmatmul.bf16.gmra.mxu0 %v1386
        %v5751 = vpop.f32.mrf.mxu0
        %v5752 = vadd.f32 %v5739, %v5751
        %v5753 = vpop.f32.mrf.mxu0
        %5754 = vdwg.mxu0
        %5755 = vmatpush.bf16.msra.mxu0 %v3963
        %5756 = vmatpush.bf16.msra.mxu0 %v3955
        %5757 = vmatpush.bf16.msra.mxu0 %v3947
        %5758 = vmatpush.bf16.msra.mxu0 %v3939
        %5759 = vmatpush.bf16.msra.mxu0 %v3931
        %5760 = vmatpush.bf16.msra.mxu0 %v3923
        %5761 = vmatpush.bf16.msra.mxu0 %v3915
        %5762 = vmatpush.bf16.msra.mxu0 %v3907
        %5763 = vmatmul.bf16.gmra.mxu0 %v1387
        %v5764 = vpop.f32.mrf.mxu0
        %v5765 = vadd.f32 %v5752, %v5764
        %v5766 = vpop.f32.mrf.mxu0
        %5767 = vdwg.mxu0
        %5768 = vmatpush.bf16.msra.mxu0 %v4027
        %5769 = vmatpush.bf16.msra.mxu0 %v4019
        %5770 = vmatpush.bf16.msra.mxu0 %v4011
        %5771 = vmatpush.bf16.msra.mxu0 %v4003
        %5772 = vmatpush.bf16.msra.mxu0 %v3995
        %5773 = vmatpush.bf16.msra.mxu0 %v3987
        %5774 = vmatpush.bf16.msra.mxu0 %v3979
        %5775 = vmatpush.bf16.msra.mxu0 %v3971
        %5776 = vmatmul.bf16.gmra.mxu0 %v1388
        %v5777 = vpop.f32.mrf.mxu0
        %v5778 = vadd.f32 %v5765, %v5777
        %v5779 = vpop.f32.mrf.mxu0
        %5780 = vdwg.mxu0
        %5781 = vmatpush.bf16.msra.mxu0 %v4091
        %5782 = vmatpush.bf16.msra.mxu0 %v4083
        %5783 = vmatpush.bf16.msra.mxu0 %v4075
        %5784 = vmatpush.bf16.msra.mxu0 %v4067
        %5785 = vmatpush.bf16.msra.mxu0 %v4059
        %5786 = vmatpush.bf16.msra.mxu0 %v4051
        %5787 = vmatpush.bf16.msra.mxu0 %v4043
        %5788 = vmatpush.bf16.msra.mxu0 %v4035
        %5789 = vmatmul.bf16.gmra.mxu0 %v1389
        %v5790 = vpop.f32.mrf.mxu0
        %v5791 = vadd.f32 %v5778, %v5790
        %v5792 = vpop.f32.mrf.mxu0
        %5793 = vdwg.mxu0
        %5794 = vmatpush.bf16.msra.mxu0 %v4155
        %5795 = vmatpush.bf16.msra.mxu0 %v4147
        %5796 = vmatpush.bf16.msra.mxu0 %v4139
        %5797 = vmatpush.bf16.msra.mxu0 %v4131
        %5798 = vmatpush.bf16.msra.mxu0 %v4123
        %5799 = vmatpush.bf16.msra.mxu0 %v4115
        %5800 = vmatpush.bf16.msra.mxu0 %v4107
        %5801 = vmatpush.bf16.msra.mxu0 %v4099
        %5802 = vmatmul.bf16.gmra.mxu0 %v1390
        %v5803 = vpop.f32.mrf.mxu0
        %v5804 = vadd.f32 %v5791, %v5803
        %v5805 = vpop.f32.mrf.mxu0
        %5806 = vdwg.mxu0
        %5807 = vmatpush.bf16.msra.mxu0 %v4219
        %5808 = vmatpush.bf16.msra.mxu0 %v4211
        %5809 = vmatpush.bf16.msra.mxu0 %v4203
        %5810 = vmatpush.bf16.msra.mxu0 %v4195
        %5811 = vmatpush.bf16.msra.mxu0 %v4187
        %5812 = vmatpush.bf16.msra.mxu0 %v4179
        %5813 = vmatpush.bf16.msra.mxu0 %v4171
        %5814 = vmatpush.bf16.msra.mxu0 %v4163
        %5815 = vmatmul.bf16.gmra.mxu0 %v1391
        %v5816 = vpop.f32.mrf.mxu0
        %v5817 = vadd.f32 %v5804, %v5816
        %v5818 = vpop.f32.mrf.mxu0
        %5819 = vdwg.mxu0
        %5820 = vmatpush.bf16.msra.mxu0 %v4283
        %5821 = vmatpush.bf16.msra.mxu0 %v4275
        %5822 = vmatpush.bf16.msra.mxu0 %v4267
        %5823 = vmatpush.bf16.msra.mxu0 %v4259
        %5824 = vmatpush.bf16.msra.mxu0 %v4251
        %5825 = vmatpush.bf16.msra.mxu0 %v4243
        %5826 = vmatpush.bf16.msra.mxu0 %v4235
        %5827 = vmatpush.bf16.msra.mxu0 %v4227
        %5828 = vmatmul.bf16.gmra.mxu0 %v1392
        %v5829 = vpop.f32.mrf.mxu0
        %v5830 = vadd.f32 %v5817, %v5829
        %v5831 = vpop.f32.mrf.mxu0
        %5832 = vdwg.mxu0
        %5833 = vmatpush.bf16.msra.mxu0 %v4347
        %5834 = vmatpush.bf16.msra.mxu0 %v4339
        %5835 = vmatpush.bf16.msra.mxu0 %v4331
        %5836 = vmatpush.bf16.msra.mxu0 %v4323
        %5837 = vmatpush.bf16.msra.mxu0 %v4315
        %5838 = vmatpush.bf16.msra.mxu0 %v4307
        %5839 = vmatpush.bf16.msra.mxu0 %v4299
        %5840 = vmatpush.bf16.msra.mxu0 %v4291
        %5841 = vmatmul.bf16.gmra.mxu0 %v1393
        %v5842 = vpop.f32.mrf.mxu0
        %v5843 = vadd.f32 %v5830, %v5842
        %v5844 = vpop.f32.mrf.mxu0
        %5845 = vdwg.mxu0
        %5846 = vmatpush.bf16.msra.mxu0 %v4411
        %5847 = vmatpush.bf16.msra.mxu0 %v4403
        %5848 = vmatpush.bf16.msra.mxu0 %v4395
        %5849 = vmatpush.bf16.msra.mxu0 %v4387
        %5850 = vmatpush.bf16.msra.mxu0 %v4379
        %5851 = vmatpush.bf16.msra.mxu0 %v4371
        %5852 = vmatpush.bf16.msra.mxu0 %v4363
        %5853 = vmatpush.bf16.msra.mxu0 %v4355
        %5854 = vmatmul.bf16.gmra.mxu0 %v1394
        %v5855 = vpop.f32.mrf.mxu0
        %v5856 = vadd.f32 %v5843, %v5855
        %v5857 = vpop.f32.mrf.mxu0
        %5858 = vdwg.mxu0
        %5859 = vmatpush.bf16.msra.mxu0 %v4475
        %5860 = vmatpush.bf16.msra.mxu0 %v4467
        %5861 = vmatpush.bf16.msra.mxu0 %v4459
        %5862 = vmatpush.bf16.msra.mxu0 %v4451
        %5863 = vmatpush.bf16.msra.mxu0 %v4443
        %5864 = vmatpush.bf16.msra.mxu0 %v4435
        %5865 = vmatpush.bf16.msra.mxu0 %v4427
        %5866 = vmatpush.bf16.msra.mxu0 %v4419
        %5867 = vmatmul.bf16.gmra.mxu0 %v1395
        %v5868 = vpop.f32.mrf.mxu0
        %v5869 = vadd.f32 %v5856, %v5868
        %v5870 = vpop.f32.mrf.mxu0
        %5871 = vdwg.mxu0
        %5872 = vmatpush.bf16.msra.mxu0 %v3772
        %5873 = vmatpush.bf16.msra.mxu0 %v3764
        %5874 = vmatpush.bf16.msra.mxu0 %v3756
        %5875 = vmatpush.bf16.msra.mxu0 %v3748
        %5876 = vmatpush.bf16.msra.mxu0 %v3740
        %5877 = vmatpush.bf16.msra.mxu0 %v3732
        %5878 = vmatpush.bf16.msra.mxu0 %v3724
        %5879 = vmatpush.bf16.msra.mxu0 %v3716
        %5880 = vmatmul.bf16.gmra.mxu0 %v1384
        %v5881 = vpop.f32.mrf.mxu0
        %v5882 = vadd.f32 0.0, %v5881
        %v5883 = vpop.f32.mrf.mxu0
        %5884 = vdwg.mxu0
        %5885 = vmatpush.bf16.msra.mxu0 %v3836
        %5886 = vmatpush.bf16.msra.mxu0 %v3828
        %5887 = vmatpush.bf16.msra.mxu0 %v3820
        %5888 = vmatpush.bf16.msra.mxu0 %v3812
        %5889 = vmatpush.bf16.msra.mxu0 %v3804
        %5890 = vmatpush.bf16.msra.mxu0 %v3796
        %5891 = vmatpush.bf16.msra.mxu0 %v3788
        %5892 = vmatpush.bf16.msra.mxu0 %v3780
        %5893 = vmatmul.bf16.gmra.mxu0 %v1385
        %v5894 = vpop.f32.mrf.mxu0
        %v5895 = vadd.f32 %v5882, %v5894
        %v5896 = vpop.f32.mrf.mxu0
        %5897 = vdwg.mxu0
        %5898 = vmatpush.bf16.msra.mxu0 %v3900
        %5899 = vmatpush.bf16.msra.mxu0 %v3892
        %5900 = vmatpush.bf16.msra.mxu0 %v3884
        %5901 = vmatpush.bf16.msra.mxu0 %v3876
        %5902 = vmatpush.bf16.msra.mxu0 %v3868
        %5903 = vmatpush.bf16.msra.mxu0 %v3860
        %5904 = vmatpush.bf16.msra.mxu0 %v3852
        %5905 = vmatpush.bf16.msra.mxu0 %v3844
        %5906 = vmatmul.bf16.gmra.mxu0 %v1386
        %v5907 = vpop.f32.mrf.mxu0
        %v5908 = vadd.f32 %v5895, %v5907
        %v5909 = vpop.f32.mrf.mxu0
        %5910 = vdwg.mxu0
        %5911 = vmatpush.bf16.msra.mxu0 %v3964
        %5912 = vmatpush.bf16.msra.mxu0 %v3956
        %5913 = vmatpush.bf16.msra.mxu0 %v3948
        %5914 = vmatpush.bf16.msra.mxu0 %v3940
        %5915 = vmatpush.bf16.msra.mxu0 %v3932
        %5916 = vmatpush.bf16.msra.mxu0 %v3924
        %5917 = vmatpush.bf16.msra.mxu0 %v3916
        %5918 = vmatpush.bf16.msra.mxu0 %v3908
        %5919 = vmatmul.bf16.gmra.mxu0 %v1387
        %v5920 = vpop.f32.mrf.mxu0
        %v5921 = vadd.f32 %v5908, %v5920
        %v5922 = vpop.f32.mrf.mxu0
        %5923 = vdwg.mxu0
        %5924 = vmatpush.bf16.msra.mxu0 %v4028
        %5925 = vmatpush.bf16.msra.mxu0 %v4020
        %5926 = vmatpush.bf16.msra.mxu0 %v4012
        %5927 = vmatpush.bf16.msra.mxu0 %v4004
        %5928 = vmatpush.bf16.msra.mxu0 %v3996
        %5929 = vmatpush.bf16.msra.mxu0 %v3988
        %5930 = vmatpush.bf16.msra.mxu0 %v3980
        %5931 = vmatpush.bf16.msra.mxu0 %v3972
        %5932 = vmatmul.bf16.gmra.mxu0 %v1388
        %v5933 = vpop.f32.mrf.mxu0
        %v5934 = vadd.f32 %v5921, %v5933
        %v5935 = vpop.f32.mrf.mxu0
        %5936 = vdwg.mxu0
        %5937 = vmatpush.bf16.msra.mxu0 %v4092
        %5938 = vmatpush.bf16.msra.mxu0 %v4084
        %5939 = vmatpush.bf16.msra.mxu0 %v4076
        %5940 = vmatpush.bf16.msra.mxu0 %v4068
        %5941 = vmatpush.bf16.msra.mxu0 %v4060
        %5942 = vmatpush.bf16.msra.mxu0 %v4052
        %5943 = vmatpush.bf16.msra.mxu0 %v4044
        %5944 = vmatpush.bf16.msra.mxu0 %v4036
        %5945 = vmatmul.bf16.gmra.mxu0 %v1389
        %v5946 = vpop.f32.mrf.mxu0
        %v5947 = vadd.f32 %v5934, %v5946
        %v5948 = vpop.f32.mrf.mxu0
        %5949 = vdwg.mxu0
        %5950 = vmatpush.bf16.msra.mxu0 %v4156
        %5951 = vmatpush.bf16.msra.mxu0 %v4148
        %5952 = vmatpush.bf16.msra.mxu0 %v4140
        %5953 = vmatpush.bf16.msra.mxu0 %v4132
        %5954 = vmatpush.bf16.msra.mxu0 %v4124
        %5955 = vmatpush.bf16.msra.mxu0 %v4116
        %5956 = vmatpush.bf16.msra.mxu0 %v4108
        %5957 = vmatpush.bf16.msra.mxu0 %v4100
        %5958 = vmatmul.bf16.gmra.mxu0 %v1390
        %v5959 = vpop.f32.mrf.mxu0
        %v5960 = vadd.f32 %v5947, %v5959
        %v5961 = vpop.f32.mrf.mxu0
        %5962 = vdwg.mxu0
        %5963 = vmatpush.bf16.msra.mxu0 %v4220
        %5964 = vmatpush.bf16.msra.mxu0 %v4212
        %5965 = vmatpush.bf16.msra.mxu0 %v4204
        %5966 = vmatpush.bf16.msra.mxu0 %v4196
        %5967 = vmatpush.bf16.msra.mxu0 %v4188
        %5968 = vmatpush.bf16.msra.mxu0 %v4180
        %5969 = vmatpush.bf16.msra.mxu0 %v4172
        %5970 = vmatpush.bf16.msra.mxu0 %v4164
        %5971 = vmatmul.bf16.gmra.mxu0 %v1391
        %v5972 = vpop.f32.mrf.mxu0
        %v5973 = vadd.f32 %v5960, %v5972
        %v5974 = vpop.f32.mrf.mxu0
        %5975 = vdwg.mxu0
        %5976 = vmatpush.bf16.msra.mxu0 %v4284
        %5977 = vmatpush.bf16.msra.mxu0 %v4276
        %5978 = vmatpush.bf16.msra.mxu0 %v4268
        %5979 = vmatpush.bf16.msra.mxu0 %v4260
        %5980 = vmatpush.bf16.msra.mxu0 %v4252
        %5981 = vmatpush.bf16.msra.mxu0 %v4244
        %5982 = vmatpush.bf16.msra.mxu0 %v4236
        %5983 = vmatpush.bf16.msra.mxu0 %v4228
        %5984 = vmatmul.bf16.gmra.mxu0 %v1392
        %v5985 = vpop.f32.mrf.mxu0
        %v5986 = vadd.f32 %v5973, %v5985
        %v5987 = vpop.f32.mrf.mxu0
        %5988 = vdwg.mxu0
        %5989 = vmatpush.bf16.msra.mxu0 %v4348
        %5990 = vmatpush.bf16.msra.mxu0 %v4340
        %5991 = vmatpush.bf16.msra.mxu0 %v4332
        %5992 = vmatpush.bf16.msra.mxu0 %v4324
        %5993 = vmatpush.bf16.msra.mxu0 %v4316
        %5994 = vmatpush.bf16.msra.mxu0 %v4308
        %5995 = vmatpush.bf16.msra.mxu0 %v4300
        %5996 = vmatpush.bf16.msra.mxu0 %v4292
        %5997 = vmatmul.bf16.gmra.mxu0 %v1393
        %v5998 = vpop.f32.mrf.mxu0
        %v5999 = vadd.f32 %v5986, %v5998
        %v6000 = vpop.f32.mrf.mxu0
        %6001 = vdwg.mxu0
        %6002 = vmatpush.bf16.msra.mxu0 %v4412
        %6003 = vmatpush.bf16.msra.mxu0 %v4404
        %6004 = vmatpush.bf16.msra.mxu0 %v4396
        %6005 = vmatpush.bf16.msra.mxu0 %v4388
        %6006 = vmatpush.bf16.msra.mxu0 %v4380
        %6007 = vmatpush.bf16.msra.mxu0 %v4372
        %6008 = vmatpush.bf16.msra.mxu0 %v4364
        %6009 = vmatpush.bf16.msra.mxu0 %v4356
        %6010 = vmatmul.bf16.gmra.mxu0 %v1394
        %v6011 = vpop.f32.mrf.mxu0
        %v6012 = vadd.f32 %v5999, %v6011
        %v6013 = vpop.f32.mrf.mxu0
        %6014 = vdwg.mxu0
        %6015 = vmatpush.bf16.msra.mxu0 %v4476
        %6016 = vmatpush.bf16.msra.mxu0 %v4468
        %6017 = vmatpush.bf16.msra.mxu0 %v4460
        %6018 = vmatpush.bf16.msra.mxu0 %v4452
        %6019 = vmatpush.bf16.msra.mxu0 %v4444
        %6020 = vmatpush.bf16.msra.mxu0 %v4436
        %6021 = vmatpush.bf16.msra.mxu0 %v4428
        %6022 = vmatpush.bf16.msra.mxu0 %v4420
        %6023 = vmatmul.bf16.gmra.mxu0 %v1395
        %v6024 = vpop.f32.mrf.mxu0
        %v6025 = vadd.f32 %v6012, %v6024
        %v6026 = vpop.f32.mrf.mxu0
        %6027 = vdwg.mxu0
        %6028 = vmatpush.bf16.msra.mxu0 %v3773
        %6029 = vmatpush.bf16.msra.mxu0 %v3765
        %6030 = vmatpush.bf16.msra.mxu0 %v3757
        %6031 = vmatpush.bf16.msra.mxu0 %v3749
        %6032 = vmatpush.bf16.msra.mxu0 %v3741
        %6033 = vmatpush.bf16.msra.mxu0 %v3733
        %6034 = vmatpush.bf16.msra.mxu0 %v3725
        %6035 = vmatpush.bf16.msra.mxu0 %v3717
        %6036 = vmatmul.bf16.gmra.mxu0 %v1384
        %v6037 = vpop.f32.mrf.mxu0
        %v6038 = vadd.f32 0.0, %v6037
        %v6039 = vpop.f32.mrf.mxu0
        %6040 = vdwg.mxu0
        %6041 = vmatpush.bf16.msra.mxu0 %v3837
        %6042 = vmatpush.bf16.msra.mxu0 %v3829
        %6043 = vmatpush.bf16.msra.mxu0 %v3821
        %6044 = vmatpush.bf16.msra.mxu0 %v3813
        %6045 = vmatpush.bf16.msra.mxu0 %v3805
        %6046 = vmatpush.bf16.msra.mxu0 %v3797
        %6047 = vmatpush.bf16.msra.mxu0 %v3789
        %6048 = vmatpush.bf16.msra.mxu0 %v3781
        %6049 = vmatmul.bf16.gmra.mxu0 %v1385
        %v6050 = vpop.f32.mrf.mxu0
        %v6051 = vadd.f32 %v6038, %v6050
        %v6052 = vpop.f32.mrf.mxu0
        %6053 = vdwg.mxu0
        %6054 = vmatpush.bf16.msra.mxu0 %v3901
        %6055 = vmatpush.bf16.msra.mxu0 %v3893
        %6056 = vmatpush.bf16.msra.mxu0 %v3885
        %6057 = vmatpush.bf16.msra.mxu0 %v3877
        %6058 = vmatpush.bf16.msra.mxu0 %v3869
        %6059 = vmatpush.bf16.msra.mxu0 %v3861
        %6060 = vmatpush.bf16.msra.mxu0 %v3853
        %6061 = vmatpush.bf16.msra.mxu0 %v3845
        %6062 = vmatmul.bf16.gmra.mxu0 %v1386
        %v6063 = vpop.f32.mrf.mxu0
        %v6064 = vadd.f32 %v6051, %v6063
        %v6065 = vpop.f32.mrf.mxu0
        %6066 = vdwg.mxu0
        %6067 = vmatpush.bf16.msra.mxu0 %v3965
        %6068 = vmatpush.bf16.msra.mxu0 %v3957
        %6069 = vmatpush.bf16.msra.mxu0 %v3949
        %6070 = vmatpush.bf16.msra.mxu0 %v3941
        %6071 = vmatpush.bf16.msra.mxu0 %v3933
        %6072 = vmatpush.bf16.msra.mxu0 %v3925
        %6073 = vmatpush.bf16.msra.mxu0 %v3917
        %6074 = vmatpush.bf16.msra.mxu0 %v3909
        %6075 = vmatmul.bf16.gmra.mxu0 %v1387
        %v6076 = vpop.f32.mrf.mxu0
        %v6077 = vadd.f32 %v6064, %v6076
        %v6078 = vpop.f32.mrf.mxu0
        %6079 = vdwg.mxu0
        %6080 = vmatpush.bf16.msra.mxu0 %v4029
        %6081 = vmatpush.bf16.msra.mxu0 %v4021
        %6082 = vmatpush.bf16.msra.mxu0 %v4013
        %6083 = vmatpush.bf16.msra.mxu0 %v4005
        %6084 = vmatpush.bf16.msra.mxu0 %v3997
        %6085 = vmatpush.bf16.msra.mxu0 %v3989
        %6086 = vmatpush.bf16.msra.mxu0 %v3981
        %6087 = vmatpush.bf16.msra.mxu0 %v3973
        %6088 = vmatmul.bf16.gmra.mxu0 %v1388
        %v6089 = vpop.f32.mrf.mxu0
        %v6090 = vadd.f32 %v6077, %v6089
        %v6091 = vpop.f32.mrf.mxu0
        %6092 = vdwg.mxu0
        %6093 = vmatpush.bf16.msra.mxu0 %v4093
        %6094 = vmatpush.bf16.msra.mxu0 %v4085
        %6095 = vmatpush.bf16.msra.mxu0 %v4077
        %6096 = vmatpush.bf16.msra.mxu0 %v4069
        %6097 = vmatpush.bf16.msra.mxu0 %v4061
        %6098 = vmatpush.bf16.msra.mxu0 %v4053
        %6099 = vmatpush.bf16.msra.mxu0 %v4045
        %6100 = vmatpush.bf16.msra.mxu0 %v4037
        %6101 = vmatmul.bf16.gmra.mxu0 %v1389
        %v6102 = vpop.f32.mrf.mxu0
        %v6103 = vadd.f32 %v6090, %v6102
        %v6104 = vpop.f32.mrf.mxu0
        %6105 = vdwg.mxu0
        %6106 = vmatpush.bf16.msra.mxu0 %v4157
        %6107 = vmatpush.bf16.msra.mxu0 %v4149
        %6108 = vmatpush.bf16.msra.mxu0 %v4141
        %6109 = vmatpush.bf16.msra.mxu0 %v4133
        %6110 = vmatpush.bf16.msra.mxu0 %v4125
        %6111 = vmatpush.bf16.msra.mxu0 %v4117
        %6112 = vmatpush.bf16.msra.mxu0 %v4109
        %6113 = vmatpush.bf16.msra.mxu0 %v4101
        %6114 = vmatmul.bf16.gmra.mxu0 %v1390
        %v6115 = vpop.f32.mrf.mxu0
        %v6116 = vadd.f32 %v6103, %v6115
        %v6117 = vpop.f32.mrf.mxu0
        %6118 = vdwg.mxu0
        %6119 = vmatpush.bf16.msra.mxu0 %v4221
        %6120 = vmatpush.bf16.msra.mxu0 %v4213
        %6121 = vmatpush.bf16.msra.mxu0 %v4205
        %6122 = vmatpush.bf16.msra.mxu0 %v4197
        %6123 = vmatpush.bf16.msra.mxu0 %v4189
        %6124 = vmatpush.bf16.msra.mxu0 %v4181
        %6125 = vmatpush.bf16.msra.mxu0 %v4173
        %6126 = vmatpush.bf16.msra.mxu0 %v4165
        %6127 = vmatmul.bf16.gmra.mxu0 %v1391
        %v6128 = vpop.f32.mrf.mxu0
        %v6129 = vadd.f32 %v6116, %v6128
        %v6130 = vpop.f32.mrf.mxu0
        %6131 = vdwg.mxu0
        %6132 = vmatpush.bf16.msra.mxu0 %v4285
        %6133 = vmatpush.bf16.msra.mxu0 %v4277
        %6134 = vmatpush.bf16.msra.mxu0 %v4269
        %6135 = vmatpush.bf16.msra.mxu0 %v4261
        %6136 = vmatpush.bf16.msra.mxu0 %v4253
        %6137 = vmatpush.bf16.msra.mxu0 %v4245
        %6138 = vmatpush.bf16.msra.mxu0 %v4237
        %6139 = vmatpush.bf16.msra.mxu0 %v4229
        %6140 = vmatmul.bf16.gmra.mxu0 %v1392
        %v6141 = vpop.f32.mrf.mxu0
        %v6142 = vadd.f32 %v6129, %v6141
        %v6143 = vpop.f32.mrf.mxu0
        %6144 = vdwg.mxu0
        %6145 = vmatpush.bf16.msra.mxu0 %v4349
        %6146 = vmatpush.bf16.msra.mxu0 %v4341
        %6147 = vmatpush.bf16.msra.mxu0 %v4333
        %6148 = vmatpush.bf16.msra.mxu0 %v4325
        %6149 = vmatpush.bf16.msra.mxu0 %v4317
        %6150 = vmatpush.bf16.msra.mxu0 %v4309
        %6151 = vmatpush.bf16.msra.mxu0 %v4301
        %6152 = vmatpush.bf16.msra.mxu0 %v4293
        %6153 = vmatmul.bf16.gmra.mxu0 %v1393
        %v6154 = vpop.f32.mrf.mxu0
        %v6155 = vadd.f32 %v6142, %v6154
        %v6156 = vpop.f32.mrf.mxu0
        %6157 = vdwg.mxu0
        %6158 = vmatpush.bf16.msra.mxu0 %v4413
        %6159 = vmatpush.bf16.msra.mxu0 %v4405
        %6160 = vmatpush.bf16.msra.mxu0 %v4397
        %6161 = vmatpush.bf16.msra.mxu0 %v4389
        %6162 = vmatpush.bf16.msra.mxu0 %v4381
        %6163 = vmatpush.bf16.msra.mxu0 %v4373
        %6164 = vmatpush.bf16.msra.mxu0 %v4365
        %6165 = vmatpush.bf16.msra.mxu0 %v4357
        %6166 = vmatmul.bf16.gmra.mxu0 %v1394
        %v6167 = vpop.f32.mrf.mxu0
        %v6168 = vadd.f32 %v6155, %v6167
        %v6169 = vpop.f32.mrf.mxu0
        %6170 = vdwg.mxu0
        %6171 = vmatpush.bf16.msra.mxu0 %v4477
        %6172 = vmatpush.bf16.msra.mxu0 %v4469
        %6173 = vmatpush.bf16.msra.mxu0 %v4461
        %6174 = vmatpush.bf16.msra.mxu0 %v4453
        %6175 = vmatpush.bf16.msra.mxu0 %v4445
        %6176 = vmatpush.bf16.msra.mxu0 %v4437
        %6177 = vmatpush.bf16.msra.mxu0 %v4429
        %6178 = vmatpush.bf16.msra.mxu0 %v4421
        %6179 = vmatmul.bf16.gmra.mxu0 %v1395
        %v6180 = vpop.f32.mrf.mxu0
        %v6181 = vadd.f32 %v6168, %v6180
        %v6182 = vpop.f32.mrf.mxu0
        %6183 = vdwg.mxu0
        %6184 = vmatpush.bf16.msra.mxu0 %v3774
        %6185 = vmatpush.bf16.msra.mxu0 %v3766
        %6186 = vmatpush.bf16.msra.mxu0 %v3758
        %6187 = vmatpush.bf16.msra.mxu0 %v3750
        %6188 = vmatpush.bf16.msra.mxu0 %v3742
        %6189 = vmatpush.bf16.msra.mxu0 %v3734
        %6190 = vmatpush.bf16.msra.mxu0 %v3726
        %6191 = vmatpush.bf16.msra.mxu0 %v3718
        %6192 = vmatmul.bf16.gmra.mxu0 %v1384
        %v6193 = vpop.f32.mrf.mxu0
        %v6194 = vadd.f32 0.0, %v6193
        %v6195 = vpop.f32.mrf.mxu0
        %6196 = vdwg.mxu0
        %6197 = vmatpush.bf16.msra.mxu0 %v3838
        %6198 = vmatpush.bf16.msra.mxu0 %v3830
        %6199 = vmatpush.bf16.msra.mxu0 %v3822
        %6200 = vmatpush.bf16.msra.mxu0 %v3814
        %6201 = vmatpush.bf16.msra.mxu0 %v3806
        %6202 = vmatpush.bf16.msra.mxu0 %v3798
        %6203 = vmatpush.bf16.msra.mxu0 %v3790
        %6204 = vmatpush.bf16.msra.mxu0 %v3782
        %6205 = vmatmul.bf16.gmra.mxu0 %v1385
        %v6206 = vpop.f32.mrf.mxu0
        %v6207 = vadd.f32 %v6194, %v6206
        %v6208 = vpop.f32.mrf.mxu0
        %6209 = vdwg.mxu0
        %6210 = vmatpush.bf16.msra.mxu0 %v3902
        %6211 = vmatpush.bf16.msra.mxu0 %v3894
        %6212 = vmatpush.bf16.msra.mxu0 %v3886
        %6213 = vmatpush.bf16.msra.mxu0 %v3878
        %6214 = vmatpush.bf16.msra.mxu0 %v3870
        %6215 = vmatpush.bf16.msra.mxu0 %v3862
        %6216 = vmatpush.bf16.msra.mxu0 %v3854
        %6217 = vmatpush.bf16.msra.mxu0 %v3846
        %6218 = vmatmul.bf16.gmra.mxu0 %v1386
        %v6219 = vpop.f32.mrf.mxu0
        %v6220 = vadd.f32 %v6207, %v6219
        %v6221 = vpop.f32.mrf.mxu0
        %6222 = vdwg.mxu0
        %6223 = vmatpush.bf16.msra.mxu0 %v3966
        %6224 = vmatpush.bf16.msra.mxu0 %v3958
        %6225 = vmatpush.bf16.msra.mxu0 %v3950
        %6226 = vmatpush.bf16.msra.mxu0 %v3942
        %6227 = vmatpush.bf16.msra.mxu0 %v3934
        %6228 = vmatpush.bf16.msra.mxu0 %v3926
        %6229 = vmatpush.bf16.msra.mxu0 %v3918
        %6230 = vmatpush.bf16.msra.mxu0 %v3910
        %6231 = vmatmul.bf16.gmra.mxu0 %v1387
        %v6232 = vpop.f32.mrf.mxu0
        %v6233 = vadd.f32 %v6220, %v6232
        %v6234 = vpop.f32.mrf.mxu0
        %6235 = vdwg.mxu0
        %6236 = vmatpush.bf16.msra.mxu0 %v4030
        %6237 = vmatpush.bf16.msra.mxu0 %v4022
        %6238 = vmatpush.bf16.msra.mxu0 %v4014
        %6239 = vmatpush.bf16.msra.mxu0 %v4006
        %6240 = vmatpush.bf16.msra.mxu0 %v3998
        %6241 = vmatpush.bf16.msra.mxu0 %v3990
        %6242 = vmatpush.bf16.msra.mxu0 %v3982
        %6243 = vmatpush.bf16.msra.mxu0 %v3974
        %6244 = vmatmul.bf16.gmra.mxu0 %v1388
        %v6245 = vpop.f32.mrf.mxu0
        %v6246 = vadd.f32 %v6233, %v6245
        %v6247 = vpop.f32.mrf.mxu0
        %6248 = vdwg.mxu0
        %6249 = vmatpush.bf16.msra.mxu0 %v4094
        %6250 = vmatpush.bf16.msra.mxu0 %v4086
        %6251 = vmatpush.bf16.msra.mxu0 %v4078
        %6252 = vmatpush.bf16.msra.mxu0 %v4070
        %6253 = vmatpush.bf16.msra.mxu0 %v4062
        %6254 = vmatpush.bf16.msra.mxu0 %v4054
        %6255 = vmatpush.bf16.msra.mxu0 %v4046
        %6256 = vmatpush.bf16.msra.mxu0 %v4038
        %6257 = vmatmul.bf16.gmra.mxu0 %v1389
        %v6258 = vpop.f32.mrf.mxu0
        %v6259 = vadd.f32 %v6246, %v6258
        %v6260 = vpop.f32.mrf.mxu0
        %6261 = vdwg.mxu0
        %6262 = vmatpush.bf16.msra.mxu0 %v4158
        %6263 = vmatpush.bf16.msra.mxu0 %v4150
        %6264 = vmatpush.bf16.msra.mxu0 %v4142
        %6265 = vmatpush.bf16.msra.mxu0 %v4134
        %6266 = vmatpush.bf16.msra.mxu0 %v4126
        %6267 = vmatpush.bf16.msra.mxu0 %v4118
        %6268 = vmatpush.bf16.msra.mxu0 %v4110
        %6269 = vmatpush.bf16.msra.mxu0 %v4102
        %6270 = vmatmul.bf16.gmra.mxu0 %v1390
        %v6271 = vpop.f32.mrf.mxu0
        %v6272 = vadd.f32 %v6259, %v6271
        %v6273 = vpop.f32.mrf.mxu0
        %6274 = vdwg.mxu0
        %6275 = vmatpush.bf16.msra.mxu0 %v4222
        %6276 = vmatpush.bf16.msra.mxu0 %v4214
        %6277 = vmatpush.bf16.msra.mxu0 %v4206
        %6278 = vmatpush.bf16.msra.mxu0 %v4198
        %6279 = vmatpush.bf16.msra.mxu0 %v4190
        %6280 = vmatpush.bf16.msra.mxu0 %v4182
        %6281 = vmatpush.bf16.msra.mxu0 %v4174
        %6282 = vmatpush.bf16.msra.mxu0 %v4166
        %6283 = vmatmul.bf16.gmra.mxu0 %v1391
        %v6284 = vpop.f32.mrf.mxu0
        %v6285 = vadd.f32 %v6272, %v6284
        %v6286 = vpop.f32.mrf.mxu0
        %6287 = vdwg.mxu0
        %6288 = vmatpush.bf16.msra.mxu0 %v4286
        %6289 = vmatpush.bf16.msra.mxu0 %v4278
        %6290 = vmatpush.bf16.msra.mxu0 %v4270
        %6291 = vmatpush.bf16.msra.mxu0 %v4262
        %6292 = vmatpush.bf16.msra.mxu0 %v4254
        %6293 = vmatpush.bf16.msra.mxu0 %v4246
        %6294 = vmatpush.bf16.msra.mxu0 %v4238
        %6295 = vmatpush.bf16.msra.mxu0 %v4230
        %6296 = vmatmul.bf16.gmra.mxu0 %v1392
        %v6297 = vpop.f32.mrf.mxu0
        %v6298 = vadd.f32 %v6285, %v6297
        %v6299 = vpop.f32.mrf.mxu0
        %6300 = vdwg.mxu0
        %6301 = vmatpush.bf16.msra.mxu0 %v4350
        %6302 = vmatpush.bf16.msra.mxu0 %v4342
        %6303 = vmatpush.bf16.msra.mxu0 %v4334
        %6304 = vmatpush.bf16.msra.mxu0 %v4326
        %6305 = vmatpush.bf16.msra.mxu0 %v4318
        %6306 = vmatpush.bf16.msra.mxu0 %v4310
        %6307 = vmatpush.bf16.msra.mxu0 %v4302
        %6308 = vmatpush.bf16.msra.mxu0 %v4294
        %6309 = vmatmul.bf16.gmra.mxu0 %v1393
        %v6310 = vpop.f32.mrf.mxu0
        %v6311 = vadd.f32 %v6298, %v6310
        %v6312 = vpop.f32.mrf.mxu0
        %6313 = vdwg.mxu0
        %6314 = vmatpush.bf16.msra.mxu0 %v4414
        %6315 = vmatpush.bf16.msra.mxu0 %v4406
        %6316 = vmatpush.bf16.msra.mxu0 %v4398
        %6317 = vmatpush.bf16.msra.mxu0 %v4390
        %6318 = vmatpush.bf16.msra.mxu0 %v4382
        %6319 = vmatpush.bf16.msra.mxu0 %v4374
        %6320 = vmatpush.bf16.msra.mxu0 %v4366
        %6321 = vmatpush.bf16.msra.mxu0 %v4358
        %6322 = vmatmul.bf16.gmra.mxu0 %v1394
        %v6323 = vpop.f32.mrf.mxu0
        %v6324 = vadd.f32 %v6311, %v6323
        %v6325 = vpop.f32.mrf.mxu0
        %6326 = vdwg.mxu0
        %6327 = vmatpush.bf16.msra.mxu0 %v4478
        %6328 = vmatpush.bf16.msra.mxu0 %v4470
        %6329 = vmatpush.bf16.msra.mxu0 %v4462
        %6330 = vmatpush.bf16.msra.mxu0 %v4454
        %6331 = vmatpush.bf16.msra.mxu0 %v4446
        %6332 = vmatpush.bf16.msra.mxu0 %v4438
        %6333 = vmatpush.bf16.msra.mxu0 %v4430
        %6334 = vmatpush.bf16.msra.mxu0 %v4422
        %6335 = vmatmul.bf16.gmra.mxu0 %v1395
        %v6336 = vpop.f32.mrf.mxu0
        %v6337 = vadd.f32 %v6324, %v6336
        %v6338 = vpop.f32.mrf.mxu0
        %6339 = vdwg.mxu0
        %6340 = vmatpush.bf16.msra.mxu0 %v3775
        %6341 = vmatpush.bf16.msra.mxu0 %v3767
        %6342 = vmatpush.bf16.msra.mxu0 %v3759
        %6343 = vmatpush.bf16.msra.mxu0 %v3751
        %6344 = vmatpush.bf16.msra.mxu0 %v3743
        %6345 = vmatpush.bf16.msra.mxu0 %v3735
        %6346 = vmatpush.bf16.msra.mxu0 %v3727
        %6347 = vmatpush.bf16.msra.mxu0 %v3719
        %6348 = vmatmul.bf16.gmra.mxu0 %v1384
        %v6349 = vpop.f32.mrf.mxu0
        %v6350 = vadd.f32 0.0, %v6349
        %v6351 = vpop.f32.mrf.mxu0
        %6352 = vdwg.mxu0
        %6353 = vmatpush.bf16.msra.mxu0 %v3839
        %6354 = vmatpush.bf16.msra.mxu0 %v3831
        %6355 = vmatpush.bf16.msra.mxu0 %v3823
        %6356 = vmatpush.bf16.msra.mxu0 %v3815
        %6357 = vmatpush.bf16.msra.mxu0 %v3807
        %6358 = vmatpush.bf16.msra.mxu0 %v3799
        %6359 = vmatpush.bf16.msra.mxu0 %v3791
        %6360 = vmatpush.bf16.msra.mxu0 %v3783
        %6361 = vmatmul.bf16.gmra.mxu0 %v1385
        %v6362 = vpop.f32.mrf.mxu0
        %v6363 = vadd.f32 %v6350, %v6362
        %v6364 = vpop.f32.mrf.mxu0
        %6365 = vdwg.mxu0
        %6366 = vmatpush.bf16.msra.mxu0 %v3903
        %6367 = vmatpush.bf16.msra.mxu0 %v3895
        %6368 = vmatpush.bf16.msra.mxu0 %v3887
        %6369 = vmatpush.bf16.msra.mxu0 %v3879
        %6370 = vmatpush.bf16.msra.mxu0 %v3871
        %6371 = vmatpush.bf16.msra.mxu0 %v3863
        %6372 = vmatpush.bf16.msra.mxu0 %v3855
        %6373 = vmatpush.bf16.msra.mxu0 %v3847
        %6374 = vmatmul.bf16.gmra.mxu0 %v1386
        %v6375 = vpop.f32.mrf.mxu0
        %v6376 = vadd.f32 %v6363, %v6375
        %v6377 = vpop.f32.mrf.mxu0
        %6378 = vdwg.mxu0
        %6379 = vmatpush.bf16.msra.mxu0 %v3967
        %6380 = vmatpush.bf16.msra.mxu0 %v3959
        %6381 = vmatpush.bf16.msra.mxu0 %v3951
        %6382 = vmatpush.bf16.msra.mxu0 %v3943
        %6383 = vmatpush.bf16.msra.mxu0 %v3935
        %6384 = vmatpush.bf16.msra.mxu0 %v3927
        %6385 = vmatpush.bf16.msra.mxu0 %v3919
        %6386 = vmatpush.bf16.msra.mxu0 %v3911
        %6387 = vmatmul.bf16.gmra.mxu0 %v1387
        %v6388 = vpop.f32.mrf.mxu0
        %v6389 = vadd.f32 %v6376, %v6388
        %v6390 = vpop.f32.mrf.mxu0
        %6391 = vdwg.mxu0
        %6392 = vmatpush.bf16.msra.mxu0 %v4031
        %6393 = vmatpush.bf16.msra.mxu0 %v4023
        %6394 = vmatpush.bf16.msra.mxu0 %v4015
        %6395 = vmatpush.bf16.msra.mxu0 %v4007
        %6396 = vmatpush.bf16.msra.mxu0 %v3999
        %6397 = vmatpush.bf16.msra.mxu0 %v3991
        %6398 = vmatpush.bf16.msra.mxu0 %v3983
        %6399 = vmatpush.bf16.msra.mxu0 %v3975
        %6400 = vmatmul.bf16.gmra.mxu0 %v1388
        %v6401 = vpop.f32.mrf.mxu0
        %v6402 = vadd.f32 %v6389, %v6401
        %v6403 = vpop.f32.mrf.mxu0
        %6404 = vdwg.mxu0
        %6405 = vmatpush.bf16.msra.mxu0 %v4095
        %6406 = vmatpush.bf16.msra.mxu0 %v4087
        %6407 = vmatpush.bf16.msra.mxu0 %v4079
        %6408 = vmatpush.bf16.msra.mxu0 %v4071
        %6409 = vmatpush.bf16.msra.mxu0 %v4063
        %6410 = vmatpush.bf16.msra.mxu0 %v4055
        %6411 = vmatpush.bf16.msra.mxu0 %v4047
        %6412 = vmatpush.bf16.msra.mxu0 %v4039
        %6413 = vmatmul.bf16.gmra.mxu0 %v1389
        %v6414 = vpop.f32.mrf.mxu0
        %v6415 = vadd.f32 %v6402, %v6414
        %v6416 = vpop.f32.mrf.mxu0
        %6417 = vdwg.mxu0
        %6418 = vmatpush.bf16.msra.mxu0 %v4159
        %6419 = vmatpush.bf16.msra.mxu0 %v4151
        %6420 = vmatpush.bf16.msra.mxu0 %v4143
        %6421 = vmatpush.bf16.msra.mxu0 %v4135
        %6422 = vmatpush.bf16.msra.mxu0 %v4127
        %6423 = vmatpush.bf16.msra.mxu0 %v4119
        %6424 = vmatpush.bf16.msra.mxu0 %v4111
        %6425 = vmatpush.bf16.msra.mxu0 %v4103
        %6426 = vmatmul.bf16.gmra.mxu0 %v1390
        %v6427 = vpop.f32.mrf.mxu0
        %v6428 = vadd.f32 %v6415, %v6427
        %v6429 = vpop.f32.mrf.mxu0
        %6430 = vdwg.mxu0
        %6431 = vmatpush.bf16.msra.mxu0 %v4223
        %6432 = vmatpush.bf16.msra.mxu0 %v4215
        %6433 = vmatpush.bf16.msra.mxu0 %v4207
        %6434 = vmatpush.bf16.msra.mxu0 %v4199
        %6435 = vmatpush.bf16.msra.mxu0 %v4191
        %6436 = vmatpush.bf16.msra.mxu0 %v4183
        %6437 = vmatpush.bf16.msra.mxu0 %v4175
        %6438 = vmatpush.bf16.msra.mxu0 %v4167
        %6439 = vmatmul.bf16.gmra.mxu0 %v1391
        %v6440 = vpop.f32.mrf.mxu0
        %v6441 = vadd.f32 %v6428, %v6440
        %v6442 = vpop.f32.mrf.mxu0
        %6443 = vdwg.mxu0
        %6444 = vmatpush.bf16.msra.mxu0 %v4287
        %6445 = vmatpush.bf16.msra.mxu0 %v4279
        %6446 = vmatpush.bf16.msra.mxu0 %v4271
        %6447 = vmatpush.bf16.msra.mxu0 %v4263
        %6448 = vmatpush.bf16.msra.mxu0 %v4255
        %6449 = vmatpush.bf16.msra.mxu0 %v4247
        %6450 = vmatpush.bf16.msra.mxu0 %v4239
        %6451 = vmatpush.bf16.msra.mxu0 %v4231
        %6452 = vmatmul.bf16.gmra.mxu0 %v1392
        %v6453 = vpop.f32.mrf.mxu0
        %v6454 = vadd.f32 %v6441, %v6453
        %v6455 = vpop.f32.mrf.mxu0
        %6456 = vdwg.mxu0
        %6457 = vmatpush.bf16.msra.mxu0 %v4351
        %6458 = vmatpush.bf16.msra.mxu0 %v4343
        %6459 = vmatpush.bf16.msra.mxu0 %v4335
        %6460 = vmatpush.bf16.msra.mxu0 %v4327
        %6461 = vmatpush.bf16.msra.mxu0 %v4319
        %6462 = vmatpush.bf16.msra.mxu0 %v4311
        %6463 = vmatpush.bf16.msra.mxu0 %v4303
        %6464 = vmatpush.bf16.msra.mxu0 %v4295
        %6465 = vmatmul.bf16.gmra.mxu0 %v1393
        %v6466 = vpop.f32.mrf.mxu0
        %v6467 = vadd.f32 %v6454, %v6466
        %v6468 = vpop.f32.mrf.mxu0
        %6469 = vdwg.mxu0
        %6470 = vmatpush.bf16.msra.mxu0 %v4415
        %6471 = vmatpush.bf16.msra.mxu0 %v4407
        %6472 = vmatpush.bf16.msra.mxu0 %v4399
        %6473 = vmatpush.bf16.msra.mxu0 %v4391
        %6474 = vmatpush.bf16.msra.mxu0 %v4383
        %6475 = vmatpush.bf16.msra.mxu0 %v4375
        %6476 = vmatpush.bf16.msra.mxu0 %v4367
        %6477 = vmatpush.bf16.msra.mxu0 %v4359
        %6478 = vmatmul.bf16.gmra.mxu0 %v1394
        %v6479 = vpop.f32.mrf.mxu0
        %v6480 = vadd.f32 %v6467, %v6479
        %v6481 = vpop.f32.mrf.mxu0
        %6482 = vdwg.mxu0
        %6483 = vmatpush.bf16.msra.mxu0 %v4479
        %6484 = vmatpush.bf16.msra.mxu0 %v4471
        %6485 = vmatpush.bf16.msra.mxu0 %v4463
        %6486 = vmatpush.bf16.msra.mxu0 %v4455
        %6487 = vmatpush.bf16.msra.mxu0 %v4447
        %6488 = vmatpush.bf16.msra.mxu0 %v4439
        %6489 = vmatpush.bf16.msra.mxu0 %v4431
        %6490 = vmatpush.bf16.msra.mxu0 %v4423
        %6491 = vmatmul.bf16.gmra.mxu0 %v1395
        %v6492 = vpop.f32.mrf.mxu0
        %v6493 = vadd.f32 %v6480, %v6492
        %v6494 = vpop.f32.mrf.mxu0
        %6495 = vdwg.mxu0
        %v6496 = vadd.f32 %v584, %v5401
        %v6497 = vadd.f32 %v585, %v5557
        %v6498 = vadd.f32 %v586, %v5713
        %v6499 = vadd.f32 %v587, %v5869
        %v6500 = vadd.f32 %v588, %v6025
        %v6501 = vadd.f32 %v589, %v6181
        %v6502 = vadd.f32 %v590, %v6337
        %v6503 = vadd.f32 %v591, %v6493
        %6504 = vst [vmem:[#allocation2] sm:$0xff] %v6496
        %6505 = vst [vmem:[#allocation2 + $0x8] sm:$0xff] %v6497
        %6506 = vst [vmem:[#allocation2 + $0x10] sm:$0xff] %v6498
        %6507 = vst [vmem:[#allocation2 + $0x18] sm:$0xff] %v6499
        %6508 = vst [vmem:[#allocation2 + $0x20] sm:$0xff] %v6500
        %6509 = vst [vmem:[#allocation2 + $0x28] sm:$0xff] %v6501
        %6510 = vst [vmem:[#allocation2 + $0x30] sm:$0xff] %v6502
        %6511 = vst [vmem:[#allocation2 + $0x38] sm:$0xff] %v6503
        %p6512 = scmp.eq.s32.totalorder %s33, 3
        // Predicated region
        $region113: #{tpu_custom_call.1} parent=63 // pred_check
          %p6513 = pneg %p6512
        $region114: #{tpu_custom_call.1} parent=63 // pred_check_branch
          %6515 = sbr.rel (%p6513) target = $region116
        $region115: #{tpu_custom_call.1} parent=63 // pred_region
          %v6516 = vld [vmem:[#allocation2] sm:$0xff]
          %v6517 = vld [vmem:[#allocation2 + $0x8] sm:$0xff]
          %v6518 = vld [vmem:[#allocation2 + $0x10] sm:$0xff]
          %v6519 = vld [vmem:[#allocation2 + $0x18] sm:$0xff]
          %v6520 = vld [vmem:[#allocation2 + $0x20] sm:$0xff]
          %v6521 = vld [vmem:[#allocation2 + $0x28] sm:$0xff]
          %v6522 = vld [vmem:[#allocation2 + $0x30] sm:$0xff]
          %v6523 = vld [vmem:[#allocation2 + $0x38] sm:$0xff]
          %v6524 = vld [vmem:[#allocation8] sm:$0xff]
          %v6526 = vperm.slane %v6524, 0
          %v6527 = vperm.slane %v6524, 1
          %v6528 = vperm.slane %v6524, 2
          %v6529 = vperm.slane %v6524, 3
          %v6530 = vperm.slane %v6524, 4
          %v6531 = vperm.slane %v6524, 5
          %v6532 = vperm.slane %v6524, 6
          %v6533 = vperm.slane %v6524, 7
          %v6542 = vadd.f32 %v6516, %v6526
          %v6543 = vadd.f32 %v6517, %v6527
          %v6544 = vadd.f32 %v6518, %v6528
          %v6545 = vadd.f32 %v6519, %v6529
          %v6546 = vadd.f32 %v6520, %v6530
          %v6547 = vadd.f32 %v6521, %v6531
          %v6548 = vadd.f32 %v6522, %v6532
          %v6549 = vadd.f32 %v6523, %v6533
          %v6550 = vmax.f32 %v6542, 0.0
          %v6551 = vmax.f32 %v6543, 0.0
          %v6552 = vmax.f32 %v6544, 0.0
          %v6553 = vmax.f32 %v6545, 0.0
          %v6554 = vmax.f32 %v6546, 0.0
          %v6555 = vmax.f32 %v6547, 0.0
          %v6556 = vmax.f32 %v6548, 0.0
          %v6557 = vmax.f32 %v6549, 0.0
          %v6558 = vrot.slane %v6550, 4
          %v6559 = vadd.f32 %v6550, %v6558
          %v6560 = vrot.slane %v6559, 2
          %v6561 = vadd.f32 %v6559, %v6560
          %v6562 = vrot.slane %v6561, 1
          %v6563 = vadd.f32 %v6561, %v6562
          %v6564 = vrot.slane %v6551, 4
          %v6565 = vadd.f32 %v6551, %v6564
          %v6566 = vrot.slane %v6565, 2
          %v6567 = vadd.f32 %v6565, %v6566
          %v6568 = vrot.slane %v6567, 1
          %v6569 = vadd.f32 %v6567, %v6568
          %v6570 = vrot.slane %v6552, 4
          %v6571 = vadd.f32 %v6552, %v6570
          %v6572 = vrot.slane %v6571, 2
          %v6573 = vadd.f32 %v6571, %v6572
          %v6574 = vrot.slane %v6573, 1
          %v6575 = vadd.f32 %v6573, %v6574
          %v6576 = vrot.slane %v6553, 4
          %v6577 = vadd.f32 %v6553, %v6576
          %v6578 = vrot.slane %v6577, 2
          %v6579 = vadd.f32 %v6577, %v6578
          %v6580 = vrot.slane %v6579, 1
          %v6581 = vadd.f32 %v6579, %v6580
          %v6582 = vrot.slane %v6554, 4
          %v6583 = vadd.f32 %v6554, %v6582
          %v6584 = vrot.slane %v6583, 2
          %v6585 = vadd.f32 %v6583, %v6584
          %v6586 = vrot.slane %v6585, 1
          %v6587 = vadd.f32 %v6585, %v6586
          %v6588 = vrot.slane %v6555, 4
          %v6589 = vadd.f32 %v6555, %v6588
          %v6590 = vrot.slane %v6589, 2
          %v6591 = vadd.f32 %v6589, %v6590
          %v6592 = vrot.slane %v6591, 1
          %v6593 = vadd.f32 %v6591, %v6592
          %v6594 = vrot.slane %v6556, 4
          %v6595 = vadd.f32 %v6556, %v6594
          %v6596 = vrot.slane %v6595, 2
          %v6597 = vadd.f32 %v6595, %v6596
          %v6598 = vrot.slane %v6597, 1
          %v6599 = vadd.f32 %v6597, %v6598
          %v6600 = vrot.slane %v6557, 4
          %v6601 = vadd.f32 %v6557, %v6600
          %v6602 = vrot.slane %v6601, 2
          %v6603 = vadd.f32 %v6601, %v6602
          %v6604 = vrot.slane %v6603, 1
          %v6605 = vadd.f32 %v6603, %v6604
          %v6606 = vrcp.pop 8.0
          %v6607 = vmul.f32 8.0, %v6606
          %v6608 = vsub.f32 1.0, %v6607
          %v6609 = vmul.f32 %v6606, %v6608
          %v6610 = vadd.f32 %v6606, %v6609
          %vm6611 = vweird.f32 %v6606
          %v6612 = vsel %vm6611, %v6606, %v6610
          %v6613 = vmul.f32 %v6563, %v6612
          %v6614 = vmul.f32 %v6569, %v6612
          %v6615 = vmul.f32 %v6575, %v6612
          %v6616 = vmul.f32 %v6581, %v6612
          %v6617 = vmul.f32 %v6587, %v6612
          %v6618 = vmul.f32 %v6593, %v6612
          %v6619 = vmul.f32 %v6599, %v6612
          %v6620 = vmul.f32 %v6605, %v6612
          %v6621 = vsub.f32 %v6550, %v6613
          %v6622 = vsub.f32 %v6551, %v6614
          %v6623 = vsub.f32 %v6552, %v6615
          %v6624 = vsub.f32 %v6553, %v6616
          %v6625 = vsub.f32 %v6554, %v6617
          %v6626 = vsub.f32 %v6555, %v6618
          %v6627 = vsub.f32 %v6556, %v6619
          %v6628 = vsub.f32 %v6557, %v6620
          %v6629 = vmul.f32 %v6621, %v6621
          %v6630 = vmul.f32 %v6622, %v6622
          %v6631 = vmul.f32 %v6623, %v6623
          %v6632 = vmul.f32 %v6624, %v6624
          %v6633 = vmul.f32 %v6625, %v6625
          %v6634 = vmul.f32 %v6626, %v6626
          %v6635 = vmul.f32 %v6627, %v6627
          %v6636 = vmul.f32 %v6628, %v6628
          %v6637 = vrot.slane %v6629, 4
          %v6638 = vadd.f32 %v6629, %v6637
          %v6639 = vrot.slane %v6638, 2
          %v6640 = vadd.f32 %v6638, %v6639
          %v6641 = vrot.slane %v6640, 1
          %v6642 = vadd.f32 %v6640, %v6641
          %v6643 = vrot.slane %v6630, 4
          %v6644 = vadd.f32 %v6630, %v6643
          %v6645 = vrot.slane %v6644, 2
          %v6646 = vadd.f32 %v6644, %v6645
          %v6647 = vrot.slane %v6646, 1
          %v6648 = vadd.f32 %v6646, %v6647
          %v6649 = vrot.slane %v6631, 4
          %v6650 = vadd.f32 %v6631, %v6649
          %v6651 = vrot.slane %v6650, 2
          %v6652 = vadd.f32 %v6650, %v6651
          %v6653 = vrot.slane %v6652, 1
          %v6654 = vadd.f32 %v6652, %v6653
          %v6655 = vrot.slane %v6632, 4
          %v6656 = vadd.f32 %v6632, %v6655
          %v6657 = vrot.slane %v6656, 2
          %v6658 = vadd.f32 %v6656, %v6657
          %v6659 = vrot.slane %v6658, 1
          %v6660 = vadd.f32 %v6658, %v6659
          %v6661 = vrot.slane %v6633, 4
          %v6662 = vadd.f32 %v6633, %v6661
          %v6663 = vrot.slane %v6662, 2
          %v6664 = vadd.f32 %v6662, %v6663
          %v6665 = vrot.slane %v6664, 1
          %v6666 = vadd.f32 %v6664, %v6665
          %v6667 = vrot.slane %v6634, 4
          %v6668 = vadd.f32 %v6634, %v6667
          %v6669 = vrot.slane %v6668, 2
          %v6670 = vadd.f32 %v6668, %v6669
          %v6671 = vrot.slane %v6670, 1
          %v6672 = vadd.f32 %v6670, %v6671
          %v6673 = vrot.slane %v6635, 4
          %v6674 = vadd.f32 %v6635, %v6673
          %v6675 = vrot.slane %v6674, 2
          %v6676 = vadd.f32 %v6674, %v6675
          %v6677 = vrot.slane %v6676, 1
          %v6678 = vadd.f32 %v6676, %v6677
          %v6679 = vrot.slane %v6636, 4
          %v6680 = vadd.f32 %v6636, %v6679
          %v6681 = vrot.slane %v6680, 2
          %v6682 = vadd.f32 %v6680, %v6681
          %v6683 = vrot.slane %v6682, 1
          %v6684 = vadd.f32 %v6682, %v6683
          %v6685 = vmul.f32 %v6642, %v6612
          %v6686 = vmul.f32 %v6648, %v6612
          %v6687 = vmul.f32 %v6654, %v6612
          %v6688 = vmul.f32 %v6660, %v6612
          %v6689 = vmul.f32 %v6666, %v6612
          %v6690 = vmul.f32 %v6672, %v6612
          %v6691 = vmul.f32 %v6678, %v6612
          %v6692 = vmul.f32 %v6684, %v6612
          %v6693 = vadd.f32 %v6685, 1e-05
          %v6694 = vadd.f32 %v6686, 1e-05
          %v6695 = vadd.f32 %v6687, 1e-05
          %v6696 = vadd.f32 %v6688, 1e-05
          %v6697 = vadd.f32 %v6689, 1e-05
          %v6698 = vadd.f32 %v6690, 1e-05
          %v6699 = vadd.f32 %v6691, 1e-05
          %v6700 = vadd.f32 %v6692, 1e-05
          %v6701 = vrsqrt.pop %v6693
          %v6702 = vmul.f32 %v6701, %v6693
          %v6703 = vmul.f32 %v6702, %v6701
          %v6704 = vmul.f32 0.5, %v6703
          %v6705 = vsub.f32 1.5, %v6704
          %v6706 = vmul.f32 %v6701, %v6705
          %vm6707 = vweird.f32 %v6693
          %vm6708 = vweird.f32 %v6701
          %vm6709 = vmor %vm6707, %vm6708
          %v6710 = vsel %vm6709, %v6701, %v6706
          %v6711 = vrsqrt.pop %v6694
          %v6712 = vmul.f32 %v6711, %v6694
          %v6713 = vmul.f32 %v6712, %v6711
          %v6714 = vmul.f32 0.5, %v6713
          %v6715 = vsub.f32 1.5, %v6714
          %v6716 = vmul.f32 %v6711, %v6715
          %vm6717 = vweird.f32 %v6694
          %vm6718 = vweird.f32 %v6711
          %vm6719 = vmor %vm6717, %vm6718
          %v6720 = vsel %vm6719, %v6711, %v6716
          %v6721 = vrsqrt.pop %v6695
          %v6722 = vmul.f32 %v6721, %v6695
          %v6723 = vmul.f32 %v6722, %v6721
          %v6724 = vmul.f32 0.5, %v6723
          %v6725 = vsub.f32 1.5, %v6724
          %v6726 = vmul.f32 %v6721, %v6725
          %vm6727 = vweird.f32 %v6695
          %vm6728 = vweird.f32 %v6721
          %vm6729 = vmor %vm6727, %vm6728
          %v6730 = vsel %vm6729, %v6721, %v6726
          %v6731 = vrsqrt.pop %v6696
          %v6732 = vmul.f32 %v6731, %v6696
          %v6733 = vmul.f32 %v6732, %v6731
          %v6734 = vmul.f32 0.5, %v6733
          %v6735 = vsub.f32 1.5, %v6734
          %v6736 = vmul.f32 %v6731, %v6735
          %vm6737 = vweird.f32 %v6696
          %vm6738 = vweird.f32 %v6731
          %vm6739 = vmor %vm6737, %vm6738
          %v6740 = vsel %vm6739, %v6731, %v6736
          %v6741 = vrsqrt.pop %v6697
          %v6742 = vmul.f32 %v6741, %v6697
          %v6743 = vmul.f32 %v6742, %v6741
          %v6744 = vmul.f32 0.5, %v6743
          %v6745 = vsub.f32 1.5, %v6744
          %v6746 = vmul.f32 %v6741, %v6745
          %vm6747 = vweird.f32 %v6697
          %vm6748 = vweird.f32 %v6741
          %vm6749 = vmor %vm6747, %vm6748
          %v6750 = vsel %vm6749, %v6741, %v6746
          %v6751 = vrsqrt.pop %v6698
          %v6752 = vmul.f32 %v6751, %v6698
          %v6753 = vmul.f32 %v6752, %v6751
          %v6754 = vmul.f32 0.5, %v6753
          %v6755 = vsub.f32 1.5, %v6754
          %v6756 = vmul.f32 %v6751, %v6755
          %vm6757 = vweird.f32 %v6698
          %vm6758 = vweird.f32 %v6751
          %vm6759 = vmor %vm6757, %vm6758
          %v6760 = vsel %vm6759, %v6751, %v6756
          %v6761 = vrsqrt.pop %v6699
          %v6762 = vmul.f32 %v6761, %v6699
          %v6763 = vmul.f32 %v6762, %v6761
          %v6764 = vmul.f32 0.5, %v6763
          %v6765 = vsub.f32 1.5, %v6764
          %v6766 = vmul.f32 %v6761, %v6765
          %vm6767 = vweird.f32 %v6699
          %vm6768 = vweird.f32 %v6761
          %vm6769 = vmor %vm6767, %vm6768
          %v6770 = vsel %vm6769, %v6761, %v6766
          %v6771 = vrsqrt.pop %v6700
          %v6772 = vmul.f32 %v6771, %v6700
          %v6773 = vmul.f32 %v6772, %v6771
          %v6774 = vmul.f32 0.5, %v6773
          %v6775 = vsub.f32 1.5, %v6774
          %v6776 = vmul.f32 %v6771, %v6775
          %vm6777 = vweird.f32 %v6700
          %vm6778 = vweird.f32 %v6771
          %vm6779 = vmor %vm6777, %vm6778
          %v6780 = vsel %vm6779, %v6771, %v6776
          %v6781 = vmul.f32 %v6621, %v6710
          %v6782 = vmul.f32 %v6622, %v6720
          %v6783 = vmul.f32 %v6623, %v6730
          %v6784 = vmul.f32 %v6624, %v6740
          %v6785 = vmul.f32 %v6625, %v6750
          %v6786 = vmul.f32 %v6626, %v6760
          %v6787 = vmul.f32 %v6627, %v6770
          %v6788 = vmul.f32 %v6628, %v6780
          %v6789 = vld [vmem:[#allocation9] sm:$0xff]
          %v6791 = vperm.slane %v6789, 0
          %v6792 = vperm.slane %v6789, 1
          %v6793 = vperm.slane %v6789, 2
          %v6794 = vperm.slane %v6789, 3
          %v6795 = vperm.slane %v6789, 4
          %v6796 = vperm.slane %v6789, 5
          %v6797 = vperm.slane %v6789, 6
          %v6798 = vperm.slane %v6789, 7
          %v6807 = vmul.f32 %v6781, %v6791
          %v6808 = vmul.f32 %v6782, %v6792
          %v6809 = vmul.f32 %v6783, %v6793
          %v6810 = vmul.f32 %v6784, %v6794
          %v6811 = vmul.f32 %v6785, %v6795
          %v6812 = vmul.f32 %v6786, %v6796
          %v6813 = vmul.f32 %v6787, %v6797
          %v6814 = vmul.f32 %v6788, %v6798
          %v6815 = vld [vmem:[#allocation11] sm:$0xff]
          %v6817 = vperm.slane %v6815, 0
          %v6818 = vperm.slane %v6815, 1
          %v6819 = vperm.slane %v6815, 2
          %v6820 = vperm.slane %v6815, 3
          %v6821 = vperm.slane %v6815, 4
          %v6822 = vperm.slane %v6815, 5
          %v6823 = vperm.slane %v6815, 6
          %v6824 = vperm.slane %v6815, 7
          %v6833 = vadd.f32 %v6807, %v6817
          %v6834 = vadd.f32 %v6808, %v6818
          %v6835 = vadd.f32 %v6809, %v6819
          %v6836 = vadd.f32 %v6810, %v6820
          %v6837 = vadd.f32 %v6811, %v6821
          %v6838 = vadd.f32 %v6812, %v6822
          %v6839 = vadd.f32 %v6813, %v6823
          %v6840 = vadd.f32 %v6814, %v6824
          %v6841 = vpack.c.bf16 %v6833, %v6833
          %v6842 = vpack.c.bf16 %v6834, %v6834
          %v6843 = vpack.c.bf16 %v6835, %v6835
          %v6844 = vpack.c.bf16 %v6836, %v6836
          %v6845 = vpack.c.bf16 %v6837, %v6837
          %v6846 = vpack.c.bf16 %v6838, %v6838
          %v6847 = vpack.c.bf16 %v6839, %v6839
          %v6848 = vpack.c.bf16 %v6840, %v6840
          %v6849 = vld [vmem:[#allocation12] sm:$0xff]
          %v6850 = vld [vmem:[#allocation12 + $0x8] sm:$0xff]
          %v6851 = vld [vmem:[#allocation12 + $0x10] sm:$0xff]
          %v6852 = vld [vmem:[#allocation12 + $0x18] sm:$0xff]
          %v6853 = vld [vmem:[#allocation12 + $0x20] sm:$0xff]
          %v6854 = vld [vmem:[#allocation12 + $0x28] sm:$0xff]
          %v6855 = vld [vmem:[#allocation12 + $0x30] sm:$0xff]
          %v6856 = vld [vmem:[#allocation12 + $0x38] sm:$0xff]
          %v6857 = vld [vmem:[#allocation12 + $0x40] sm:$0xff]
          %v6858 = vld [vmem:[#allocation12 + $0x48] sm:$0xff]
          %v6859 = vld [vmem:[#allocation12 + $0x50] sm:$0xff]
          %v6860 = vld [vmem:[#allocation12 + $0x58] sm:$0xff]
          %v6861 = vld [vmem:[#allocation12 + $0x60] sm:$0xff]
          %v6862 = vld [vmem:[#allocation12 + $0x68] sm:$0xff]
          %v6863 = vld [vmem:[#allocation12 + $0x70] sm:$0xff]
          %v6864 = vld [vmem:[#allocation12 + $0x78] sm:$0xff]
          %v6865 = vld [vmem:[#allocation12 + $0x80] sm:$0xff]
          %v6866 = vld [vmem:[#allocation12 + $0x88] sm:$0xff]
          %v6867 = vld [vmem:[#allocation12 + $0x90] sm:$0xff]
          %v6868 = vld [vmem:[#allocation12 + $0x98] sm:$0xff]
          %v6869 = vld [vmem:[#allocation12 + $0xa0] sm:$0xff]
          %v6870 = vld [vmem:[#allocation12 + $0xa8] sm:$0xff]
          %v6871 = vld [vmem:[#allocation12 + $0xb0] sm:$0xff]
          %v6872 = vld [vmem:[#allocation12 + $0xb8] sm:$0xff]
          %v6873 = vld [vmem:[#allocation12 + $0xc0] sm:$0xff]
          %v6874 = vld [vmem:[#allocation12 + $0xc8] sm:$0xff]
          %v6875 = vld [vmem:[#allocation12 + $0xd0] sm:$0xff]
          %v6876 = vld [vmem:[#allocation12 + $0xd8] sm:$0xff]
          %v6877 = vld [vmem:[#allocation12 + $0xe0] sm:$0xff]
          %v6878 = vld [vmem:[#allocation12 + $0xe8] sm:$0xff]
          %v6879 = vld [vmem:[#allocation12 + $0xf0] sm:$0xff]
          %v6880 = vld [vmem:[#allocation12 + $0xf8] sm:$0xff]
          %v6881 = vld [vmem:[#allocation12 + $0x100] sm:$0xff]
          %v6882 = vld [vmem:[#allocation12 + $0x108] sm:$0xff]
          %v6883 = vld [vmem:[#allocation12 + $0x110] sm:$0xff]
          %v6884 = vld [vmem:[#allocation12 + $0x118] sm:$0xff]
          %v6885 = vld [vmem:[#allocation12 + $0x120] sm:$0xff]
          %v6886 = vld [vmem:[#allocation12 + $0x128] sm:$0xff]
          %v6887 = vld [vmem:[#allocation12 + $0x130] sm:$0xff]
          %v6888 = vld [vmem:[#allocation12 + $0x138] sm:$0xff]
          %v6889 = vld [vmem:[#allocation12 + $0x140] sm:$0xff]
          %v6890 = vld [vmem:[#allocation12 + $0x148] sm:$0xff]
          %v6891 = vld [vmem:[#allocation12 + $0x150] sm:$0xff]
          %v6892 = vld [vmem:[#allocation12 + $0x158] sm:$0xff]
          %v6893 = vld [vmem:[#allocation12 + $0x160] sm:$0xff]
          %v6894 = vld [vmem:[#allocation12 + $0x168] sm:$0xff]
          %v6895 = vld [vmem:[#allocation12 + $0x170] sm:$0xff]
          %v6896 = vld [vmem:[#allocation12 + $0x178] sm:$0xff]
          %v6897 = vld [vmem:[#allocation12 + $0x180] sm:$0xff]
          %v6898 = vld [vmem:[#allocation12 + $0x188] sm:$0xff]
          %v6899 = vld [vmem:[#allocation12 + $0x190] sm:$0xff]
          %v6900 = vld [vmem:[#allocation12 + $0x198] sm:$0xff]
          %v6901 = vld [vmem:[#allocation12 + $0x1a0] sm:$0xff]
          %v6902 = vld [vmem:[#allocation12 + $0x1a8] sm:$0xff]
          %v6903 = vld [vmem:[#allocation12 + $0x1b0] sm:$0xff]
          %v6904 = vld [vmem:[#allocation12 + $0x1b8] sm:$0xff]
          %v6905 = vld [vmem:[#allocation12 + $0x1c0] sm:$0xff]
          %v6906 = vld [vmem:[#allocation12 + $0x1c8] sm:$0xff]
          %v6907 = vld [vmem:[#allocation12 + $0x1d0] sm:$0xff]
          %v6908 = vld [vmem:[#allocation12 + $0x1d8] sm:$0xff]
          %v6909 = vld [vmem:[#allocation12 + $0x1e0] sm:$0xff]
          %v6910 = vld [vmem:[#allocation12 + $0x1e8] sm:$0xff]
          %v6911 = vld [vmem:[#allocation12 + $0x1f0] sm:$0xff]
          %v6912 = vld [vmem:[#allocation12 + $0x1f8] sm:$0xff]
          %v6913 = vld [vmem:[#allocation12 + $0x200] sm:$0xff]
          %v6914 = vld [vmem:[#allocation12 + $0x208] sm:$0xff]
          %v6915 = vld [vmem:[#allocation12 + $0x210] sm:$0xff]
          %v6916 = vld [vmem:[#allocation12 + $0x218] sm:$0xff]
          %v6917 = vld [vmem:[#allocation12 + $0x220] sm:$0xff]
          %v6918 = vld [vmem:[#allocation12 + $0x228] sm:$0xff]
          %v6919 = vld [vmem:[#allocation12 + $0x230] sm:$0xff]
          %v6920 = vld [vmem:[#allocation12 + $0x238] sm:$0xff]
          %v6921 = vld [vmem:[#allocation12 + $0x240] sm:$0xff]
          %v6922 = vld [vmem:[#allocation12 + $0x248] sm:$0xff]
          %v6923 = vld [vmem:[#allocation12 + $0x250] sm:$0xff]
          %v6924 = vld [vmem:[#allocation12 + $0x258] sm:$0xff]
          %v6925 = vld [vmem:[#allocation12 + $0x260] sm:$0xff]
          %v6926 = vld [vmem:[#allocation12 + $0x268] sm:$0xff]
          %v6927 = vld [vmem:[#allocation12 + $0x270] sm:$0xff]
          %v6928 = vld [vmem:[#allocation12 + $0x278] sm:$0xff]
          %v6929 = vld [vmem:[#allocation12 + $0x280] sm:$0xff]
          %v6930 = vld [vmem:[#allocation12 + $0x288] sm:$0xff]
          %v6931 = vld [vmem:[#allocation12 + $0x290] sm:$0xff]
          %v6932 = vld [vmem:[#allocation12 + $0x298] sm:$0xff]
          %v6933 = vld [vmem:[#allocation12 + $0x2a0] sm:$0xff]
          %v6934 = vld [vmem:[#allocation12 + $0x2a8] sm:$0xff]
          %v6935 = vld [vmem:[#allocation12 + $0x2b0] sm:$0xff]
          %v6936 = vld [vmem:[#allocation12 + $0x2b8] sm:$0xff]
          %v6937 = vld [vmem:[#allocation12 + $0x2c0] sm:$0xff]
          %v6938 = vld [vmem:[#allocation12 + $0x2c8] sm:$0xff]
          %v6939 = vld [vmem:[#allocation12 + $0x2d0] sm:$0xff]
          %v6940 = vld [vmem:[#allocation12 + $0x2d8] sm:$0xff]
          %v6941 = vld [vmem:[#allocation12 + $0x2e0] sm:$0xff]
          %v6942 = vld [vmem:[#allocation12 + $0x2e8] sm:$0xff]
          %v6943 = vld [vmem:[#allocation12 + $0x2f0] sm:$0xff]
          %v6944 = vld [vmem:[#allocation12 + $0x2f8] sm:$0xff]
          %v6945 = vld [vmem:[#allocation12 + $0x300] sm:$0xff]
          %v6946 = vld [vmem:[#allocation12 + $0x308] sm:$0xff]
          %v6947 = vld [vmem:[#allocation12 + $0x310] sm:$0xff]
          %v6948 = vld [vmem:[#allocation12 + $0x318] sm:$0xff]
          %v6949 = vld [vmem:[#allocation12 + $0x320] sm:$0xff]
          %v6950 = vld [vmem:[#allocation12 + $0x328] sm:$0xff]
          %v6951 = vld [vmem:[#allocation12 + $0x330] sm:$0xff]
          %v6952 = vld [vmem:[#allocation12 + $0x338] sm:$0xff]
          %v6953 = vld [vmem:[#allocation12 + $0x340] sm:$0xff]
          %v6954 = vld [vmem:[#allocation12 + $0x348] sm:$0xff]
          %v6955 = vld [vmem:[#allocation12 + $0x350] sm:$0xff]
          %v6956 = vld [vmem:[#allocation12 + $0x358] sm:$0xff]
          %v6957 = vld [vmem:[#allocation12 + $0x360] sm:$0xff]
          %v6958 = vld [vmem:[#allocation12 + $0x368] sm:$0xff]
          %v6959 = vld [vmem:[#allocation12 + $0x370] sm:$0xff]
          %v6960 = vld [vmem:[#allocation12 + $0x378] sm:$0xff]
          %v6961 = vld [vmem:[#allocation12 + $0x380] sm:$0xff]
          %v6962 = vld [vmem:[#allocation12 + $0x388] sm:$0xff]
          %v6963 = vld [vmem:[#allocation12 + $0x390] sm:$0xff]
          %v6964 = vld [vmem:[#allocation12 + $0x398] sm:$0xff]
          %v6965 = vld [vmem:[#allocation12 + $0x3a0] sm:$0xff]
          %v6966 = vld [vmem:[#allocation12 + $0x3a8] sm:$0xff]
          %v6967 = vld [vmem:[#allocation12 + $0x3b0] sm:$0xff]
          %v6968 = vld [vmem:[#allocation12 + $0x3b8] sm:$0xff]
          %v6969 = vld [vmem:[#allocation12 + $0x3c0] sm:$0xff]
          %v6970 = vld [vmem:[#allocation12 + $0x3c8] sm:$0xff]
          %v6971 = vld [vmem:[#allocation12 + $0x3d0] sm:$0xff]
          %v6972 = vld [vmem:[#allocation12 + $0x3d8] sm:$0xff]
          %v6973 = vld [vmem:[#allocation12 + $0x3e0] sm:$0xff]
          %v6974 = vld [vmem:[#allocation12 + $0x3e8] sm:$0xff]
          %v6975 = vld [vmem:[#allocation12 + $0x3f0] sm:$0xff]
          %v6976 = vld [vmem:[#allocation12 + $0x3f8] sm:$0xff]
          %v6977 = vld [vmem:[#allocation12 + $0x400] sm:$0xff]
          %v6978 = vld [vmem:[#allocation12 + $0x408] sm:$0xff]
          %v6979 = vld [vmem:[#allocation12 + $0x410] sm:$0xff]
          %v6980 = vld [vmem:[#allocation12 + $0x418] sm:$0xff]
          %v6981 = vld [vmem:[#allocation12 + $0x420] sm:$0xff]
          %v6982 = vld [vmem:[#allocation12 + $0x428] sm:$0xff]
          %v6983 = vld [vmem:[#allocation12 + $0x430] sm:$0xff]
          %v6984 = vld [vmem:[#allocation12 + $0x438] sm:$0xff]
          %v6985 = vld [vmem:[#allocation12 + $0x440] sm:$0xff]
          %v6986 = vld [vmem:[#allocation12 + $0x448] sm:$0xff]
          %v6987 = vld [vmem:[#allocation12 + $0x450] sm:$0xff]
          %v6988 = vld [vmem:[#allocation12 + $0x458] sm:$0xff]
          %v6989 = vld [vmem:[#allocation12 + $0x460] sm:$0xff]
          %v6990 = vld [vmem:[#allocation12 + $0x468] sm:$0xff]
          %v6991 = vld [vmem:[#allocation12 + $0x470] sm:$0xff]
          %v6992 = vld [vmem:[#allocation12 + $0x478] sm:$0xff]
          %v6993 = vld [vmem:[#allocation12 + $0x480] sm:$0xff]
          %v6994 = vld [vmem:[#allocation12 + $0x488] sm:$0xff]
          %v6995 = vld [vmem:[#allocation12 + $0x490] sm:$0xff]
          %v6996 = vld [vmem:[#allocation12 + $0x498] sm:$0xff]
          %v6997 = vld [vmem:[#allocation12 + $0x4a0] sm:$0xff]
          %v6998 = vld [vmem:[#allocation12 + $0x4a8] sm:$0xff]
          %v6999 = vld [vmem:[#allocation12 + $0x4b0] sm:$0xff]
          %v7000 = vld [vmem:[#allocation12 + $0x4b8] sm:$0xff]
          %v7001 = vld [vmem:[#allocation12 + $0x4c0] sm:$0xff]
          %v7002 = vld [vmem:[#allocation12 + $0x4c8] sm:$0xff]
          %v7003 = vld [vmem:[#allocation12 + $0x4d0] sm:$0xff]
          %v7004 = vld [vmem:[#allocation12 + $0x4d8] sm:$0xff]
          %v7005 = vld [vmem:[#allocation12 + $0x4e0] sm:$0xff]
          %v7006 = vld [vmem:[#allocation12 + $0x4e8] sm:$0xff]
          %v7007 = vld [vmem:[#allocation12 + $0x4f0] sm:$0xff]
          %v7008 = vld [vmem:[#allocation12 + $0x4f8] sm:$0xff]
          %v7009 = vld [vmem:[#allocation12 + $0x500] sm:$0xff]
          %v7010 = vld [vmem:[#allocation12 + $0x508] sm:$0xff]
          %v7011 = vld [vmem:[#allocation12 + $0x510] sm:$0xff]
          %v7012 = vld [vmem:[#allocation12 + $0x518] sm:$0xff]
          %v7013 = vld [vmem:[#allocation12 + $0x520] sm:$0xff]
          %v7014 = vld [vmem:[#allocation12 + $0x528] sm:$0xff]
          %v7015 = vld [vmem:[#allocation12 + $0x530] sm:$0xff]
          %v7016 = vld [vmem:[#allocation12 + $0x538] sm:$0xff]
          %v7017 = vld [vmem:[#allocation12 + $0x540] sm:$0xff]
          %v7018 = vld [vmem:[#allocation12 + $0x548] sm:$0xff]
          %v7019 = vld [vmem:[#allocation12 + $0x550] sm:$0xff]
          %v7020 = vld [vmem:[#allocation12 + $0x558] sm:$0xff]
          %v7021 = vld [vmem:[#allocation12 + $0x560] sm:$0xff]
          %v7022 = vld [vmem:[#allocation12 + $0x568] sm:$0xff]
          %v7023 = vld [vmem:[#allocation12 + $0x570] sm:$0xff]
          %v7024 = vld [vmem:[#allocation12 + $0x578] sm:$0xff]
          %v7025 = vld [vmem:[#allocation12 + $0x580] sm:$0xff]
          %v7026 = vld [vmem:[#allocation12 + $0x588] sm:$0xff]
          %v7027 = vld [vmem:[#allocation12 + $0x590] sm:$0xff]
          %v7028 = vld [vmem:[#allocation12 + $0x598] sm:$0xff]
          %v7029 = vld [vmem:[#allocation12 + $0x5a0] sm:$0xff]
          %v7030 = vld [vmem:[#allocation12 + $0x5a8] sm:$0xff]
          %v7031 = vld [vmem:[#allocation12 + $0x5b0] sm:$0xff]
          %v7032 = vld [vmem:[#allocation12 + $0x5b8] sm:$0xff]
          %v7033 = vld [vmem:[#allocation12 + $0x5c0] sm:$0xff]
          %v7034 = vld [vmem:[#allocation12 + $0x5c8] sm:$0xff]
          %v7035 = vld [vmem:[#allocation12 + $0x5d0] sm:$0xff]
          %v7036 = vld [vmem:[#allocation12 + $0x5d8] sm:$0xff]
          %v7037 = vld [vmem:[#allocation12 + $0x5e0] sm:$0xff]
          %v7038 = vld [vmem:[#allocation12 + $0x5e8] sm:$0xff]
          %v7039 = vld [vmem:[#allocation12 + $0x5f0] sm:$0xff]
          %v7040 = vld [vmem:[#allocation12 + $0x5f8] sm:$0xff]
          %v7041 = vld [vmem:[#allocation12 + $0x600] sm:$0xff]
          %v7042 = vld [vmem:[#allocation12 + $0x608] sm:$0xff]
          %v7043 = vld [vmem:[#allocation12 + $0x610] sm:$0xff]
          %v7044 = vld [vmem:[#allocation12 + $0x618] sm:$0xff]
          %v7045 = vld [vmem:[#allocation12 + $0x620] sm:$0xff]
          %v7046 = vld [vmem:[#allocation12 + $0x628] sm:$0xff]
          %v7047 = vld [vmem:[#allocation12 + $0x630] sm:$0xff]
          %v7048 = vld [vmem:[#allocation12 + $0x638] sm:$0xff]
          %v7049 = vld [vmem:[#allocation12 + $0x640] sm:$0xff]
          %v7050 = vld [vmem:[#allocation12 + $0x648] sm:$0xff]
          %v7051 = vld [vmem:[#allocation12 + $0x650] sm:$0xff]
          %v7052 = vld [vmem:[#allocation12 + $0x658] sm:$0xff]
          %v7053 = vld [vmem:[#allocation12 + $0x660] sm:$0xff]
          %v7054 = vld [vmem:[#allocation12 + $0x668] sm:$0xff]
          %v7055 = vld [vmem:[#allocation12 + $0x670] sm:$0xff]
          %v7056 = vld [vmem:[#allocation12 + $0x678] sm:$0xff]
          %v7057 = vld [vmem:[#allocation12 + $0x680] sm:$0xff]
          %v7058 = vld [vmem:[#allocation12 + $0x688] sm:$0xff]
          %v7059 = vld [vmem:[#allocation12 + $0x690] sm:$0xff]
          %v7060 = vld [vmem:[#allocation12 + $0x698] sm:$0xff]
          %v7061 = vld [vmem:[#allocation12 + $0x6a0] sm:$0xff]
          %v7062 = vld [vmem:[#allocation12 + $0x6a8] sm:$0xff]
          %v7063 = vld [vmem:[#allocation12 + $0x6b0] sm:$0xff]
          %v7064 = vld [vmem:[#allocation12 + $0x6b8] sm:$0xff]
          %v7065 = vld [vmem:[#allocation12 + $0x6c0] sm:$0xff]
          %v7066 = vld [vmem:[#allocation12 + $0x6c8] sm:$0xff]
          %v7067 = vld [vmem:[#allocation12 + $0x6d0] sm:$0xff]
          %v7068 = vld [vmem:[#allocation12 + $0x6d8] sm:$0xff]
          %v7069 = vld [vmem:[#allocation12 + $0x6e0] sm:$0xff]
          %v7070 = vld [vmem:[#allocation12 + $0x6e8] sm:$0xff]
          %v7071 = vld [vmem:[#allocation12 + $0x6f0] sm:$0xff]
          %v7072 = vld [vmem:[#allocation12 + $0x6f8] sm:$0xff]
          %v7073 = vld [vmem:[#allocation12 + $0x700] sm:$0xff]
          %v7074 = vld [vmem:[#allocation12 + $0x708] sm:$0xff]
          %v7075 = vld [vmem:[#allocation12 + $0x710] sm:$0xff]
          %v7076 = vld [vmem:[#allocation12 + $0x718] sm:$0xff]
          %v7077 = vld [vmem:[#allocation12 + $0x720] sm:$0xff]
          %v7078 = vld [vmem:[#allocation12 + $0x728] sm:$0xff]
          %v7079 = vld [vmem:[#allocation12 + $0x730] sm:$0xff]
          %v7080 = vld [vmem:[#allocation12 + $0x738] sm:$0xff]
          %v7081 = vld [vmem:[#allocation12 + $0x740] sm:$0xff]
          %v7082 = vld [vmem:[#allocation12 + $0x748] sm:$0xff]
          %v7083 = vld [vmem:[#allocation12 + $0x750] sm:$0xff]
          %v7084 = vld [vmem:[#allocation12 + $0x758] sm:$0xff]
          %v7085 = vld [vmem:[#allocation12 + $0x760] sm:$0xff]
          %v7086 = vld [vmem:[#allocation12 + $0x768] sm:$0xff]
          %v7087 = vld [vmem:[#allocation12 + $0x770] sm:$0xff]
          %v7088 = vld [vmem:[#allocation12 + $0x778] sm:$0xff]
          %v7089 = vld [vmem:[#allocation12 + $0x780] sm:$0xff]
          %v7090 = vld [vmem:[#allocation12 + $0x788] sm:$0xff]
          %v7091 = vld [vmem:[#allocation12 + $0x790] sm:$0xff]
          %v7092 = vld [vmem:[#allocation12 + $0x798] sm:$0xff]
          %v7093 = vld [vmem:[#allocation12 + $0x7a0] sm:$0xff]
          %v7094 = vld [vmem:[#allocation12 + $0x7a8] sm:$0xff]
          %v7095 = vld [vmem:[#allocation12 + $0x7b0] sm:$0xff]
          %v7096 = vld [vmem:[#allocation12 + $0x7b8] sm:$0xff]
          %v7097 = vld [vmem:[#allocation12 + $0x7c0] sm:$0xff]
          %v7098 = vld [vmem:[#allocation12 + $0x7c8] sm:$0xff]
          %v7099 = vld [vmem:[#allocation12 + $0x7d0] sm:$0xff]
          %v7100 = vld [vmem:[#allocation12 + $0x7d8] sm:$0xff]
          %v7101 = vld [vmem:[#allocation12 + $0x7e0] sm:$0xff]
          %v7102 = vld [vmem:[#allocation12 + $0x7e8] sm:$0xff]
          %v7103 = vld [vmem:[#allocation12 + $0x7f0] sm:$0xff]
          %v7104 = vld [vmem:[#allocation12 + $0x7f8] sm:$0xff]
          %v7105 = vld [vmem:[#allocation14] sm:$0xf]
          %v7107 = vperm.slane %v7105, 0
          %v7108 = vperm.slane %v7105, 1
          %v7109 = vperm.slane %v7105, 2
          %v7110 = vperm.slane %v7105, 3
          %v7371 = vunpack.c.l.b16 %v6849
          %v7372 = vunpack.c.h.b16 %v6849
          %v7373 = vunpack.c.l.b16 %v6850
          %v7374 = vunpack.c.h.b16 %v6850
          %v7375 = vunpack.c.l.b16 %v6851
          %v7376 = vunpack.c.h.b16 %v6851
          %v7377 = vunpack.c.l.b16 %v6852
          %v7378 = vunpack.c.h.b16 %v6852
          %v7379 = vunpack.c.l.b16 %v6853
          %v7380 = vunpack.c.h.b16 %v6853
          %v7381 = vunpack.c.l.b16 %v6854
          %v7382 = vunpack.c.h.b16 %v6854
          %v7383 = vunpack.c.l.b16 %v6855
          %v7384 = vunpack.c.h.b16 %v6855
          %v7385 = vunpack.c.l.b16 %v6856
          %v7386 = vunpack.c.h.b16 %v6856
          %v7387 = vunpack.c.l.b16 %v6857
          %v7388 = vunpack.c.h.b16 %v6857
          %v7389 = vunpack.c.l.b16 %v6858
          %v7390 = vunpack.c.h.b16 %v6858
          %v7391 = vunpack.c.l.b16 %v6859
          %v7392 = vunpack.c.h.b16 %v6859
          %v7393 = vunpack.c.l.b16 %v6860
          %v7394 = vunpack.c.h.b16 %v6860
          %v7395 = vunpack.c.l.b16 %v6861
          %v7396 = vunpack.c.h.b16 %v6861
          %v7397 = vunpack.c.l.b16 %v6862
          %v7398 = vunpack.c.h.b16 %v6862
          %v7399 = vunpack.c.l.b16 %v6863
          %v7400 = vunpack.c.h.b16 %v6863
          %v7401 = vunpack.c.l.b16 %v6864
          %v7402 = vunpack.c.h.b16 %v6864
          %v7403 = vunpack.c.l.b16 %v6865
          %v7404 = vunpack.c.h.b16 %v6865
          %v7405 = vunpack.c.l.b16 %v6866
          %v7406 = vunpack.c.h.b16 %v6866
          %v7407 = vunpack.c.l.b16 %v6867
          %v7408 = vunpack.c.h.b16 %v6867
          %v7409 = vunpack.c.l.b16 %v6868
          %v7410 = vunpack.c.h.b16 %v6868
          %v7411 = vunpack.c.l.b16 %v6869
          %v7412 = vunpack.c.h.b16 %v6869
          %v7413 = vunpack.c.l.b16 %v6870
          %v7414 = vunpack.c.h.b16 %v6870
          %v7415 = vunpack.c.l.b16 %v6871
          %v7416 = vunpack.c.h.b16 %v6871
          %v7417 = vunpack.c.l.b16 %v6872
          %v7418 = vunpack.c.h.b16 %v6872
          %v7419 = vunpack.c.l.b16 %v6873
          %v7420 = vunpack.c.h.b16 %v6873
          %v7421 = vunpack.c.l.b16 %v6874
          %v7422 = vunpack.c.h.b16 %v6874
          %v7423 = vunpack.c.l.b16 %v6875
          %v7424 = vunpack.c.h.b16 %v6875
          %v7425 = vunpack.c.l.b16 %v6876
          %v7426 = vunpack.c.h.b16 %v6876
          %v7427 = vunpack.c.l.b16 %v6877
          %v7428 = vunpack.c.h.b16 %v6877
          %v7429 = vunpack.c.l.b16 %v6878
          %v7430 = vunpack.c.h.b16 %v6878
          %v7431 = vunpack.c.l.b16 %v6879
          %v7432 = vunpack.c.h.b16 %v6879
          %v7433 = vunpack.c.l.b16 %v6880
          %v7434 = vunpack.c.h.b16 %v6880
          %v7435 = vunpack.c.l.b16 %v6881
          %v7436 = vunpack.c.h.b16 %v6881
          %v7437 = vunpack.c.l.b16 %v6882
          %v7438 = vunpack.c.h.b16 %v6882
          %v7439 = vunpack.c.l.b16 %v6883
          %v7440 = vunpack.c.h.b16 %v6883
          %v7441 = vunpack.c.l.b16 %v6884
          %v7442 = vunpack.c.h.b16 %v6884
          %v7443 = vunpack.c.l.b16 %v6885
          %v7444 = vunpack.c.h.b16 %v6885
          %v7445 = vunpack.c.l.b16 %v6886
          %v7446 = vunpack.c.h.b16 %v6886
          %v7447 = vunpack.c.l.b16 %v6887
          %v7448 = vunpack.c.h.b16 %v6887
          %v7449 = vunpack.c.l.b16 %v6888
          %v7450 = vunpack.c.h.b16 %v6888
          %v7451 = vunpack.c.l.b16 %v6889
          %v7452 = vunpack.c.h.b16 %v6889
          %v7453 = vunpack.c.l.b16 %v6890
          %v7454 = vunpack.c.h.b16 %v6890
          %v7455 = vunpack.c.l.b16 %v6891
          %v7456 = vunpack.c.h.b16 %v6891
          %v7457 = vunpack.c.l.b16 %v6892
          %v7458 = vunpack.c.h.b16 %v6892
          %v7459 = vunpack.c.l.b16 %v6893
          %v7460 = vunpack.c.h.b16 %v6893
          %v7461 = vunpack.c.l.b16 %v6894
          %v7462 = vunpack.c.h.b16 %v6894
          %v7463 = vunpack.c.l.b16 %v6895
          %v7464 = vunpack.c.h.b16 %v6895
          %v7465 = vunpack.c.l.b16 %v6896
          %v7466 = vunpack.c.h.b16 %v6896
          %v7467 = vunpack.c.l.b16 %v6897
          %v7468 = vunpack.c.h.b16 %v6897
          %v7469 = vunpack.c.l.b16 %v6898
          %v7470 = vunpack.c.h.b16 %v6898
          %v7471 = vunpack.c.l.b16 %v6899
          %v7472 = vunpack.c.h.b16 %v6899
          %v7473 = vunpack.c.l.b16 %v6900
          %v7474 = vunpack.c.h.b16 %v6900
          %v7475 = vunpack.c.l.b16 %v6901
          %v7476 = vunpack.c.h.b16 %v6901
          %v7477 = vunpack.c.l.b16 %v6902
          %v7478 = vunpack.c.h.b16 %v6902
          %v7479 = vunpack.c.l.b16 %v6903
          %v7480 = vunpack.c.h.b16 %v6903
          %v7481 = vunpack.c.l.b16 %v6904
          %v7482 = vunpack.c.h.b16 %v6904
          %v7483 = vunpack.c.l.b16 %v6905
          %v7484 = vunpack.c.h.b16 %v6905
          %v7485 = vunpack.c.l.b16 %v6906
          %v7486 = vunpack.c.h.b16 %v6906
          %v7487 = vunpack.c.l.b16 %v6907
          %v7488 = vunpack.c.h.b16 %v6907
          %v7489 = vunpack.c.l.b16 %v6908
          %v7490 = vunpack.c.h.b16 %v6908
          %v7491 = vunpack.c.l.b16 %v6909
          %v7492 = vunpack.c.h.b16 %v6909
          %v7493 = vunpack.c.l.b16 %v6910
          %v7494 = vunpack.c.h.b16 %v6910
          %v7495 = vunpack.c.l.b16 %v6911
          %v7496 = vunpack.c.h.b16 %v6911
          %v7497 = vunpack.c.l.b16 %v6912
          %v7498 = vunpack.c.h.b16 %v6912
          %v7499 = vunpack.c.l.b16 %v6913
          %v7500 = vunpack.c.h.b16 %v6913
          %v7501 = vunpack.c.l.b16 %v6914
          %v7502 = vunpack.c.h.b16 %v6914
          %v7503 = vunpack.c.l.b16 %v6915
          %v7504 = vunpack.c.h.b16 %v6915
          %v7505 = vunpack.c.l.b16 %v6916
          %v7506 = vunpack.c.h.b16 %v6916
          %v7507 = vunpack.c.l.b16 %v6917
          %v7508 = vunpack.c.h.b16 %v6917
          %v7509 = vunpack.c.l.b16 %v6918
          %v7510 = vunpack.c.h.b16 %v6918
          %v7511 = vunpack.c.l.b16 %v6919
          %v7512 = vunpack.c.h.b16 %v6919
          %v7513 = vunpack.c.l.b16 %v6920
          %v7514 = vunpack.c.h.b16 %v6920
          %v7515 = vunpack.c.l.b16 %v6921
          %v7516 = vunpack.c.h.b16 %v6921
          %v7517 = vunpack.c.l.b16 %v6922
          %v7518 = vunpack.c.h.b16 %v6922
          %v7519 = vunpack.c.l.b16 %v6923
          %v7520 = vunpack.c.h.b16 %v6923
          %v7521 = vunpack.c.l.b16 %v6924
          %v7522 = vunpack.c.h.b16 %v6924
          %v7523 = vunpack.c.l.b16 %v6925
          %v7524 = vunpack.c.h.b16 %v6925
          %v7525 = vunpack.c.l.b16 %v6926
          %v7526 = vunpack.c.h.b16 %v6926
          %v7527 = vunpack.c.l.b16 %v6927
          %v7528 = vunpack.c.h.b16 %v6927
          %v7529 = vunpack.c.l.b16 %v6928
          %v7530 = vunpack.c.h.b16 %v6928
          %v7531 = vunpack.c.l.b16 %v6929
          %v7532 = vunpack.c.h.b16 %v6929
          %v7533 = vunpack.c.l.b16 %v6930
          %v7534 = vunpack.c.h.b16 %v6930
          %v7535 = vunpack.c.l.b16 %v6931
          %v7536 = vunpack.c.h.b16 %v6931
          %v7537 = vunpack.c.l.b16 %v6932
          %v7538 = vunpack.c.h.b16 %v6932
          %v7539 = vunpack.c.l.b16 %v6933
          %v7540 = vunpack.c.h.b16 %v6933
          %v7541 = vunpack.c.l.b16 %v6934
          %v7542 = vunpack.c.h.b16 %v6934
          %v7543 = vunpack.c.l.b16 %v6935
          %v7544 = vunpack.c.h.b16 %v6935
          %v7545 = vunpack.c.l.b16 %v6936
          %v7546 = vunpack.c.h.b16 %v6936
          %v7547 = vunpack.c.l.b16 %v6937
          %v7548 = vunpack.c.h.b16 %v6937
          %v7549 = vunpack.c.l.b16 %v6938
          %v7550 = vunpack.c.h.b16 %v6938
          %v7551 = vunpack.c.l.b16 %v6939
          %v7552 = vunpack.c.h.b16 %v6939
          %v7553 = vunpack.c.l.b16 %v6940
          %v7554 = vunpack.c.h.b16 %v6940
          %v7555 = vunpack.c.l.b16 %v6941
          %v7556 = vunpack.c.h.b16 %v6941
          %v7557 = vunpack.c.l.b16 %v6942
          %v7558 = vunpack.c.h.b16 %v6942
          %v7559 = vunpack.c.l.b16 %v6943
          %v7560 = vunpack.c.h.b16 %v6943
          %v7561 = vunpack.c.l.b16 %v6944
          %v7562 = vunpack.c.h.b16 %v6944
          %v7563 = vunpack.c.l.b16 %v6945
          %v7564 = vunpack.c.h.b16 %v6945
          %v7565 = vunpack.c.l.b16 %v6946
          %v7566 = vunpack.c.h.b16 %v6946
          %v7567 = vunpack.c.l.b16 %v6947
          %v7568 = vunpack.c.h.b16 %v6947
          %v7569 = vunpack.c.l.b16 %v6948
          %v7570 = vunpack.c.h.b16 %v6948
          %v7571 = vunpack.c.l.b16 %v6949
          %v7572 = vunpack.c.h.b16 %v6949
          %v7573 = vunpack.c.l.b16 %v6950
          %v7574 = vunpack.c.h.b16 %v6950
          %v7575 = vunpack.c.l.b16 %v6951
          %v7576 = vunpack.c.h.b16 %v6951
          %v7577 = vunpack.c.l.b16 %v6952
          %v7578 = vunpack.c.h.b16 %v6952
          %v7579 = vunpack.c.l.b16 %v6953
          %v7580 = vunpack.c.h.b16 %v6953
          %v7581 = vunpack.c.l.b16 %v6954
          %v7582 = vunpack.c.h.b16 %v6954
          %v7583 = vunpack.c.l.b16 %v6955
          %v7584 = vunpack.c.h.b16 %v6955
          %v7585 = vunpack.c.l.b16 %v6956
          %v7586 = vunpack.c.h.b16 %v6956
          %v7587 = vunpack.c.l.b16 %v6957
          %v7588 = vunpack.c.h.b16 %v6957
          %v7589 = vunpack.c.l.b16 %v6958
          %v7590 = vunpack.c.h.b16 %v6958
          %v7591 = vunpack.c.l.b16 %v6959
          %v7592 = vunpack.c.h.b16 %v6959
          %v7593 = vunpack.c.l.b16 %v6960
          %v7594 = vunpack.c.h.b16 %v6960
          %v7595 = vunpack.c.l.b16 %v6961
          %v7596 = vunpack.c.h.b16 %v6961
          %v7597 = vunpack.c.l.b16 %v6962
          %v7598 = vunpack.c.h.b16 %v6962
          %v7599 = vunpack.c.l.b16 %v6963
          %v7600 = vunpack.c.h.b16 %v6963
          %v7601 = vunpack.c.l.b16 %v6964
          %v7602 = vunpack.c.h.b16 %v6964
          %v7603 = vunpack.c.l.b16 %v6965
          %v7604 = vunpack.c.h.b16 %v6965
          %v7605 = vunpack.c.l.b16 %v6966
          %v7606 = vunpack.c.h.b16 %v6966
          %v7607 = vunpack.c.l.b16 %v6967
          %v7608 = vunpack.c.h.b16 %v6967
          %v7609 = vunpack.c.l.b16 %v6968
          %v7610 = vunpack.c.h.b16 %v6968
          %v7611 = vunpack.c.l.b16 %v6969
          %v7612 = vunpack.c.h.b16 %v6969
          %v7613 = vunpack.c.l.b16 %v6970
          %v7614 = vunpack.c.h.b16 %v6970
          %v7615 = vunpack.c.l.b16 %v6971
          %v7616 = vunpack.c.h.b16 %v6971
          %v7617 = vunpack.c.l.b16 %v6972
          %v7618 = vunpack.c.h.b16 %v6972
          %v7619 = vunpack.c.l.b16 %v6973
          %v7620 = vunpack.c.h.b16 %v6973
          %v7621 = vunpack.c.l.b16 %v6974
          %v7622 = vunpack.c.h.b16 %v6974
          %v7623 = vunpack.c.l.b16 %v6975
          %v7624 = vunpack.c.h.b16 %v6975
          %v7625 = vunpack.c.l.b16 %v6976
          %v7626 = vunpack.c.h.b16 %v6976
          %v7627 = vunpack.c.l.b16 %v6977
          %v7628 = vunpack.c.h.b16 %v6977
          %v7629 = vunpack.c.l.b16 %v6978
          %v7630 = vunpack.c.h.b16 %v6978
          %v7631 = vunpack.c.l.b16 %v6979
          %v7632 = vunpack.c.h.b16 %v6979
          %v7633 = vunpack.c.l.b16 %v6980
          %v7634 = vunpack.c.h.b16 %v6980
          %v7635 = vunpack.c.l.b16 %v6981
          %v7636 = vunpack.c.h.b16 %v6981
          %v7637 = vunpack.c.l.b16 %v6982
          %v7638 = vunpack.c.h.b16 %v6982
          %v7639 = vunpack.c.l.b16 %v6983
          %v7640 = vunpack.c.h.b16 %v6983
          %v7641 = vunpack.c.l.b16 %v6984
          %v7642 = vunpack.c.h.b16 %v6984
          %v7643 = vunpack.c.l.b16 %v6985
          %v7644 = vunpack.c.h.b16 %v6985
          %v7645 = vunpack.c.l.b16 %v6986
          %v7646 = vunpack.c.h.b16 %v6986
          %v7647 = vunpack.c.l.b16 %v6987
          %v7648 = vunpack.c.h.b16 %v6987
          %v7649 = vunpack.c.l.b16 %v6988
          %v7650 = vunpack.c.h.b16 %v6988
          %v7651 = vunpack.c.l.b16 %v6989
          %v7652 = vunpack.c.h.b16 %v6989
          %v7653 = vunpack.c.l.b16 %v6990
          %v7654 = vunpack.c.h.b16 %v6990
          %v7655 = vunpack.c.l.b16 %v6991
          %v7656 = vunpack.c.h.b16 %v6991
          %v7657 = vunpack.c.l.b16 %v6992
          %v7658 = vunpack.c.h.b16 %v6992
          %v7659 = vunpack.c.l.b16 %v6993
          %v7660 = vunpack.c.h.b16 %v6993
          %v7661 = vunpack.c.l.b16 %v6994
          %v7662 = vunpack.c.h.b16 %v6994
          %v7663 = vunpack.c.l.b16 %v6995
          %v7664 = vunpack.c.h.b16 %v6995
          %v7665 = vunpack.c.l.b16 %v6996
          %v7666 = vunpack.c.h.b16 %v6996
          %v7667 = vunpack.c.l.b16 %v6997
          %v7668 = vunpack.c.h.b16 %v6997
          %v7669 = vunpack.c.l.b16 %v6998
          %v7670 = vunpack.c.h.b16 %v6998
          %v7671 = vunpack.c.l.b16 %v6999
          %v7672 = vunpack.c.h.b16 %v6999
          %v7673 = vunpack.c.l.b16 %v7000
          %v7674 = vunpack.c.h.b16 %v7000
          %v7675 = vunpack.c.l.b16 %v7001
          %v7676 = vunpack.c.h.b16 %v7001
          %v7677 = vunpack.c.l.b16 %v7002
          %v7678 = vunpack.c.h.b16 %v7002
          %v7679 = vunpack.c.l.b16 %v7003
          %v7680 = vunpack.c.h.b16 %v7003
          %v7681 = vunpack.c.l.b16 %v7004
          %v7682 = vunpack.c.h.b16 %v7004
          %v7683 = vunpack.c.l.b16 %v7005
          %v7684 = vunpack.c.h.b16 %v7005
          %v7685 = vunpack.c.l.b16 %v7006
          %v7686 = vunpack.c.h.b16 %v7006
          %v7687 = vunpack.c.l.b16 %v7007
          %v7688 = vunpack.c.h.b16 %v7007
          %v7689 = vunpack.c.l.b16 %v7008
          %v7690 = vunpack.c.h.b16 %v7008
          %v7691 = vunpack.c.l.b16 %v7009
          %v7692 = vunpack.c.h.b16 %v7009
          %v7693 = vunpack.c.l.b16 %v7010
          %v7694 = vunpack.c.h.b16 %v7010
          %v7695 = vunpack.c.l.b16 %v7011
          %v7696 = vunpack.c.h.b16 %v7011
          %v7697 = vunpack.c.l.b16 %v7012
          %v7698 = vunpack.c.h.b16 %v7012
          %v7699 = vunpack.c.l.b16 %v7013
          %v7700 = vunpack.c.h.b16 %v7013
          %v7701 = vunpack.c.l.b16 %v7014
          %v7702 = vunpack.c.h.b16 %v7014
          %v7703 = vunpack.c.l.b16 %v7015
          %v7704 = vunpack.c.h.b16 %v7015
          %v7705 = vunpack.c.l.b16 %v7016
          %v7706 = vunpack.c.h.b16 %v7016
          %v7707 = vunpack.c.l.b16 %v7017
          %v7708 = vunpack.c.h.b16 %v7017
          %v7709 = vunpack.c.l.b16 %v7018
          %v7710 = vunpack.c.h.b16 %v7018
          %v7711 = vunpack.c.l.b16 %v7019
          %v7712 = vunpack.c.h.b16 %v7019
          %v7713 = vunpack.c.l.b16 %v7020
          %v7714 = vunpack.c.h.b16 %v7020
          %v7715 = vunpack.c.l.b16 %v7021
          %v7716 = vunpack.c.h.b16 %v7021
          %v7717 = vunpack.c.l.b16 %v7022
          %v7718 = vunpack.c.h.b16 %v7022
          %v7719 = vunpack.c.l.b16 %v7023
          %v7720 = vunpack.c.h.b16 %v7023
          %v7721 = vunpack.c.l.b16 %v7024
          %v7722 = vunpack.c.h.b16 %v7024
          %v7723 = vunpack.c.l.b16 %v7025
          %v7724 = vunpack.c.h.b16 %v7025
          %v7725 = vunpack.c.l.b16 %v7026
          %v7726 = vunpack.c.h.b16 %v7026
          %v7727 = vunpack.c.l.b16 %v7027
          %v7728 = vunpack.c.h.b16 %v7027
          %v7729 = vunpack.c.l.b16 %v7028
          %v7730 = vunpack.c.h.b16 %v7028
          %v7731 = vunpack.c.l.b16 %v7029
          %v7732 = vunpack.c.h.b16 %v7029
          %v7733 = vunpack.c.l.b16 %v7030
          %v7734 = vunpack.c.h.b16 %v7030
          %v7735 = vunpack.c.l.b16 %v7031
          %v7736 = vunpack.c.h.b16 %v7031
          %v7737 = vunpack.c.l.b16 %v7032
          %v7738 = vunpack.c.h.b16 %v7032
          %v7739 = vunpack.c.l.b16 %v7033
          %v7740 = vunpack.c.h.b16 %v7033
          %v7741 = vunpack.c.l.b16 %v7034
          %v7742 = vunpack.c.h.b16 %v7034
          %v7743 = vunpack.c.l.b16 %v7035
          %v7744 = vunpack.c.h.b16 %v7035
          %v7745 = vunpack.c.l.b16 %v7036
          %v7746 = vunpack.c.h.b16 %v7036
          %v7747 = vunpack.c.l.b16 %v7037
          %v7748 = vunpack.c.h.b16 %v7037
          %v7749 = vunpack.c.l.b16 %v7038
          %v7750 = vunpack.c.h.b16 %v7038
          %v7751 = vunpack.c.l.b16 %v7039
          %v7752 = vunpack.c.h.b16 %v7039
          %v7753 = vunpack.c.l.b16 %v7040
          %v7754 = vunpack.c.h.b16 %v7040
          %v7755 = vunpack.c.l.b16 %v7041
          %v7756 = vunpack.c.h.b16 %v7041
          %v7757 = vunpack.c.l.b16 %v7042
          %v7758 = vunpack.c.h.b16 %v7042
          %v7759 = vunpack.c.l.b16 %v7043
          %v7760 = vunpack.c.h.b16 %v7043
          %v7761 = vunpack.c.l.b16 %v7044
          %v7762 = vunpack.c.h.b16 %v7044
          %v7763 = vunpack.c.l.b16 %v7045
          %v7764 = vunpack.c.h.b16 %v7045
          %v7765 = vunpack.c.l.b16 %v7046
          %v7766 = vunpack.c.h.b16 %v7046
          %v7767 = vunpack.c.l.b16 %v7047
          %v7768 = vunpack.c.h.b16 %v7047
          %v7769 = vunpack.c.l.b16 %v7048
          %v7770 = vunpack.c.h.b16 %v7048
          %v7771 = vunpack.c.l.b16 %v7049
          %v7772 = vunpack.c.h.b16 %v7049
          %v7773 = vunpack.c.l.b16 %v7050
          %v7774 = vunpack.c.h.b16 %v7050
          %v7775 = vunpack.c.l.b16 %v7051
          %v7776 = vunpack.c.h.b16 %v7051
          %v7777 = vunpack.c.l.b16 %v7052
          %v7778 = vunpack.c.h.b16 %v7052
          %v7779 = vunpack.c.l.b16 %v7053
          %v7780 = vunpack.c.h.b16 %v7053
          %v7781 = vunpack.c.l.b16 %v7054
          %v7782 = vunpack.c.h.b16 %v7054
          %v7783 = vunpack.c.l.b16 %v7055
          %v7784 = vunpack.c.h.b16 %v7055
          %v7785 = vunpack.c.l.b16 %v7056
          %v7786 = vunpack.c.h.b16 %v7056
          %v7787 = vunpack.c.l.b16 %v7057
          %v7788 = vunpack.c.h.b16 %v7057
          %v7789 = vunpack.c.l.b16 %v7058
          %v7790 = vunpack.c.h.b16 %v7058
          %v7791 = vunpack.c.l.b16 %v7059
          %v7792 = vunpack.c.h.b16 %v7059
          %v7793 = vunpack.c.l.b16 %v7060
          %v7794 = vunpack.c.h.b16 %v7060
          %v7795 = vunpack.c.l.b16 %v7061
          %v7796 = vunpack.c.h.b16 %v7061
          %v7797 = vunpack.c.l.b16 %v7062
          %v7798 = vunpack.c.h.b16 %v7062
          %v7799 = vunpack.c.l.b16 %v7063
          %v7800 = vunpack.c.h.b16 %v7063
          %v7801 = vunpack.c.l.b16 %v7064
          %v7802 = vunpack.c.h.b16 %v7064
          %v7803 = vunpack.c.l.b16 %v7065
          %v7804 = vunpack.c.h.b16 %v7065
          %v7805 = vunpack.c.l.b16 %v7066
          %v7806 = vunpack.c.h.b16 %v7066
          %v7807 = vunpack.c.l.b16 %v7067
          %v7808 = vunpack.c.h.b16 %v7067
          %v7809 = vunpack.c.l.b16 %v7068
          %v7810 = vunpack.c.h.b16 %v7068
          %v7811 = vunpack.c.l.b16 %v7069
          %v7812 = vunpack.c.h.b16 %v7069
          %v7813 = vunpack.c.l.b16 %v7070
          %v7814 = vunpack.c.h.b16 %v7070
          %v7815 = vunpack.c.l.b16 %v7071
          %v7816 = vunpack.c.h.b16 %v7071
          %v7817 = vunpack.c.l.b16 %v7072
          %v7818 = vunpack.c.h.b16 %v7072
          %v7819 = vunpack.c.l.b16 %v7073
          %v7820 = vunpack.c.h.b16 %v7073
          %v7821 = vunpack.c.l.b16 %v7074
          %v7822 = vunpack.c.h.b16 %v7074
          %v7823 = vunpack.c.l.b16 %v7075
          %v7824 = vunpack.c.h.b16 %v7075
          %v7825 = vunpack.c.l.b16 %v7076
          %v7826 = vunpack.c.h.b16 %v7076
          %v7827 = vunpack.c.l.b16 %v7077
          %v7828 = vunpack.c.h.b16 %v7077
          %v7829 = vunpack.c.l.b16 %v7078
          %v7830 = vunpack.c.h.b16 %v7078
          %v7831 = vunpack.c.l.b16 %v7079
          %v7832 = vunpack.c.h.b16 %v7079
          %v7833 = vunpack.c.l.b16 %v7080
          %v7834 = vunpack.c.h.b16 %v7080
          %v7835 = vunpack.c.l.b16 %v7081
          %v7836 = vunpack.c.h.b16 %v7081
          %v7837 = vunpack.c.l.b16 %v7082
          %v7838 = vunpack.c.h.b16 %v7082
          %v7839 = vunpack.c.l.b16 %v7083
          %v7840 = vunpack.c.h.b16 %v7083
          %v7841 = vunpack.c.l.b16 %v7084
          %v7842 = vunpack.c.h.b16 %v7084
          %v7843 = vunpack.c.l.b16 %v7085
          %v7844 = vunpack.c.h.b16 %v7085
          %v7845 = vunpack.c.l.b16 %v7086
          %v7846 = vunpack.c.h.b16 %v7086
          %v7847 = vunpack.c.l.b16 %v7087
          %v7848 = vunpack.c.h.b16 %v7087
          %v7849 = vunpack.c.l.b16 %v7088
          %v7850 = vunpack.c.h.b16 %v7088
          %v7851 = vunpack.c.l.b16 %v7089
          %v7852 = vunpack.c.h.b16 %v7089
          %v7853 = vunpack.c.l.b16 %v7090
          %v7854 = vunpack.c.h.b16 %v7090
          %v7855 = vunpack.c.l.b16 %v7091
          %v7856 = vunpack.c.h.b16 %v7091
          %v7857 = vunpack.c.l.b16 %v7092
          %v7858 = vunpack.c.h.b16 %v7092
          %v7859 = vunpack.c.l.b16 %v7093
          %v7860 = vunpack.c.h.b16 %v7093
          %v7861 = vunpack.c.l.b16 %v7094
          %v7862 = vunpack.c.h.b16 %v7094
          %v7863 = vunpack.c.l.b16 %v7095
          %v7864 = vunpack.c.h.b16 %v7095
          %v7865 = vunpack.c.l.b16 %v7096
          %v7866 = vunpack.c.h.b16 %v7096
          %v7867 = vunpack.c.l.b16 %v7097
          %v7868 = vunpack.c.h.b16 %v7097
          %v7869 = vunpack.c.l.b16 %v7098
          %v7870 = vunpack.c.h.b16 %v7098
          %v7871 = vunpack.c.l.b16 %v7099
          %v7872 = vunpack.c.h.b16 %v7099
          %v7873 = vunpack.c.l.b16 %v7100
          %v7874 = vunpack.c.h.b16 %v7100
          %v7875 = vunpack.c.l.b16 %v7101
          %v7876 = vunpack.c.h.b16 %v7101
          %v7877 = vunpack.c.l.b16 %v7102
          %v7878 = vunpack.c.h.b16 %v7102
          %v7879 = vunpack.c.l.b16 %v7103
          %v7880 = vunpack.c.h.b16 %v7103
          %v7881 = vunpack.c.l.b16 %v7104
          %v7882 = vunpack.c.h.b16 %v7104
          %v7883 = vpack.c.b16 %v7375, %v7371
          %v7884 = vpack.c.b16 %v7376, %v7372
          %v7885 = vpack.c.b16 %v7377, %v7373
          %v7886 = vpack.c.b16 %v7378, %v7374
          %v7887 = vpack.c.b16 %v7383, %v7379
          %v7888 = vpack.c.b16 %v7384, %v7380
          %v7889 = vpack.c.b16 %v7385, %v7381
          %v7890 = vpack.c.b16 %v7386, %v7382
          %v7891 = vpack.c.b16 %v7391, %v7387
          %v7892 = vpack.c.b16 %v7392, %v7388
          %v7893 = vpack.c.b16 %v7393, %v7389
          %v7894 = vpack.c.b16 %v7394, %v7390
          %v7895 = vpack.c.b16 %v7399, %v7395
          %v7896 = vpack.c.b16 %v7400, %v7396
          %v7897 = vpack.c.b16 %v7401, %v7397
          %v7898 = vpack.c.b16 %v7402, %v7398
          %v7899 = vpack.c.b16 %v7407, %v7403
          %v7900 = vpack.c.b16 %v7408, %v7404
          %v7901 = vpack.c.b16 %v7409, %v7405
          %v7902 = vpack.c.b16 %v7410, %v7406
          %v7903 = vpack.c.b16 %v7415, %v7411
          %v7904 = vpack.c.b16 %v7416, %v7412
          %v7905 = vpack.c.b16 %v7417, %v7413
          %v7906 = vpack.c.b16 %v7418, %v7414
          %v7907 = vpack.c.b16 %v7423, %v7419
          %v7908 = vpack.c.b16 %v7424, %v7420
          %v7909 = vpack.c.b16 %v7425, %v7421
          %v7910 = vpack.c.b16 %v7426, %v7422
          %v7911 = vpack.c.b16 %v7431, %v7427
          %v7912 = vpack.c.b16 %v7432, %v7428
          %v7913 = vpack.c.b16 %v7433, %v7429
          %v7914 = vpack.c.b16 %v7434, %v7430
          %v7915 = vpack.c.b16 %v7439, %v7435
          %v7916 = vpack.c.b16 %v7440, %v7436
          %v7917 = vpack.c.b16 %v7441, %v7437
          %v7918 = vpack.c.b16 %v7442, %v7438
          %v7919 = vpack.c.b16 %v7447, %v7443
          %v7920 = vpack.c.b16 %v7448, %v7444
          %v7921 = vpack.c.b16 %v7449, %v7445
          %v7922 = vpack.c.b16 %v7450, %v7446
          %v7923 = vpack.c.b16 %v7455, %v7451
          %v7924 = vpack.c.b16 %v7456, %v7452
          %v7925 = vpack.c.b16 %v7457, %v7453
          %v7926 = vpack.c.b16 %v7458, %v7454
          %v7927 = vpack.c.b16 %v7463, %v7459
          %v7928 = vpack.c.b16 %v7464, %v7460
          %v7929 = vpack.c.b16 %v7465, %v7461
          %v7930 = vpack.c.b16 %v7466, %v7462
          %v7931 = vpack.c.b16 %v7471, %v7467
          %v7932 = vpack.c.b16 %v7472, %v7468
          %v7933 = vpack.c.b16 %v7473, %v7469
          %v7934 = vpack.c.b16 %v7474, %v7470
          %v7935 = vpack.c.b16 %v7479, %v7475
          %v7936 = vpack.c.b16 %v7480, %v7476
          %v7937 = vpack.c.b16 %v7481, %v7477
          %v7938 = vpack.c.b16 %v7482, %v7478
          %v7939 = vpack.c.b16 %v7487, %v7483
          %v7940 = vpack.c.b16 %v7488, %v7484
          %v7941 = vpack.c.b16 %v7489, %v7485
          %v7942 = vpack.c.b16 %v7490, %v7486
          %v7943 = vpack.c.b16 %v7495, %v7491
          %v7944 = vpack.c.b16 %v7496, %v7492
          %v7945 = vpack.c.b16 %v7497, %v7493
          %v7946 = vpack.c.b16 %v7498, %v7494
          %v7947 = vpack.c.b16 %v7503, %v7499
          %v7948 = vpack.c.b16 %v7504, %v7500
          %v7949 = vpack.c.b16 %v7505, %v7501
          %v7950 = vpack.c.b16 %v7506, %v7502
          %v7951 = vpack.c.b16 %v7511, %v7507
          %v7952 = vpack.c.b16 %v7512, %v7508
          %v7953 = vpack.c.b16 %v7513, %v7509
          %v7954 = vpack.c.b16 %v7514, %v7510
          %v7955 = vpack.c.b16 %v7519, %v7515
          %v7956 = vpack.c.b16 %v7520, %v7516
          %v7957 = vpack.c.b16 %v7521, %v7517
          %v7958 = vpack.c.b16 %v7522, %v7518
          %v7959 = vpack.c.b16 %v7527, %v7523
          %v7960 = vpack.c.b16 %v7528, %v7524
          %v7961 = vpack.c.b16 %v7529, %v7525
          %v7962 = vpack.c.b16 %v7530, %v7526
          %v7963 = vpack.c.b16 %v7535, %v7531
          %v7964 = vpack.c.b16 %v7536, %v7532
          %v7965 = vpack.c.b16 %v7537, %v7533
          %v7966 = vpack.c.b16 %v7538, %v7534
          %v7967 = vpack.c.b16 %v7543, %v7539
          %v7968 = vpack.c.b16 %v7544, %v7540
          %v7969 = vpack.c.b16 %v7545, %v7541
          %v7970 = vpack.c.b16 %v7546, %v7542
          %v7971 = vpack.c.b16 %v7551, %v7547
          %v7972 = vpack.c.b16 %v7552, %v7548
          %v7973 = vpack.c.b16 %v7553, %v7549
          %v7974 = vpack.c.b16 %v7554, %v7550
          %v7975 = vpack.c.b16 %v7559, %v7555
          %v7976 = vpack.c.b16 %v7560, %v7556
          %v7977 = vpack.c.b16 %v7561, %v7557
          %v7978 = vpack.c.b16 %v7562, %v7558
          %v7979 = vpack.c.b16 %v7567, %v7563
          %v7980 = vpack.c.b16 %v7568, %v7564
          %v7981 = vpack.c.b16 %v7569, %v7565
          %v7982 = vpack.c.b16 %v7570, %v7566
          %v7983 = vpack.c.b16 %v7575, %v7571
          %v7984 = vpack.c.b16 %v7576, %v7572
          %v7985 = vpack.c.b16 %v7577, %v7573
          %v7986 = vpack.c.b16 %v7578, %v7574
          %v7987 = vpack.c.b16 %v7583, %v7579
          %v7988 = vpack.c.b16 %v7584, %v7580
          %v7989 = vpack.c.b16 %v7585, %v7581
          %v7990 = vpack.c.b16 %v7586, %v7582
          %v7991 = vpack.c.b16 %v7591, %v7587
          %v7992 = vpack.c.b16 %v7592, %v7588
          %v7993 = vpack.c.b16 %v7593, %v7589
          %v7994 = vpack.c.b16 %v7594, %v7590
          %v7995 = vpack.c.b16 %v7599, %v7595
          %v7996 = vpack.c.b16 %v7600, %v7596
          %v7997 = vpack.c.b16 %v7601, %v7597
          %v7998 = vpack.c.b16 %v7602, %v7598
          %v7999 = vpack.c.b16 %v7607, %v7603
          %v8000 = vpack.c.b16 %v7608, %v7604
          %v8001 = vpack.c.b16 %v7609, %v7605
          %v8002 = vpack.c.b16 %v7610, %v7606
          %v8003 = vpack.c.b16 %v7615, %v7611
          %v8004 = vpack.c.b16 %v7616, %v7612
          %v8005 = vpack.c.b16 %v7617, %v7613
          %v8006 = vpack.c.b16 %v7618, %v7614
          %v8007 = vpack.c.b16 %v7623, %v7619
          %v8008 = vpack.c.b16 %v7624, %v7620
          %v8009 = vpack.c.b16 %v7625, %v7621
          %v8010 = vpack.c.b16 %v7626, %v7622
          %v8011 = vpack.c.b16 %v7631, %v7627
          %v8012 = vpack.c.b16 %v7632, %v7628
          %v8013 = vpack.c.b16 %v7633, %v7629
          %v8014 = vpack.c.b16 %v7634, %v7630
          %v8015 = vpack.c.b16 %v7639, %v7635
          %v8016 = vpack.c.b16 %v7640, %v7636
          %v8017 = vpack.c.b16 %v7641, %v7637
          %v8018 = vpack.c.b16 %v7642, %v7638
          %v8019 = vpack.c.b16 %v7647, %v7643
          %v8020 = vpack.c.b16 %v7648, %v7644
          %v8021 = vpack.c.b16 %v7649, %v7645
          %v8022 = vpack.c.b16 %v7650, %v7646
          %v8023 = vpack.c.b16 %v7655, %v7651
          %v8024 = vpack.c.b16 %v7656, %v7652
          %v8025 = vpack.c.b16 %v7657, %v7653
          %v8026 = vpack.c.b16 %v7658, %v7654
          %v8027 = vpack.c.b16 %v7663, %v7659
          %v8028 = vpack.c.b16 %v7664, %v7660
          %v8029 = vpack.c.b16 %v7665, %v7661
          %v8030 = vpack.c.b16 %v7666, %v7662
          %v8031 = vpack.c.b16 %v7671, %v7667
          %v8032 = vpack.c.b16 %v7672, %v7668
          %v8033 = vpack.c.b16 %v7673, %v7669
          %v8034 = vpack.c.b16 %v7674, %v7670
          %v8035 = vpack.c.b16 %v7679, %v7675
          %v8036 = vpack.c.b16 %v7680, %v7676
          %v8037 = vpack.c.b16 %v7681, %v7677
          %v8038 = vpack.c.b16 %v7682, %v7678
          %v8039 = vpack.c.b16 %v7687, %v7683
          %v8040 = vpack.c.b16 %v7688, %v7684
          %v8041 = vpack.c.b16 %v7689, %v7685
          %v8042 = vpack.c.b16 %v7690, %v7686
          %v8043 = vpack.c.b16 %v7695, %v7691
          %v8044 = vpack.c.b16 %v7696, %v7692
          %v8045 = vpack.c.b16 %v7697, %v7693
          %v8046 = vpack.c.b16 %v7698, %v7694
          %v8047 = vpack.c.b16 %v7703, %v7699
          %v8048 = vpack.c.b16 %v7704, %v7700
          %v8049 = vpack.c.b16 %v7705, %v7701
          %v8050 = vpack.c.b16 %v7706, %v7702
          %v8051 = vpack.c.b16 %v7711, %v7707
          %v8052 = vpack.c.b16 %v7712, %v7708
          %v8053 = vpack.c.b16 %v7713, %v7709
          %v8054 = vpack.c.b16 %v7714, %v7710
          %v8055 = vpack.c.b16 %v7719, %v7715
          %v8056 = vpack.c.b16 %v7720, %v7716
          %v8057 = vpack.c.b16 %v7721, %v7717
          %v8058 = vpack.c.b16 %v7722, %v7718
          %v8059 = vpack.c.b16 %v7727, %v7723
          %v8060 = vpack.c.b16 %v7728, %v7724
          %v8061 = vpack.c.b16 %v7729, %v7725
          %v8062 = vpack.c.b16 %v7730, %v7726
          %v8063 = vpack.c.b16 %v7735, %v7731
          %v8064 = vpack.c.b16 %v7736, %v7732
          %v8065 = vpack.c.b16 %v7737, %v7733
          %v8066 = vpack.c.b16 %v7738, %v7734
          %v8067 = vpack.c.b16 %v7743, %v7739
          %v8068 = vpack.c.b16 %v7744, %v7740
          %v8069 = vpack.c.b16 %v7745, %v7741
          %v8070 = vpack.c.b16 %v7746, %v7742
          %v8071 = vpack.c.b16 %v7751, %v7747
          %v8072 = vpack.c.b16 %v7752, %v7748
          %v8073 = vpack.c.b16 %v7753, %v7749
          %v8074 = vpack.c.b16 %v7754, %v7750
          %v8075 = vpack.c.b16 %v7759, %v7755
          %v8076 = vpack.c.b16 %v7760, %v7756
          %v8077 = vpack.c.b16 %v7761, %v7757
          %v8078 = vpack.c.b16 %v7762, %v7758
          %v8079 = vpack.c.b16 %v7767, %v7763
          %v8080 = vpack.c.b16 %v7768, %v7764
          %v8081 = vpack.c.b16 %v7769, %v7765
          %v8082 = vpack.c.b16 %v7770, %v7766
          %v8083 = vpack.c.b16 %v7775, %v7771
          %v8084 = vpack.c.b16 %v7776, %v7772
          %v8085 = vpack.c.b16 %v7777, %v7773
          %v8086 = vpack.c.b16 %v7778, %v7774
          %v8087 = vpack.c.b16 %v7783, %v7779
          %v8088 = vpack.c.b16 %v7784, %v7780
          %v8089 = vpack.c.b16 %v7785, %v7781
          %v8090 = vpack.c.b16 %v7786, %v7782
          %v8091 = vpack.c.b16 %v7791, %v7787
          %v8092 = vpack.c.b16 %v7792, %v7788
          %v8093 = vpack.c.b16 %v7793, %v7789
          %v8094 = vpack.c.b16 %v7794, %v7790
          %v8095 = vpack.c.b16 %v7799, %v7795
          %v8096 = vpack.c.b16 %v7800, %v7796
          %v8097 = vpack.c.b16 %v7801, %v7797
          %v8098 = vpack.c.b16 %v7802, %v7798
          %v8099 = vpack.c.b16 %v7807, %v7803
          %v8100 = vpack.c.b16 %v7808, %v7804
          %v8101 = vpack.c.b16 %v7809, %v7805
          %v8102 = vpack.c.b16 %v7810, %v7806
          %v8103 = vpack.c.b16 %v7815, %v7811
          %v8104 = vpack.c.b16 %v7816, %v7812
          %v8105 = vpack.c.b16 %v7817, %v7813
          %v8106 = vpack.c.b16 %v7818, %v7814
          %v8107 = vpack.c.b16 %v7823, %v7819
          %v8108 = vpack.c.b16 %v7824, %v7820
          %v8109 = vpack.c.b16 %v7825, %v7821
          %v8110 = vpack.c.b16 %v7826, %v7822
          %v8111 = vpack.c.b16 %v7831, %v7827
          %v8112 = vpack.c.b16 %v7832, %v7828
          %v8113 = vpack.c.b16 %v7833, %v7829
          %v8114 = vpack.c.b16 %v7834, %v7830
          %v8115 = vpack.c.b16 %v7839, %v7835
          %v8116 = vpack.c.b16 %v7840, %v7836
          %v8117 = vpack.c.b16 %v7841, %v7837
          %v8118 = vpack.c.b16 %v7842, %v7838
          %v8119 = vpack.c.b16 %v7847, %v7843
          %v8120 = vpack.c.b16 %v7848, %v7844
          %v8121 = vpack.c.b16 %v7849, %v7845
          %v8122 = vpack.c.b16 %v7850, %v7846
          %v8123 = vpack.c.b16 %v7855, %v7851
          %v8124 = vpack.c.b16 %v7856, %v7852
          %v8125 = vpack.c.b16 %v7857, %v7853
          %v8126 = vpack.c.b16 %v7858, %v7854
          %v8127 = vpack.c.b16 %v7863, %v7859
          %v8128 = vpack.c.b16 %v7864, %v7860
          %v8129 = vpack.c.b16 %v7865, %v7861
          %v8130 = vpack.c.b16 %v7866, %v7862
          %v8131 = vpack.c.b16 %v7871, %v7867
          %v8132 = vpack.c.b16 %v7872, %v7868
          %v8133 = vpack.c.b16 %v7873, %v7869
          %v8134 = vpack.c.b16 %v7874, %v7870
          %v8135 = vpack.c.b16 %v7879, %v7875
          %v8136 = vpack.c.b16 %v7880, %v7876
          %v8137 = vpack.c.b16 %v7881, %v7877
          %v8138 = vpack.c.b16 %v7882, %v7878
          %8395 = vmatpush.bf16.msra.mxu0 %v7911
          %8396 = vmatpush.bf16.msra.mxu0 %v7907
          %8397 = vmatpush.bf16.msra.mxu0 %v7903
          %8398 = vmatpush.bf16.msra.mxu0 %v7899
          %8399 = vmatpush.bf16.msra.mxu0 %v7895
          %8400 = vmatpush.bf16.msra.mxu0 %v7891
          %8401 = vmatpush.bf16.msra.mxu0 %v7887
          %8402 = vmatpush.bf16.msra.mxu0 %v7883
          %8403 = vmatmul.bf16.gmra.mxu0 %v6841
          %v8404 = vpop.f32.mrf.mxu0
          %v8405 = vadd.f32 %v7107, %v8404
          %v8406 = vpop.f32.mrf.mxu0
          %8407 = vdwg.mxu0
          %8408 = vmatpush.bf16.msra.mxu0 %v7943
          %8409 = vmatpush.bf16.msra.mxu0 %v7939
          %8410 = vmatpush.bf16.msra.mxu0 %v7935
          %8411 = vmatpush.bf16.msra.mxu0 %v7931
          %8412 = vmatpush.bf16.msra.mxu0 %v7927
          %8413 = vmatpush.bf16.msra.mxu0 %v7923
          %8414 = vmatpush.bf16.msra.mxu0 %v7919
          %8415 = vmatpush.bf16.msra.mxu0 %v7915
          %8416 = vmatmul.bf16.gmra.mxu0 %v6842
          %v8417 = vpop.f32.mrf.mxu0
          %v8418 = vadd.f32 %v8405, %v8417
          %v8419 = vpop.f32.mrf.mxu0
          %8420 = vdwg.mxu0
          %8421 = vmatpush.bf16.msra.mxu0 %v7975
          %8422 = vmatpush.bf16.msra.mxu0 %v7971
          %8423 = vmatpush.bf16.msra.mxu0 %v7967
          %8424 = vmatpush.bf16.msra.mxu0 %v7963
          %8425 = vmatpush.bf16.msra.mxu0 %v7959
          %8426 = vmatpush.bf16.msra.mxu0 %v7955
          %8427 = vmatpush.bf16.msra.mxu0 %v7951
          %8428 = vmatpush.bf16.msra.mxu0 %v7947
          %8429 = vmatmul.bf16.gmra.mxu0 %v6843
          %v8430 = vpop.f32.mrf.mxu0
          %v8431 = vadd.f32 %v8418, %v8430
          %v8432 = vpop.f32.mrf.mxu0
          %8433 = vdwg.mxu0
          %8434 = vmatpush.bf16.msra.mxu0 %v8007
          %8435 = vmatpush.bf16.msra.mxu0 %v8003
          %8436 = vmatpush.bf16.msra.mxu0 %v7999
          %8437 = vmatpush.bf16.msra.mxu0 %v7995
          %8438 = vmatpush.bf16.msra.mxu0 %v7991
          %8439 = vmatpush.bf16.msra.mxu0 %v7987
          %8440 = vmatpush.bf16.msra.mxu0 %v7983
          %8441 = vmatpush.bf16.msra.mxu0 %v7979
          %8442 = vmatmul.bf16.gmra.mxu0 %v6844
          %v8443 = vpop.f32.mrf.mxu0
          %v8444 = vadd.f32 %v8431, %v8443
          %v8445 = vpop.f32.mrf.mxu0
          %8446 = vdwg.mxu0
          %8447 = vmatpush.bf16.msra.mxu0 %v8039
          %8448 = vmatpush.bf16.msra.mxu0 %v8035
          %8449 = vmatpush.bf16.msra.mxu0 %v8031
          %8450 = vmatpush.bf16.msra.mxu0 %v8027
          %8451 = vmatpush.bf16.msra.mxu0 %v8023
          %8452 = vmatpush.bf16.msra.mxu0 %v8019
          %8453 = vmatpush.bf16.msra.mxu0 %v8015
          %8454 = vmatpush.bf16.msra.mxu0 %v8011
          %8455 = vmatmul.bf16.gmra.mxu0 %v6845
          %v8456 = vpop.f32.mrf.mxu0
          %v8457 = vadd.f32 %v8444, %v8456
          %v8458 = vpop.f32.mrf.mxu0
          %8459 = vdwg.mxu0
          %8460 = vmatpush.bf16.msra.mxu0 %v8071
          %8461 = vmatpush.bf16.msra.mxu0 %v8067
          %8462 = vmatpush.bf16.msra.mxu0 %v8063
          %8463 = vmatpush.bf16.msra.mxu0 %v8059
          %8464 = vmatpush.bf16.msra.mxu0 %v8055
          %8465 = vmatpush.bf16.msra.mxu0 %v8051
          %8466 = vmatpush.bf16.msra.mxu0 %v8047
          %8467 = vmatpush.bf16.msra.mxu0 %v8043
          %8468 = vmatmul.bf16.gmra.mxu0 %v6846
          %v8469 = vpop.f32.mrf.mxu0
          %v8470 = vadd.f32 %v8457, %v8469
          %v8471 = vpop.f32.mrf.mxu0
          %8472 = vdwg.mxu0
          %8473 = vmatpush.bf16.msra.mxu0 %v8103
          %8474 = vmatpush.bf16.msra.mxu0 %v8099
          %8475 = vmatpush.bf16.msra.mxu0 %v8095
          %8476 = vmatpush.bf16.msra.mxu0 %v8091
          %8477 = vmatpush.bf16.msra.mxu0 %v8087
          %8478 = vmatpush.bf16.msra.mxu0 %v8083
          %8479 = vmatpush.bf16.msra.mxu0 %v8079
          %8480 = vmatpush.bf16.msra.mxu0 %v8075
          %8481 = vmatmul.bf16.gmra.mxu0 %v6847
          %v8482 = vpop.f32.mrf.mxu0
          %v8483 = vadd.f32 %v8470, %v8482
          %v8484 = vpop.f32.mrf.mxu0
          %8485 = vdwg.mxu0
          %8486 = vmatpush.bf16.msra.mxu0 %v8135
          %8487 = vmatpush.bf16.msra.mxu0 %v8131
          %8488 = vmatpush.bf16.msra.mxu0 %v8127
          %8489 = vmatpush.bf16.msra.mxu0 %v8123
          %8490 = vmatpush.bf16.msra.mxu0 %v8119
          %8491 = vmatpush.bf16.msra.mxu0 %v8115
          %8492 = vmatpush.bf16.msra.mxu0 %v8111
          %8493 = vmatpush.bf16.msra.mxu0 %v8107
          %8494 = vmatmul.bf16.gmra.mxu0 %v6848
          %v8495 = vpop.f32.mrf.mxu0
          %v8496 = vadd.f32 %v8483, %v8495
          %v8497 = vpop.f32.mrf.mxu0
          %8498 = vdwg.mxu0
          %8499 = vmatpush.bf16.msra.mxu0 %v7912
          %8500 = vmatpush.bf16.msra.mxu0 %v7908
          %8501 = vmatpush.bf16.msra.mxu0 %v7904
          %8502 = vmatpush.bf16.msra.mxu0 %v7900
          %8503 = vmatpush.bf16.msra.mxu0 %v7896
          %8504 = vmatpush.bf16.msra.mxu0 %v7892
          %8505 = vmatpush.bf16.msra.mxu0 %v7888
          %8506 = vmatpush.bf16.msra.mxu0 %v7884
          %8507 = vmatmul.bf16.gmra.mxu0 %v6841
          %v8508 = vpop.f32.mrf.mxu0
          %v8509 = vadd.f32 %v7108, %v8508
          %v8510 = vpop.f32.mrf.mxu0
          %8511 = vdwg.mxu0
          %8512 = vmatpush.bf16.msra.mxu0 %v7944
          %8513 = vmatpush.bf16.msra.mxu0 %v7940
          %8514 = vmatpush.bf16.msra.mxu0 %v7936
          %8515 = vmatpush.bf16.msra.mxu0 %v7932
          %8516 = vmatpush.bf16.msra.mxu0 %v7928
          %8517 = vmatpush.bf16.msra.mxu0 %v7924
          %8518 = vmatpush.bf16.msra.mxu0 %v7920
          %8519 = vmatpush.bf16.msra.mxu0 %v7916
          %8520 = vmatmul.bf16.gmra.mxu0 %v6842
          %v8521 = vpop.f32.mrf.mxu0
          %v8522 = vadd.f32 %v8509, %v8521
          %v8523 = vpop.f32.mrf.mxu0
          %8524 = vdwg.mxu0
          %8525 = vmatpush.bf16.msra.mxu0 %v7976
          %8526 = vmatpush.bf16.msra.mxu0 %v7972
          %8527 = vmatpush.bf16.msra.mxu0 %v7968
          %8528 = vmatpush.bf16.msra.mxu0 %v7964
          %8529 = vmatpush.bf16.msra.mxu0 %v7960
          %8530 = vmatpush.bf16.msra.mxu0 %v7956
          %8531 = vmatpush.bf16.msra.mxu0 %v7952
          %8532 = vmatpush.bf16.msra.mxu0 %v7948
          %8533 = vmatmul.bf16.gmra.mxu0 %v6843
          %v8534 = vpop.f32.mrf.mxu0
          %v8535 = vadd.f32 %v8522, %v8534
          %v8536 = vpop.f32.mrf.mxu0
          %8537 = vdwg.mxu0
          %8538 = vmatpush.bf16.msra.mxu0 %v8008
          %8539 = vmatpush.bf16.msra.mxu0 %v8004
          %8540 = vmatpush.bf16.msra.mxu0 %v8000
          %8541 = vmatpush.bf16.msra.mxu0 %v7996
          %8542 = vmatpush.bf16.msra.mxu0 %v7992
          %8543 = vmatpush.bf16.msra.mxu0 %v7988
          %8544 = vmatpush.bf16.msra.mxu0 %v7984
          %8545 = vmatpush.bf16.msra.mxu0 %v7980
          %8546 = vmatmul.bf16.gmra.mxu0 %v6844
          %v8547 = vpop.f32.mrf.mxu0
          %v8548 = vadd.f32 %v8535, %v8547
          %v8549 = vpop.f32.mrf.mxu0
          %8550 = vdwg.mxu0
          %8551 = vmatpush.bf16.msra.mxu0 %v8040
          %8552 = vmatpush.bf16.msra.mxu0 %v8036
          %8553 = vmatpush.bf16.msra.mxu0 %v8032
          %8554 = vmatpush.bf16.msra.mxu0 %v8028
          %8555 = vmatpush.bf16.msra.mxu0 %v8024
          %8556 = vmatpush.bf16.msra.mxu0 %v8020
          %8557 = vmatpush.bf16.msra.mxu0 %v8016
          %8558 = vmatpush.bf16.msra.mxu0 %v8012
          %8559 = vmatmul.bf16.gmra.mxu0 %v6845
          %v8560 = vpop.f32.mrf.mxu0
          %v8561 = vadd.f32 %v8548, %v8560
          %v8562 = vpop.f32.mrf.mxu0
          %8563 = vdwg.mxu0
          %8564 = vmatpush.bf16.msra.mxu0 %v8072
          %8565 = vmatpush.bf16.msra.mxu0 %v8068
          %8566 = vmatpush.bf16.msra.mxu0 %v8064
          %8567 = vmatpush.bf16.msra.mxu0 %v8060
          %8568 = vmatpush.bf16.msra.mxu0 %v8056
          %8569 = vmatpush.bf16.msra.mxu0 %v8052
          %8570 = vmatpush.bf16.msra.mxu0 %v8048
          %8571 = vmatpush.bf16.msra.mxu0 %v8044
          %8572 = vmatmul.bf16.gmra.mxu0 %v6846
          %v8573 = vpop.f32.mrf.mxu0
          %v8574 = vadd.f32 %v8561, %v8573
          %v8575 = vpop.f32.mrf.mxu0
          %8576 = vdwg.mxu0
          %8577 = vmatpush.bf16.msra.mxu0 %v8104
          %8578 = vmatpush.bf16.msra.mxu0 %v8100
          %8579 = vmatpush.bf16.msra.mxu0 %v8096
          %8580 = vmatpush.bf16.msra.mxu0 %v8092
          %8581 = vmatpush.bf16.msra.mxu0 %v8088
          %8582 = vmatpush.bf16.msra.mxu0 %v8084
          %8583 = vmatpush.bf16.msra.mxu0 %v8080
          %8584 = vmatpush.bf16.msra.mxu0 %v8076
          %8585 = vmatmul.bf16.gmra.mxu0 %v6847
          %v8586 = vpop.f32.mrf.mxu0
          %v8587 = vadd.f32 %v8574, %v8586
          %v8588 = vpop.f32.mrf.mxu0
          %8589 = vdwg.mxu0
          %8590 = vmatpush.bf16.msra.mxu0 %v8136
          %8591 = vmatpush.bf16.msra.mxu0 %v8132
          %8592 = vmatpush.bf16.msra.mxu0 %v8128
          %8593 = vmatpush.bf16.msra.mxu0 %v8124
          %8594 = vmatpush.bf16.msra.mxu0 %v8120
          %8595 = vmatpush.bf16.msra.mxu0 %v8116
          %8596 = vmatpush.bf16.msra.mxu0 %v8112
          %8597 = vmatpush.bf16.msra.mxu0 %v8108
          %8598 = vmatmul.bf16.gmra.mxu0 %v6848
          %v8599 = vpop.f32.mrf.mxu0
          %v8600 = vadd.f32 %v8587, %v8599
          %v8601 = vpop.f32.mrf.mxu0
          %8602 = vdwg.mxu0
          %8603 = vmatpush.bf16.msra.mxu0 %v7913
          %8604 = vmatpush.bf16.msra.mxu0 %v7909
          %8605 = vmatpush.bf16.msra.mxu0 %v7905
          %8606 = vmatpush.bf16.msra.mxu0 %v7901
          %8607 = vmatpush.bf16.msra.mxu0 %v7897
          %8608 = vmatpush.bf16.msra.mxu0 %v7893
          %8609 = vmatpush.bf16.msra.mxu0 %v7889
          %8610 = vmatpush.bf16.msra.mxu0 %v7885
          %8611 = vmatmul.bf16.gmra.mxu0 %v6841
          %v8612 = vpop.f32.mrf.mxu0
          %v8613 = vadd.f32 %v7109, %v8612
          %v8614 = vpop.f32.mrf.mxu0
          %8615 = vdwg.mxu0
          %8616 = vmatpush.bf16.msra.mxu0 %v7945
          %8617 = vmatpush.bf16.msra.mxu0 %v7941
          %8618 = vmatpush.bf16.msra.mxu0 %v7937
          %8619 = vmatpush.bf16.msra.mxu0 %v7933
          %8620 = vmatpush.bf16.msra.mxu0 %v7929
          %8621 = vmatpush.bf16.msra.mxu0 %v7925
          %8622 = vmatpush.bf16.msra.mxu0 %v7921
          %8623 = vmatpush.bf16.msra.mxu0 %v7917
          %8624 = vmatmul.bf16.gmra.mxu0 %v6842
          %v8625 = vpop.f32.mrf.mxu0
          %v8626 = vadd.f32 %v8613, %v8625
          %v8627 = vpop.f32.mrf.mxu0
          %8628 = vdwg.mxu0
          %8629 = vmatpush.bf16.msra.mxu0 %v7977
          %8630 = vmatpush.bf16.msra.mxu0 %v7973
          %8631 = vmatpush.bf16.msra.mxu0 %v7969
          %8632 = vmatpush.bf16.msra.mxu0 %v7965
          %8633 = vmatpush.bf16.msra.mxu0 %v7961
          %8634 = vmatpush.bf16.msra.mxu0 %v7957
          %8635 = vmatpush.bf16.msra.mxu0 %v7953
          %8636 = vmatpush.bf16.msra.mxu0 %v7949
          %8637 = vmatmul.bf16.gmra.mxu0 %v6843
          %v8638 = vpop.f32.mrf.mxu0
          %v8639 = vadd.f32 %v8626, %v8638
          %v8640 = vpop.f32.mrf.mxu0
          %8641 = vdwg.mxu0
          %8642 = vmatpush.bf16.msra.mxu0 %v8009
          %8643 = vmatpush.bf16.msra.mxu0 %v8005
          %8644 = vmatpush.bf16.msra.mxu0 %v8001
          %8645 = vmatpush.bf16.msra.mxu0 %v7997
          %8646 = vmatpush.bf16.msra.mxu0 %v7993
          %8647 = vmatpush.bf16.msra.mxu0 %v7989
          %8648 = vmatpush.bf16.msra.mxu0 %v7985
          %8649 = vmatpush.bf16.msra.mxu0 %v7981
          %8650 = vmatmul.bf16.gmra.mxu0 %v6844
          %v8651 = vpop.f32.mrf.mxu0
          %v8652 = vadd.f32 %v8639, %v8651
          %v8653 = vpop.f32.mrf.mxu0
          %8654 = vdwg.mxu0
          %8655 = vmatpush.bf16.msra.mxu0 %v8041
          %8656 = vmatpush.bf16.msra.mxu0 %v8037
          %8657 = vmatpush.bf16.msra.mxu0 %v8033
          %8658 = vmatpush.bf16.msra.mxu0 %v8029
          %8659 = vmatpush.bf16.msra.mxu0 %v8025
          %8660 = vmatpush.bf16.msra.mxu0 %v8021
          %8661 = vmatpush.bf16.msra.mxu0 %v8017
          %8662 = vmatpush.bf16.msra.mxu0 %v8013
          %8663 = vmatmul.bf16.gmra.mxu0 %v6845
          %v8664 = vpop.f32.mrf.mxu0
          %v8665 = vadd.f32 %v8652, %v8664
          %v8666 = vpop.f32.mrf.mxu0
          %8667 = vdwg.mxu0
          %8668 = vmatpush.bf16.msra.mxu0 %v8073
          %8669 = vmatpush.bf16.msra.mxu0 %v8069
          %8670 = vmatpush.bf16.msra.mxu0 %v8065
          %8671 = vmatpush.bf16.msra.mxu0 %v8061
          %8672 = vmatpush.bf16.msra.mxu0 %v8057
          %8673 = vmatpush.bf16.msra.mxu0 %v8053
          %8674 = vmatpush.bf16.msra.mxu0 %v8049
          %8675 = vmatpush.bf16.msra.mxu0 %v8045
          %8676 = vmatmul.bf16.gmra.mxu0 %v6846
          %v8677 = vpop.f32.mrf.mxu0
          %v8678 = vadd.f32 %v8665, %v8677
          %v8679 = vpop.f32.mrf.mxu0
          %8680 = vdwg.mxu0
          %8681 = vmatpush.bf16.msra.mxu0 %v8105
          %8682 = vmatpush.bf16.msra.mxu0 %v8101
          %8683 = vmatpush.bf16.msra.mxu0 %v8097
          %8684 = vmatpush.bf16.msra.mxu0 %v8093
          %8685 = vmatpush.bf16.msra.mxu0 %v8089
          %8686 = vmatpush.bf16.msra.mxu0 %v8085
          %8687 = vmatpush.bf16.msra.mxu0 %v8081
          %8688 = vmatpush.bf16.msra.mxu0 %v8077
          %8689 = vmatmul.bf16.gmra.mxu0 %v6847
          %v8690 = vpop.f32.mrf.mxu0
          %v8691 = vadd.f32 %v8678, %v8690
          %v8692 = vpop.f32.mrf.mxu0
          %8693 = vdwg.mxu0
          %8694 = vmatpush.bf16.msra.mxu0 %v8137
          %8695 = vmatpush.bf16.msra.mxu0 %v8133
          %8696 = vmatpush.bf16.msra.mxu0 %v8129
          %8697 = vmatpush.bf16.msra.mxu0 %v8125
          %8698 = vmatpush.bf16.msra.mxu0 %v8121
          %8699 = vmatpush.bf16.msra.mxu0 %v8117
          %8700 = vmatpush.bf16.msra.mxu0 %v8113
          %8701 = vmatpush.bf16.msra.mxu0 %v8109
          %8702 = vmatmul.bf16.gmra.mxu0 %v6848
          %v8703 = vpop.f32.mrf.mxu0
          %v8704 = vadd.f32 %v8691, %v8703
          %v8705 = vpop.f32.mrf.mxu0
          %8706 = vdwg.mxu0
          %8707 = vmatpush.bf16.msra.mxu0 %v7914
          %8708 = vmatpush.bf16.msra.mxu0 %v7910
          %8709 = vmatpush.bf16.msra.mxu0 %v7906
          %8710 = vmatpush.bf16.msra.mxu0 %v7902
          %8711 = vmatpush.bf16.msra.mxu0 %v7898
          %8712 = vmatpush.bf16.msra.mxu0 %v7894
          %8713 = vmatpush.bf16.msra.mxu0 %v7890
          %8714 = vmatpush.bf16.msra.mxu0 %v7886
          %8715 = vmatmul.bf16.gmra.mxu0 %v6841
          %v8716 = vpop.f32.mrf.mxu0
          %v8717 = vadd.f32 %v7110, %v8716
          %v8718 = vpop.f32.mrf.mxu0
          %8719 = vdwg.mxu0
          %8720 = vmatpush.bf16.msra.mxu0 %v7946
          %8721 = vmatpush.bf16.msra.mxu0 %v7942
          %8722 = vmatpush.bf16.msra.mxu0 %v7938
          %8723 = vmatpush.bf16.msra.mxu0 %v7934
          %8724 = vmatpush.bf16.msra.mxu0 %v7930
          %8725 = vmatpush.bf16.msra.mxu0 %v7926
          %8726 = vmatpush.bf16.msra.mxu0 %v7922
          %8727 = vmatpush.bf16.msra.mxu0 %v7918
          %8728 = vmatmul.bf16.gmra.mxu0 %v6842
          %v8729 = vpop.f32.mrf.mxu0
          %v8730 = vadd.f32 %v8717, %v8729
          %v8731 = vpop.f32.mrf.mxu0
          %8732 = vdwg.mxu0
          %8733 = vmatpush.bf16.msra.mxu0 %v7978
          %8734 = vmatpush.bf16.msra.mxu0 %v7974
          %8735 = vmatpush.bf16.msra.mxu0 %v7970
          %8736 = vmatpush.bf16.msra.mxu0 %v7966
          %8737 = vmatpush.bf16.msra.mxu0 %v7962
          %8738 = vmatpush.bf16.msra.mxu0 %v7958
          %8739 = vmatpush.bf16.msra.mxu0 %v7954
          %8740 = vmatpush.bf16.msra.mxu0 %v7950
          %8741 = vmatmul.bf16.gmra.mxu0 %v6843
          %v8742 = vpop.f32.mrf.mxu0
          %v8743 = vadd.f32 %v8730, %v8742
          %v8744 = vpop.f32.mrf.mxu0
          %8745 = vdwg.mxu0
          %8746 = vmatpush.bf16.msra.mxu0 %v8010
          %8747 = vmatpush.bf16.msra.mxu0 %v8006
          %8748 = vmatpush.bf16.msra.mxu0 %v8002
          %8749 = vmatpush.bf16.msra.mxu0 %v7998
          %8750 = vmatpush.bf16.msra.mxu0 %v7994
          %8751 = vmatpush.bf16.msra.mxu0 %v7990
          %8752 = vmatpush.bf16.msra.mxu0 %v7986
          %8753 = vmatpush.bf16.msra.mxu0 %v7982
          %8754 = vmatmul.bf16.gmra.mxu0 %v6844
          %v8755 = vpop.f32.mrf.mxu0
          %v8756 = vadd.f32 %v8743, %v8755
          %v8757 = vpop.f32.mrf.mxu0
          %8758 = vdwg.mxu0
          %8759 = vmatpush.bf16.msra.mxu0 %v8042
          %8760 = vmatpush.bf16.msra.mxu0 %v8038
          %8761 = vmatpush.bf16.msra.mxu0 %v8034
          %8762 = vmatpush.bf16.msra.mxu0 %v8030
          %8763 = vmatpush.bf16.msra.mxu0 %v8026
          %8764 = vmatpush.bf16.msra.mxu0 %v8022
          %8765 = vmatpush.bf16.msra.mxu0 %v8018
          %8766 = vmatpush.bf16.msra.mxu0 %v8014
          %8767 = vmatmul.bf16.gmra.mxu0 %v6845
          %v8768 = vpop.f32.mrf.mxu0
          %v8769 = vadd.f32 %v8756, %v8768
          %v8770 = vpop.f32.mrf.mxu0
          %8771 = vdwg.mxu0
          %8772 = vmatpush.bf16.msra.mxu0 %v8074
          %8773 = vmatpush.bf16.msra.mxu0 %v8070
          %8774 = vmatpush.bf16.msra.mxu0 %v8066
          %8775 = vmatpush.bf16.msra.mxu0 %v8062
          %8776 = vmatpush.bf16.msra.mxu0 %v8058
          %8777 = vmatpush.bf16.msra.mxu0 %v8054
          %8778 = vmatpush.bf16.msra.mxu0 %v8050
          %8779 = vmatpush.bf16.msra.mxu0 %v8046
          %8780 = vmatmul.bf16.gmra.mxu0 %v6846
          %v8781 = vpop.f32.mrf.mxu0
          %v8782 = vadd.f32 %v8769, %v8781
          %v8783 = vpop.f32.mrf.mxu0
          %8784 = vdwg.mxu0
          %8785 = vmatpush.bf16.msra.mxu0 %v8106
          %8786 = vmatpush.bf16.msra.mxu0 %v8102
          %8787 = vmatpush.bf16.msra.mxu0 %v8098
          %8788 = vmatpush.bf16.msra.mxu0 %v8094
          %8789 = vmatpush.bf16.msra.mxu0 %v8090
          %8790 = vmatpush.bf16.msra.mxu0 %v8086
          %8791 = vmatpush.bf16.msra.mxu0 %v8082
          %8792 = vmatpush.bf16.msra.mxu0 %v8078
          %8793 = vmatmul.bf16.gmra.mxu0 %v6847
          %v8794 = vpop.f32.mrf.mxu0
          %v8795 = vadd.f32 %v8782, %v8794
          %v8796 = vpop.f32.mrf.mxu0
          %8797 = vdwg.mxu0
          %8798 = vmatpush.bf16.msra.mxu0 %v8138
          %8799 = vmatpush.bf16.msra.mxu0 %v8134
          %8800 = vmatpush.bf16.msra.mxu0 %v8130
          %8801 = vmatpush.bf16.msra.mxu0 %v8126
          %8802 = vmatpush.bf16.msra.mxu0 %v8122
          %8803 = vmatpush.bf16.msra.mxu0 %v8118
          %8804 = vmatpush.bf16.msra.mxu0 %v8114
          %8805 = vmatpush.bf16.msra.mxu0 %v8110
          %8806 = vmatmul.bf16.gmra.mxu0 %v6848
          %v8807 = vpop.f32.mrf.mxu0
          %v8808 = vadd.f32 %v8795, %v8807
          %v8809 = vpop.f32.mrf.mxu0
          %8810 = vdwg.mxu0
          %v8811 = vmax.f32 %v8496, 0.0
          %v8812 = vmax.f32 %v8600, 0.0
          %v8813 = vmax.f32 %v8704, 0.0
          %v8814 = vmax.f32 %v8808, 0.0
          %v8815 = vrot.slane %v8811, 4
          %v8816 = vadd.f32 %v8811, %v8815
          %v8817 = vrot.slane %v8816, 2
          %v8818 = vadd.f32 %v8816, %v8817
          %v8819 = vrot.slane %v8818, 1
          %v8820 = vadd.f32 %v8818, %v8819
          %v8821 = vrot.slane %v8812, 4
          %v8822 = vadd.f32 %v8812, %v8821
          %v8823 = vrot.slane %v8822, 2
          %v8824 = vadd.f32 %v8822, %v8823
          %v8825 = vrot.slane %v8824, 1
          %v8826 = vadd.f32 %v8824, %v8825
          %v8827 = vrot.slane %v8813, 4
          %v8828 = vadd.f32 %v8813, %v8827
          %v8829 = vrot.slane %v8828, 2
          %v8830 = vadd.f32 %v8828, %v8829
          %v8831 = vrot.slane %v8830, 1
          %v8832 = vadd.f32 %v8830, %v8831
          %v8833 = vrot.slane %v8814, 4
          %v8834 = vadd.f32 %v8814, %v8833
          %v8835 = vrot.slane %v8834, 2
          %v8836 = vadd.f32 %v8834, %v8835
          %v8837 = vrot.slane %v8836, 1
          %v8838 = vadd.f32 %v8836, %v8837
          %v8839 = vmul.f32 %v8820, %v6612
          %v8840 = vmul.f32 %v8826, %v6612
          %v8841 = vmul.f32 %v8832, %v6612
          %v8842 = vmul.f32 %v8838, %v6612
          %v8843 = vsub.f32 %v8811, %v8839
          %v8844 = vsub.f32 %v8812, %v8840
          %v8845 = vsub.f32 %v8813, %v8841
          %v8846 = vsub.f32 %v8814, %v8842
          %v8847 = vmul.f32 %v8843, %v8843
          %v8848 = vmul.f32 %v8844, %v8844
          %v8849 = vmul.f32 %v8845, %v8845
          %v8850 = vmul.f32 %v8846, %v8846
          %v8851 = vrot.slane %v8847, 4
          %v8852 = vadd.f32 %v8847, %v8851
          %v8853 = vrot.slane %v8852, 2
          %v8854 = vadd.f32 %v8852, %v8853
          %v8855 = vrot.slane %v8854, 1
          %v8856 = vadd.f32 %v8854, %v8855
          %v8857 = vrot.slane %v8848, 4
          %v8858 = vadd.f32 %v8848, %v8857
          %v8859 = vrot.slane %v8858, 2
          %v8860 = vadd.f32 %v8858, %v8859
          %v8861 = vrot.slane %v8860, 1
          %v8862 = vadd.f32 %v8860, %v8861
          %v8863 = vrot.slane %v8849, 4
          %v8864 = vadd.f32 %v8849, %v8863
          %v8865 = vrot.slane %v8864, 2
          %v8866 = vadd.f32 %v8864, %v8865
          %v8867 = vrot.slane %v8866, 1
          %v8868 = vadd.f32 %v8866, %v8867
          %v8869 = vrot.slane %v8850, 4
          %v8870 = vadd.f32 %v8850, %v8869
          %v8871 = vrot.slane %v8870, 2
          %v8872 = vadd.f32 %v8870, %v8871
          %v8873 = vrot.slane %v8872, 1
          %v8874 = vadd.f32 %v8872, %v8873
          %v8875 = vmul.f32 %v8856, %v6612
          %v8876 = vmul.f32 %v8862, %v6612
          %v8877 = vmul.f32 %v8868, %v6612
          %v8878 = vmul.f32 %v8874, %v6612
          %v8879 = vadd.f32 %v8875, 1e-05
          %v8880 = vadd.f32 %v8876, 1e-05
          %v8881 = vadd.f32 %v8877, 1e-05
          %v8882 = vadd.f32 %v8878, 1e-05
          %v8883 = vrsqrt.pop %v8879
          %v8884 = vmul.f32 %v8883, %v8879
          %v8885 = vmul.f32 %v8884, %v8883
          %v8886 = vmul.f32 0.5, %v8885
          %v8887 = vsub.f32 1.5, %v8886
          %v8888 = vmul.f32 %v8883, %v8887
          %vm8889 = vweird.f32 %v8879
          %vm8890 = vweird.f32 %v8883
          %vm8891 = vmor %vm8889, %vm8890
          %v8892 = vsel %vm8891, %v8883, %v8888
          %v8893 = vrsqrt.pop %v8880
          %v8894 = vmul.f32 %v8893, %v8880
          %v8895 = vmul.f32 %v8894, %v8893
          %v8896 = vmul.f32 0.5, %v8895
          %v8897 = vsub.f32 1.5, %v8896
          %v8898 = vmul.f32 %v8893, %v8897
          %vm8899 = vweird.f32 %v8880
          %vm8900 = vweird.f32 %v8893
          %vm8901 = vmor %vm8899, %vm8900
          %v8902 = vsel %vm8901, %v8893, %v8898
          %v8903 = vrsqrt.pop %v8881
          %v8904 = vmul.f32 %v8903, %v8881
          %v8905 = vmul.f32 %v8904, %v8903
          %v8906 = vmul.f32 0.5, %v8905
          %v8907 = vsub.f32 1.5, %v8906
          %v8908 = vmul.f32 %v8903, %v8907
          %vm8909 = vweird.f32 %v8881
          %vm8910 = vweird.f32 %v8903
          %vm8911 = vmor %vm8909, %vm8910
          %v8912 = vsel %vm8911, %v8903, %v8908
          %v8913 = vrsqrt.pop %v8882
          %v8914 = vmul.f32 %v8913, %v8882
          %v8915 = vmul.f32 %v8914, %v8913
          %v8916 = vmul.f32 0.5, %v8915
          %v8917 = vsub.f32 1.5, %v8916
          %v8918 = vmul.f32 %v8913, %v8917
          %vm8919 = vweird.f32 %v8882
          %vm8920 = vweird.f32 %v8913
          %vm8921 = vmor %vm8919, %vm8920
          %v8922 = vsel %vm8921, %v8913, %v8918
          %v8923 = vmul.f32 %v8843, %v8892
          %v8924 = vmul.f32 %v8844, %v8902
          %v8925 = vmul.f32 %v8845, %v8912
          %v8926 = vmul.f32 %v8846, %v8922
          %v8927 = vld [vmem:[#allocation15] sm:$0xf]
          %v8929 = vperm.slane %v8927, 0
          %v8930 = vperm.slane %v8927, 1
          %v8931 = vperm.slane %v8927, 2
          %v8932 = vperm.slane %v8927, 3
          %v8937 = vmul.f32 %v8923, %v8929
          %v8938 = vmul.f32 %v8924, %v8930
          %v8939 = vmul.f32 %v8925, %v8931
          %v8940 = vmul.f32 %v8926, %v8932
          %v8941 = vld [vmem:[#allocation17] sm:$0xf]
          %v8943 = vperm.slane %v8941, 0
          %v8944 = vperm.slane %v8941, 1
          %v8945 = vperm.slane %v8941, 2
          %v8946 = vperm.slane %v8941, 3
          %v8951 = vadd.f32 %v8937, %v8943
          %v8952 = vadd.f32 %v8938, %v8944
          %v8953 = vadd.f32 %v8939, %v8945
          %v8954 = vadd.f32 %v8940, %v8946
          %v8955 = vpack.c.bf16 %v8951, %v8951
          %v8956 = vpack.c.bf16 %v8952, %v8952
          %v8957 = vpack.c.bf16 %v8953, %v8953
          %v8958 = vpack.c.bf16 %v8954, %v8954
          %v8959 = vld [vmem:[#allocation18] sm:$0xf]
          %v8960 = vld [vmem:[#allocation18 + $0x4] sm:$0xf]
          %v8961 = vld [vmem:[#allocation18 + $0x8] sm:$0xf]
          %v8962 = vld [vmem:[#allocation18 + $0xc] sm:$0xf]
          %v8963 = vld [vmem:[#allocation18 + $0x10] sm:$0xf]
          %v8964 = vld [vmem:[#allocation18 + $0x14] sm:$0xf]
          %v8965 = vld [vmem:[#allocation18 + $0x18] sm:$0xf]
          %v8966 = vld [vmem:[#allocation18 + $0x1c] sm:$0xf]
          %v8967 = vld [vmem:[#allocation18 + $0x20] sm:$0xf]
          %v8968 = vld [vmem:[#allocation18 + $0x24] sm:$0xf]
          %v8969 = vld [vmem:[#allocation18 + $0x28] sm:$0xf]
          %v8970 = vld [vmem:[#allocation18 + $0x2c] sm:$0xf]
          %v8971 = vld [vmem:[#allocation18 + $0x30] sm:$0xf]
          %v8972 = vld [vmem:[#allocation18 + $0x34] sm:$0xf]
          %v8973 = vld [vmem:[#allocation18 + $0x38] sm:$0xf]
          %v8974 = vld [vmem:[#allocation18 + $0x3c] sm:$0xf]
          %v8975 = vld [vmem:[#allocation18 + $0x40] sm:$0xf]
          %v8976 = vld [vmem:[#allocation18 + $0x44] sm:$0xf]
          %v8977 = vld [vmem:[#allocation18 + $0x48] sm:$0xf]
          %v8978 = vld [vmem:[#allocation18 + $0x4c] sm:$0xf]
          %v8979 = vld [vmem:[#allocation18 + $0x50] sm:$0xf]
          %v8980 = vld [vmem:[#allocation18 + $0x54] sm:$0xf]
          %v8981 = vld [vmem:[#allocation18 + $0x58] sm:$0xf]
          %v8982 = vld [vmem:[#allocation18 + $0x5c] sm:$0xf]
          %v8983 = vld [vmem:[#allocation18 + $0x60] sm:$0xf]
          %v8984 = vld [vmem:[#allocation18 + $0x64] sm:$0xf]
          %v8985 = vld [vmem:[#allocation18 + $0x68] sm:$0xf]
          %v8986 = vld [vmem:[#allocation18 + $0x6c] sm:$0xf]
          %v8987 = vld [vmem:[#allocation18 + $0x70] sm:$0xf]
          %v8988 = vld [vmem:[#allocation18 + $0x74] sm:$0xf]
          %v8989 = vld [vmem:[#allocation18 + $0x78] sm:$0xf]
          %v8990 = vld [vmem:[#allocation18 + $0x7c] sm:$0xf]
          %v8991 = vld [vmem:[#allocation18 + $0x80] sm:$0xf]
          %v8992 = vld [vmem:[#allocation18 + $0x84] sm:$0xf]
          %v8993 = vld [vmem:[#allocation18 + $0x88] sm:$0xf]
          %v8994 = vld [vmem:[#allocation18 + $0x8c] sm:$0xf]
          %v8995 = vld [vmem:[#allocation18 + $0x90] sm:$0xf]
          %v8996 = vld [vmem:[#allocation18 + $0x94] sm:$0xf]
          %v8997 = vld [vmem:[#allocation18 + $0x98] sm:$0xf]
          %v8998 = vld [vmem:[#allocation18 + $0x9c] sm:$0xf]
          %v8999 = vld [vmem:[#allocation18 + $0xa0] sm:$0xf]
          %v9000 = vld [vmem:[#allocation18 + $0xa4] sm:$0xf]
          %v9001 = vld [vmem:[#allocation18 + $0xa8] sm:$0xf]
          %v9002 = vld [vmem:[#allocation18 + $0xac] sm:$0xf]
          %v9003 = vld [vmem:[#allocation18 + $0xb0] sm:$0xf]
          %v9004 = vld [vmem:[#allocation18 + $0xb4] sm:$0xf]
          %v9005 = vld [vmem:[#allocation18 + $0xb8] sm:$0xf]
          %v9006 = vld [vmem:[#allocation18 + $0xbc] sm:$0xf]
          %v9007 = vld [vmem:[#allocation18 + $0xc0] sm:$0xf]
          %v9008 = vld [vmem:[#allocation18 + $0xc4] sm:$0xf]
          %v9009 = vld [vmem:[#allocation18 + $0xc8] sm:$0xf]
          %v9010 = vld [vmem:[#allocation18 + $0xcc] sm:$0xf]
          %v9011 = vld [vmem:[#allocation18 + $0xd0] sm:$0xf]
          %v9012 = vld [vmem:[#allocation18 + $0xd4] sm:$0xf]
          %v9013 = vld [vmem:[#allocation18 + $0xd8] sm:$0xf]
          %v9014 = vld [vmem:[#allocation18 + $0xdc] sm:$0xf]
          %v9015 = vld [vmem:[#allocation18 + $0xe0] sm:$0xf]
          %v9016 = vld [vmem:[#allocation18 + $0xe4] sm:$0xf]
          %v9017 = vld [vmem:[#allocation18 + $0xe8] sm:$0xf]
          %v9018 = vld [vmem:[#allocation18 + $0xec] sm:$0xf]
          %v9019 = vld [vmem:[#allocation18 + $0xf0] sm:$0xf]
          %v9020 = vld [vmem:[#allocation18 + $0xf4] sm:$0xf]
          %v9021 = vld [vmem:[#allocation18 + $0xf8] sm:$0xf]
          %v9022 = vld [vmem:[#allocation18 + $0xfc] sm:$0xf]
          %v9023 = vld [vmem:[#allocation20] sm:$0x1]
          %v9025 = vperm.slane %v9023, 0
          %v9091 = vunpack.c.l.b16 %v8959
          %v9092 = vunpack.c.l.b16 %v8960
          %v9093 = vunpack.c.l.b16 %v8961
          %v9094 = vunpack.c.l.b16 %v8962
          %v9095 = vunpack.c.l.b16 %v8963
          %v9096 = vunpack.c.l.b16 %v8964
          %v9097 = vunpack.c.l.b16 %v8965
          %v9098 = vunpack.c.l.b16 %v8966
          %v9099 = vunpack.c.l.b16 %v8967
          %v9100 = vunpack.c.l.b16 %v8968
          %v9101 = vunpack.c.l.b16 %v8969
          %v9102 = vunpack.c.l.b16 %v8970
          %v9103 = vunpack.c.l.b16 %v8971
          %v9104 = vunpack.c.l.b16 %v8972
          %v9105 = vunpack.c.l.b16 %v8973
          %v9106 = vunpack.c.l.b16 %v8974
          %v9107 = vunpack.c.l.b16 %v8975
          %v9108 = vunpack.c.l.b16 %v8976
          %v9109 = vunpack.c.l.b16 %v8977
          %v9110 = vunpack.c.l.b16 %v8978
          %v9111 = vunpack.c.l.b16 %v8979
          %v9112 = vunpack.c.l.b16 %v8980
          %v9113 = vunpack.c.l.b16 %v8981
          %v9114 = vunpack.c.l.b16 %v8982
          %v9115 = vunpack.c.l.b16 %v8983
          %v9116 = vunpack.c.l.b16 %v8984
          %v9117 = vunpack.c.l.b16 %v8985
          %v9118 = vunpack.c.l.b16 %v8986
          %v9119 = vunpack.c.l.b16 %v8987
          %v9120 = vunpack.c.l.b16 %v8988
          %v9121 = vunpack.c.l.b16 %v8989
          %v9122 = vunpack.c.l.b16 %v8990
          %v9123 = vunpack.c.l.b16 %v8991
          %v9124 = vunpack.c.l.b16 %v8992
          %v9125 = vunpack.c.l.b16 %v8993
          %v9126 = vunpack.c.l.b16 %v8994
          %v9127 = vunpack.c.l.b16 %v8995
          %v9128 = vunpack.c.l.b16 %v8996
          %v9129 = vunpack.c.l.b16 %v8997
          %v9130 = vunpack.c.l.b16 %v8998
          %v9131 = vunpack.c.l.b16 %v8999
          %v9132 = vunpack.c.l.b16 %v9000
          %v9133 = vunpack.c.l.b16 %v9001
          %v9134 = vunpack.c.l.b16 %v9002
          %v9135 = vunpack.c.l.b16 %v9003
          %v9136 = vunpack.c.l.b16 %v9004
          %v9137 = vunpack.c.l.b16 %v9005
          %v9138 = vunpack.c.l.b16 %v9006
          %v9139 = vunpack.c.l.b16 %v9007
          %v9140 = vunpack.c.l.b16 %v9008
          %v9141 = vunpack.c.l.b16 %v9009
          %v9142 = vunpack.c.l.b16 %v9010
          %v9143 = vunpack.c.l.b16 %v9011
          %v9144 = vunpack.c.l.b16 %v9012
          %v9145 = vunpack.c.l.b16 %v9013
          %v9146 = vunpack.c.l.b16 %v9014
          %v9147 = vunpack.c.l.b16 %v9015
          %v9148 = vunpack.c.l.b16 %v9016
          %v9149 = vunpack.c.l.b16 %v9017
          %v9150 = vunpack.c.l.b16 %v9018
          %v9151 = vunpack.c.l.b16 %v9019
          %v9152 = vunpack.c.l.b16 %v9020
          %v9153 = vunpack.c.l.b16 %v9021
          %v9154 = vunpack.c.l.b16 %v9022
          %v9155 = vpack.c.b16 %v9092, %v9091
          %v9156 = vpack.c.b16 %v9094, %v9093
          %v9157 = vpack.c.b16 %v9096, %v9095
          %v9158 = vpack.c.b16 %v9098, %v9097
          %v9159 = vpack.c.b16 %v9100, %v9099
          %v9160 = vpack.c.b16 %v9102, %v9101
          %v9161 = vpack.c.b16 %v9104, %v9103
          %v9162 = vpack.c.b16 %v9106, %v9105
          %v9163 = vpack.c.b16 %v9108, %v9107
          %v9164 = vpack.c.b16 %v9110, %v9109
          %v9165 = vpack.c.b16 %v9112, %v9111
          %v9166 = vpack.c.b16 %v9114, %v9113
          %v9167 = vpack.c.b16 %v9116, %v9115
          %v9168 = vpack.c.b16 %v9118, %v9117
          %v9169 = vpack.c.b16 %v9120, %v9119
          %v9170 = vpack.c.b16 %v9122, %v9121
          %v9171 = vpack.c.b16 %v9124, %v9123
          %v9172 = vpack.c.b16 %v9126, %v9125
          %v9173 = vpack.c.b16 %v9128, %v9127
          %v9174 = vpack.c.b16 %v9130, %v9129
          %v9175 = vpack.c.b16 %v9132, %v9131
          %v9176 = vpack.c.b16 %v9134, %v9133
          %v9177 = vpack.c.b16 %v9136, %v9135
          %v9178 = vpack.c.b16 %v9138, %v9137
          %v9179 = vpack.c.b16 %v9140, %v9139
          %v9180 = vpack.c.b16 %v9142, %v9141
          %v9181 = vpack.c.b16 %v9144, %v9143
          %v9182 = vpack.c.b16 %v9146, %v9145
          %v9183 = vpack.c.b16 %v9148, %v9147
          %v9184 = vpack.c.b16 %v9150, %v9149
          %v9185 = vpack.c.b16 %v9152, %v9151
          %v9186 = vpack.c.b16 %v9154, %v9153
          %9219 = vmatpush.bf16.msra.mxu0 %v9162
          %9220 = vmatpush.bf16.msra.mxu0 %v9161
          %9221 = vmatpush.bf16.msra.mxu0 %v9160
          %9222 = vmatpush.bf16.msra.mxu0 %v9159
          %9223 = vmatpush.bf16.msra.mxu0 %v9158
          %9224 = vmatpush.bf16.msra.mxu0 %v9157
          %9225 = vmatpush.bf16.msra.mxu0 %v9156
          %9226 = vmatpush.bf16.msra.mxu0 %v9155
          %9227 = vmatmul.bf16.gmra.mxu0 %v8955
          %v9228 = vpop.f32.mrf.mxu0
          %v9229 = vadd.f32 %v9025, %v9228
          %v9230 = vpop.f32.mrf.mxu0
          %9231 = vdwg.mxu0
          %9232 = vmatpush.bf16.msra.mxu0 %v9170
          %9233 = vmatpush.bf16.msra.mxu0 %v9169
          %9234 = vmatpush.bf16.msra.mxu0 %v9168
          %9235 = vmatpush.bf16.msra.mxu0 %v9167
          %9236 = vmatpush.bf16.msra.mxu0 %v9166
          %9237 = vmatpush.bf16.msra.mxu0 %v9165
          %9238 = vmatpush.bf16.msra.mxu0 %v9164
          %9239 = vmatpush.bf16.msra.mxu0 %v9163
          %9240 = vmatmul.bf16.gmra.mxu0 %v8956
          %v9241 = vpop.f32.mrf.mxu0
          %v9242 = vadd.f32 %v9229, %v9241
          %v9243 = vpop.f32.mrf.mxu0
          %9244 = vdwg.mxu0
          %9245 = vmatpush.bf16.msra.mxu0 %v9178
          %9246 = vmatpush.bf16.msra.mxu0 %v9177
          %9247 = vmatpush.bf16.msra.mxu0 %v9176
          %9248 = vmatpush.bf16.msra.mxu0 %v9175
          %9249 = vmatpush.bf16.msra.mxu0 %v9174
          %9250 = vmatpush.bf16.msra.mxu0 %v9173
          %9251 = vmatpush.bf16.msra.mxu0 %v9172
          %9252 = vmatpush.bf16.msra.mxu0 %v9171
          %9253 = vmatmul.bf16.gmra.mxu0 %v8957
          %v9254 = vpop.f32.mrf.mxu0
          %v9255 = vadd.f32 %v9242, %v9254
          %v9256 = vpop.f32.mrf.mxu0
          %9257 = vdwg.mxu0
          %9258 = vmatpush.bf16.msra.mxu0 %v9186
          %9259 = vmatpush.bf16.msra.mxu0 %v9185
          %9260 = vmatpush.bf16.msra.mxu0 %v9184
          %9261 = vmatpush.bf16.msra.mxu0 %v9183
          %9262 = vmatpush.bf16.msra.mxu0 %v9182
          %9263 = vmatpush.bf16.msra.mxu0 %v9181
          %9264 = vmatpush.bf16.msra.mxu0 %v9180
          %9265 = vmatpush.bf16.msra.mxu0 %v9179
          %9266 = vmatmul.bf16.gmra.mxu0 %v8958
          %v9267 = vpop.f32.mrf.mxu0
          %v9268 = vadd.f32 %v9255, %v9267
          %v9269 = vpop.f32.mrf.mxu0
          %9270 = vdwg.mxu0
          %9271 = vst [vmem:[#allocation21] sm:$0xff] %v9268
        $region116: #{tpu_custom_call.1} parent=63 // pred_fallthru
          _
        // Predicated region
        $region117: #{tpu_custom_call.1} parent=63 // pred_check
          %p9272 = pneg %p287
        $region118: #{tpu_custom_call.1} parent=63 // pred_check_branch
          %9274 = sbr.rel (%p9272) target = $region120
        $region119: #{tpu_custom_call.1} parent=63 // pred_region
          %9276 = vsyncadd [#allocation5], 0
          %s9278 = sshll.u32 [#allocation21], 4
          %s9279 = int_to_ptr.vmem [resolvable:$true] %s9278
          %s9280 = sshll.u32 %s11, 4
          %s9281 = int_to_ptr.hbm [resolvable:$true] %s9280
          %9283 = dma.vmem_to_hbm [thread:$0]  %s9279, 128, %s9281, [#allocation5]
        $region120: #{tpu_custom_call.1} parent=63 // pred_fallthru
          _
        // Predicated region
        $region121: #{tpu_custom_call.1} parent=63 // pred_check
          %p9284 = pneg %p287
        $region122: #{tpu_custom_call.1} parent=63 // pred_check_branch
          %9286 = sbr.rel (%p9284) target = $region124
        $region123: #{tpu_custom_call.1} parent=63 // pred_region
          %9288 = dma.done [#allocation5], 128
        $region124: #{tpu_custom_call.1} parent=63 // pred_fallthru
          _
      $region64: #{tpu_custom_call.1} parent=5 // pred_fallthru
        _
      %p9289 = scmp.le.s32.totalorder 2, %s28
      // Predicated region
      $region125: #{tpu_custom_call.1} parent=5 // pred_check
        %p9290 = pneg %p9289
      $region126: #{tpu_custom_call.1} parent=5 // pred_check_branch
        %9292 = sbr.rel (%p9290) target = $region128
      $region127: #{tpu_custom_call.1} parent=5 // pred_region
        %s9293 = ssub.s32 %s28, 2
      $region128: #{tpu_custom_call.1} parent=5 // pred_fallthru
        _
    $region6: #{tpu_custom_call.1} parent=1 // loop_footer
      %s32 = sadd.s32 1, %s28
    $region7: #{tpu_custom_call.1} parent=1 // loop_footer_branch
      %27 = sbr.rel target = $region3
    $region8: #{tpu_custom_call.1} parent=1 // loop_exit
      _
    %9294 = vsyncpa [#allocation4], 1
    %s9295 = scalar_lea.sflag [#allocation4], 1
    %9296 = vsyncpa %s9295, 1
    %9297 = vsyncpa [#allocation7], 1
    %s9298 = scalar_lea.sflag [#allocation7], 1
    %9299 = vsyncpa %s9298, 1
    %9300 = vsyncpa [#allocation10], 1
    %9301 = vsyncpa [#allocation13], 1
    %9302 = vsyncpa [#allocation16], 1
    %9303 = vsyncpa [#allocation19], 1
    %9304 = vsyncpa [#allocation5], 1
    %s9305 = scalar_lea.sflag [#allocation5], 1
    %9306 = vsyncpa %s9305, 1

</llo_original>
